<compile_context>
chip_gen: v5e
topology: v5e:2x2
jax: 0.10.0
libtpu: 0.0.40
codegen_flags: <defaults>
</compile_context>

<pallas_src>
import functools

import jax
import jax.numpy as jnp
from jax import lax
from jax.experimental import pallas as pl
from jax.experimental.pallas import tpu as pltpu

_EPS = 1e-5  # PyTorch InstanceNorm2d default


def _stage(act3, w_ref, xp_ref, patches_ref, *, C, H, W, apply_relu):
    """One ReflectionPad(1) + Conv3x3 + InstanceNorm (+ ReLU) stage.

    act3        : (H, W, C) f32 value (channels minor)
    w_ref       : (9*C, C) ref, row = (kh*3+kw)*C + ci, col = co
    xp_ref      : (H+2, W+2, C) f32 VMEM scratch (reflection-padded activation)
    patches_ref : (H*W, 9*C) f32 VMEM scratch (im2col matrix)
    """
    Hp, Wp = H + 2, W + 2

    # --- reflection pad: interior + halo written directly in VMEM ----------
    xp_ref[1:H + 1, 1:W + 1, :] = act3
    xp_ref[0:1, 1:W + 1, :] = act3[1:2, :, :]                  # top row  <- row 1
    xp_ref[H + 1:Hp, 1:W + 1, :] = act3[H - 2:H - 1, :, :]     # bottom   <- row H-2
    left = xp_ref[:, 2:3, :]                                   # padded col 2 == orig col 1
    xp_ref[:, 0:1, :] = left
    right = xp_ref[:, W - 1:W, :]                              # padded col W-1 == orig col W-2
    xp_ref[:, W + 1:Wp, :] = right

    # --- im2col into scratch, then one MXU matmul ---------------------------
    for kh in range(3):
        for kw in range(3):
            tap = kh * 3 + kw
            patches_ref[:, tap * C:(tap + 1) * C] = (
                xp_ref[kh:kh + H, kw:kw + W, :].reshape(H * W, C))
    y = jnp.dot(patches_ref[...], w_ref[...],
                preferred_element_type=jnp.float32)            # (H*W, C)
    # NOTE: conv bias omitted on purpose — a per-channel constant is exactly
    # cancelled by the non-affine InstanceNorm mean subtraction.

    # --- InstanceNorm2d (no affine), biased variance ------------------------
    mean = jnp.mean(y, axis=0, keepdims=True)                  # (1, C)
    cent = y - mean
    var = jnp.mean(cent * cent, axis=0, keepdims=True)
    y = cent * lax.rsqrt(var + _EPS)
    if apply_relu:
        y = jnp.maximum(y, 0.0)
    return y.reshape(H, W, C)


def _fused_kernel(x_ref, w1_ref, w2_ref, o_ref, xp_ref, patches_ref,
                  *, C, H, W, res_num):
    """One batch element: the whole res_num loop, activations resident in VMEM."""
    act3 = x_ref[0].astype(jnp.float32)                        # (H, W, C)
    for _ in range(res_num):  # static, small -> fully unrolled for the scheduler
        act3 = _stage(act3, w1_ref, xp_ref, patches_ref,
                      C=C, H=H, W=W, apply_relu=True)
        act3 = _stage(act3, w2_ref, xp_ref, patches_ref,
                      C=C, H=H, W=W, apply_relu=False)
    o_ref[0] = act3.astype(o_ref.dtype)


@functools.partial(jax.jit, static_argnums=2)
def resblock_forward(x_nchw, params, res_num):
    """Pallas-backed forward of `resblock` (weights shared across iterations)."""
    (w1, _b1), (w2, _b2) = params  # biases unused: cancelled by InstanceNorm
    N, C, H, W = x_nchw.shape

    # Layout conversion exactly once at entry / exit.
    x_nhwc = jnp.transpose(x_nchw, (0, 2, 3, 1))               # (N, H, W, C)
    # (O, I, KH, KW) -> (KH, KW, I, O) -> (9*Cin, Cout)
    wmat1 = jnp.transpose(w1, (2, 3, 1, 0)).reshape(9 * C, C)
    wmat2 = jnp.transpose(w2, (2, 3, 1, 0)).reshape(9 * C, C)

    kernel = functools.partial(_fused_kernel, C=C, H=H, W=W, res_num=res_num)

    out_nhwc = pl.pallas_call(
        kernel,
        out_shape=jax.ShapeDtypeStruct((N, H, W, C), x_nchw.dtype),
        grid_spec=pltpu.PrefetchScalarGridSpec(
            num_scalar_prefetch=0,
            grid=(N,),
            in_specs=[
                pl.BlockSpec((1, H, W, C), lambda n: (n, 0, 0, 0)),
                pl.BlockSpec((9 * C, C), lambda n: (0, 0)),
                pl.BlockSpec((9 * C, C), lambda n: (0, 0)),
            ],
            out_specs=pl.BlockSpec((1, H, W, C), lambda n: (n, 0, 0, 0)),
            scratch_shapes=[
                pltpu.VMEM((H + 2, W + 2, C), jnp.float32),    # padded activation
                pltpu.VMEM((H * W, 9 * C), jnp.float32),       # im2col patches
            ],
        ),
        compiler_params=pltpu.CompilerParams(
            # batch elements are independent -> shard across TCs on v7x
            dimension_semantics=("parallel",)),
        # VMEM use here is tiny; for large H/W add halo H-tiling and an
        # explicit vmem_limit_bytes (v7x: 64 MiB physical, v5e: 16 MiB scoped).
    )(x_nhwc, wmat1, wmat2)

    return jnp.transpose(out_nhwc, (0, 3, 1, 2))               # back to NCHW


# ---------------- pure-JAX reference (for verification only) ----------------
def _reflect_pad1_nchw(x):
    return jnp.pad(x, ((0, 0), (0, 0), (1, 1), (1, 1)), mode="reflect")


def _ref_block(x, w, b, apply_relu):
    xp = _reflect_pad1_nchw(x)
    y = lax.conv_general_dilated(
        xp, w, window_strides=(1, 1), padding="VALID",
        dimension_numbers=("NCHW", "OIHW", "NCHW"))
    y = y + b[None, :, None, None]
    mean = y.mean(axis=(2, 3), keepdims=True)
    var = ((y - mean) ** 2).mean(axis=(2, 3), keepdims=True)
    y = (y - mean) / jnp.sqrt(var + _EPS)
    if apply_relu:
        y = jnp.maximum(y, 0.0)
    return y


def _ref_forward(x, params, res_num):
    (w1, b1), (w2, b2) = params
    for _ in range(res_num):
        x = _ref_block(x, w1, b1, True)
        x = _ref_block(x, w2, b2, False)
    return x


if __name__ == "__main__":
    N, C, H, W = 2, 4, 16, 16
    res_num = 2

    key = jax.random.PRNGKey(0)
    kx, kw1, kb1, kw2, kb2 = jax.random.split(key, 5)

    x = jax.random.normal(kx, (N, C, H, W), jnp.float32)
    # Conv2d(C, C, 3) weight/bias shapes.
    w1 = jax.random.normal(kw1, (C, C, 3, 3), jnp.float32) * 0.2
    b1 = jax.random.normal(kb1, (C,), jnp.float32) * 0.1
    w2 = jax.random.normal(kw2, (C, C, 3, 3), jnp.float32) * 0.2
    b2 = jax.random.normal(kb2, (C,), jnp.float32) * 0.1
    params = ((w1, b1), (w2, b2))

    out = resblock_forward(x, params, res_num)
    out = jax.block_until_ready(out)

    ref = _ref_forward(x, params, res_num)
    assert out.shape == (N, C, H, W)
    assert jnp.allclose(out, ref, rtol=1e-3, atol=1e-3), (
        float(jnp.max(jnp.abs(out - ref))))

    print("KERNEL_OK")
</pallas_src>

<mosaic_0001>
module attributes {stable_mosaic.version = 11 : i64} {
  func.func @_fused_kernel(%arg0: i32, %arg1: memref<1x16x16x4xf32, #tpu.memory_space<vmem>>, %arg2: memref<36x4xf32, #tpu.memory_space<vmem>>, %arg3: memref<36x4xf32, #tpu.memory_space<vmem>>, %arg4: memref<1x16x16x4xf32, #tpu.memory_space<vmem>>, %arg5: memref<18x18x4xf32, #tpu.memory_space<vmem>>, %arg6: memref<256x36xf32, #tpu.memory_space<vmem>>) attributes {dimension_semantics = [#tpu.dimension_semantics<parallel>], iteration_bounds = array<i64: 2>, scalar_prefetch = 0 : i64, scratch_operands = 2 : i64, tpu.core_type = #tpu.core_type<tc>, window_params = [{transform_indices = @transform_0, window_bounds = array<i64: 1, 16, 16, 4>}, {pipeline_mode = #tpu.pipeline_mode<synchronous>, transform_indices = @transform_1, window_bounds = array<i64: 36, 4>}, {pipeline_mode = #tpu.pipeline_mode<synchronous>, transform_indices = @transform_2, window_bounds = array<i64: 36, 4>}, {transform_indices = @transform_3, window_bounds = array<i64: 1, 16, 16, 4>}]} {
    %c0 = arith.constant 0 : index
    %c0_0 = arith.constant 0 : index
    %c0_1 = arith.constant 0 : index
    %c0_2 = arith.constant 0 : index
    %0 = vector.load %arg1[%c0, %c0_0, %c0_1, %c0_2] : memref<1x16x16x4xf32, #tpu.memory_space<vmem>>, vector<1x16x16x4xf32>
    %1 = vector.shape_cast %0 : vector<1x16x16x4xf32> to vector<16x16x4xf32>
    %c1 = arith.constant 1 : index
    %c1_3 = arith.constant 1 : index
    %c0_4 = arith.constant 0 : index
    %2 = vector.load %arg5[%c1, %c1_3, %c0_4] : memref<18x18x4xf32, #tpu.memory_space<vmem>>, vector<16x16x4xf32>
    tpu.vector_store %arg5[%c1, %c1_3, %c0_4], %1 {strides = array<i32>} : memref<18x18x4xf32, #tpu.memory_space<vmem>>, vector<16x16x4xf32>,
    %3 = vector.extract_strided_slice %1 {offsets = [1, 0, 0], sizes = [1, 16, 4], strides = [1, 1, 1]} : vector<16x16x4xf32> to vector<1x16x4xf32>
    %c0_5 = arith.constant 0 : index
    %c1_6 = arith.constant 1 : index
    %c0_7 = arith.constant 0 : index
    %4 = vector.load %arg5[%c0_5, %c1_6, %c0_7] : memref<18x18x4xf32, #tpu.memory_space<vmem>>, vector<1x16x4xf32>
    tpu.vector_store %arg5[%c0_5, %c1_6, %c0_7], %3 {strides = array<i32>} : memref<18x18x4xf32, #tpu.memory_space<vmem>>, vector<1x16x4xf32>,
    %5 = vector.extract_strided_slice %1 {offsets = [14, 0, 0], sizes = [1, 16, 4], strides = [1, 1, 1]} : vector<16x16x4xf32> to vector<1x16x4xf32>
    %c17 = arith.constant 17 : index
    %c1_8 = arith.constant 1 : index
    %c0_9 = arith.constant 0 : index
    %6 = vector.load %arg5[%c17, %c1_8, %c0_9] : memref<18x18x4xf32, #tpu.memory_space<vmem>>, vector<1x16x4xf32>
    tpu.vector_store %arg5[%c17, %c1_8, %c0_9], %5 {strides = array<i32>} : memref<18x18x4xf32, #tpu.memory_space<vmem>>, vector<1x16x4xf32>,
    %c0_10 = arith.constant 0 : index
    %c2 = arith.constant 2 : index
    %c0_11 = arith.constant 0 : index
    %7 = vector.load %arg5[%c0_10, %c2, %c0_11] : memref<18x18x4xf32, #tpu.memory_space<vmem>>, vector<18x1x4xf32>
    %c0_12 = arith.constant 0 : index
    %c0_13 = arith.constant 0 : index
    %c0_14 = arith.constant 0 : index
    %8 = vector.load %arg5[%c0_12, %c0_13, %c0_14] : memref<18x18x4xf32, #tpu.memory_space<vmem>>, vector<18x1x4xf32>
    tpu.vector_store %arg5[%c0_12, %c0_13, %c0_14], %7 {strides = array<i32>} : memref<18x18x4xf32, #tpu.memory_space<vmem>>, vector<18x1x4xf32>,
    %c0_15 = arith.constant 0 : index
    %c15 = arith.constant 15 : index
    %c0_16 = arith.constant 0 : index
    %9 = vector.load %arg5[%c0_15, %c15, %c0_16] : memref<18x18x4xf32, #tpu.memory_space<vmem>>, vector<18x1x4xf32>
    %c0_17 = arith.constant 0 : index
    %c17_18 = arith.constant 17 : index
    %c0_19 = arith.constant 0 : index
    %10 = vector.load %arg5[%c0_17, %c17_18, %c0_19] : memref<18x18x4xf32, #tpu.memory_space<vmem>>, vector<18x1x4xf32>
    tpu.vector_store %arg5[%c0_17, %c17_18, %c0_19], %9 {strides = array<i32>} : memref<18x18x4xf32, #tpu.memory_space<vmem>>, vector<18x1x4xf32>,
    %c0_20 = arith.constant 0 : index
    %c0_21 = arith.constant 0 : index
    %c0_22 = arith.constant 0 : index
    %11 = vector.load %arg5[%c0_20, %c0_21, %c0_22] : memref<18x18x4xf32, #tpu.memory_space<vmem>>, vector<16x16x4xf32>
    %12 = vector.shape_cast %11 : vector<16x16x4xf32> to vector<256x4xf32>
    %c0_23 = arith.constant 0 : index
    %c0_24 = arith.constant 0 : index
    %13 = vector.load %arg6[%c0_23, %c0_24] : memref<256x36xf32, #tpu.memory_space<vmem>>, vector<256x4xf32>
    tpu.vector_store %arg6[%c0_23, %c0_24], %12 {strides = array<i32>} : memref<256x36xf32, #tpu.memory_space<vmem>>, vector<256x4xf32>,
    %c0_25 = arith.constant 0 : index
    %c1_26 = arith.constant 1 : index
    %c0_27 = arith.constant 0 : index
    %14 = vector.load %arg5[%c0_25, %c1_26, %c0_27] : memref<18x18x4xf32, #tpu.memory_space<vmem>>, vector<16x16x4xf32>
    %15 = vector.shape_cast %14 : vector<16x16x4xf32> to vector<256x4xf32>
    %c0_28 = arith.constant 0 : index
    %c4 = arith.constant 4 : index
    %16 = vector.load %arg6[%c0_28, %c4] : memref<256x36xf32, #tpu.memory_space<vmem>>, vector<256x4xf32>
    tpu.vector_store %arg6[%c0_28, %c4], %15 {strides = array<i32>} : memref<256x36xf32, #tpu.memory_space<vmem>>, vector<256x4xf32>,
    %c0_29 = arith.constant 0 : index
    %c2_30 = arith.constant 2 : index
    %c0_31 = arith.constant 0 : index
    %17 = vector.load %arg5[%c0_29, %c2_30, %c0_31] : memref<18x18x4xf32, #tpu.memory_space<vmem>>, vector<16x16x4xf32>
    %18 = vector.shape_cast %17 : vector<16x16x4xf32> to vector<256x4xf32>
    %c0_32 = arith.constant 0 : index
    %c8 = arith.constant 8 : index
    %19 = vector.load %arg6[%c0_32, %c8] : memref<256x36xf32, #tpu.memory_space<vmem>>, vector<256x4xf32>
    tpu.vector_store %arg6[%c0_32, %c8], %18 {strides = array<i32>} : memref<256x36xf32, #tpu.memory_space<vmem>>, vector<256x4xf32>,
    %c1_33 = arith.constant 1 : index
    %c0_34 = arith.constant 0 : index
    %c0_35 = arith.constant 0 : index
    %20 = vector.load %arg5[%c1_33, %c0_34, %c0_35] : memref<18x18x4xf32, #tpu.memory_space<vmem>>, vector<16x16x4xf32>
    %21 = vector.shape_cast %20 : vector<16x16x4xf32> to vector<256x4xf32>
    %c0_36 = arith.constant 0 : index
    %c12 = arith.constant 12 : index
    %22 = vector.load %arg6[%c0_36, %c12] : memref<256x36xf32, #tpu.memory_space<vmem>>, vector<256x4xf32>
    tpu.vector_store %arg6[%c0_36, %c12], %21 {strides = array<i32>} : memref<256x36xf32, #tpu.memory_space<vmem>>, vector<256x4xf32>,
    %c1_37 = arith.constant 1 : index
    %c1_38 = arith.constant 1 : index
    %c0_39 = arith.constant 0 : index
    %23 = vector.load %arg5[%c1_37, %c1_38, %c0_39] : memref<18x18x4xf32, #tpu.memory_space<vmem>>, vector<16x16x4xf32>
    %24 = vector.shape_cast %23 : vector<16x16x4xf32> to vector<256x4xf32>
    %c0_40 = arith.constant 0 : index
    %c16 = arith.constant 16 : index
    %25 = vector.load %arg6[%c0_40, %c16] : memref<256x36xf32, #tpu.memory_space<vmem>>, vector<256x4xf32>
    tpu.vector_store %arg6[%c0_40, %c16], %24 {strides = array<i32>} : memref<256x36xf32, #tpu.memory_space<vmem>>, vector<256x4xf32>,
    %c1_41 = arith.constant 1 : index
    %c2_42 = arith.constant 2 : index
    %c0_43 = arith.constant 0 : index
    %26 = vector.load %arg5[%c1_41, %c2_42, %c0_43] : memref<18x18x4xf32, #tpu.memory_space<vmem>>, vector<16x16x4xf32>
    %27 = vector.shape_cast %26 : vector<16x16x4xf32> to vector<256x4xf32>
    %c0_44 = arith.constant 0 : index
    %c20 = arith.constant 20 : index
    %28 = vector.load %arg6[%c0_44, %c20] : memref<256x36xf32, #tpu.memory_space<vmem>>, vector<256x4xf32>
    tpu.vector_store %arg6[%c0_44, %c20], %27 {strides = array<i32>} : memref<256x36xf32, #tpu.memory_space<vmem>>, vector<256x4xf32>,
    %c2_45 = arith.constant 2 : index
    %c0_46 = arith.constant 0 : index
    %c0_47 = arith.constant 0 : index
    %29 = vector.load %arg5[%c2_45, %c0_46, %c0_47] : memref<18x18x4xf32, #tpu.memory_space<vmem>>, vector<16x16x4xf32>
    %30 = vector.shape_cast %29 : vector<16x16x4xf32> to vector<256x4xf32>
    %c0_48 = arith.constant 0 : index
    %c24 = arith.constant 24 : index
    %31 = vector.load %arg6[%c0_48, %c24] : memref<256x36xf32, #tpu.memory_space<vmem>>, vector<256x4xf32>
    tpu.vector_store %arg6[%c0_48, %c24], %30 {strides = array<i32>} : memref<256x36xf32, #tpu.memory_space<vmem>>, vector<256x4xf32>,
    %c2_49 = arith.constant 2 : index
    %c1_50 = arith.constant 1 : index
    %c0_51 = arith.constant 0 : index
    %32 = vector.load %arg5[%c2_49, %c1_50, %c0_51] : memref<18x18x4xf32, #tpu.memory_space<vmem>>, vector<16x16x4xf32>
    %33 = vector.shape_cast %32 : vector<16x16x4xf32> to vector<256x4xf32>
    %c0_52 = arith.constant 0 : index
    %c28 = arith.constant 28 : index
    %34 = vector.load %arg6[%c0_52, %c28] : memref<256x36xf32, #tpu.memory_space<vmem>>, vector<256x4xf32>
    tpu.vector_store %arg6[%c0_52, %c28], %33 {strides = array<i32>} : memref<256x36xf32, #tpu.memory_space<vmem>>, vector<256x4xf32>,
    %c2_53 = arith.constant 2 : index
    %c2_54 = arith.constant 2 : index
    %c0_55 = arith.constant 0 : index
    %35 = vector.load %arg5[%c2_53, %c2_54, %c0_55] : memref<18x18x4xf32, #tpu.memory_space<vmem>>, vector<16x16x4xf32>
    %36 = vector.shape_cast %35 : vector<16x16x4xf32> to vector<256x4xf32>
    %c0_56 = arith.constant 0 : index
    %c32 = arith.constant 32 : index
    %37 = vector.load %arg6[%c0_56, %c32] : memref<256x36xf32, #tpu.memory_space<vmem>>, vector<256x4xf32>
    tpu.vector_store %arg6[%c0_56, %c32], %36 {strides = array<i32>} : memref<256x36xf32, #tpu.memory_space<vmem>>, vector<256x4xf32>,
    %c0_57 = arith.constant 0 : index
    %c0_58 = arith.constant 0 : index
    %38 = vector.load %arg6[%c0_57, %c0_58] : memref<256x36xf32, #tpu.memory_space<vmem>>, vector<256x36xf32>
    %c0_59 = arith.constant 0 : index
    %c0_60 = arith.constant 0 : index
    %39 = vector.load %arg2[%c0_59, %c0_60] : memref<36x4xf32, #tpu.memory_space<vmem>>, vector<36x4xf32>
    %cst = arith.constant dense<0.000000e+00> : vector<256x4xf32>
    %40 = tpu.matmul %38, %39, %cst {dimension_numbers = #tpu.dot_dimension_numbers<[1], [0], [0], [1], [0, 0, 1, 1], [], []>} : vector<256x36xf32>, vector<36x4xf32>, vector<256x4xf32> -> vector<256x4xf32>
    %cst_61 = arith.constant dense<0.000000e+00> : vector<4xf32>
    %41 = vector.multi_reduction <add>, %40, %cst_61 [0] : vector<256x4xf32> to vector<4xf32>
    %42 = vector.shape_cast %41 : vector<4xf32> to vector<1x4xf32>
    %cst_62 = arith.constant 2.560000e+02 : f32
    %43 = vector.broadcast %cst_62 : f32 to vector<1x4xf32>
    %44 = arith.divf %42, %43 : vector<1x4xf32>
    %45 = vector.broadcast %44 : vector<1x4xf32> to vector<256x4xf32>
    %46 = arith.subf %40, %45 : vector<256x4xf32>
    %47 = arith.mulf %46, %46 : vector<256x4xf32>
    %cst_63 = arith.constant dense<0.000000e+00> : vector<4xf32>
    %48 = vector.multi_reduction <add>, %47, %cst_63 [0] : vector<256x4xf32> to vector<4xf32>
    %49 = vector.shape_cast %48 : vector<4xf32> to vector<1x4xf32>
    %cst_64 = arith.constant 2.560000e+02 : f32
    %50 = vector.broadcast %cst_64 : f32 to vector<1x4xf32>
    %51 = arith.divf %49, %50 : vector<1x4xf32>
    %cst_65 = arith.constant 9.99999974E-6 : f32
    %52 = vector.broadcast %cst_65 : f32 to vector<1x4xf32>
    %53 = arith.addf %51, %52 : vector<1x4xf32>
    %54 = math.rsqrt %53 : vector<1x4xf32>
    %55 = vector.broadcast %54 : vector<1x4xf32> to vector<256x4xf32>
    %56 = arith.mulf %46, %55 : vector<256x4xf32>
    %cst_66 = arith.constant 0.000000e+00 : f32
    %57 = vector.broadcast %cst_66 : f32 to vector<256x4xf32>
    %58 = arith.maximumf %56, %57 : vector<256x4xf32>
    %59 = vector.shape_cast %58 : vector<256x4xf32> to vector<16x16x4xf32>
    %c1_67 = arith.constant 1 : index
    %c1_68 = arith.constant 1 : index
    %c0_69 = arith.constant 0 : index
    %60 = vector.load %arg5[%c1_67, %c1_68, %c0_69] : memref<18x18x4xf32, #tpu.memory_space<vmem>>, vector<16x16x4xf32>
    tpu.vector_store %arg5[%c1_67, %c1_68, %c0_69], %59 {strides = array<i32>} : memref<18x18x4xf32, #tpu.memory_space<vmem>>, vector<16x16x4xf32>,
    %61 = vector.extract_strided_slice %59 {offsets = [1, 0, 0], sizes = [1, 16, 4], strides = [1, 1, 1]} : vector<16x16x4xf32> to vector<1x16x4xf32>
    %c0_70 = arith.constant 0 : index
    %c1_71 = arith.constant 1 : index
    %c0_72 = arith.constant 0 : index
    %62 = vector.load %arg5[%c0_70, %c1_71, %c0_72] : memref<18x18x4xf32, #tpu.memory_space<vmem>>, vector<1x16x4xf32>
    tpu.vector_store %arg5[%c0_70, %c1_71, %c0_72], %61 {strides = array<i32>} : memref<18x18x4xf32, #tpu.memory_space<vmem>>, vector<1x16x4xf32>,
    %63 = vector.extract_strided_slice %59 {offsets = [14, 0, 0], sizes = [1, 16, 4], strides = [1, 1, 1]} : vector<16x16x4xf32> to vector<1x16x4xf32>
    %c17_73 = arith.constant 17 : index
    %c1_74 = arith.constant 1 : index
    %c0_75 = arith.constant 0 : index
    %64 = vector.load %arg5[%c17_73, %c1_74, %c0_75] : memref<18x18x4xf32, #tpu.memory_space<vmem>>, vector<1x16x4xf32>
    tpu.vector_store %arg5[%c17_73, %c1_74, %c0_75], %63 {strides = array<i32>} : memref<18x18x4xf32, #tpu.memory_space<vmem>>, vector<1x16x4xf32>,
    %c0_76 = arith.constant 0 : index
    %c2_77 = arith.constant 2 : index
    %c0_78 = arith.constant 0 : index
    %65 = vector.load %arg5[%c0_76, %c2_77, %c0_78] : memref<18x18x4xf32, #tpu.memory_space<vmem>>, vector<18x1x4xf32>
    %c0_79 = arith.constant 0 : index
    %c0_80 = arith.constant 0 : index
    %c0_81 = arith.constant 0 : index
    %66 = vector.load %arg5[%c0_79, %c0_80, %c0_81] : memref<18x18x4xf32, #tpu.memory_space<vmem>>, vector<18x1x4xf32>
    tpu.vector_store %arg5[%c0_79, %c0_80, %c0_81], %65 {strides = array<i32>} : memref<18x18x4xf32, #tpu.memory_space<vmem>>, vector<18x1x4xf32>,
    %c0_82 = arith.constant 0 : index
    %c15_83 = arith.constant 15 : index
    %c0_84 = arith.constant 0 : index
    %67 = vector.load %arg5[%c0_82, %c15_83, %c0_84] : memref<18x18x4xf32, #tpu.memory_space<vmem>>, vector<18x1x4xf32>
    %c0_85 = arith.constant 0 : index
    %c17_86 = arith.constant 17 : index
    %c0_87 = arith.constant 0 : index
    %68 = vector.load %arg5[%c0_85, %c17_86, %c0_87] : memref<18x18x4xf32, #tpu.memory_space<vmem>>, vector<18x1x4xf32>
    tpu.vector_store %arg5[%c0_85, %c17_86, %c0_87], %67 {strides = array<i32>} : memref<18x18x4xf32, #tpu.memory_space<vmem>>, vector<18x1x4xf32>,
    %c0_88 = arith.constant 0 : index
    %c0_89 = arith.constant 0 : index
    %c0_90 = arith.constant 0 : index
    %69 = vector.load %arg5[%c0_88, %c0_89, %c0_90] : memref<18x18x4xf32, #tpu.memory_space<vmem>>, vector<16x16x4xf32>
    %70 = vector.shape_cast %69 : vector<16x16x4xf32> to vector<256x4xf32>
    %c0_91 = arith.constant 0 : index
    %c0_92 = arith.constant 0 : index
    %71 = vector.load %arg6[%c0_91, %c0_92] : memref<256x36xf32, #tpu.memory_space<vmem>>, vector<256x4xf32>
    tpu.vector_store %arg6[%c0_91, %c0_92], %70 {strides = array<i32>} : memref<256x36xf32, #tpu.memory_space<vmem>>, vector<256x4xf32>,
    %c0_93 = arith.constant 0 : index
    %c1_94 = arith.constant 1 : index
    %c0_95 = arith.constant 0 : index
    %72 = vector.load %arg5[%c0_93, %c1_94, %c0_95] : memref<18x18x4xf32, #tpu.memory_space<vmem>>, vector<16x16x4xf32>
    %73 = vector.shape_cast %72 : vector<16x16x4xf32> to vector<256x4xf32>
    %c0_96 = arith.constant 0 : index
    %c4_97 = arith.constant 4 : index
    %74 = vector.load %arg6[%c0_96, %c4_97] : memref<256x36xf32, #tpu.memory_space<vmem>>, vector<256x4xf32>
    tpu.vector_store %arg6[%c0_96, %c4_97], %73 {strides = array<i32>} : memref<256x36xf32, #tpu.memory_space<vmem>>, vector<256x4xf32>,
    %c0_98 = arith.constant 0 : index
    %c2_99 = arith.constant 2 : index
    %c0_100 = arith.constant 0 : index
    %75 = vector.load %arg5[%c0_98, %c2_99, %c0_100] : memref<18x18x4xf32, #tpu.memory_space<vmem>>, vector<16x16x4xf32>
    %76 = vector.shape_cast %75 : vector<16x16x4xf32> to vector<256x4xf32>
    %c0_101 = arith.constant 0 : index
    %c8_102 = arith.constant 8 : index
    %77 = vector.load %arg6[%c0_101, %c8_102] : memref<256x36xf32, #tpu.memory_space<vmem>>, vector<256x4xf32>
    tpu.vector_store %arg6[%c0_101, %c8_102], %76 {strides = array<i32>} : memref<256x36xf32, #tpu.memory_space<vmem>>, vector<256x4xf32>,
    %c1_103 = arith.constant 1 : index
    %c0_104 = arith.constant 0 : index
    %c0_105 = arith.constant 0 : index
    %78 = vector.load %arg5[%c1_103, %c0_104, %c0_105] : memref<18x18x4xf32, #tpu.memory_space<vmem>>, vector<16x16x4xf32>
    %79 = vector.shape_cast %78 : vector<16x16x4xf32> to vector<256x4xf32>
    %c0_106 = arith.constant 0 : index
    %c12_107 = arith.constant 12 : index
    %80 = vector.load %arg6[%c0_106, %c12_107] : memref<256x36xf32, #tpu.memory_space<vmem>>, vector<256x4xf32>
    tpu.vector_store %arg6[%c0_106, %c12_107], %79 {strides = array<i32>} : memref<256x36xf32, #tpu.memory_space<vmem>>, vector<256x4xf32>,
    %c1_108 = arith.constant 1 : index
    %c1_109 = arith.constant 1 : index
    %c0_110 = arith.constant 0 : index
    %81 = vector.load %arg5[%c1_108, %c1_109, %c0_110] : memref<18x18x4xf32, #tpu.memory_space<vmem>>, vector<16x16x4xf32>
    %82 = vector.shape_cast %81 : vector<16x16x4xf32> to vector<256x4xf32>
    %c0_111 = arith.constant 0 : index
    %c16_112 = arith.constant 16 : index
    %83 = vector.load %arg6[%c0_111, %c16_112] : memref<256x36xf32, #tpu.memory_space<vmem>>, vector<256x4xf32>
    tpu.vector_store %arg6[%c0_111, %c16_112], %82 {strides = array<i32>} : memref<256x36xf32, #tpu.memory_space<vmem>>, vector<256x4xf32>,
    %c1_113 = arith.constant 1 : index
    %c2_114 = arith.constant 2 : index
    %c0_115 = arith.constant 0 : index
    %84 = vector.load %arg5[%c1_113, %c2_114, %c0_115] : memref<18x18x4xf32, #tpu.memory_space<vmem>>, vector<16x16x4xf32>
    %85 = vector.shape_cast %84 : vector<16x16x4xf32> to vector<256x4xf32>
    %c0_116 = arith.constant 0 : index
    %c20_117 = arith.constant 20 : index
    %86 = vector.load %arg6[%c0_116, %c20_117] : memref<256x36xf32, #tpu.memory_space<vmem>>, vector<256x4xf32>
    tpu.vector_store %arg6[%c0_116, %c20_117], %85 {strides = array<i32>} : memref<256x36xf32, #tpu.memory_space<vmem>>, vector<256x4xf32>,
    %c2_118 = arith.constant 2 : index
    %c0_119 = arith.constant 0 : index
    %c0_120 = arith.constant 0 : index
    %87 = vector.load %arg5[%c2_118, %c0_119, %c0_120] : memref<18x18x4xf32, #tpu.memory_space<vmem>>, vector<16x16x4xf32>
    %88 = vector.shape_cast %87 : vector<16x16x4xf32> to vector<256x4xf32>
    %c0_121 = arith.constant 0 : index
    %c24_122 = arith.constant 24 : index
    %89 = vector.load %arg6[%c0_121, %c24_122] : memref<256x36xf32, #tpu.memory_space<vmem>>, vector<256x4xf32>
    tpu.vector_store %arg6[%c0_121, %c24_122], %88 {strides = array<i32>} : memref<256x36xf32, #tpu.memory_space<vmem>>, vector<256x4xf32>,
    %c2_123 = arith.constant 2 : index
    %c1_124 = arith.constant 1 : index
    %c0_125 = arith.constant 0 : index
    %90 = vector.load %arg5[%c2_123, %c1_124, %c0_125] : memref<18x18x4xf32, #tpu.memory_space<vmem>>, vector<16x16x4xf32>
    %91 = vector.shape_cast %90 : vector<16x16x4xf32> to vector<256x4xf32>
    %c0_126 = arith.constant 0 : index
    %c28_127 = arith.constant 28 : index
    %92 = vector.load %arg6[%c0_126, %c28_127] : memref<256x36xf32, #tpu.memory_space<vmem>>, vector<256x4xf32>
    tpu.vector_store %arg6[%c0_126, %c28_127], %91 {strides = array<i32>} : memref<256x36xf32, #tpu.memory_space<vmem>>, vector<256x4xf32>,
    %c2_128 = arith.constant 2 : index
    %c2_129 = arith.constant 2 : index
    %c0_130 = arith.constant 0 : index
    %93 = vector.load %arg5[%c2_128, %c2_129, %c0_130] : memref<18x18x4xf32, #tpu.memory_space<vmem>>, vector<16x16x4xf32>
    %94 = vector.shape_cast %93 : vector<16x16x4xf32> to vector<256x4xf32>
    %c0_131 = arith.constant 0 : index
    %c32_132 = arith.constant 32 : index
    %95 = vector.load %arg6[%c0_131, %c32_132] : memref<256x36xf32, #tpu.memory_space<vmem>>, vector<256x4xf32>
    tpu.vector_store %arg6[%c0_131, %c32_132], %94 {strides = array<i32>} : memref<256x36xf32, #tpu.memory_space<vmem>>, vector<256x4xf32>,
    %c0_133 = arith.constant 0 : index
    %c0_134 = arith.constant 0 : index
    %96 = vector.load %arg6[%c0_133, %c0_134] : memref<256x36xf32, #tpu.memory_space<vmem>>, vector<256x36xf32>
    %c0_135 = arith.constant 0 : index
    %c0_136 = arith.constant 0 : index
    %97 = vector.load %arg3[%c0_135, %c0_136] : memref<36x4xf32, #tpu.memory_space<vmem>>, vector<36x4xf32>
    %cst_137 = arith.constant dense<0.000000e+00> : vector<256x4xf32>
    %98 = tpu.matmul %96, %97, %cst_137 {dimension_numbers = #tpu.dot_dimension_numbers<[1], [0], [0], [1], [0, 0, 1, 1], [], []>} : vector<256x36xf32>, vector<36x4xf32>, vector<256x4xf32> -> vector<256x4xf32>
    %cst_138 = arith.constant dense<0.000000e+00> : vector<4xf32>
    %99 = vector.multi_reduction <add>, %98, %cst_138 [0] : vector<256x4xf32> to vector<4xf32>
    %100 = vector.shape_cast %99 : vector<4xf32> to vector<1x4xf32>
    %cst_139 = arith.constant 2.560000e+02 : f32
    %101 = vector.broadcast %cst_139 : f32 to vector<1x4xf32>
    %102 = arith.divf %100, %101 : vector<1x4xf32>
    %103 = vector.broadcast %102 : vector<1x4xf32> to vector<256x4xf32>
    %104 = arith.subf %98, %103 : vector<256x4xf32>
    %105 = arith.mulf %104, %104 : vector<256x4xf32>
    %cst_140 = arith.constant dense<0.000000e+00> : vector<4xf32>
    %106 = vector.multi_reduction <add>, %105, %cst_140 [0] : vector<256x4xf32> to vector<4xf32>
    %107 = vector.shape_cast %106 : vector<4xf32> to vector<1x4xf32>
    %cst_141 = arith.constant 2.560000e+02 : f32
    %108 = vector.broadcast %cst_141 : f32 to vector<1x4xf32>
    %109 = arith.divf %107, %108 : vector<1x4xf32>
    %cst_142 = arith.constant 9.99999974E-6 : f32
    %110 = vector.broadcast %cst_142 : f32 to vector<1x4xf32>
    %111 = arith.addf %109, %110 : vector<1x4xf32>
    %112 = math.rsqrt %111 : vector<1x4xf32>
    %113 = vector.broadcast %112 : vector<1x4xf32> to vector<256x4xf32>
    %114 = arith.mulf %104, %113 : vector<256x4xf32>
    %115 = vector.shape_cast %114 : vector<256x4xf32> to vector<16x16x4xf32>
    %c1_143 = arith.constant 1 : index
    %c1_144 = arith.constant 1 : index
    %c0_145 = arith.constant 0 : index
    %116 = vector.load %arg5[%c1_143, %c1_144, %c0_145] : memref<18x18x4xf32, #tpu.memory_space<vmem>>, vector<16x16x4xf32>
    tpu.vector_store %arg5[%c1_143, %c1_144, %c0_145], %115 {strides = array<i32>} : memref<18x18x4xf32, #tpu.memory_space<vmem>>, vector<16x16x4xf32>,
    %117 = vector.extract_strided_slice %115 {offsets = [1, 0, 0], sizes = [1, 16, 4], strides = [1, 1, 1]} : vector<16x16x4xf32> to vector<1x16x4xf32>
    %c0_146 = arith.constant 0 : index
    %c1_147 = arith.constant 1 : index
    %c0_148 = arith.constant 0 : index
    %118 = vector.load %arg5[%c0_146, %c1_147, %c0_148] : memref<18x18x4xf32, #tpu.memory_space<vmem>>, vector<1x16x4xf32>
    tpu.vector_store %arg5[%c0_146, %c1_147, %c0_148], %117 {strides = array<i32>} : memref<18x18x4xf32, #tpu.memory_space<vmem>>, vector<1x16x4xf32>,
    %119 = vector.extract_strided_slice %115 {offsets = [14, 0, 0], sizes = [1, 16, 4], strides = [1, 1, 1]} : vector<16x16x4xf32> to vector<1x16x4xf32>
    %c17_149 = arith.constant 17 : index
    %c1_150 = arith.constant 1 : index
    %c0_151 = arith.constant 0 : index
    %120 = vector.load %arg5[%c17_149, %c1_150, %c0_151] : memref<18x18x4xf32, #tpu.memory_space<vmem>>, vector<1x16x4xf32>
    tpu.vector_store %arg5[%c17_149, %c1_150, %c0_151], %119 {strides = array<i32>} : memref<18x18x4xf32, #tpu.memory_space<vmem>>, vector<1x16x4xf32>,
    %c0_152 = arith.constant 0 : index
    %c2_153 = arith.constant 2 : index
    %c0_154 = arith.constant 0 : index
    %121 = vector.load %arg5[%c0_152, %c2_153, %c0_154] : memref<18x18x4xf32, #tpu.memory_space<vmem>>, vector<18x1x4xf32>
    %c0_155 = arith.constant 0 : index
    %c0_156 = arith.constant 0 : index
    %c0_157 = arith.constant 0 : index
    %122 = vector.load %arg5[%c0_155, %c0_156, %c0_157] : memref<18x18x4xf32, #tpu.memory_space<vmem>>, vector<18x1x4xf32>
    tpu.vector_store %arg5[%c0_155, %c0_156, %c0_157], %121 {strides = array<i32>} : memref<18x18x4xf32, #tpu.memory_space<vmem>>, vector<18x1x4xf32>,
    %c0_158 = arith.constant 0 : index
    %c15_159 = arith.constant 15 : index
    %c0_160 = arith.constant 0 : index
    %123 = vector.load %arg5[%c0_158, %c15_159, %c0_160] : memref<18x18x4xf32, #tpu.memory_space<vmem>>, vector<18x1x4xf32>
    %c0_161 = arith.constant 0 : index
    %c17_162 = arith.constant 17 : index
    %c0_163 = arith.constant 0 : index
    %124 = vector.load %arg5[%c0_161, %c17_162, %c0_163] : memref<18x18x4xf32, #tpu.memory_space<vmem>>, vector<18x1x4xf32>
    tpu.vector_store %arg5[%c0_161, %c17_162, %c0_163], %123 {strides = array<i32>} : memref<18x18x4xf32, #tpu.memory_space<vmem>>, vector<18x1x4xf32>,
    %c0_164 = arith.constant 0 : index
    %c0_165 = arith.constant 0 : index
    %c0_166 = arith.constant 0 : index
    %125 = vector.load %arg5[%c0_164, %c0_165, %c0_166] : memref<18x18x4xf32, #tpu.memory_space<vmem>>, vector<16x16x4xf32>
    %126 = vector.shape_cast %125 : vector<16x16x4xf32> to vector<256x4xf32>
    %c0_167 = arith.constant 0 : index
    %c0_168 = arith.constant 0 : index
    %127 = vector.load %arg6[%c0_167, %c0_168] : memref<256x36xf32, #tpu.memory_space<vmem>>, vector<256x4xf32>
    tpu.vector_store %arg6[%c0_167, %c0_168], %126 {strides = array<i32>} : memref<256x36xf32, #tpu.memory_space<vmem>>, vector<256x4xf32>,
    %c0_169 = arith.constant 0 : index
    %c1_170 = arith.constant 1 : index
    %c0_171 = arith.constant 0 : index
    %128 = vector.load %arg5[%c0_169, %c1_170, %c0_171] : memref<18x18x4xf32, #tpu.memory_space<vmem>>, vector<16x16x4xf32>
    %129 = vector.shape_cast %128 : vector<16x16x4xf32> to vector<256x4xf32>
    %c0_172 = arith.constant 0 : index
    %c4_173 = arith.constant 4 : index
    %130 = vector.load %arg6[%c0_172, %c4_173] : memref<256x36xf32, #tpu.memory_space<vmem>>, vector<256x4xf32>
    tpu.vector_store %arg6[%c0_172, %c4_173], %129 {strides = array<i32>} : memref<256x36xf32, #tpu.memory_space<vmem>>, vector<256x4xf32>,
    %c0_174 = arith.constant 0 : index
    %c2_175 = arith.constant 2 : index
    %c0_176 = arith.constant 0 : index
    %131 = vector.load %arg5[%c0_174, %c2_175, %c0_176] : memref<18x18x4xf32, #tpu.memory_space<vmem>>, vector<16x16x4xf32>
    %132 = vector.shape_cast %131 : vector<16x16x4xf32> to vector<256x4xf32>
    %c0_177 = arith.constant 0 : index
    %c8_178 = arith.constant 8 : index
    %133 = vector.load %arg6[%c0_177, %c8_178] : memref<256x36xf32, #tpu.memory_space<vmem>>, vector<256x4xf32>
    tpu.vector_store %arg6[%c0_177, %c8_178], %132 {strides = array<i32>} : memref<256x36xf32, #tpu.memory_space<vmem>>, vector<256x4xf32>,
    %c1_179 = arith.constant 1 : index
    %c0_180 = arith.constant 0 : index
    %c0_181 = arith.constant 0 : index
    %134 = vector.load %arg5[%c1_179, %c0_180, %c0_181] : memref<18x18x4xf32, #tpu.memory_space<vmem>>, vector<16x16x4xf32>
    %135 = vector.shape_cast %134 : vector<16x16x4xf32> to vector<256x4xf32>
    %c0_182 = arith.constant 0 : index
    %c12_183 = arith.constant 12 : index
    %136 = vector.load %arg6[%c0_182, %c12_183] : memref<256x36xf32, #tpu.memory_space<vmem>>, vector<256x4xf32>
    tpu.vector_store %arg6[%c0_182, %c12_183], %135 {strides = array<i32>} : memref<256x36xf32, #tpu.memory_space<vmem>>, vector<256x4xf32>,
    %c1_184 = arith.constant 1 : index
    %c1_185 = arith.constant 1 : index
    %c0_186 = arith.constant 0 : index
    %137 = vector.load %arg5[%c1_184, %c1_185, %c0_186] : memref<18x18x4xf32, #tpu.memory_space<vmem>>, vector<16x16x4xf32>
    %138 = vector.shape_cast %137 : vector<16x16x4xf32> to vector<256x4xf32>
    %c0_187 = arith.constant 0 : index
    %c16_188 = arith.constant 16 : index
    %139 = vector.load %arg6[%c0_187, %c16_188] : memref<256x36xf32, #tpu.memory_space<vmem>>, vector<256x4xf32>
    tpu.vector_store %arg6[%c0_187, %c16_188], %138 {strides = array<i32>} : memref<256x36xf32, #tpu.memory_space<vmem>>, vector<256x4xf32>,
    %c1_189 = arith.constant 1 : index
    %c2_190 = arith.constant 2 : index
    %c0_191 = arith.constant 0 : index
    %140 = vector.load %arg5[%c1_189, %c2_190, %c0_191] : memref<18x18x4xf32, #tpu.memory_space<vmem>>, vector<16x16x4xf32>
    %141 = vector.shape_cast %140 : vector<16x16x4xf32> to vector<256x4xf32>
    %c0_192 = arith.constant 0 : index
    %c20_193 = arith.constant 20 : index
    %142 = vector.load %arg6[%c0_192, %c20_193] : memref<256x36xf32, #tpu.memory_space<vmem>>, vector<256x4xf32>
    tpu.vector_store %arg6[%c0_192, %c20_193], %141 {strides = array<i32>} : memref<256x36xf32, #tpu.memory_space<vmem>>, vector<256x4xf32>,
    %c2_194 = arith.constant 2 : index
    %c0_195 = arith.constant 0 : index
    %c0_196 = arith.constant 0 : index
    %143 = vector.load %arg5[%c2_194, %c0_195, %c0_196] : memref<18x18x4xf32, #tpu.memory_space<vmem>>, vector<16x16x4xf32>
    %144 = vector.shape_cast %143 : vector<16x16x4xf32> to vector<256x4xf32>
    %c0_197 = arith.constant 0 : index
    %c24_198 = arith.constant 24 : index
    %145 = vector.load %arg6[%c0_197, %c24_198] : memref<256x36xf32, #tpu.memory_space<vmem>>, vector<256x4xf32>
    tpu.vector_store %arg6[%c0_197, %c24_198], %144 {strides = array<i32>} : memref<256x36xf32, #tpu.memory_space<vmem>>, vector<256x4xf32>,
    %c2_199 = arith.constant 2 : index
    %c1_200 = arith.constant 1 : index
    %c0_201 = arith.constant 0 : index
    %146 = vector.load %arg5[%c2_199, %c1_200, %c0_201] : memref<18x18x4xf32, #tpu.memory_space<vmem>>, vector<16x16x4xf32>
    %147 = vector.shape_cast %146 : vector<16x16x4xf32> to vector<256x4xf32>
    %c0_202 = arith.constant 0 : index
    %c28_203 = arith.constant 28 : index
    %148 = vector.load %arg6[%c0_202, %c28_203] : memref<256x36xf32, #tpu.memory_space<vmem>>, vector<256x4xf32>
    tpu.vector_store %arg6[%c0_202, %c28_203], %147 {strides = array<i32>} : memref<256x36xf32, #tpu.memory_space<vmem>>, vector<256x4xf32>,
    %c2_204 = arith.constant 2 : index
    %c2_205 = arith.constant 2 : index
    %c0_206 = arith.constant 0 : index
    %149 = vector.load %arg5[%c2_204, %c2_205, %c0_206] : memref<18x18x4xf32, #tpu.memory_space<vmem>>, vector<16x16x4xf32>
    %150 = vector.shape_cast %149 : vector<16x16x4xf32> to vector<256x4xf32>
    %c0_207 = arith.constant 0 : index
    %c32_208 = arith.constant 32 : index
    %151 = vector.load %arg6[%c0_207, %c32_208] : memref<256x36xf32, #tpu.memory_space<vmem>>, vector<256x4xf32>
    tpu.vector_store %arg6[%c0_207, %c32_208], %150 {strides = array<i32>} : memref<256x36xf32, #tpu.memory_space<vmem>>, vector<256x4xf32>,
    %c0_209 = arith.constant 0 : index
    %c0_210 = arith.constant 0 : index
    %152 = vector.load %arg6[%c0_209, %c0_210] : memref<256x36xf32, #tpu.memory_space<vmem>>, vector<256x36xf32>
    %c0_211 = arith.constant 0 : index
    %c0_212 = arith.constant 0 : index
    %153 = vector.load %arg2[%c0_211, %c0_212] : memref<36x4xf32, #tpu.memory_space<vmem>>, vector<36x4xf32>
    %cst_213 = arith.constant dense<0.000000e+00> : vector<256x4xf32>
    %154 = tpu.matmul %152, %153, %cst_213 {dimension_numbers = #tpu.dot_dimension_numbers<[1], [0], [0], [1], [0, 0, 1, 1], [], []>} : vector<256x36xf32>, vector<36x4xf32>, vector<256x4xf32> -> vector<256x4xf32>
    %cst_214 = arith.constant dense<0.000000e+00> : vector<4xf32>
    %155 = vector.multi_reduction <add>, %154, %cst_214 [0] : vector<256x4xf32> to vector<4xf32>
    %156 = vector.shape_cast %155 : vector<4xf32> to vector<1x4xf32>
    %cst_215 = arith.constant 2.560000e+02 : f32
    %157 = vector.broadcast %cst_215 : f32 to vector<1x4xf32>
    %158 = arith.divf %156, %157 : vector<1x4xf32>
    %159 = vector.broadcast %158 : vector<1x4xf32> to vector<256x4xf32>
    %160 = arith.subf %154, %159 : vector<256x4xf32>
    %161 = arith.mulf %160, %160 : vector<256x4xf32>
    %cst_216 = arith.constant dense<0.000000e+00> : vector<4xf32>
    %162 = vector.multi_reduction <add>, %161, %cst_216 [0] : vector<256x4xf32> to vector<4xf32>
    %163 = vector.shape_cast %162 : vector<4xf32> to vector<1x4xf32>
    %cst_217 = arith.constant 2.560000e+02 : f32
    %164 = vector.broadcast %cst_217 : f32 to vector<1x4xf32>
    %165 = arith.divf %163, %164 : vector<1x4xf32>
    %cst_218 = arith.constant 9.99999974E-6 : f32
    %166 = vector.broadcast %cst_218 : f32 to vector<1x4xf32>
    %167 = arith.addf %165, %166 : vector<1x4xf32>
    %168 = math.rsqrt %167 : vector<1x4xf32>
    %169 = vector.broadcast %168 : vector<1x4xf32> to vector<256x4xf32>
    %170 = arith.mulf %160, %169 : vector<256x4xf32>
    %cst_219 = arith.constant 0.000000e+00 : f32
    %171 = vector.broadcast %cst_219 : f32 to vector<256x4xf32>
    %172 = arith.maximumf %170, %171 : vector<256x4xf32>
    %173 = vector.shape_cast %172 : vector<256x4xf32> to vector<16x16x4xf32>
    %c1_220 = arith.constant 1 : index
    %c1_221 = arith.constant 1 : index
    %c0_222 = arith.constant 0 : index
    %174 = vector.load %arg5[%c1_220, %c1_221, %c0_222] : memref<18x18x4xf32, #tpu.memory_space<vmem>>, vector<16x16x4xf32>
    tpu.vector_store %arg5[%c1_220, %c1_221, %c0_222], %173 {strides = array<i32>} : memref<18x18x4xf32, #tpu.memory_space<vmem>>, vector<16x16x4xf32>,
    %175 = vector.extract_strided_slice %173 {offsets = [1, 0, 0], sizes = [1, 16, 4], strides = [1, 1, 1]} : vector<16x16x4xf32> to vector<1x16x4xf32>
    %c0_223 = arith.constant 0 : index
    %c1_224 = arith.constant 1 : index
    %c0_225 = arith.constant 0 : index
    %176 = vector.load %arg5[%c0_223, %c1_224, %c0_225] : memref<18x18x4xf32, #tpu.memory_space<vmem>>, vector<1x16x4xf32>
    tpu.vector_store %arg5[%c0_223, %c1_224, %c0_225], %175 {strides = array<i32>} : memref<18x18x4xf32, #tpu.memory_space<vmem>>, vector<1x16x4xf32>,
    %177 = vector.extract_strided_slice %173 {offsets = [14, 0, 0], sizes = [1, 16, 4], strides = [1, 1, 1]} : vector<16x16x4xf32> to vector<1x16x4xf32>
    %c17_226 = arith.constant 17 : index
    %c1_227 = arith.constant 1 : index
    %c0_228 = arith.constant 0 : index
    %178 = vector.load %arg5[%c17_226, %c1_227, %c0_228] : memref<18x18x4xf32, #tpu.memory_space<vmem>>, vector<1x16x4xf32>
    tpu.vector_store %arg5[%c17_226, %c1_227, %c0_228], %177 {strides = array<i32>} : memref<18x18x4xf32, #tpu.memory_space<vmem>>, vector<1x16x4xf32>,
    %c0_229 = arith.constant 0 : index
    %c2_230 = arith.constant 2 : index
    %c0_231 = arith.constant 0 : index
    %179 = vector.load %arg5[%c0_229, %c2_230, %c0_231] : memref<18x18x4xf32, #tpu.memory_space<vmem>>, vector<18x1x4xf32>
    %c0_232 = arith.constant 0 : index
    %c0_233 = arith.constant 0 : index
    %c0_234 = arith.constant 0 : index
    %180 = vector.load %arg5[%c0_232, %c0_233, %c0_234] : memref<18x18x4xf32, #tpu.memory_space<vmem>>, vector<18x1x4xf32>
    tpu.vector_store %arg5[%c0_232, %c0_233, %c0_234], %179 {strides = array<i32>} : memref<18x18x4xf32, #tpu.memory_space<vmem>>, vector<18x1x4xf32>,
    %c0_235 = arith.constant 0 : index
    %c15_236 = arith.constant 15 : index
    %c0_237 = arith.constant 0 : index
    %181 = vector.load %arg5[%c0_235, %c15_236, %c0_237] : memref<18x18x4xf32, #tpu.memory_space<vmem>>, vector<18x1x4xf32>
    %c0_238 = arith.constant 0 : index
    %c17_239 = arith.constant 17 : index
    %c0_240 = arith.constant 0 : index
    %182 = vector.load %arg5[%c0_238, %c17_239, %c0_240] : memref<18x18x4xf32, #tpu.memory_space<vmem>>, vector<18x1x4xf32>
    tpu.vector_store %arg5[%c0_238, %c17_239, %c0_240], %181 {strides = array<i32>} : memref<18x18x4xf32, #tpu.memory_space<vmem>>, vector<18x1x4xf32>,
    %c0_241 = arith.constant 0 : index
    %c0_242 = arith.constant 0 : index
    %c0_243 = arith.constant 0 : index
    %183 = vector.load %arg5[%c0_241, %c0_242, %c0_243] : memref<18x18x4xf32, #tpu.memory_space<vmem>>, vector<16x16x4xf32>
    %184 = vector.shape_cast %183 : vector<16x16x4xf32> to vector<256x4xf32>
    %c0_244 = arith.constant 0 : index
    %c0_245 = arith.constant 0 : index
    %185 = vector.load %arg6[%c0_244, %c0_245] : memref<256x36xf32, #tpu.memory_space<vmem>>, vector<256x4xf32>
    tpu.vector_store %arg6[%c0_244, %c0_245], %184 {strides = array<i32>} : memref<256x36xf32, #tpu.memory_space<vmem>>, vector<256x4xf32>,
    %c0_246 = arith.constant 0 : index
    %c1_247 = arith.constant 1 : index
    %c0_248 = arith.constant 0 : index
    %186 = vector.load %arg5[%c0_246, %c1_247, %c0_248] : memref<18x18x4xf32, #tpu.memory_space<vmem>>, vector<16x16x4xf32>
    %187 = vector.shape_cast %186 : vector<16x16x4xf32> to vector<256x4xf32>
    %c0_249 = arith.constant 0 : index
    %c4_250 = arith.constant 4 : index
    %188 = vector.load %arg6[%c0_249, %c4_250] : memref<256x36xf32, #tpu.memory_space<vmem>>, vector<256x4xf32>
    tpu.vector_store %arg6[%c0_249, %c4_250], %187 {strides = array<i32>} : memref<256x36xf32, #tpu.memory_space<vmem>>, vector<256x4xf32>,
    %c0_251 = arith.constant 0 : index
    %c2_252 = arith.constant 2 : index
    %c0_253 = arith.constant 0 : index
    %189 = vector.load %arg5[%c0_251, %c2_252, %c0_253] : memref<18x18x4xf32, #tpu.memory_space<vmem>>, vector<16x16x4xf32>
    %190 = vector.shape_cast %189 : vector<16x16x4xf32> to vector<256x4xf32>
    %c0_254 = arith.constant 0 : index
    %c8_255 = arith.constant 8 : index
    %191 = vector.load %arg6[%c0_254, %c8_255] : memref<256x36xf32, #tpu.memory_space<vmem>>, vector<256x4xf32>
    tpu.vector_store %arg6[%c0_254, %c8_255], %190 {strides = array<i32>} : memref<256x36xf32, #tpu.memory_space<vmem>>, vector<256x4xf32>,
    %c1_256 = arith.constant 1 : index
    %c0_257 = arith.constant 0 : index
    %c0_258 = arith.constant 0 : index
    %192 = vector.load %arg5[%c1_256, %c0_257, %c0_258] : memref<18x18x4xf32, #tpu.memory_space<vmem>>, vector<16x16x4xf32>
    %193 = vector.shape_cast %192 : vector<16x16x4xf32> to vector<256x4xf32>
    %c0_259 = arith.constant 0 : index
    %c12_260 = arith.constant 12 : index
    %194 = vector.load %arg6[%c0_259, %c12_260] : memref<256x36xf32, #tpu.memory_space<vmem>>, vector<256x4xf32>
    tpu.vector_store %arg6[%c0_259, %c12_260], %193 {strides = array<i32>} : memref<256x36xf32, #tpu.memory_space<vmem>>, vector<256x4xf32>,
    %c1_261 = arith.constant 1 : index
    %c1_262 = arith.constant 1 : index
    %c0_263 = arith.constant 0 : index
    %195 = vector.load %arg5[%c1_261, %c1_262, %c0_263] : memref<18x18x4xf32, #tpu.memory_space<vmem>>, vector<16x16x4xf32>
    %196 = vector.shape_cast %195 : vector<16x16x4xf32> to vector<256x4xf32>
    %c0_264 = arith.constant 0 : index
    %c16_265 = arith.constant 16 : index
    %197 = vector.load %arg6[%c0_264, %c16_265] : memref<256x36xf32, #tpu.memory_space<vmem>>, vector<256x4xf32>
    tpu.vector_store %arg6[%c0_264, %c16_265], %196 {strides = array<i32>} : memref<256x36xf32, #tpu.memory_space<vmem>>, vector<256x4xf32>,
    %c1_266 = arith.constant 1 : index
    %c2_267 = arith.constant 2 : index
    %c0_268 = arith.constant 0 : index
    %198 = vector.load %arg5[%c1_266, %c2_267, %c0_268] : memref<18x18x4xf32, #tpu.memory_space<vmem>>, vector<16x16x4xf32>
    %199 = vector.shape_cast %198 : vector<16x16x4xf32> to vector<256x4xf32>
    %c0_269 = arith.constant 0 : index
    %c20_270 = arith.constant 20 : index
    %200 = vector.load %arg6[%c0_269, %c20_270] : memref<256x36xf32, #tpu.memory_space<vmem>>, vector<256x4xf32>
    tpu.vector_store %arg6[%c0_269, %c20_270], %199 {strides = array<i32>} : memref<256x36xf32, #tpu.memory_space<vmem>>, vector<256x4xf32>,
    %c2_271 = arith.constant 2 : index
    %c0_272 = arith.constant 0 : index
    %c0_273 = arith.constant 0 : index
    %201 = vector.load %arg5[%c2_271, %c0_272, %c0_273] : memref<18x18x4xf32, #tpu.memory_space<vmem>>, vector<16x16x4xf32>
    %202 = vector.shape_cast %201 : vector<16x16x4xf32> to vector<256x4xf32>
    %c0_274 = arith.constant 0 : index
    %c24_275 = arith.constant 24 : index
    %203 = vector.load %arg6[%c0_274, %c24_275] : memref<256x36xf32, #tpu.memory_space<vmem>>, vector<256x4xf32>
    tpu.vector_store %arg6[%c0_274, %c24_275], %202 {strides = array<i32>} : memref<256x36xf32, #tpu.memory_space<vmem>>, vector<256x4xf32>,
    %c2_276 = arith.constant 2 : index
    %c1_277 = arith.constant 1 : index
    %c0_278 = arith.constant 0 : index
    %204 = vector.load %arg5[%c2_276, %c1_277, %c0_278] : memref<18x18x4xf32, #tpu.memory_space<vmem>>, vector<16x16x4xf32>
    %205 = vector.shape_cast %204 : vector<16x16x4xf32> to vector<256x4xf32>
    %c0_279 = arith.constant 0 : index
    %c28_280 = arith.constant 28 : index
    %206 = vector.load %arg6[%c0_279, %c28_280] : memref<256x36xf32, #tpu.memory_space<vmem>>, vector<256x4xf32>
    tpu.vector_store %arg6[%c0_279, %c28_280], %205 {strides = array<i32>} : memref<256x36xf32, #tpu.memory_space<vmem>>, vector<256x4xf32>,
    %c2_281 = arith.constant 2 : index
    %c2_282 = arith.constant 2 : index
    %c0_283 = arith.constant 0 : index
    %207 = vector.load %arg5[%c2_281, %c2_282, %c0_283] : memref<18x18x4xf32, #tpu.memory_space<vmem>>, vector<16x16x4xf32>
    %208 = vector.shape_cast %207 : vector<16x16x4xf32> to vector<256x4xf32>
    %c0_284 = arith.constant 0 : index
    %c32_285 = arith.constant 32 : index
    %209 = vector.load %arg6[%c0_284, %c32_285] : memref<256x36xf32, #tpu.memory_space<vmem>>, vector<256x4xf32>
    tpu.vector_store %arg6[%c0_284, %c32_285], %208 {strides = array<i32>} : memref<256x36xf32, #tpu.memory_space<vmem>>, vector<256x4xf32>,
    %c0_286 = arith.constant 0 : index
    %c0_287 = arith.constant 0 : index
    %210 = vector.load %arg6[%c0_286, %c0_287] : memref<256x36xf32, #tpu.memory_space<vmem>>, vector<256x36xf32>
    %c0_288 = arith.constant 0 : index
    %c0_289 = arith.constant 0 : index
    %211 = vector.load %arg3[%c0_288, %c0_289] : memref<36x4xf32, #tpu.memory_space<vmem>>, vector<36x4xf32>
    %cst_290 = arith.constant dense<0.000000e+00> : vector<256x4xf32>
    %212 = tpu.matmul %210, %211, %cst_290 {dimension_numbers = #tpu.dot_dimension_numbers<[1], [0], [0], [1], [0, 0, 1, 1], [], []>} : vector<256x36xf32>, vector<36x4xf32>, vector<256x4xf32> -> vector<256x4xf32>
    %cst_291 = arith.constant dense<0.000000e+00> : vector<4xf32>
    %213 = vector.multi_reduction <add>, %212, %cst_291 [0] : vector<256x4xf32> to vector<4xf32>
    %214 = vector.shape_cast %213 : vector<4xf32> to vector<1x4xf32>
    %cst_292 = arith.constant 2.560000e+02 : f32
    %215 = vector.broadcast %cst_292 : f32 to vector<1x4xf32>
    %216 = arith.divf %214, %215 : vector<1x4xf32>
    %217 = vector.broadcast %216 : vector<1x4xf32> to vector<256x4xf32>
    %218 = arith.subf %212, %217 : vector<256x4xf32>
    %219 = arith.mulf %218, %218 : vector<256x4xf32>
    %cst_293 = arith.constant dense<0.000000e+00> : vector<4xf32>
    %220 = vector.multi_reduction <add>, %219, %cst_293 [0] : vector<256x4xf32> to vector<4xf32>
    %221 = vector.shape_cast %220 : vector<4xf32> to vector<1x4xf32>
    %cst_294 = arith.constant 2.560000e+02 : f32
    %222 = vector.broadcast %cst_294 : f32 to vector<1x4xf32>
    %223 = arith.divf %221, %222 : vector<1x4xf32>
    %cst_295 = arith.constant 9.99999974E-6 : f32
    %224 = vector.broadcast %cst_295 : f32 to vector<1x4xf32>
    %225 = arith.addf %223, %224 : vector<1x4xf32>
    %226 = math.rsqrt %225 : vector<1x4xf32>
    %227 = vector.broadcast %226 : vector<1x4xf32> to vector<256x4xf32>
    %228 = arith.mulf %218, %227 : vector<256x4xf32>
    %229 = vector.shape_cast %228 : vector<256x4xf32> to vector<16x16x4xf32>
    %c0_296 = arith.constant 0 : index
    %c0_297 = arith.constant 0 : index
    %c0_298 = arith.constant 0 : index
    %c0_299 = arith.constant 0 : index
    %230 = vector.load %arg4[%c0_296, %c0_297, %c0_298, %c0_299] : memref<1x16x16x4xf32, #tpu.memory_space<vmem>>, vector<1x16x16x4xf32>
    %231 = vector.shape_cast %230 : vector<1x16x16x4xf32> to vector<16x16x4xf32>
    %232 = vector.shape_cast %229 : vector<16x16x4xf32> to vector<1x16x16x4xf32>
    tpu.vector_store %arg4[%c0_296, %c0_297, %c0_298, %c0_299], %232 {strides = array<i32>} : memref<1x16x16x4xf32, #tpu.memory_space<vmem>>, vector<1x16x16x4xf32>,
    return
  }
  func.func @transform_0(%arg0: i32) -> (i32, i32, i32, i32) {
    %c0_i32 = arith.constant 0 : i32
    %c0_i32_0 = arith.constant 0 : i32
    %c0_i32_1 = arith.constant 0 : i32
    %c0_i32_2 = arith.constant 0 : i32
    return %arg0, %c0_i32, %c0_i32_0, %c0_i32_1 : i32, i32, i32, i32
  }
  func.func @transform_1(%arg0: i32) -> (i32, i32) {
    %c0_i32 = arith.constant 0 : i32
    %c0_i32_0 = arith.constant 0 : i32
    %c0_i32_1 = arith.constant 0 : i32
    return %c0_i32, %c0_i32_0 : i32, i32
  }
  func.func @transform_2(%arg0: i32) -> (i32, i32) {
    %c0_i32 = arith.constant 0 : i32
    %c0_i32_0 = arith.constant 0 : i32
    %c0_i32_1 = arith.constant 0 : i32
    return %c0_i32, %c0_i32_0 : i32, i32
  }
  func.func @transform_3(%arg0: i32) -> (i32, i32, i32, i32) {
    %c0_i32 = arith.constant 0 : i32
    %c0_i32_0 = arith.constant 0 : i32
    %c0_i32_1 = arith.constant 0 : i32
    %c0_i32_2 = arith.constant 0 : i32
    return %arg0, %c0_i32, %c0_i32_0, %c0_i32_1 : i32, i32, i32, i32
  }
}

</mosaic_0001>

<llo_original>
// kernel: resblock_forward.1
$region0: #{resblock_forward.1}
  #allocation0 [shape = 'u32[]', space=smem, size = 0x4, offset = 0x4, fixed_abs, tag = 'smem constant byte address 0x4 - core index']
  #allocation1 [shape = 'u32[72,128]{1,0:T(1,128)}', space=vmem, size = 0x9000, scoped, tag = 'internal scratch']
  #allocation2 [shape = 'f32[18,18,4]{2,1,0:T(8,128)}', space=vmem, size = 0x36000, scoped, tag = 'scratch operand']
  #allocation3 [shape = 'f32[256,36]{1,0:T(8,128)}', space=vmem, size = 0x20000, scoped, tag = 'scratch operand']
  %s0 = inlined_call_operand.vmem [shape: f32[2,16,16,4], index: 0, kind: input, shape index: {}]
  %s1 = inlined_call_operand.vmem [shape: f32[36,4], index: 1, kind: input, shape index: {}]
  %s2 = inlined_call_operand.vmem [shape: f32[36,4], index: 2, kind: input, shape index: {}]
  %s3 = inlined_call_operand.vmem [shape: f32[2,16,16,4], index: 3, kind: output, shape index: {}]
  %s4 = sld [smem:[#allocation0]]
  $region45: #{resblock_forward.1} parent=0
    _
  %s6 = ssub.s32 1, %s4
  %s7 = scalar_select 0, %s6, %s4
  loop: start=0, step=1, limit=4
  $region2: #{resblock_forward.1} parent=0 // loop_pre_header
    _
  $region3: #{resblock_forward.1} parent=0 // loop_header
    %s9 = sphi 0, %s13
    %p10 = scmp.ge.s32.totalorder %s9, 4
    %s19 = sphi 0, %s21
    %s22 = sphi 0, %s19
    %s23 = sphi 0, %s22
    %s39 = sphi 0, %s23
    %s43 = sphi 0, %s43
    %s45 = sphi 0, %s43
    %s46 = sphi 0, %s45
    %s60 = sphi 0, %s46
    %s64 = sphi 0, %s64
    %s66 = sphi 0, %s64
    %s67 = sphi 0, %s66
    %s81 = sphi 0, %s67
    %s87 = sphi 0, %s89
    %s90 = sphi 0, %s87
    %s91 = sphi 0, %s90
    %s107 = sphi 0, %s91
  $region4: #{resblock_forward.1} parent=0 // loop_header_branch
    %12 = sbr.rel (%p10) target = $region8
  $region5: #{resblock_forward.1} parent=0 // loop_body
    %s14 = ssub.s32 %s9, 1
    %s15 = ssub.s32 %s9, 2
    %s16 = sadd.s32 %s9, 1
    %s17 = ssub.s32 %s9, %s16
    %p18 = scmp.eq.s32.totalorder %s17, 0
    %s20 = sadd.s32 %s19, 1
    %s21 = scalar_select %p18, %s19, %s20
    %p24 = pneg %p18
    %p25 = scmp.eq.s32.totalorder %s9, 1
    %p26 = por %p24, %p25
    %p27 = scmp.ne.s32.totalorder %s19, %s22
    %p28 = scmp.eq.s32.totalorder %s9, 0
    %p29 = por %p27, %p28
    %p30 = scmp.ne.s32.totalorder %s19, %s22
    %p31 = scmp.eq.s32.totalorder %s14, 1
    %p32 = por %p30, %p31
    %p33 = scmp.ne.s32.totalorder %s22, %s23
    %p34 = scmp.eq.s32.totalorder %s14, 0
    %p35 = por %p33, %p34
    %p36 = scmp.ne.s32.totalorder %s22, %s23
    %p37 = scmp.eq.s32.totalorder %s15, 1
    %p38 = por %p36, %p37
    %p40 = scmp.ne.s32.totalorder %s23, %s39
    %p41 = scmp.eq.s32.totalorder %s15, 0
    %p42 = por %p40, %p41
    %s44 = sadd.s32 %s43, 1
    %p47 = scmp.eq.s32.totalorder %s9, 1
    %p48 = scmp.ne.s32.totalorder %s43, %s45
    %p49 = scmp.eq.s32.totalorder %s9, 0
    %p50 = por %p48, %p49
    %p51 = scmp.ne.s32.totalorder %s43, %s45
    %p52 = scmp.eq.s32.totalorder %s14, 1
    %p53 = por %p51, %p52
    %p54 = scmp.ne.s32.totalorder %s45, %s46
    %p55 = scmp.eq.s32.totalorder %s14, 0
    %p56 = por %p54, %p55
    %p57 = scmp.ne.s32.totalorder %s45, %s46
    %p58 = scmp.eq.s32.totalorder %s15, 1
    %p59 = por %p57, %p58
    %p61 = scmp.ne.s32.totalorder %s46, %s60
    %p62 = scmp.eq.s32.totalorder %s15, 0
    %p63 = por %p61, %p62
    %s65 = sadd.s32 %s64, 1
    %p68 = scmp.eq.s32.totalorder %s9, 1
    %p69 = scmp.ne.s32.totalorder %s64, %s66
    %p70 = scmp.eq.s32.totalorder %s9, 0
    %p71 = por %p69, %p70
    %p72 = scmp.ne.s32.totalorder %s64, %s66
    %p73 = scmp.eq.s32.totalorder %s14, 1
    %p74 = por %p72, %p73
    %p75 = scmp.ne.s32.totalorder %s66, %s67
    %p76 = scmp.eq.s32.totalorder %s14, 0
    %p77 = por %p75, %p76
    %p78 = scmp.ne.s32.totalorder %s66, %s67
    %p79 = scmp.eq.s32.totalorder %s15, 1
    %p80 = por %p78, %p79
    %p82 = scmp.ne.s32.totalorder %s67, %s81
    %p83 = scmp.eq.s32.totalorder %s15, 0
    %p84 = por %p82, %p83
    %s85 = ssub.s32 %s9, %s16
    %p86 = scmp.eq.s32.totalorder %s85, 0
    %s88 = sadd.s32 %s87, 1
    %s89 = scalar_select %p86, %s87, %s88
    %p92 = pneg %p86
    %p93 = scmp.eq.s32.totalorder %s9, 1
    %p94 = por %p92, %p93
    %p95 = scmp.ne.s32.totalorder %s87, %s90
    %p96 = scmp.eq.s32.totalorder %s9, 0
    %p97 = por %p95, %p96
    %p98 = scmp.ne.s32.totalorder %s87, %s90
    %p99 = scmp.eq.s32.totalorder %s14, 1
    %p100 = por %p98, %p99
    %p101 = scmp.ne.s32.totalorder %s90, %s91
    %p102 = scmp.eq.s32.totalorder %s14, 0
    %p103 = por %p101, %p102
    %p104 = scmp.ne.s32.totalorder %s90, %s91
    %p105 = scmp.eq.s32.totalorder %s15, 1
    %p106 = por %p104, %p105
    %p108 = scmp.ne.s32.totalorder %s91, %s107
    %p109 = scmp.eq.s32.totalorder %s15, 0
    %p110 = por %p108, %p109
    %p111 = scmp.le.s32.totalorder 1, %s9
    %p112 = scmp.lt.s32.totalorder %s9, 3
    %p113 = pnand %p111, %p112
    %p114 = pneg %p113
    // Predicated region
    $region9: #{resblock_forward.1} parent=5 // pred_check
      _
    $region10: #{resblock_forward.1} parent=5 // pred_check_branch
      %116 = sbr.rel (%p113) target = $region12
    $region11: #{resblock_forward.1} parent=5 // pred_region
      %s117 = ssub.s32 %s9, 1
      // Predicated region
      $region13: #{resblock_forward.1} parent=11 // pred_check
        %p118 = pneg %p56
      $region14: #{resblock_forward.1} parent=11 // pred_check_branch
        %120 = sbr.rel (%p118) target = $region16
      $region15: #{resblock_forward.1} parent=11 // pred_region
        _
      $region16: #{resblock_forward.1} parent=11 // pred_fallthru
        _
      // Predicated region
      $region17: #{resblock_forward.1} parent=11 // pred_check
        %p121 = pneg %p77
      $region18: #{resblock_forward.1} parent=11 // pred_check_branch
        %123 = sbr.rel (%p121) target = $region20
      $region19: #{resblock_forward.1} parent=11 // pred_region
        _
      $region20: #{resblock_forward.1} parent=11 // pred_fallthru
        _
    $region12: #{resblock_forward.1} parent=5 // pred_fallthru
      _
    %p124 = scmp.lt.s32.totalorder %s9, 2
    // Predicated region
    $region21: #{resblock_forward.1} parent=5 // pred_check
      %p125 = pneg %p124
    $region22: #{resblock_forward.1} parent=5 // pred_check_branch
      %127 = sbr.rel (%p125) target = $region24
    $region23: #{resblock_forward.1} parent=5 // pred_region
      // Predicated region
      $region25: #{resblock_forward.1} parent=23 // pred_check
        %p128 = pneg %p29
      $region26: #{resblock_forward.1} parent=23 // pred_check_branch
        %130 = sbr.rel (%p128) target = $region28
      $region27: #{resblock_forward.1} parent=23 // pred_region
        %p131 = scmp.lt.s32.totalorder %s9, 1
        %s132 = scalar_select %p131, %s9, 1
        %s133 = smul.addr %s132, 32
        %s134 = smul.addr %s133, 8
        %s135 = scalar_lea.vmem %s0, %s134
      $region28: #{resblock_forward.1} parent=23 // pred_fallthru
        _
    $region24: #{resblock_forward.1} parent=5 // pred_fallthru
      _
    %p136 = scmp.le.s32.totalorder 1, %s9
    %p137 = scmp.lt.s32.totalorder %s9, 3
    %p138 = pnand %p136, %p137
    %p139 = pneg %p138
    // Predicated region
    $region29: #{resblock_forward.1} parent=5 // pred_check
      _
    $region30: #{resblock_forward.1} parent=5 // pred_check_branch
      %141 = sbr.rel (%p138) target = $region32
    $region31: #{resblock_forward.1} parent=5 // pred_region
      %s142 = ssub.s32 %s9, 1
      %p143 = scmp.lt.s32.totalorder %s14, 1
      %s144 = scalar_select %p143, %s14, 1
      %s145 = smul.addr %s144, 32
      %s146 = smul.addr %s145, 8
      %s147 = scalar_lea.vmem %s0, %s146
      %p148 = pneg %p35
      %p149 = pneg %p32
      %p150 = pneg %p56
      %p151 = pneg %p53
      %p152 = pneg %p77
      %p153 = pneg %p74
      %p154 = pneg %p103
      %p155 = pneg %p100
      %p156 = scmp.lt.s32.totalorder %s14, 1
      %s157 = scalar_select %p156, %s14, 1
      %s158 = smul.addr %s157, 32
      %s159 = smul.addr %s158, 8
      %s160 = scalar_lea.vmem %s3, %s159
      %p161 = scmp.lt.s32.totalorder %s14, 1
      %s162 = scalar_select %p161, %s14, 1
      %s163 = smul.addr %s162, 32
      %s164 = smul.addr %s163, 8
      %s165 = scalar_lea.vmem %s0, %s164
      %p166 = scmp.lt.s32.totalorder %s14, 1
      %s167 = scalar_select %p166, %s14, 1
      %s168 = smul.addr %s167, 32
      %s169 = smul.addr %s168, 8
      %s170 = scalar_lea.vmem %s3, %s169
      %v171 = vld [vmem:[%s165] sm:$0xff]
      %v172 = vld [vmem:[%s165 + $0x8] sm:$0xff]
      %v173 = vld [vmem:[%s165 + $0x10] sm:$0xff]
      %v174 = vld [vmem:[%s165 + $0x18] sm:$0xff]
      %v175 = vld [vmem:[%s165 + $0x20] sm:$0xff]
      %v176 = vld [vmem:[%s165 + $0x28] sm:$0xff]
      %v177 = vld [vmem:[%s165 + $0x30] sm:$0xff]
      %v178 = vld [vmem:[%s165 + $0x38] sm:$0xff]
      %v179 = vld [vmem:[%s165 + $0x40] sm:$0xff]
      %v180 = vld [vmem:[%s165 + $0x48] sm:$0xff]
      %v181 = vld [vmem:[%s165 + $0x50] sm:$0xff]
      %v182 = vld [vmem:[%s165 + $0x58] sm:$0xff]
      %v183 = vld [vmem:[%s165 + $0x60] sm:$0xff]
      %v184 = vld [vmem:[%s165 + $0x68] sm:$0xff]
      %v185 = vld [vmem:[%s165 + $0x70] sm:$0xff]
      %v186 = vld [vmem:[%s165 + $0x78] sm:$0xff]
      %v187 = vld [vmem:[%s165 + $0x80] sm:$0xff]
      %v188 = vld [vmem:[%s165 + $0x88] sm:$0xff]
      %v189 = vld [vmem:[%s165 + $0x90] sm:$0xff]
      %v190 = vld [vmem:[%s165 + $0x98] sm:$0xff]
      %v191 = vld [vmem:[%s165 + $0xa0] sm:$0xff]
      %v192 = vld [vmem:[%s165 + $0xa8] sm:$0xff]
      %v193 = vld [vmem:[%s165 + $0xb0] sm:$0xff]
      %v194 = vld [vmem:[%s165 + $0xb8] sm:$0xff]
      %v195 = vld [vmem:[%s165 + $0xc0] sm:$0xff]
      %v196 = vld [vmem:[%s165 + $0xc8] sm:$0xff]
      %v197 = vld [vmem:[%s165 + $0xd0] sm:$0xff]
      %v198 = vld [vmem:[%s165 + $0xd8] sm:$0xff]
      %v199 = vld [vmem:[%s165 + $0xe0] sm:$0xff]
      %v200 = vld [vmem:[%s165 + $0xe8] sm:$0xff]
      %v201 = vld [vmem:[%s165 + $0xf0] sm:$0xff]
      %v202 = vld [vmem:[%s165 + $0xf8] sm:$0xff]
      %s203 = scalar_lea.vmem [#allocation2], 24
      %vm204 = vcmask 31744
      %205 = vst.msk [vmem:[%s203 + $0x1] sm:$0xff] %vm204, %v171
      %206 = vst.msk [vmem:[%s203 + $0x9] sm:$0xff] %vm204, %v172
      %207 = vst.msk [vmem:[%s203 + $0x19] sm:$0xff] %vm204, %v173
      %208 = vst.msk [vmem:[%s203 + $0x21] sm:$0xff] %vm204, %v174
      %209 = vst.msk [vmem:[%s203 + $0x31] sm:$0xff] %vm204, %v175
      %210 = vst.msk [vmem:[%s203 + $0x39] sm:$0xff] %vm204, %v176
      %211 = vst.msk [vmem:[%s203 + $0x49] sm:$0xff] %vm204, %v177
      %212 = vst.msk [vmem:[%s203 + $0x51] sm:$0xff] %vm204, %v178
      %213 = vst.msk [vmem:[%s203 + $0x61] sm:$0xff] %vm204, %v179
      %214 = vst.msk [vmem:[%s203 + $0x69] sm:$0xff] %vm204, %v180
      %215 = vst.msk [vmem:[%s203 + $0x79] sm:$0xff] %vm204, %v181
      %216 = vst.msk [vmem:[%s203 + $0x81] sm:$0xff] %vm204, %v182
      %217 = vst.msk [vmem:[%s203 + $0x91] sm:$0xff] %vm204, %v183
      %218 = vst.msk [vmem:[%s203 + $0x99] sm:$0xff] %vm204, %v184
      %219 = vst.msk [vmem:[%s203 + $0xa9] sm:$0xff] %vm204, %v185
      %220 = vst.msk [vmem:[%s203 + $0xb1] sm:$0xff] %vm204, %v186
      %221 = vst.msk [vmem:[%s203 + $0xc1] sm:$0xff] %vm204, %v187
      %222 = vst.msk [vmem:[%s203 + $0xc9] sm:$0xff] %vm204, %v188
      %223 = vst.msk [vmem:[%s203 + $0xd9] sm:$0xff] %vm204, %v189
      %224 = vst.msk [vmem:[%s203 + $0xe1] sm:$0xff] %vm204, %v190
      %225 = vst.msk [vmem:[%s203 + $0xf1] sm:$0xff] %vm204, %v191
      %226 = vst.msk [vmem:[%s203 + $0xf9] sm:$0xff] %vm204, %v192
      %227 = vst.msk [vmem:[%s203 + $0x109] sm:$0xff] %vm204, %v193
      %228 = vst.msk [vmem:[%s203 + $0x111] sm:$0xff] %vm204, %v194
      %229 = vst.msk [vmem:[%s203 + $0x121] sm:$0xff] %vm204, %v195
      %230 = vst.msk [vmem:[%s203 + $0x129] sm:$0xff] %vm204, %v196
      %231 = vst.msk [vmem:[%s203 + $0x139] sm:$0xff] %vm204, %v197
      %232 = vst.msk [vmem:[%s203 + $0x141] sm:$0xff] %vm204, %v198
      %233 = vst.msk [vmem:[%s203 + $0x151] sm:$0xff] %vm204, %v199
      %234 = vst.msk [vmem:[%s203 + $0x159] sm:$0xff] %vm204, %v200
      %235 = vst.msk [vmem:[%s203 + $0x169] sm:$0xff] %vm204, %v201
      %236 = vst.msk [vmem:[%s203 + $0x171] sm:$0xff] %vm204, %v202
      %237 = vst.msk [vmem:[#allocation2 + $0x1] sm:$0xff] %vm204, %v173
      %238 = vst.msk [vmem:[#allocation2 + $0x9] sm:$0xff] %vm204, %v174
      %s239 = scalar_lea.vmem [#allocation2], 408
      %240 = vst.msk [vmem:[%s239 + $0x1] sm:$0xff] %vm204, %v199
      %241 = vst.msk [vmem:[%s239 + $0x9] sm:$0xff] %vm204, %v200
      %v242 = vld [vmem:[#allocation2 + $0x2] sm:$0x1]
      %v243 = vld [vmem:[#allocation2 + $0x1a] sm:$0x1]
      %v244 = vld [vmem:[#allocation2 + $0x32] sm:$0x1]
      %v245 = vld [vmem:[#allocation2 + $0x4a] sm:$0x1]
      %v246 = vld [vmem:[#allocation2 + $0x62] sm:$0x1]
      %v247 = vld [vmem:[#allocation2 + $0x7a] sm:$0x1]
      %v248 = vld [vmem:[#allocation2 + $0x92] sm:$0x1]
      %v249 = vld [vmem:[#allocation2 + $0xaa] sm:$0x1]
      %v250 = vld [vmem:[#allocation2 + $0xc2] sm:$0x1]
      %v251 = vld [vmem:[#allocation2 + $0xda] sm:$0x1]
      %v252 = vld [vmem:[#allocation2 + $0xf2] sm:$0x1]
      %v253 = vld [vmem:[#allocation2 + $0x10a] sm:$0x1]
      %v254 = vld [vmem:[#allocation2 + $0x122] sm:$0x1]
      %v255 = vld [vmem:[#allocation2 + $0x13a] sm:$0x1]
      %v256 = vld [vmem:[#allocation2 + $0x152] sm:$0x1]
      %v257 = vld [vmem:[#allocation2 + $0x16a] sm:$0x1]
      %v258 = vld [vmem:[#allocation2 + $0x182] sm:$0x1]
      %v259 = vld [vmem:[#allocation2 + $0x19a] sm:$0x1]
      %vm260 = vcmask 24576
      %261 = vst.msk [vmem:[#allocation2] sm:$0x1] %vm260, %v242
      %262 = vst.msk [vmem:[#allocation2 + $0x18] sm:$0x1] %vm260, %v243
      %263 = vst.msk [vmem:[#allocation2 + $0x30] sm:$0x1] %vm260, %v244
      %264 = vst.msk [vmem:[#allocation2 + $0x48] sm:$0x1] %vm260, %v245
      %265 = vst.msk [vmem:[#allocation2 + $0x60] sm:$0x1] %vm260, %v246
      %266 = vst.msk [vmem:[#allocation2 + $0x78] sm:$0x1] %vm260, %v247
      %267 = vst.msk [vmem:[#allocation2 + $0x90] sm:$0x1] %vm260, %v248
      %268 = vst.msk [vmem:[#allocation2 + $0xa8] sm:$0x1] %vm260, %v249
      %269 = vst.msk [vmem:[#allocation2 + $0xc0] sm:$0x1] %vm260, %v250
      %270 = vst.msk [vmem:[#allocation2 + $0xd8] sm:$0x1] %vm260, %v251
      %271 = vst.msk [vmem:[#allocation2 + $0xf0] sm:$0x1] %vm260, %v252
      %272 = vst.msk [vmem:[#allocation2 + $0x108] sm:$0x1] %vm260, %v253
      %273 = vst.msk [vmem:[#allocation2 + $0x120] sm:$0x1] %vm260, %v254
      %274 = vst.msk [vmem:[#allocation2 + $0x138] sm:$0x1] %vm260, %v255
      %275 = vst.msk [vmem:[#allocation2 + $0x150] sm:$0x1] %vm260, %v256
      %276 = vst.msk [vmem:[#allocation2 + $0x168] sm:$0x1] %vm260, %v257
      %277 = vst.msk [vmem:[#allocation2 + $0x180] sm:$0x1] %vm260, %v258
      %278 = vst.msk [vmem:[#allocation2 + $0x198] sm:$0x1] %vm260, %v259
      %v279 = vld [vmem:[#allocation2 + $0xf] sm:$0x1]
      %v280 = vld [vmem:[#allocation2 + $0x27] sm:$0x1]
      %v281 = vld [vmem:[#allocation2 + $0x3f] sm:$0x1]
      %v282 = vld [vmem:[#allocation2 + $0x57] sm:$0x1]
      %v283 = vld [vmem:[#allocation2 + $0x6f] sm:$0x1]
      %v284 = vld [vmem:[#allocation2 + $0x87] sm:$0x1]
      %v285 = vld [vmem:[#allocation2 + $0x9f] sm:$0x1]
      %v286 = vld [vmem:[#allocation2 + $0xb7] sm:$0x1]
      %v287 = vld [vmem:[#allocation2 + $0xcf] sm:$0x1]
      %v288 = vld [vmem:[#allocation2 + $0xe7] sm:$0x1]
      %v289 = vld [vmem:[#allocation2 + $0xff] sm:$0x1]
      %v290 = vld [vmem:[#allocation2 + $0x117] sm:$0x1]
      %v291 = vld [vmem:[#allocation2 + $0x12f] sm:$0x1]
      %v292 = vld [vmem:[#allocation2 + $0x147] sm:$0x1]
      %v293 = vld [vmem:[#allocation2 + $0x15f] sm:$0x1]
      %v294 = vld [vmem:[#allocation2 + $0x177] sm:$0x1]
      %v295 = vld [vmem:[#allocation2 + $0x18f] sm:$0x1]
      %v296 = vld [vmem:[#allocation2 + $0x1a7] sm:$0x1]
      %297 = vst.msk [vmem:[#allocation2 + $0x11] sm:$0x1] %vm260, %v279
      %298 = vst.msk [vmem:[#allocation2 + $0x29] sm:$0x1] %vm260, %v280
      %299 = vst.msk [vmem:[#allocation2 + $0x41] sm:$0x1] %vm260, %v281
      %300 = vst.msk [vmem:[#allocation2 + $0x59] sm:$0x1] %vm260, %v282
      %301 = vst.msk [vmem:[#allocation2 + $0x71] sm:$0x1] %vm260, %v283
      %302 = vst.msk [vmem:[#allocation2 + $0x89] sm:$0x1] %vm260, %v284
      %303 = vst.msk [vmem:[#allocation2 + $0xa1] sm:$0x1] %vm260, %v285
      %304 = vst.msk [vmem:[#allocation2 + $0xb9] sm:$0x1] %vm260, %v286
      %305 = vst.msk [vmem:[#allocation2 + $0xd1] sm:$0x1] %vm260, %v287
      %306 = vst.msk [vmem:[#allocation2 + $0xe9] sm:$0x1] %vm260, %v288
      %307 = vst.msk [vmem:[#allocation2 + $0x101] sm:$0x1] %vm260, %v289
      %308 = vst.msk [vmem:[#allocation2 + $0x119] sm:$0x1] %vm260, %v290
      %309 = vst.msk [vmem:[#allocation2 + $0x131] sm:$0x1] %vm260, %v291
      %310 = vst.msk [vmem:[#allocation2 + $0x149] sm:$0x1] %vm260, %v292
      %311 = vst.msk [vmem:[#allocation2 + $0x161] sm:$0x1] %vm260, %v293
      %312 = vst.msk [vmem:[#allocation2 + $0x179] sm:$0x1] %vm260, %v294
      %313 = vst.msk [vmem:[#allocation2 + $0x191] sm:$0x1] %vm260, %v295
      %314 = vst.msk [vmem:[#allocation2 + $0x1a9] sm:$0x1] %vm260, %v296
      %v315 = vld [vmem:[#allocation2] sm:$0xff]
      %v316 = vld [vmem:[#allocation2 + $0x8] sm:$0xff]
      %v317 = vld [vmem:[#allocation2 + $0x18] sm:$0xff]
      %v318 = vld [vmem:[#allocation2 + $0x20] sm:$0xff]
      %v319 = vld [vmem:[#allocation2 + $0x30] sm:$0xff]
      %v320 = vld [vmem:[#allocation2 + $0x38] sm:$0xff]
      %v321 = vld [vmem:[#allocation2 + $0x48] sm:$0xff]
      %v322 = vld [vmem:[#allocation2 + $0x50] sm:$0xff]
      %v323 = vld [vmem:[#allocation2 + $0x60] sm:$0xff]
      %v324 = vld [vmem:[#allocation2 + $0x68] sm:$0xff]
      %v325 = vld [vmem:[#allocation2 + $0x78] sm:$0xff]
      %v326 = vld [vmem:[#allocation2 + $0x80] sm:$0xff]
      %v327 = vld [vmem:[#allocation2 + $0x90] sm:$0xff]
      %v328 = vld [vmem:[#allocation2 + $0x98] sm:$0xff]
      %v329 = vld [vmem:[#allocation2 + $0xa8] sm:$0xff]
      %v330 = vld [vmem:[#allocation2 + $0xb0] sm:$0xff]
      %v331 = vld [vmem:[#allocation2 + $0xc0] sm:$0xff]
      %v332 = vld [vmem:[#allocation2 + $0xc8] sm:$0xff]
      %v333 = vld [vmem:[#allocation2 + $0xd8] sm:$0xff]
      %v334 = vld [vmem:[#allocation2 + $0xe0] sm:$0xff]
      %v335 = vld [vmem:[#allocation2 + $0xf0] sm:$0xff]
      %v336 = vld [vmem:[#allocation2 + $0xf8] sm:$0xff]
      %v337 = vld [vmem:[#allocation2 + $0x108] sm:$0xff]
      %v338 = vld [vmem:[#allocation2 + $0x110] sm:$0xff]
      %v339 = vld [vmem:[#allocation2 + $0x120] sm:$0xff]
      %v340 = vld [vmem:[#allocation2 + $0x128] sm:$0xff]
      %v341 = vld [vmem:[#allocation2 + $0x138] sm:$0xff]
      %v342 = vld [vmem:[#allocation2 + $0x140] sm:$0xff]
      %v343 = vld [vmem:[#allocation2 + $0x150] sm:$0xff]
      %v344 = vld [vmem:[#allocation2 + $0x158] sm:$0xff]
      %v345 = vld [vmem:[#allocation2 + $0x168] sm:$0xff]
      %v346 = vld [vmem:[#allocation2 + $0x170] sm:$0xff]
      %347 = vst.msk [vmem:[#allocation3] sm:$0xff] %vm204, %v315
      %348 = vst.msk [vmem:[#allocation3 + $0x8] sm:$0xff] %vm204, %v316
      %349 = vst.msk [vmem:[#allocation3 + $0x10] sm:$0xff] %vm204, %v317
      %350 = vst.msk [vmem:[#allocation3 + $0x18] sm:$0xff] %vm204, %v318
      %351 = vst.msk [vmem:[#allocation3 + $0x20] sm:$0xff] %vm204, %v319
      %352 = vst.msk [vmem:[#allocation3 + $0x28] sm:$0xff] %vm204, %v320
      %353 = vst.msk [vmem:[#allocation3 + $0x30] sm:$0xff] %vm204, %v321
      %354 = vst.msk [vmem:[#allocation3 + $0x38] sm:$0xff] %vm204, %v322
      %355 = vst.msk [vmem:[#allocation3 + $0x40] sm:$0xff] %vm204, %v323
      %356 = vst.msk [vmem:[#allocation3 + $0x48] sm:$0xff] %vm204, %v324
      %357 = vst.msk [vmem:[#allocation3 + $0x50] sm:$0xff] %vm204, %v325
      %358 = vst.msk [vmem:[#allocation3 + $0x58] sm:$0xff] %vm204, %v326
      %359 = vst.msk [vmem:[#allocation3 + $0x60] sm:$0xff] %vm204, %v327
      %360 = vst.msk [vmem:[#allocation3 + $0x68] sm:$0xff] %vm204, %v328
      %361 = vst.msk [vmem:[#allocation3 + $0x70] sm:$0xff] %vm204, %v329
      %362 = vst.msk [vmem:[#allocation3 + $0x78] sm:$0xff] %vm204, %v330
      %363 = vst.msk [vmem:[#allocation3 + $0x80] sm:$0xff] %vm204, %v331
      %364 = vst.msk [vmem:[#allocation3 + $0x88] sm:$0xff] %vm204, %v332
      %365 = vst.msk [vmem:[#allocation3 + $0x90] sm:$0xff] %vm204, %v333
      %366 = vst.msk [vmem:[#allocation3 + $0x98] sm:$0xff] %vm204, %v334
      %367 = vst.msk [vmem:[#allocation3 + $0xa0] sm:$0xff] %vm204, %v335
      %368 = vst.msk [vmem:[#allocation3 + $0xa8] sm:$0xff] %vm204, %v336
      %369 = vst.msk [vmem:[#allocation3 + $0xb0] sm:$0xff] %vm204, %v337
      %370 = vst.msk [vmem:[#allocation3 + $0xb8] sm:$0xff] %vm204, %v338
      %371 = vst.msk [vmem:[#allocation3 + $0xc0] sm:$0xff] %vm204, %v339
      %372 = vst.msk [vmem:[#allocation3 + $0xc8] sm:$0xff] %vm204, %v340
      %373 = vst.msk [vmem:[#allocation3 + $0xd0] sm:$0xff] %vm204, %v341
      %374 = vst.msk [vmem:[#allocation3 + $0xd8] sm:$0xff] %vm204, %v342
      %375 = vst.msk [vmem:[#allocation3 + $0xe0] sm:$0xff] %vm204, %v343
      %376 = vst.msk [vmem:[#allocation3 + $0xe8] sm:$0xff] %vm204, %v344
      %377 = vst.msk [vmem:[#allocation3 + $0xf0] sm:$0xff] %vm204, %v345
      %378 = vst.msk [vmem:[#allocation3 + $0xf8] sm:$0xff] %vm204, %v346
      %v379 = vld [vmem:[#allocation2 + $0x1] sm:$0xff]
      %v380 = vld [vmem:[#allocation2 + $0x9] sm:$0xff]
      %v381 = vld [vmem:[#allocation2 + $0x19] sm:$0xff]
      %v382 = vld [vmem:[#allocation2 + $0x21] sm:$0xff]
      %v383 = vld [vmem:[#allocation2 + $0x31] sm:$0xff]
      %v384 = vld [vmem:[#allocation2 + $0x39] sm:$0xff]
      %v385 = vld [vmem:[#allocation2 + $0x49] sm:$0xff]
      %v386 = vld [vmem:[#allocation2 + $0x51] sm:$0xff]
      %v387 = vld [vmem:[#allocation2 + $0x61] sm:$0xff]
      %v388 = vld [vmem:[#allocation2 + $0x69] sm:$0xff]
      %v389 = vld [vmem:[#allocation2 + $0x79] sm:$0xff]
      %v390 = vld [vmem:[#allocation2 + $0x81] sm:$0xff]
      %v391 = vld [vmem:[#allocation2 + $0x91] sm:$0xff]
      %v392 = vld [vmem:[#allocation2 + $0x99] sm:$0xff]
      %v393 = vld [vmem:[#allocation2 + $0xa9] sm:$0xff]
      %v394 = vld [vmem:[#allocation2 + $0xb1] sm:$0xff]
      %v395 = vld [vmem:[#allocation2 + $0xc1] sm:$0xff]
      %v396 = vld [vmem:[#allocation2 + $0xc9] sm:$0xff]
      %v397 = vld [vmem:[#allocation2 + $0xd9] sm:$0xff]
      %v398 = vld [vmem:[#allocation2 + $0xe1] sm:$0xff]
      %v399 = vld [vmem:[#allocation2 + $0xf1] sm:$0xff]
      %v400 = vld [vmem:[#allocation2 + $0xf9] sm:$0xff]
      %v401 = vld [vmem:[#allocation2 + $0x109] sm:$0xff]
      %v402 = vld [vmem:[#allocation2 + $0x111] sm:$0xff]
      %v403 = vld [vmem:[#allocation2 + $0x121] sm:$0xff]
      %v404 = vld [vmem:[#allocation2 + $0x129] sm:$0xff]
      %v405 = vld [vmem:[#allocation2 + $0x139] sm:$0xff]
      %v406 = vld [vmem:[#allocation2 + $0x141] sm:$0xff]
      %v407 = vld [vmem:[#allocation2 + $0x151] sm:$0xff]
      %v408 = vld [vmem:[#allocation2 + $0x159] sm:$0xff]
      %v409 = vld [vmem:[#allocation2 + $0x169] sm:$0xff]
      %v410 = vld [vmem:[#allocation2 + $0x171] sm:$0xff]
      %443 = vrot.lane.b32.xlu0 %v379, 4
      %v444 = vpop.permute.xlu0 %443
      %445 = vrot.lane.b32.xlu0 %v380, 4
      %v446 = vpop.permute.xlu0 %445
      %447 = vrot.lane.b32.xlu0 %v381, 4
      %v448 = vpop.permute.xlu0 %447
      %449 = vrot.lane.b32.xlu0 %v382, 4
      %v450 = vpop.permute.xlu0 %449
      %451 = vrot.lane.b32.xlu0 %v383, 4
      %v452 = vpop.permute.xlu0 %451
      %453 = vrot.lane.b32.xlu0 %v384, 4
      %v454 = vpop.permute.xlu0 %453
      %455 = vrot.lane.b32.xlu0 %v385, 4
      %v456 = vpop.permute.xlu0 %455
      %457 = vrot.lane.b32.xlu0 %v386, 4
      %v458 = vpop.permute.xlu0 %457
      %459 = vrot.lane.b32.xlu0 %v387, 4
      %v460 = vpop.permute.xlu0 %459
      %461 = vrot.lane.b32.xlu0 %v388, 4
      %v462 = vpop.permute.xlu0 %461
      %463 = vrot.lane.b32.xlu0 %v389, 4
      %v464 = vpop.permute.xlu0 %463
      %465 = vrot.lane.b32.xlu0 %v390, 4
      %v466 = vpop.permute.xlu0 %465
      %467 = vrot.lane.b32.xlu0 %v391, 4
      %v468 = vpop.permute.xlu0 %467
      %469 = vrot.lane.b32.xlu0 %v392, 4
      %v470 = vpop.permute.xlu0 %469
      %471 = vrot.lane.b32.xlu0 %v393, 4
      %v472 = vpop.permute.xlu0 %471
      %473 = vrot.lane.b32.xlu0 %v394, 4
      %v474 = vpop.permute.xlu0 %473
      %475 = vrot.lane.b32.xlu0 %v395, 4
      %v476 = vpop.permute.xlu0 %475
      %477 = vrot.lane.b32.xlu0 %v396, 4
      %v478 = vpop.permute.xlu0 %477
      %479 = vrot.lane.b32.xlu0 %v397, 4
      %v480 = vpop.permute.xlu0 %479
      %481 = vrot.lane.b32.xlu0 %v398, 4
      %v482 = vpop.permute.xlu0 %481
      %483 = vrot.lane.b32.xlu0 %v399, 4
      %v484 = vpop.permute.xlu0 %483
      %485 = vrot.lane.b32.xlu0 %v400, 4
      %v486 = vpop.permute.xlu0 %485
      %487 = vrot.lane.b32.xlu0 %v401, 4
      %v488 = vpop.permute.xlu0 %487
      %489 = vrot.lane.b32.xlu0 %v402, 4
      %v490 = vpop.permute.xlu0 %489
      %491 = vrot.lane.b32.xlu0 %v403, 4
      %v492 = vpop.permute.xlu0 %491
      %493 = vrot.lane.b32.xlu0 %v404, 4
      %v494 = vpop.permute.xlu0 %493
      %495 = vrot.lane.b32.xlu0 %v405, 4
      %v496 = vpop.permute.xlu0 %495
      %497 = vrot.lane.b32.xlu0 %v406, 4
      %v498 = vpop.permute.xlu0 %497
      %499 = vrot.lane.b32.xlu0 %v407, 4
      %v500 = vpop.permute.xlu0 %499
      %501 = vrot.lane.b32.xlu0 %v408, 4
      %v502 = vpop.permute.xlu0 %501
      %503 = vrot.lane.b32.xlu0 %v409, 4
      %v504 = vpop.permute.xlu0 %503
      %505 = vrot.lane.b32.xlu0 %v410, 4
      %v506 = vpop.permute.xlu0 %505
      %vm539 = vcmask 64544
      %540 = vst.msk [vmem:[#allocation3] sm:$0xff] %vm539, %v444
      %541 = vst.msk [vmem:[#allocation3 + $0x8] sm:$0xff] %vm539, %v446
      %542 = vst.msk [vmem:[#allocation3 + $0x10] sm:$0xff] %vm539, %v448
      %543 = vst.msk [vmem:[#allocation3 + $0x18] sm:$0xff] %vm539, %v450
      %544 = vst.msk [vmem:[#allocation3 + $0x20] sm:$0xff] %vm539, %v452
      %545 = vst.msk [vmem:[#allocation3 + $0x28] sm:$0xff] %vm539, %v454
      %546 = vst.msk [vmem:[#allocation3 + $0x30] sm:$0xff] %vm539, %v456
      %547 = vst.msk [vmem:[#allocation3 + $0x38] sm:$0xff] %vm539, %v458
      %548 = vst.msk [vmem:[#allocation3 + $0x40] sm:$0xff] %vm539, %v460
      %549 = vst.msk [vmem:[#allocation3 + $0x48] sm:$0xff] %vm539, %v462
      %550 = vst.msk [vmem:[#allocation3 + $0x50] sm:$0xff] %vm539, %v464
      %551 = vst.msk [vmem:[#allocation3 + $0x58] sm:$0xff] %vm539, %v466
      %552 = vst.msk [vmem:[#allocation3 + $0x60] sm:$0xff] %vm539, %v468
      %553 = vst.msk [vmem:[#allocation3 + $0x68] sm:$0xff] %vm539, %v470
      %554 = vst.msk [vmem:[#allocation3 + $0x70] sm:$0xff] %vm539, %v472
      %555 = vst.msk [vmem:[#allocation3 + $0x78] sm:$0xff] %vm539, %v474
      %556 = vst.msk [vmem:[#allocation3 + $0x80] sm:$0xff] %vm539, %v476
      %557 = vst.msk [vmem:[#allocation3 + $0x88] sm:$0xff] %vm539, %v478
      %558 = vst.msk [vmem:[#allocation3 + $0x90] sm:$0xff] %vm539, %v480
      %559 = vst.msk [vmem:[#allocation3 + $0x98] sm:$0xff] %vm539, %v482
      %560 = vst.msk [vmem:[#allocation3 + $0xa0] sm:$0xff] %vm539, %v484
      %561 = vst.msk [vmem:[#allocation3 + $0xa8] sm:$0xff] %vm539, %v486
      %562 = vst.msk [vmem:[#allocation3 + $0xb0] sm:$0xff] %vm539, %v488
      %563 = vst.msk [vmem:[#allocation3 + $0xb8] sm:$0xff] %vm539, %v490
      %564 = vst.msk [vmem:[#allocation3 + $0xc0] sm:$0xff] %vm539, %v492
      %565 = vst.msk [vmem:[#allocation3 + $0xc8] sm:$0xff] %vm539, %v494
      %566 = vst.msk [vmem:[#allocation3 + $0xd0] sm:$0xff] %vm539, %v496
      %567 = vst.msk [vmem:[#allocation3 + $0xd8] sm:$0xff] %vm539, %v498
      %568 = vst.msk [vmem:[#allocation3 + $0xe0] sm:$0xff] %vm539, %v500
      %569 = vst.msk [vmem:[#allocation3 + $0xe8] sm:$0xff] %vm539, %v502
      %570 = vst.msk [vmem:[#allocation3 + $0xf0] sm:$0xff] %vm539, %v504
      %571 = vst.msk [vmem:[#allocation3 + $0xf8] sm:$0xff] %vm539, %v506
      %v572 = vld [vmem:[#allocation2 + $0x2] sm:$0xff]
      %v573 = vld [vmem:[#allocation2 + $0xa] sm:$0xff]
      %v574 = vld [vmem:[#allocation2 + $0x1a] sm:$0xff]
      %v575 = vld [vmem:[#allocation2 + $0x22] sm:$0xff]
      %v576 = vld [vmem:[#allocation2 + $0x32] sm:$0xff]
      %v577 = vld [vmem:[#allocation2 + $0x3a] sm:$0xff]
      %v578 = vld [vmem:[#allocation2 + $0x4a] sm:$0xff]
      %v579 = vld [vmem:[#allocation2 + $0x52] sm:$0xff]
      %v580 = vld [vmem:[#allocation2 + $0x62] sm:$0xff]
      %v581 = vld [vmem:[#allocation2 + $0x6a] sm:$0xff]
      %v582 = vld [vmem:[#allocation2 + $0x7a] sm:$0xff]
      %v583 = vld [vmem:[#allocation2 + $0x82] sm:$0xff]
      %v584 = vld [vmem:[#allocation2 + $0x92] sm:$0xff]
      %v585 = vld [vmem:[#allocation2 + $0x9a] sm:$0xff]
      %v586 = vld [vmem:[#allocation2 + $0xaa] sm:$0xff]
      %v587 = vld [vmem:[#allocation2 + $0xb2] sm:$0xff]
      %v588 = vld [vmem:[#allocation2 + $0xc2] sm:$0xff]
      %v589 = vld [vmem:[#allocation2 + $0xca] sm:$0xff]
      %v590 = vld [vmem:[#allocation2 + $0xda] sm:$0xff]
      %v591 = vld [vmem:[#allocation2 + $0xe2] sm:$0xff]
      %v592 = vld [vmem:[#allocation2 + $0xf2] sm:$0xff]
      %v593 = vld [vmem:[#allocation2 + $0xfa] sm:$0xff]
      %v594 = vld [vmem:[#allocation2 + $0x10a] sm:$0xff]
      %v595 = vld [vmem:[#allocation2 + $0x112] sm:$0xff]
      %v596 = vld [vmem:[#allocation2 + $0x122] sm:$0xff]
      %v597 = vld [vmem:[#allocation2 + $0x12a] sm:$0xff]
      %v598 = vld [vmem:[#allocation2 + $0x13a] sm:$0xff]
      %v599 = vld [vmem:[#allocation2 + $0x142] sm:$0xff]
      %v600 = vld [vmem:[#allocation2 + $0x152] sm:$0xff]
      %v601 = vld [vmem:[#allocation2 + $0x15a] sm:$0xff]
      %v602 = vld [vmem:[#allocation2 + $0x16a] sm:$0xff]
      %v603 = vld [vmem:[#allocation2 + $0x172] sm:$0xff]
      %636 = vrot.lane.b32.xlu0 %v572, 8
      %v637 = vpop.permute.xlu0 %636
      %638 = vrot.lane.b32.xlu0 %v573, 8
      %v639 = vpop.permute.xlu0 %638
      %640 = vrot.lane.b32.xlu0 %v574, 8
      %v641 = vpop.permute.xlu0 %640
      %642 = vrot.lane.b32.xlu0 %v575, 8
      %v643 = vpop.permute.xlu0 %642
      %644 = vrot.lane.b32.xlu0 %v576, 8
      %v645 = vpop.permute.xlu0 %644
      %646 = vrot.lane.b32.xlu0 %v577, 8
      %v647 = vpop.permute.xlu0 %646
      %648 = vrot.lane.b32.xlu0 %v578, 8
      %v649 = vpop.permute.xlu0 %648
      %650 = vrot.lane.b32.xlu0 %v579, 8
      %v651 = vpop.permute.xlu0 %650
      %652 = vrot.lane.b32.xlu0 %v580, 8
      %v653 = vpop.permute.xlu0 %652
      %654 = vrot.lane.b32.xlu0 %v581, 8
      %v655 = vpop.permute.xlu0 %654
      %656 = vrot.lane.b32.xlu0 %v582, 8
      %v657 = vpop.permute.xlu0 %656
      %658 = vrot.lane.b32.xlu0 %v583, 8
      %v659 = vpop.permute.xlu0 %658
      %660 = vrot.lane.b32.xlu0 %v584, 8
      %v661 = vpop.permute.xlu0 %660
      %662 = vrot.lane.b32.xlu0 %v585, 8
      %v663 = vpop.permute.xlu0 %662
      %664 = vrot.lane.b32.xlu0 %v586, 8
      %v665 = vpop.permute.xlu0 %664
      %666 = vrot.lane.b32.xlu0 %v587, 8
      %v667 = vpop.permute.xlu0 %666
      %668 = vrot.lane.b32.xlu0 %v588, 8
      %v669 = vpop.permute.xlu0 %668
      %670 = vrot.lane.b32.xlu0 %v589, 8
      %v671 = vpop.permute.xlu0 %670
      %672 = vrot.lane.b32.xlu0 %v590, 8
      %v673 = vpop.permute.xlu0 %672
      %674 = vrot.lane.b32.xlu0 %v591, 8
      %v675 = vpop.permute.xlu0 %674
      %676 = vrot.lane.b32.xlu0 %v592, 8
      %v677 = vpop.permute.xlu0 %676
      %678 = vrot.lane.b32.xlu0 %v593, 8
      %v679 = vpop.permute.xlu0 %678
      %680 = vrot.lane.b32.xlu0 %v594, 8
      %v681 = vpop.permute.xlu0 %680
      %682 = vrot.lane.b32.xlu0 %v595, 8
      %v683 = vpop.permute.xlu0 %682
      %684 = vrot.lane.b32.xlu0 %v596, 8
      %v685 = vpop.permute.xlu0 %684
      %686 = vrot.lane.b32.xlu0 %v597, 8
      %v687 = vpop.permute.xlu0 %686
      %688 = vrot.lane.b32.xlu0 %v598, 8
      %v689 = vpop.permute.xlu0 %688
      %690 = vrot.lane.b32.xlu0 %v599, 8
      %v691 = vpop.permute.xlu0 %690
      %692 = vrot.lane.b32.xlu0 %v600, 8
      %v693 = vpop.permute.xlu0 %692
      %694 = vrot.lane.b32.xlu0 %v601, 8
      %v695 = vpop.permute.xlu0 %694
      %696 = vrot.lane.b32.xlu0 %v602, 8
      %v697 = vpop.permute.xlu0 %696
      %698 = vrot.lane.b32.xlu0 %v603, 8
      %v699 = vpop.permute.xlu0 %698
      %vm732 = vcmask 97344
      %733 = vst.msk [vmem:[#allocation3] sm:$0xff] %vm732, %v637
      %734 = vst.msk [vmem:[#allocation3 + $0x8] sm:$0xff] %vm732, %v639
      %735 = vst.msk [vmem:[#allocation3 + $0x10] sm:$0xff] %vm732, %v641
      %736 = vst.msk [vmem:[#allocation3 + $0x18] sm:$0xff] %vm732, %v643
      %737 = vst.msk [vmem:[#allocation3 + $0x20] sm:$0xff] %vm732, %v645
      %738 = vst.msk [vmem:[#allocation3 + $0x28] sm:$0xff] %vm732, %v647
      %739 = vst.msk [vmem:[#allocation3 + $0x30] sm:$0xff] %vm732, %v649
      %740 = vst.msk [vmem:[#allocation3 + $0x38] sm:$0xff] %vm732, %v651
      %741 = vst.msk [vmem:[#allocation3 + $0x40] sm:$0xff] %vm732, %v653
      %742 = vst.msk [vmem:[#allocation3 + $0x48] sm:$0xff] %vm732, %v655
      %743 = vst.msk [vmem:[#allocation3 + $0x50] sm:$0xff] %vm732, %v657
      %744 = vst.msk [vmem:[#allocation3 + $0x58] sm:$0xff] %vm732, %v659
      %745 = vst.msk [vmem:[#allocation3 + $0x60] sm:$0xff] %vm732, %v661
      %746 = vst.msk [vmem:[#allocation3 + $0x68] sm:$0xff] %vm732, %v663
      %747 = vst.msk [vmem:[#allocation3 + $0x70] sm:$0xff] %vm732, %v665
      %748 = vst.msk [vmem:[#allocation3 + $0x78] sm:$0xff] %vm732, %v667
      %749 = vst.msk [vmem:[#allocation3 + $0x80] sm:$0xff] %vm732, %v669
      %750 = vst.msk [vmem:[#allocation3 + $0x88] sm:$0xff] %vm732, %v671
      %751 = vst.msk [vmem:[#allocation3 + $0x90] sm:$0xff] %vm732, %v673
      %752 = vst.msk [vmem:[#allocation3 + $0x98] sm:$0xff] %vm732, %v675
      %753 = vst.msk [vmem:[#allocation3 + $0xa0] sm:$0xff] %vm732, %v677
      %754 = vst.msk [vmem:[#allocation3 + $0xa8] sm:$0xff] %vm732, %v679
      %755 = vst.msk [vmem:[#allocation3 + $0xb0] sm:$0xff] %vm732, %v681
      %756 = vst.msk [vmem:[#allocation3 + $0xb8] sm:$0xff] %vm732, %v683
      %757 = vst.msk [vmem:[#allocation3 + $0xc0] sm:$0xff] %vm732, %v685
      %758 = vst.msk [vmem:[#allocation3 + $0xc8] sm:$0xff] %vm732, %v687
      %759 = vst.msk [vmem:[#allocation3 + $0xd0] sm:$0xff] %vm732, %v689
      %760 = vst.msk [vmem:[#allocation3 + $0xd8] sm:$0xff] %vm732, %v691
      %761 = vst.msk [vmem:[#allocation3 + $0xe0] sm:$0xff] %vm732, %v693
      %762 = vst.msk [vmem:[#allocation3 + $0xe8] sm:$0xff] %vm732, %v695
      %763 = vst.msk [vmem:[#allocation3 + $0xf0] sm:$0xff] %vm732, %v697
      %764 = vst.msk [vmem:[#allocation3 + $0xf8] sm:$0xff] %vm732, %v699
      %v765 = vld [vmem:[%s203] sm:$0xff]
      %v766 = vld [vmem:[%s203 + $0x8] sm:$0xff]
      %v767 = vld [vmem:[%s203 + $0x18] sm:$0xff]
      %v768 = vld [vmem:[%s203 + $0x20] sm:$0xff]
      %v769 = vld [vmem:[%s203 + $0x30] sm:$0xff]
      %v770 = vld [vmem:[%s203 + $0x38] sm:$0xff]
      %v771 = vld [vmem:[%s203 + $0x48] sm:$0xff]
      %v772 = vld [vmem:[%s203 + $0x50] sm:$0xff]
      %v773 = vld [vmem:[%s203 + $0x60] sm:$0xff]
      %v774 = vld [vmem:[%s203 + $0x68] sm:$0xff]
      %v775 = vld [vmem:[%s203 + $0x78] sm:$0xff]
      %v776 = vld [vmem:[%s203 + $0x80] sm:$0xff]
      %v777 = vld [vmem:[%s203 + $0x90] sm:$0xff]
      %v778 = vld [vmem:[%s203 + $0x98] sm:$0xff]
      %v779 = vld [vmem:[%s203 + $0xa8] sm:$0xff]
      %v780 = vld [vmem:[%s203 + $0xb0] sm:$0xff]
      %v781 = vld [vmem:[%s203 + $0xc0] sm:$0xff]
      %v782 = vld [vmem:[%s203 + $0xc8] sm:$0xff]
      %v783 = vld [vmem:[%s203 + $0xd8] sm:$0xff]
      %v784 = vld [vmem:[%s203 + $0xe0] sm:$0xff]
      %v785 = vld [vmem:[%s203 + $0xf0] sm:$0xff]
      %v786 = vld [vmem:[%s203 + $0xf8] sm:$0xff]
      %v787 = vld [vmem:[%s203 + $0x108] sm:$0xff]
      %v788 = vld [vmem:[%s203 + $0x110] sm:$0xff]
      %v789 = vld [vmem:[%s203 + $0x120] sm:$0xff]
      %v790 = vld [vmem:[%s203 + $0x128] sm:$0xff]
      %v791 = vld [vmem:[%s203 + $0x138] sm:$0xff]
      %v792 = vld [vmem:[%s203 + $0x140] sm:$0xff]
      %v793 = vld [vmem:[%s203 + $0x150] sm:$0xff]
      %v794 = vld [vmem:[%s203 + $0x158] sm:$0xff]
      %v795 = vld [vmem:[%s203 + $0x168] sm:$0xff]
      %v796 = vld [vmem:[%s203 + $0x170] sm:$0xff]
      %829 = vrot.lane.b32.xlu0 %v765, 12
      %v830 = vpop.permute.xlu0 %829
      %831 = vrot.lane.b32.xlu0 %v766, 12
      %v832 = vpop.permute.xlu0 %831
      %833 = vrot.lane.b32.xlu0 %v767, 12
      %v834 = vpop.permute.xlu0 %833
      %835 = vrot.lane.b32.xlu0 %v768, 12
      %v836 = vpop.permute.xlu0 %835
      %837 = vrot.lane.b32.xlu0 %v769, 12
      %v838 = vpop.permute.xlu0 %837
      %839 = vrot.lane.b32.xlu0 %v770, 12
      %v840 = vpop.permute.xlu0 %839
      %841 = vrot.lane.b32.xlu0 %v771, 12
      %v842 = vpop.permute.xlu0 %841
      %843 = vrot.lane.b32.xlu0 %v772, 12
      %v844 = vpop.permute.xlu0 %843
      %845 = vrot.lane.b32.xlu0 %v773, 12
      %v846 = vpop.permute.xlu0 %845
      %847 = vrot.lane.b32.xlu0 %v774, 12
      %v848 = vpop.permute.xlu0 %847
      %849 = vrot.lane.b32.xlu0 %v775, 12
      %v850 = vpop.permute.xlu0 %849
      %851 = vrot.lane.b32.xlu0 %v776, 12
      %v852 = vpop.permute.xlu0 %851
      %853 = vrot.lane.b32.xlu0 %v777, 12
      %v854 = vpop.permute.xlu0 %853
      %855 = vrot.lane.b32.xlu0 %v778, 12
      %v856 = vpop.permute.xlu0 %855
      %857 = vrot.lane.b32.xlu0 %v779, 12
      %v858 = vpop.permute.xlu0 %857
      %859 = vrot.lane.b32.xlu0 %v780, 12
      %v860 = vpop.permute.xlu0 %859
      %861 = vrot.lane.b32.xlu0 %v781, 12
      %v862 = vpop.permute.xlu0 %861
      %863 = vrot.lane.b32.xlu0 %v782, 12
      %v864 = vpop.permute.xlu0 %863
      %865 = vrot.lane.b32.xlu0 %v783, 12
      %v866 = vpop.permute.xlu0 %865
      %867 = vrot.lane.b32.xlu0 %v784, 12
      %v868 = vpop.permute.xlu0 %867
      %869 = vrot.lane.b32.xlu0 %v785, 12
      %v870 = vpop.permute.xlu0 %869
      %871 = vrot.lane.b32.xlu0 %v786, 12
      %v872 = vpop.permute.xlu0 %871
      %873 = vrot.lane.b32.xlu0 %v787, 12
      %v874 = vpop.permute.xlu0 %873
      %875 = vrot.lane.b32.xlu0 %v788, 12
      %v876 = vpop.permute.xlu0 %875
      %877 = vrot.lane.b32.xlu0 %v789, 12
      %v878 = vpop.permute.xlu0 %877
      %879 = vrot.lane.b32.xlu0 %v790, 12
      %v880 = vpop.permute.xlu0 %879
      %881 = vrot.lane.b32.xlu0 %v791, 12
      %v882 = vpop.permute.xlu0 %881
      %883 = vrot.lane.b32.xlu0 %v792, 12
      %v884 = vpop.permute.xlu0 %883
      %885 = vrot.lane.b32.xlu0 %v793, 12
      %v886 = vpop.permute.xlu0 %885
      %887 = vrot.lane.b32.xlu0 %v794, 12
      %v888 = vpop.permute.xlu0 %887
      %889 = vrot.lane.b32.xlu0 %v795, 12
      %v890 = vpop.permute.xlu0 %889
      %891 = vrot.lane.b32.xlu0 %v796, 12
      %v892 = vpop.permute.xlu0 %891
      %vm925 = vcmask 130144
      %926 = vst.msk [vmem:[#allocation3] sm:$0xff] %vm925, %v830
      %927 = vst.msk [vmem:[#allocation3 + $0x8] sm:$0xff] %vm925, %v832
      %928 = vst.msk [vmem:[#allocation3 + $0x10] sm:$0xff] %vm925, %v834
      %929 = vst.msk [vmem:[#allocation3 + $0x18] sm:$0xff] %vm925, %v836
      %930 = vst.msk [vmem:[#allocation3 + $0x20] sm:$0xff] %vm925, %v838
      %931 = vst.msk [vmem:[#allocation3 + $0x28] sm:$0xff] %vm925, %v840
      %932 = vst.msk [vmem:[#allocation3 + $0x30] sm:$0xff] %vm925, %v842
      %933 = vst.msk [vmem:[#allocation3 + $0x38] sm:$0xff] %vm925, %v844
      %934 = vst.msk [vmem:[#allocation3 + $0x40] sm:$0xff] %vm925, %v846
      %935 = vst.msk [vmem:[#allocation3 + $0x48] sm:$0xff] %vm925, %v848
      %936 = vst.msk [vmem:[#allocation3 + $0x50] sm:$0xff] %vm925, %v850
      %937 = vst.msk [vmem:[#allocation3 + $0x58] sm:$0xff] %vm925, %v852
      %938 = vst.msk [vmem:[#allocation3 + $0x60] sm:$0xff] %vm925, %v854
      %939 = vst.msk [vmem:[#allocation3 + $0x68] sm:$0xff] %vm925, %v856
      %940 = vst.msk [vmem:[#allocation3 + $0x70] sm:$0xff] %vm925, %v858
      %941 = vst.msk [vmem:[#allocation3 + $0x78] sm:$0xff] %vm925, %v860
      %942 = vst.msk [vmem:[#allocation3 + $0x80] sm:$0xff] %vm925, %v862
      %943 = vst.msk [vmem:[#allocation3 + $0x88] sm:$0xff] %vm925, %v864
      %944 = vst.msk [vmem:[#allocation3 + $0x90] sm:$0xff] %vm925, %v866
      %945 = vst.msk [vmem:[#allocation3 + $0x98] sm:$0xff] %vm925, %v868
      %946 = vst.msk [vmem:[#allocation3 + $0xa0] sm:$0xff] %vm925, %v870
      %947 = vst.msk [vmem:[#allocation3 + $0xa8] sm:$0xff] %vm925, %v872
      %948 = vst.msk [vmem:[#allocation3 + $0xb0] sm:$0xff] %vm925, %v874
      %949 = vst.msk [vmem:[#allocation3 + $0xb8] sm:$0xff] %vm925, %v876
      %950 = vst.msk [vmem:[#allocation3 + $0xc0] sm:$0xff] %vm925, %v878
      %951 = vst.msk [vmem:[#allocation3 + $0xc8] sm:$0xff] %vm925, %v880
      %952 = vst.msk [vmem:[#allocation3 + $0xd0] sm:$0xff] %vm925, %v882
      %953 = vst.msk [vmem:[#allocation3 + $0xd8] sm:$0xff] %vm925, %v884
      %954 = vst.msk [vmem:[#allocation3 + $0xe0] sm:$0xff] %vm925, %v886
      %955 = vst.msk [vmem:[#allocation3 + $0xe8] sm:$0xff] %vm925, %v888
      %956 = vst.msk [vmem:[#allocation3 + $0xf0] sm:$0xff] %vm925, %v890
      %957 = vst.msk [vmem:[#allocation3 + $0xf8] sm:$0xff] %vm925, %v892
      %v958 = vld [vmem:[%s203 + $0x1] sm:$0xff]
      %v959 = vld [vmem:[%s203 + $0x9] sm:$0xff]
      %v960 = vld [vmem:[%s203 + $0x19] sm:$0xff]
      %v961 = vld [vmem:[%s203 + $0x21] sm:$0xff]
      %v962 = vld [vmem:[%s203 + $0x31] sm:$0xff]
      %v963 = vld [vmem:[%s203 + $0x39] sm:$0xff]
      %v964 = vld [vmem:[%s203 + $0x49] sm:$0xff]
      %v965 = vld [vmem:[%s203 + $0x51] sm:$0xff]
      %v966 = vld [vmem:[%s203 + $0x61] sm:$0xff]
      %v967 = vld [vmem:[%s203 + $0x69] sm:$0xff]
      %v968 = vld [vmem:[%s203 + $0x79] sm:$0xff]
      %v969 = vld [vmem:[%s203 + $0x81] sm:$0xff]
      %v970 = vld [vmem:[%s203 + $0x91] sm:$0xff]
      %v971 = vld [vmem:[%s203 + $0x99] sm:$0xff]
      %v972 = vld [vmem:[%s203 + $0xa9] sm:$0xff]
      %v973 = vld [vmem:[%s203 + $0xb1] sm:$0xff]
      %v974 = vld [vmem:[%s203 + $0xc1] sm:$0xff]
      %v975 = vld [vmem:[%s203 + $0xc9] sm:$0xff]
      %v976 = vld [vmem:[%s203 + $0xd9] sm:$0xff]
      %v977 = vld [vmem:[%s203 + $0xe1] sm:$0xff]
      %v978 = vld [vmem:[%s203 + $0xf1] sm:$0xff]
      %v979 = vld [vmem:[%s203 + $0xf9] sm:$0xff]
      %v980 = vld [vmem:[%s203 + $0x109] sm:$0xff]
      %v981 = vld [vmem:[%s203 + $0x111] sm:$0xff]
      %v982 = vld [vmem:[%s203 + $0x121] sm:$0xff]
      %v983 = vld [vmem:[%s203 + $0x129] sm:$0xff]
      %v984 = vld [vmem:[%s203 + $0x139] sm:$0xff]
      %v985 = vld [vmem:[%s203 + $0x141] sm:$0xff]
      %v986 = vld [vmem:[%s203 + $0x151] sm:$0xff]
      %v987 = vld [vmem:[%s203 + $0x159] sm:$0xff]
      %v988 = vld [vmem:[%s203 + $0x169] sm:$0xff]
      %v989 = vld [vmem:[%s203 + $0x171] sm:$0xff]
      %1022 = vrot.lane.b32.xlu0 %v958, 16
      %v1023 = vpop.permute.xlu0 %1022
      %1024 = vrot.lane.b32.xlu0 %v959, 16
      %v1025 = vpop.permute.xlu0 %1024
      %1026 = vrot.lane.b32.xlu0 %v960, 16
      %v1027 = vpop.permute.xlu0 %1026
      %1028 = vrot.lane.b32.xlu0 %v961, 16
      %v1029 = vpop.permute.xlu0 %1028
      %1030 = vrot.lane.b32.xlu0 %v962, 16
      %v1031 = vpop.permute.xlu0 %1030
      %1032 = vrot.lane.b32.xlu0 %v963, 16
      %v1033 = vpop.permute.xlu0 %1032
      %1034 = vrot.lane.b32.xlu0 %v964, 16
      %v1035 = vpop.permute.xlu0 %1034
      %1036 = vrot.lane.b32.xlu0 %v965, 16
      %v1037 = vpop.permute.xlu0 %1036
      %1038 = vrot.lane.b32.xlu0 %v966, 16
      %v1039 = vpop.permute.xlu0 %1038
      %1040 = vrot.lane.b32.xlu0 %v967, 16
      %v1041 = vpop.permute.xlu0 %1040
      %1042 = vrot.lane.b32.xlu0 %v968, 16
      %v1043 = vpop.permute.xlu0 %1042
      %1044 = vrot.lane.b32.xlu0 %v969, 16
      %v1045 = vpop.permute.xlu0 %1044
      %1046 = vrot.lane.b32.xlu0 %v970, 16
      %v1047 = vpop.permute.xlu0 %1046
      %1048 = vrot.lane.b32.xlu0 %v971, 16
      %v1049 = vpop.permute.xlu0 %1048
      %1050 = vrot.lane.b32.xlu0 %v972, 16
      %v1051 = vpop.permute.xlu0 %1050
      %1052 = vrot.lane.b32.xlu0 %v973, 16
      %v1053 = vpop.permute.xlu0 %1052
      %1054 = vrot.lane.b32.xlu0 %v974, 16
      %v1055 = vpop.permute.xlu0 %1054
      %1056 = vrot.lane.b32.xlu0 %v975, 16
      %v1057 = vpop.permute.xlu0 %1056
      %1058 = vrot.lane.b32.xlu0 %v976, 16
      %v1059 = vpop.permute.xlu0 %1058
      %1060 = vrot.lane.b32.xlu0 %v977, 16
      %v1061 = vpop.permute.xlu0 %1060
      %1062 = vrot.lane.b32.xlu0 %v978, 16
      %v1063 = vpop.permute.xlu0 %1062
      %1064 = vrot.lane.b32.xlu0 %v979, 16
      %v1065 = vpop.permute.xlu0 %1064
      %1066 = vrot.lane.b32.xlu0 %v980, 16
      %v1067 = vpop.permute.xlu0 %1066
      %1068 = vrot.lane.b32.xlu0 %v981, 16
      %v1069 = vpop.permute.xlu0 %1068
      %1070 = vrot.lane.b32.xlu0 %v982, 16
      %v1071 = vpop.permute.xlu0 %1070
      %1072 = vrot.lane.b32.xlu0 %v983, 16
      %v1073 = vpop.permute.xlu0 %1072
      %1074 = vrot.lane.b32.xlu0 %v984, 16
      %v1075 = vpop.permute.xlu0 %1074
      %1076 = vrot.lane.b32.xlu0 %v985, 16
      %v1077 = vpop.permute.xlu0 %1076
      %1078 = vrot.lane.b32.xlu0 %v986, 16
      %v1079 = vpop.permute.xlu0 %1078
      %1080 = vrot.lane.b32.xlu0 %v987, 16
      %v1081 = vpop.permute.xlu0 %1080
      %1082 = vrot.lane.b32.xlu0 %v988, 16
      %v1083 = vpop.permute.xlu0 %1082
      %1084 = vrot.lane.b32.xlu0 %v989, 16
      %v1085 = vpop.permute.xlu0 %1084
      %vm1118 = vcmask 162944
      %1119 = vst.msk [vmem:[#allocation3] sm:$0xff] %vm1118, %v1023
      %1120 = vst.msk [vmem:[#allocation3 + $0x8] sm:$0xff] %vm1118, %v1025
      %1121 = vst.msk [vmem:[#allocation3 + $0x10] sm:$0xff] %vm1118, %v1027
      %1122 = vst.msk [vmem:[#allocation3 + $0x18] sm:$0xff] %vm1118, %v1029
      %1123 = vst.msk [vmem:[#allocation3 + $0x20] sm:$0xff] %vm1118, %v1031
      %1124 = vst.msk [vmem:[#allocation3 + $0x28] sm:$0xff] %vm1118, %v1033
      %1125 = vst.msk [vmem:[#allocation3 + $0x30] sm:$0xff] %vm1118, %v1035
      %1126 = vst.msk [vmem:[#allocation3 + $0x38] sm:$0xff] %vm1118, %v1037
      %1127 = vst.msk [vmem:[#allocation3 + $0x40] sm:$0xff] %vm1118, %v1039
      %1128 = vst.msk [vmem:[#allocation3 + $0x48] sm:$0xff] %vm1118, %v1041
      %1129 = vst.msk [vmem:[#allocation3 + $0x50] sm:$0xff] %vm1118, %v1043
      %1130 = vst.msk [vmem:[#allocation3 + $0x58] sm:$0xff] %vm1118, %v1045
      %1131 = vst.msk [vmem:[#allocation3 + $0x60] sm:$0xff] %vm1118, %v1047
      %1132 = vst.msk [vmem:[#allocation3 + $0x68] sm:$0xff] %vm1118, %v1049
      %1133 = vst.msk [vmem:[#allocation3 + $0x70] sm:$0xff] %vm1118, %v1051
      %1134 = vst.msk [vmem:[#allocation3 + $0x78] sm:$0xff] %vm1118, %v1053
      %1135 = vst.msk [vmem:[#allocation3 + $0x80] sm:$0xff] %vm1118, %v1055
      %1136 = vst.msk [vmem:[#allocation3 + $0x88] sm:$0xff] %vm1118, %v1057
      %1137 = vst.msk [vmem:[#allocation3 + $0x90] sm:$0xff] %vm1118, %v1059
      %1138 = vst.msk [vmem:[#allocation3 + $0x98] sm:$0xff] %vm1118, %v1061
      %1139 = vst.msk [vmem:[#allocation3 + $0xa0] sm:$0xff] %vm1118, %v1063
      %1140 = vst.msk [vmem:[#allocation3 + $0xa8] sm:$0xff] %vm1118, %v1065
      %1141 = vst.msk [vmem:[#allocation3 + $0xb0] sm:$0xff] %vm1118, %v1067
      %1142 = vst.msk [vmem:[#allocation3 + $0xb8] sm:$0xff] %vm1118, %v1069
      %1143 = vst.msk [vmem:[#allocation3 + $0xc0] sm:$0xff] %vm1118, %v1071
      %1144 = vst.msk [vmem:[#allocation3 + $0xc8] sm:$0xff] %vm1118, %v1073
      %1145 = vst.msk [vmem:[#allocation3 + $0xd0] sm:$0xff] %vm1118, %v1075
      %1146 = vst.msk [vmem:[#allocation3 + $0xd8] sm:$0xff] %vm1118, %v1077
      %1147 = vst.msk [vmem:[#allocation3 + $0xe0] sm:$0xff] %vm1118, %v1079
      %1148 = vst.msk [vmem:[#allocation3 + $0xe8] sm:$0xff] %vm1118, %v1081
      %1149 = vst.msk [vmem:[#allocation3 + $0xf0] sm:$0xff] %vm1118, %v1083
      %1150 = vst.msk [vmem:[#allocation3 + $0xf8] sm:$0xff] %vm1118, %v1085
      %v1151 = vld [vmem:[%s203 + $0x2] sm:$0xff]
      %v1152 = vld [vmem:[%s203 + $0xa] sm:$0xff]
      %v1153 = vld [vmem:[%s203 + $0x1a] sm:$0xff]
      %v1154 = vld [vmem:[%s203 + $0x22] sm:$0xff]
      %v1155 = vld [vmem:[%s203 + $0x32] sm:$0xff]
      %v1156 = vld [vmem:[%s203 + $0x3a] sm:$0xff]
      %v1157 = vld [vmem:[%s203 + $0x4a] sm:$0xff]
      %v1158 = vld [vmem:[%s203 + $0x52] sm:$0xff]
      %v1159 = vld [vmem:[%s203 + $0x62] sm:$0xff]
      %v1160 = vld [vmem:[%s203 + $0x6a] sm:$0xff]
      %v1161 = vld [vmem:[%s203 + $0x7a] sm:$0xff]
      %v1162 = vld [vmem:[%s203 + $0x82] sm:$0xff]
      %v1163 = vld [vmem:[%s203 + $0x92] sm:$0xff]
      %v1164 = vld [vmem:[%s203 + $0x9a] sm:$0xff]
      %v1165 = vld [vmem:[%s203 + $0xaa] sm:$0xff]
      %v1166 = vld [vmem:[%s203 + $0xb2] sm:$0xff]
      %v1167 = vld [vmem:[%s203 + $0xc2] sm:$0xff]
      %v1168 = vld [vmem:[%s203 + $0xca] sm:$0xff]
      %v1169 = vld [vmem:[%s203 + $0xda] sm:$0xff]
      %v1170 = vld [vmem:[%s203 + $0xe2] sm:$0xff]
      %v1171 = vld [vmem:[%s203 + $0xf2] sm:$0xff]
      %v1172 = vld [vmem:[%s203 + $0xfa] sm:$0xff]
      %v1173 = vld [vmem:[%s203 + $0x10a] sm:$0xff]
      %v1174 = vld [vmem:[%s203 + $0x112] sm:$0xff]
      %v1175 = vld [vmem:[%s203 + $0x122] sm:$0xff]
      %v1176 = vld [vmem:[%s203 + $0x12a] sm:$0xff]
      %v1177 = vld [vmem:[%s203 + $0x13a] sm:$0xff]
      %v1178 = vld [vmem:[%s203 + $0x142] sm:$0xff]
      %v1179 = vld [vmem:[%s203 + $0x152] sm:$0xff]
      %v1180 = vld [vmem:[%s203 + $0x15a] sm:$0xff]
      %v1181 = vld [vmem:[%s203 + $0x16a] sm:$0xff]
      %v1182 = vld [vmem:[%s203 + $0x172] sm:$0xff]
      %1215 = vrot.lane.b32.xlu0 %v1151, 20
      %v1216 = vpop.permute.xlu0 %1215
      %1217 = vrot.lane.b32.xlu0 %v1152, 20
      %v1218 = vpop.permute.xlu0 %1217
      %1219 = vrot.lane.b32.xlu0 %v1153, 20
      %v1220 = vpop.permute.xlu0 %1219
      %1221 = vrot.lane.b32.xlu0 %v1154, 20
      %v1222 = vpop.permute.xlu0 %1221
      %1223 = vrot.lane.b32.xlu0 %v1155, 20
      %v1224 = vpop.permute.xlu0 %1223
      %1225 = vrot.lane.b32.xlu0 %v1156, 20
      %v1226 = vpop.permute.xlu0 %1225
      %1227 = vrot.lane.b32.xlu0 %v1157, 20
      %v1228 = vpop.permute.xlu0 %1227
      %1229 = vrot.lane.b32.xlu0 %v1158, 20
      %v1230 = vpop.permute.xlu0 %1229
      %1231 = vrot.lane.b32.xlu0 %v1159, 20
      %v1232 = vpop.permute.xlu0 %1231
      %1233 = vrot.lane.b32.xlu0 %v1160, 20
      %v1234 = vpop.permute.xlu0 %1233
      %1235 = vrot.lane.b32.xlu0 %v1161, 20
      %v1236 = vpop.permute.xlu0 %1235
      %1237 = vrot.lane.b32.xlu0 %v1162, 20
      %v1238 = vpop.permute.xlu0 %1237
      %1239 = vrot.lane.b32.xlu0 %v1163, 20
      %v1240 = vpop.permute.xlu0 %1239
      %1241 = vrot.lane.b32.xlu0 %v1164, 20
      %v1242 = vpop.permute.xlu0 %1241
      %1243 = vrot.lane.b32.xlu0 %v1165, 20
      %v1244 = vpop.permute.xlu0 %1243
      %1245 = vrot.lane.b32.xlu0 %v1166, 20
      %v1246 = vpop.permute.xlu0 %1245
      %1247 = vrot.lane.b32.xlu0 %v1167, 20
      %v1248 = vpop.permute.xlu0 %1247
      %1249 = vrot.lane.b32.xlu0 %v1168, 20
      %v1250 = vpop.permute.xlu0 %1249
      %1251 = vrot.lane.b32.xlu0 %v1169, 20
      %v1252 = vpop.permute.xlu0 %1251
      %1253 = vrot.lane.b32.xlu0 %v1170, 20
      %v1254 = vpop.permute.xlu0 %1253
      %1255 = vrot.lane.b32.xlu0 %v1171, 20
      %v1256 = vpop.permute.xlu0 %1255
      %1257 = vrot.lane.b32.xlu0 %v1172, 20
      %v1258 = vpop.permute.xlu0 %1257
      %1259 = vrot.lane.b32.xlu0 %v1173, 20
      %v1260 = vpop.permute.xlu0 %1259
      %1261 = vrot.lane.b32.xlu0 %v1174, 20
      %v1262 = vpop.permute.xlu0 %1261
      %1263 = vrot.lane.b32.xlu0 %v1175, 20
      %v1264 = vpop.permute.xlu0 %1263
      %1265 = vrot.lane.b32.xlu0 %v1176, 20
      %v1266 = vpop.permute.xlu0 %1265
      %1267 = vrot.lane.b32.xlu0 %v1177, 20
      %v1268 = vpop.permute.xlu0 %1267
      %1269 = vrot.lane.b32.xlu0 %v1178, 20
      %v1270 = vpop.permute.xlu0 %1269
      %1271 = vrot.lane.b32.xlu0 %v1179, 20
      %v1272 = vpop.permute.xlu0 %1271
      %1273 = vrot.lane.b32.xlu0 %v1180, 20
      %v1274 = vpop.permute.xlu0 %1273
      %1275 = vrot.lane.b32.xlu0 %v1181, 20
      %v1276 = vpop.permute.xlu0 %1275
      %1277 = vrot.lane.b32.xlu0 %v1182, 20
      %v1278 = vpop.permute.xlu0 %1277
      %vm1311 = vcmask 195744
      %1312 = vst.msk [vmem:[#allocation3] sm:$0xff] %vm1311, %v1216
      %1313 = vst.msk [vmem:[#allocation3 + $0x8] sm:$0xff] %vm1311, %v1218
      %1314 = vst.msk [vmem:[#allocation3 + $0x10] sm:$0xff] %vm1311, %v1220
      %1315 = vst.msk [vmem:[#allocation3 + $0x18] sm:$0xff] %vm1311, %v1222
      %1316 = vst.msk [vmem:[#allocation3 + $0x20] sm:$0xff] %vm1311, %v1224
      %1317 = vst.msk [vmem:[#allocation3 + $0x28] sm:$0xff] %vm1311, %v1226
      %1318 = vst.msk [vmem:[#allocation3 + $0x30] sm:$0xff] %vm1311, %v1228
      %1319 = vst.msk [vmem:[#allocation3 + $0x38] sm:$0xff] %vm1311, %v1230
      %1320 = vst.msk [vmem:[#allocation3 + $0x40] sm:$0xff] %vm1311, %v1232
      %1321 = vst.msk [vmem:[#allocation3 + $0x48] sm:$0xff] %vm1311, %v1234
      %1322 = vst.msk [vmem:[#allocation3 + $0x50] sm:$0xff] %vm1311, %v1236
      %1323 = vst.msk [vmem:[#allocation3 + $0x58] sm:$0xff] %vm1311, %v1238
      %1324 = vst.msk [vmem:[#allocation3 + $0x60] sm:$0xff] %vm1311, %v1240
      %1325 = vst.msk [vmem:[#allocation3 + $0x68] sm:$0xff] %vm1311, %v1242
      %1326 = vst.msk [vmem:[#allocation3 + $0x70] sm:$0xff] %vm1311, %v1244
      %1327 = vst.msk [vmem:[#allocation3 + $0x78] sm:$0xff] %vm1311, %v1246
      %1328 = vst.msk [vmem:[#allocation3 + $0x80] sm:$0xff] %vm1311, %v1248
      %1329 = vst.msk [vmem:[#allocation3 + $0x88] sm:$0xff] %vm1311, %v1250
      %1330 = vst.msk [vmem:[#allocation3 + $0x90] sm:$0xff] %vm1311, %v1252
      %1331 = vst.msk [vmem:[#allocation3 + $0x98] sm:$0xff] %vm1311, %v1254
      %1332 = vst.msk [vmem:[#allocation3 + $0xa0] sm:$0xff] %vm1311, %v1256
      %1333 = vst.msk [vmem:[#allocation3 + $0xa8] sm:$0xff] %vm1311, %v1258
      %1334 = vst.msk [vmem:[#allocation3 + $0xb0] sm:$0xff] %vm1311, %v1260
      %1335 = vst.msk [vmem:[#allocation3 + $0xb8] sm:$0xff] %vm1311, %v1262
      %1336 = vst.msk [vmem:[#allocation3 + $0xc0] sm:$0xff] %vm1311, %v1264
      %1337 = vst.msk [vmem:[#allocation3 + $0xc8] sm:$0xff] %vm1311, %v1266
      %1338 = vst.msk [vmem:[#allocation3 + $0xd0] sm:$0xff] %vm1311, %v1268
      %1339 = vst.msk [vmem:[#allocation3 + $0xd8] sm:$0xff] %vm1311, %v1270
      %1340 = vst.msk [vmem:[#allocation3 + $0xe0] sm:$0xff] %vm1311, %v1272
      %1341 = vst.msk [vmem:[#allocation3 + $0xe8] sm:$0xff] %vm1311, %v1274
      %1342 = vst.msk [vmem:[#allocation3 + $0xf0] sm:$0xff] %vm1311, %v1276
      %1343 = vst.msk [vmem:[#allocation3 + $0xf8] sm:$0xff] %vm1311, %v1278
      %s1344 = scalar_lea.vmem [#allocation2], 48
      %v1345 = vld [vmem:[%s1344] sm:$0xff]
      %v1346 = vld [vmem:[%s1344 + $0x8] sm:$0xff]
      %v1347 = vld [vmem:[%s1344 + $0x18] sm:$0xff]
      %v1348 = vld [vmem:[%s1344 + $0x20] sm:$0xff]
      %v1349 = vld [vmem:[%s1344 + $0x30] sm:$0xff]
      %v1350 = vld [vmem:[%s1344 + $0x38] sm:$0xff]
      %v1351 = vld [vmem:[%s1344 + $0x48] sm:$0xff]
      %v1352 = vld [vmem:[%s1344 + $0x50] sm:$0xff]
      %v1353 = vld [vmem:[%s1344 + $0x60] sm:$0xff]
      %v1354 = vld [vmem:[%s1344 + $0x68] sm:$0xff]
      %v1355 = vld [vmem:[%s1344 + $0x78] sm:$0xff]
      %v1356 = vld [vmem:[%s1344 + $0x80] sm:$0xff]
      %v1357 = vld [vmem:[%s1344 + $0x90] sm:$0xff]
      %v1358 = vld [vmem:[%s1344 + $0x98] sm:$0xff]
      %v1359 = vld [vmem:[%s1344 + $0xa8] sm:$0xff]
      %v1360 = vld [vmem:[%s1344 + $0xb0] sm:$0xff]
      %v1361 = vld [vmem:[%s1344 + $0xc0] sm:$0xff]
      %v1362 = vld [vmem:[%s1344 + $0xc8] sm:$0xff]
      %v1363 = vld [vmem:[%s1344 + $0xd8] sm:$0xff]
      %v1364 = vld [vmem:[%s1344 + $0xe0] sm:$0xff]
      %v1365 = vld [vmem:[%s1344 + $0xf0] sm:$0xff]
      %v1366 = vld [vmem:[%s1344 + $0xf8] sm:$0xff]
      %v1367 = vld [vmem:[%s1344 + $0x108] sm:$0xff]
      %v1368 = vld [vmem:[%s1344 + $0x110] sm:$0xff]
      %v1369 = vld [vmem:[%s1344 + $0x120] sm:$0xff]
      %v1370 = vld [vmem:[%s1344 + $0x128] sm:$0xff]
      %v1371 = vld [vmem:[%s1344 + $0x138] sm:$0xff]
      %v1372 = vld [vmem:[%s1344 + $0x140] sm:$0xff]
      %v1373 = vld [vmem:[%s1344 + $0x150] sm:$0xff]
      %v1374 = vld [vmem:[%s1344 + $0x158] sm:$0xff]
      %v1375 = vld [vmem:[%s1344 + $0x168] sm:$0xff]
      %v1376 = vld [vmem:[%s1344 + $0x170] sm:$0xff]
      %1409 = vrot.lane.b32.xlu0 %v1345, 24
      %v1410 = vpop.permute.xlu0 %1409
      %1411 = vrot.lane.b32.xlu0 %v1346, 24
      %v1412 = vpop.permute.xlu0 %1411
      %1413 = vrot.lane.b32.xlu0 %v1347, 24
      %v1414 = vpop.permute.xlu0 %1413
      %1415 = vrot.lane.b32.xlu0 %v1348, 24
      %v1416 = vpop.permute.xlu0 %1415
      %1417 = vrot.lane.b32.xlu0 %v1349, 24
      %v1418 = vpop.permute.xlu0 %1417
      %1419 = vrot.lane.b32.xlu0 %v1350, 24
      %v1420 = vpop.permute.xlu0 %1419
      %1421 = vrot.lane.b32.xlu0 %v1351, 24
      %v1422 = vpop.permute.xlu0 %1421
      %1423 = vrot.lane.b32.xlu0 %v1352, 24
      %v1424 = vpop.permute.xlu0 %1423
      %1425 = vrot.lane.b32.xlu0 %v1353, 24
      %v1426 = vpop.permute.xlu0 %1425
      %1427 = vrot.lane.b32.xlu0 %v1354, 24
      %v1428 = vpop.permute.xlu0 %1427
      %1429 = vrot.lane.b32.xlu0 %v1355, 24
      %v1430 = vpop.permute.xlu0 %1429
      %1431 = vrot.lane.b32.xlu0 %v1356, 24
      %v1432 = vpop.permute.xlu0 %1431
      %1433 = vrot.lane.b32.xlu0 %v1357, 24
      %v1434 = vpop.permute.xlu0 %1433
      %1435 = vrot.lane.b32.xlu0 %v1358, 24
      %v1436 = vpop.permute.xlu0 %1435
      %1437 = vrot.lane.b32.xlu0 %v1359, 24
      %v1438 = vpop.permute.xlu0 %1437
      %1439 = vrot.lane.b32.xlu0 %v1360, 24
      %v1440 = vpop.permute.xlu0 %1439
      %1441 = vrot.lane.b32.xlu0 %v1361, 24
      %v1442 = vpop.permute.xlu0 %1441
      %1443 = vrot.lane.b32.xlu0 %v1362, 24
      %v1444 = vpop.permute.xlu0 %1443
      %1445 = vrot.lane.b32.xlu0 %v1363, 24
      %v1446 = vpop.permute.xlu0 %1445
      %1447 = vrot.lane.b32.xlu0 %v1364, 24
      %v1448 = vpop.permute.xlu0 %1447
      %1449 = vrot.lane.b32.xlu0 %v1365, 24
      %v1450 = vpop.permute.xlu0 %1449
      %1451 = vrot.lane.b32.xlu0 %v1366, 24
      %v1452 = vpop.permute.xlu0 %1451
      %1453 = vrot.lane.b32.xlu0 %v1367, 24
      %v1454 = vpop.permute.xlu0 %1453
      %1455 = vrot.lane.b32.xlu0 %v1368, 24
      %v1456 = vpop.permute.xlu0 %1455
      %1457 = vrot.lane.b32.xlu0 %v1369, 24
      %v1458 = vpop.permute.xlu0 %1457
      %1459 = vrot.lane.b32.xlu0 %v1370, 24
      %v1460 = vpop.permute.xlu0 %1459
      %1461 = vrot.lane.b32.xlu0 %v1371, 24
      %v1462 = vpop.permute.xlu0 %1461
      %1463 = vrot.lane.b32.xlu0 %v1372, 24
      %v1464 = vpop.permute.xlu0 %1463
      %1465 = vrot.lane.b32.xlu0 %v1373, 24
      %v1466 = vpop.permute.xlu0 %1465
      %1467 = vrot.lane.b32.xlu0 %v1374, 24
      %v1468 = vpop.permute.xlu0 %1467
      %1469 = vrot.lane.b32.xlu0 %v1375, 24
      %v1470 = vpop.permute.xlu0 %1469
      %1471 = vrot.lane.b32.xlu0 %v1376, 24
      %v1472 = vpop.permute.xlu0 %1471
      %vm1505 = vcmask 228544
      %1506 = vst.msk [vmem:[#allocation3] sm:$0xff] %vm1505, %v1410
      %1507 = vst.msk [vmem:[#allocation3 + $0x8] sm:$0xff] %vm1505, %v1412
      %1508 = vst.msk [vmem:[#allocation3 + $0x10] sm:$0xff] %vm1505, %v1414
      %1509 = vst.msk [vmem:[#allocation3 + $0x18] sm:$0xff] %vm1505, %v1416
      %1510 = vst.msk [vmem:[#allocation3 + $0x20] sm:$0xff] %vm1505, %v1418
      %1511 = vst.msk [vmem:[#allocation3 + $0x28] sm:$0xff] %vm1505, %v1420
      %1512 = vst.msk [vmem:[#allocation3 + $0x30] sm:$0xff] %vm1505, %v1422
      %1513 = vst.msk [vmem:[#allocation3 + $0x38] sm:$0xff] %vm1505, %v1424
      %1514 = vst.msk [vmem:[#allocation3 + $0x40] sm:$0xff] %vm1505, %v1426
      %1515 = vst.msk [vmem:[#allocation3 + $0x48] sm:$0xff] %vm1505, %v1428
      %1516 = vst.msk [vmem:[#allocation3 + $0x50] sm:$0xff] %vm1505, %v1430
      %1517 = vst.msk [vmem:[#allocation3 + $0x58] sm:$0xff] %vm1505, %v1432
      %1518 = vst.msk [vmem:[#allocation3 + $0x60] sm:$0xff] %vm1505, %v1434
      %1519 = vst.msk [vmem:[#allocation3 + $0x68] sm:$0xff] %vm1505, %v1436
      %1520 = vst.msk [vmem:[#allocation3 + $0x70] sm:$0xff] %vm1505, %v1438
      %1521 = vst.msk [vmem:[#allocation3 + $0x78] sm:$0xff] %vm1505, %v1440
      %1522 = vst.msk [vmem:[#allocation3 + $0x80] sm:$0xff] %vm1505, %v1442
      %1523 = vst.msk [vmem:[#allocation3 + $0x88] sm:$0xff] %vm1505, %v1444
      %1524 = vst.msk [vmem:[#allocation3 + $0x90] sm:$0xff] %vm1505, %v1446
      %1525 = vst.msk [vmem:[#allocation3 + $0x98] sm:$0xff] %vm1505, %v1448
      %1526 = vst.msk [vmem:[#allocation3 + $0xa0] sm:$0xff] %vm1505, %v1450
      %1527 = vst.msk [vmem:[#allocation3 + $0xa8] sm:$0xff] %vm1505, %v1452
      %1528 = vst.msk [vmem:[#allocation3 + $0xb0] sm:$0xff] %vm1505, %v1454
      %1529 = vst.msk [vmem:[#allocation3 + $0xb8] sm:$0xff] %vm1505, %v1456
      %1530 = vst.msk [vmem:[#allocation3 + $0xc0] sm:$0xff] %vm1505, %v1458
      %1531 = vst.msk [vmem:[#allocation3 + $0xc8] sm:$0xff] %vm1505, %v1460
      %1532 = vst.msk [vmem:[#allocation3 + $0xd0] sm:$0xff] %vm1505, %v1462
      %1533 = vst.msk [vmem:[#allocation3 + $0xd8] sm:$0xff] %vm1505, %v1464
      %1534 = vst.msk [vmem:[#allocation3 + $0xe0] sm:$0xff] %vm1505, %v1466
      %1535 = vst.msk [vmem:[#allocation3 + $0xe8] sm:$0xff] %vm1505, %v1468
      %1536 = vst.msk [vmem:[#allocation3 + $0xf0] sm:$0xff] %vm1505, %v1470
      %1537 = vst.msk [vmem:[#allocation3 + $0xf8] sm:$0xff] %vm1505, %v1472
      %v1538 = vld [vmem:[%s1344 + $0x1] sm:$0xff]
      %v1539 = vld [vmem:[%s1344 + $0x9] sm:$0xff]
      %v1540 = vld [vmem:[%s1344 + $0x19] sm:$0xff]
      %v1541 = vld [vmem:[%s1344 + $0x21] sm:$0xff]
      %v1542 = vld [vmem:[%s1344 + $0x31] sm:$0xff]
      %v1543 = vld [vmem:[%s1344 + $0x39] sm:$0xff]
      %v1544 = vld [vmem:[%s1344 + $0x49] sm:$0xff]
      %v1545 = vld [vmem:[%s1344 + $0x51] sm:$0xff]
      %v1546 = vld [vmem:[%s1344 + $0x61] sm:$0xff]
      %v1547 = vld [vmem:[%s1344 + $0x69] sm:$0xff]
      %v1548 = vld [vmem:[%s1344 + $0x79] sm:$0xff]
      %v1549 = vld [vmem:[%s1344 + $0x81] sm:$0xff]
      %v1550 = vld [vmem:[%s1344 + $0x91] sm:$0xff]
      %v1551 = vld [vmem:[%s1344 + $0x99] sm:$0xff]
      %v1552 = vld [vmem:[%s1344 + $0xa9] sm:$0xff]
      %v1553 = vld [vmem:[%s1344 + $0xb1] sm:$0xff]
      %v1554 = vld [vmem:[%s1344 + $0xc1] sm:$0xff]
      %v1555 = vld [vmem:[%s1344 + $0xc9] sm:$0xff]
      %v1556 = vld [vmem:[%s1344 + $0xd9] sm:$0xff]
      %v1557 = vld [vmem:[%s1344 + $0xe1] sm:$0xff]
      %v1558 = vld [vmem:[%s1344 + $0xf1] sm:$0xff]
      %v1559 = vld [vmem:[%s1344 + $0xf9] sm:$0xff]
      %v1560 = vld [vmem:[%s1344 + $0x109] sm:$0xff]
      %v1561 = vld [vmem:[%s1344 + $0x111] sm:$0xff]
      %v1562 = vld [vmem:[%s1344 + $0x121] sm:$0xff]
      %v1563 = vld [vmem:[%s1344 + $0x129] sm:$0xff]
      %v1564 = vld [vmem:[%s1344 + $0x139] sm:$0xff]
      %v1565 = vld [vmem:[%s1344 + $0x141] sm:$0xff]
      %v1566 = vld [vmem:[%s1344 + $0x151] sm:$0xff]
      %v1567 = vld [vmem:[%s1344 + $0x159] sm:$0xff]
      %v1568 = vld [vmem:[%s1344 + $0x169] sm:$0xff]
      %v1569 = vld [vmem:[%s1344 + $0x171] sm:$0xff]
      %1602 = vrot.lane.b32.xlu0 %v1538, 28
      %v1603 = vpop.permute.xlu0 %1602
      %1604 = vrot.lane.b32.xlu0 %v1539, 28
      %v1605 = vpop.permute.xlu0 %1604
      %1606 = vrot.lane.b32.xlu0 %v1540, 28
      %v1607 = vpop.permute.xlu0 %1606
      %1608 = vrot.lane.b32.xlu0 %v1541, 28
      %v1609 = vpop.permute.xlu0 %1608
      %1610 = vrot.lane.b32.xlu0 %v1542, 28
      %v1611 = vpop.permute.xlu0 %1610
      %1612 = vrot.lane.b32.xlu0 %v1543, 28
      %v1613 = vpop.permute.xlu0 %1612
      %1614 = vrot.lane.b32.xlu0 %v1544, 28
      %v1615 = vpop.permute.xlu0 %1614
      %1616 = vrot.lane.b32.xlu0 %v1545, 28
      %v1617 = vpop.permute.xlu0 %1616
      %1618 = vrot.lane.b32.xlu0 %v1546, 28
      %v1619 = vpop.permute.xlu0 %1618
      %1620 = vrot.lane.b32.xlu0 %v1547, 28
      %v1621 = vpop.permute.xlu0 %1620
      %1622 = vrot.lane.b32.xlu0 %v1548, 28
      %v1623 = vpop.permute.xlu0 %1622
      %1624 = vrot.lane.b32.xlu0 %v1549, 28
      %v1625 = vpop.permute.xlu0 %1624
      %1626 = vrot.lane.b32.xlu0 %v1550, 28
      %v1627 = vpop.permute.xlu0 %1626
      %1628 = vrot.lane.b32.xlu0 %v1551, 28
      %v1629 = vpop.permute.xlu0 %1628
      %1630 = vrot.lane.b32.xlu0 %v1552, 28
      %v1631 = vpop.permute.xlu0 %1630
      %1632 = vrot.lane.b32.xlu0 %v1553, 28
      %v1633 = vpop.permute.xlu0 %1632
      %1634 = vrot.lane.b32.xlu0 %v1554, 28
      %v1635 = vpop.permute.xlu0 %1634
      %1636 = vrot.lane.b32.xlu0 %v1555, 28
      %v1637 = vpop.permute.xlu0 %1636
      %1638 = vrot.lane.b32.xlu0 %v1556, 28
      %v1639 = vpop.permute.xlu0 %1638
      %1640 = vrot.lane.b32.xlu0 %v1557, 28
      %v1641 = vpop.permute.xlu0 %1640
      %1642 = vrot.lane.b32.xlu0 %v1558, 28
      %v1643 = vpop.permute.xlu0 %1642
      %1644 = vrot.lane.b32.xlu0 %v1559, 28
      %v1645 = vpop.permute.xlu0 %1644
      %1646 = vrot.lane.b32.xlu0 %v1560, 28
      %v1647 = vpop.permute.xlu0 %1646
      %1648 = vrot.lane.b32.xlu0 %v1561, 28
      %v1649 = vpop.permute.xlu0 %1648
      %1650 = vrot.lane.b32.xlu0 %v1562, 28
      %v1651 = vpop.permute.xlu0 %1650
      %1652 = vrot.lane.b32.xlu0 %v1563, 28
      %v1653 = vpop.permute.xlu0 %1652
      %1654 = vrot.lane.b32.xlu0 %v1564, 28
      %v1655 = vpop.permute.xlu0 %1654
      %1656 = vrot.lane.b32.xlu0 %v1565, 28
      %v1657 = vpop.permute.xlu0 %1656
      %1658 = vrot.lane.b32.xlu0 %v1566, 28
      %v1659 = vpop.permute.xlu0 %1658
      %1660 = vrot.lane.b32.xlu0 %v1567, 28
      %v1661 = vpop.permute.xlu0 %1660
      %1662 = vrot.lane.b32.xlu0 %v1568, 28
      %v1663 = vpop.permute.xlu0 %1662
      %1664 = vrot.lane.b32.xlu0 %v1569, 28
      %v1665 = vpop.permute.xlu0 %1664
      %vm1698 = vcmask 261344
      %1699 = vst.msk [vmem:[#allocation3] sm:$0xff] %vm1698, %v1603
      %1700 = vst.msk [vmem:[#allocation3 + $0x8] sm:$0xff] %vm1698, %v1605
      %1701 = vst.msk [vmem:[#allocation3 + $0x10] sm:$0xff] %vm1698, %v1607
      %1702 = vst.msk [vmem:[#allocation3 + $0x18] sm:$0xff] %vm1698, %v1609
      %1703 = vst.msk [vmem:[#allocation3 + $0x20] sm:$0xff] %vm1698, %v1611
      %1704 = vst.msk [vmem:[#allocation3 + $0x28] sm:$0xff] %vm1698, %v1613
      %1705 = vst.msk [vmem:[#allocation3 + $0x30] sm:$0xff] %vm1698, %v1615
      %1706 = vst.msk [vmem:[#allocation3 + $0x38] sm:$0xff] %vm1698, %v1617
      %1707 = vst.msk [vmem:[#allocation3 + $0x40] sm:$0xff] %vm1698, %v1619
      %1708 = vst.msk [vmem:[#allocation3 + $0x48] sm:$0xff] %vm1698, %v1621
      %1709 = vst.msk [vmem:[#allocation3 + $0x50] sm:$0xff] %vm1698, %v1623
      %1710 = vst.msk [vmem:[#allocation3 + $0x58] sm:$0xff] %vm1698, %v1625
      %1711 = vst.msk [vmem:[#allocation3 + $0x60] sm:$0xff] %vm1698, %v1627
      %1712 = vst.msk [vmem:[#allocation3 + $0x68] sm:$0xff] %vm1698, %v1629
      %1713 = vst.msk [vmem:[#allocation3 + $0x70] sm:$0xff] %vm1698, %v1631
      %1714 = vst.msk [vmem:[#allocation3 + $0x78] sm:$0xff] %vm1698, %v1633
      %1715 = vst.msk [vmem:[#allocation3 + $0x80] sm:$0xff] %vm1698, %v1635
      %1716 = vst.msk [vmem:[#allocation3 + $0x88] sm:$0xff] %vm1698, %v1637
      %1717 = vst.msk [vmem:[#allocation3 + $0x90] sm:$0xff] %vm1698, %v1639
      %1718 = vst.msk [vmem:[#allocation3 + $0x98] sm:$0xff] %vm1698, %v1641
      %1719 = vst.msk [vmem:[#allocation3 + $0xa0] sm:$0xff] %vm1698, %v1643
      %1720 = vst.msk [vmem:[#allocation3 + $0xa8] sm:$0xff] %vm1698, %v1645
      %1721 = vst.msk [vmem:[#allocation3 + $0xb0] sm:$0xff] %vm1698, %v1647
      %1722 = vst.msk [vmem:[#allocation3 + $0xb8] sm:$0xff] %vm1698, %v1649
      %1723 = vst.msk [vmem:[#allocation3 + $0xc0] sm:$0xff] %vm1698, %v1651
      %1724 = vst.msk [vmem:[#allocation3 + $0xc8] sm:$0xff] %vm1698, %v1653
      %1725 = vst.msk [vmem:[#allocation3 + $0xd0] sm:$0xff] %vm1698, %v1655
      %1726 = vst.msk [vmem:[#allocation3 + $0xd8] sm:$0xff] %vm1698, %v1657
      %1727 = vst.msk [vmem:[#allocation3 + $0xe0] sm:$0xff] %vm1698, %v1659
      %1728 = vst.msk [vmem:[#allocation3 + $0xe8] sm:$0xff] %vm1698, %v1661
      %1729 = vst.msk [vmem:[#allocation3 + $0xf0] sm:$0xff] %vm1698, %v1663
      %1730 = vst.msk [vmem:[#allocation3 + $0xf8] sm:$0xff] %vm1698, %v1665
      %v1731 = vld [vmem:[%s1344 + $0x2] sm:$0xff]
      %v1732 = vld [vmem:[%s1344 + $0xa] sm:$0xff]
      %v1733 = vld [vmem:[%s1344 + $0x1a] sm:$0xff]
      %v1734 = vld [vmem:[%s1344 + $0x22] sm:$0xff]
      %v1735 = vld [vmem:[%s1344 + $0x32] sm:$0xff]
      %v1736 = vld [vmem:[%s1344 + $0x3a] sm:$0xff]
      %v1737 = vld [vmem:[%s1344 + $0x4a] sm:$0xff]
      %v1738 = vld [vmem:[%s1344 + $0x52] sm:$0xff]
      %v1739 = vld [vmem:[%s1344 + $0x62] sm:$0xff]
      %v1740 = vld [vmem:[%s1344 + $0x6a] sm:$0xff]
      %v1741 = vld [vmem:[%s1344 + $0x7a] sm:$0xff]
      %v1742 = vld [vmem:[%s1344 + $0x82] sm:$0xff]
      %v1743 = vld [vmem:[%s1344 + $0x92] sm:$0xff]
      %v1744 = vld [vmem:[%s1344 + $0x9a] sm:$0xff]
      %v1745 = vld [vmem:[%s1344 + $0xaa] sm:$0xff]
      %v1746 = vld [vmem:[%s1344 + $0xb2] sm:$0xff]
      %v1747 = vld [vmem:[%s1344 + $0xc2] sm:$0xff]
      %v1748 = vld [vmem:[%s1344 + $0xca] sm:$0xff]
      %v1749 = vld [vmem:[%s1344 + $0xda] sm:$0xff]
      %v1750 = vld [vmem:[%s1344 + $0xe2] sm:$0xff]
      %v1751 = vld [vmem:[%s1344 + $0xf2] sm:$0xff]
      %v1752 = vld [vmem:[%s1344 + $0xfa] sm:$0xff]
      %v1753 = vld [vmem:[%s1344 + $0x10a] sm:$0xff]
      %v1754 = vld [vmem:[%s1344 + $0x112] sm:$0xff]
      %v1755 = vld [vmem:[%s1344 + $0x122] sm:$0xff]
      %v1756 = vld [vmem:[%s1344 + $0x12a] sm:$0xff]
      %v1757 = vld [vmem:[%s1344 + $0x13a] sm:$0xff]
      %v1758 = vld [vmem:[%s1344 + $0x142] sm:$0xff]
      %v1759 = vld [vmem:[%s1344 + $0x152] sm:$0xff]
      %v1760 = vld [vmem:[%s1344 + $0x15a] sm:$0xff]
      %v1761 = vld [vmem:[%s1344 + $0x16a] sm:$0xff]
      %v1762 = vld [vmem:[%s1344 + $0x172] sm:$0xff]
      %1795 = vrot.lane.b32.xlu0 %v1731, 32
      %v1796 = vpop.permute.xlu0 %1795
      %1797 = vrot.lane.b32.xlu0 %v1732, 32
      %v1798 = vpop.permute.xlu0 %1797
      %1799 = vrot.lane.b32.xlu0 %v1733, 32
      %v1800 = vpop.permute.xlu0 %1799
      %1801 = vrot.lane.b32.xlu0 %v1734, 32
      %v1802 = vpop.permute.xlu0 %1801
      %1803 = vrot.lane.b32.xlu0 %v1735, 32
      %v1804 = vpop.permute.xlu0 %1803
      %1805 = vrot.lane.b32.xlu0 %v1736, 32
      %v1806 = vpop.permute.xlu0 %1805
      %1807 = vrot.lane.b32.xlu0 %v1737, 32
      %v1808 = vpop.permute.xlu0 %1807
      %1809 = vrot.lane.b32.xlu0 %v1738, 32
      %v1810 = vpop.permute.xlu0 %1809
      %1811 = vrot.lane.b32.xlu0 %v1739, 32
      %v1812 = vpop.permute.xlu0 %1811
      %1813 = vrot.lane.b32.xlu0 %v1740, 32
      %v1814 = vpop.permute.xlu0 %1813
      %1815 = vrot.lane.b32.xlu0 %v1741, 32
      %v1816 = vpop.permute.xlu0 %1815
      %1817 = vrot.lane.b32.xlu0 %v1742, 32
      %v1818 = vpop.permute.xlu0 %1817
      %1819 = vrot.lane.b32.xlu0 %v1743, 32
      %v1820 = vpop.permute.xlu0 %1819
      %1821 = vrot.lane.b32.xlu0 %v1744, 32
      %v1822 = vpop.permute.xlu0 %1821
      %1823 = vrot.lane.b32.xlu0 %v1745, 32
      %v1824 = vpop.permute.xlu0 %1823
      %1825 = vrot.lane.b32.xlu0 %v1746, 32
      %v1826 = vpop.permute.xlu0 %1825
      %1827 = vrot.lane.b32.xlu0 %v1747, 32
      %v1828 = vpop.permute.xlu0 %1827
      %1829 = vrot.lane.b32.xlu0 %v1748, 32
      %v1830 = vpop.permute.xlu0 %1829
      %1831 = vrot.lane.b32.xlu0 %v1749, 32
      %v1832 = vpop.permute.xlu0 %1831
      %1833 = vrot.lane.b32.xlu0 %v1750, 32
      %v1834 = vpop.permute.xlu0 %1833
      %1835 = vrot.lane.b32.xlu0 %v1751, 32
      %v1836 = vpop.permute.xlu0 %1835
      %1837 = vrot.lane.b32.xlu0 %v1752, 32
      %v1838 = vpop.permute.xlu0 %1837
      %1839 = vrot.lane.b32.xlu0 %v1753, 32
      %v1840 = vpop.permute.xlu0 %1839
      %1841 = vrot.lane.b32.xlu0 %v1754, 32
      %v1842 = vpop.permute.xlu0 %1841
      %1843 = vrot.lane.b32.xlu0 %v1755, 32
      %v1844 = vpop.permute.xlu0 %1843
      %1845 = vrot.lane.b32.xlu0 %v1756, 32
      %v1846 = vpop.permute.xlu0 %1845
      %1847 = vrot.lane.b32.xlu0 %v1757, 32
      %v1848 = vpop.permute.xlu0 %1847
      %1849 = vrot.lane.b32.xlu0 %v1758, 32
      %v1850 = vpop.permute.xlu0 %1849
      %1851 = vrot.lane.b32.xlu0 %v1759, 32
      %v1852 = vpop.permute.xlu0 %1851
      %1853 = vrot.lane.b32.xlu0 %v1760, 32
      %v1854 = vpop.permute.xlu0 %1853
      %1855 = vrot.lane.b32.xlu0 %v1761, 32
      %v1856 = vpop.permute.xlu0 %1855
      %1857 = vrot.lane.b32.xlu0 %v1762, 32
      %v1858 = vpop.permute.xlu0 %1857
      %vm1891 = vcmask 294144
      %1892 = vst.msk [vmem:[#allocation3] sm:$0xff] %vm1891, %v1796
      %1893 = vst.msk [vmem:[#allocation3 + $0x8] sm:$0xff] %vm1891, %v1798
      %1894 = vst.msk [vmem:[#allocation3 + $0x10] sm:$0xff] %vm1891, %v1800
      %1895 = vst.msk [vmem:[#allocation3 + $0x18] sm:$0xff] %vm1891, %v1802
      %1896 = vst.msk [vmem:[#allocation3 + $0x20] sm:$0xff] %vm1891, %v1804
      %1897 = vst.msk [vmem:[#allocation3 + $0x28] sm:$0xff] %vm1891, %v1806
      %1898 = vst.msk [vmem:[#allocation3 + $0x30] sm:$0xff] %vm1891, %v1808
      %1899 = vst.msk [vmem:[#allocation3 + $0x38] sm:$0xff] %vm1891, %v1810
      %1900 = vst.msk [vmem:[#allocation3 + $0x40] sm:$0xff] %vm1891, %v1812
      %1901 = vst.msk [vmem:[#allocation3 + $0x48] sm:$0xff] %vm1891, %v1814
      %1902 = vst.msk [vmem:[#allocation3 + $0x50] sm:$0xff] %vm1891, %v1816
      %1903 = vst.msk [vmem:[#allocation3 + $0x58] sm:$0xff] %vm1891, %v1818
      %1904 = vst.msk [vmem:[#allocation3 + $0x60] sm:$0xff] %vm1891, %v1820
      %1905 = vst.msk [vmem:[#allocation3 + $0x68] sm:$0xff] %vm1891, %v1822
      %1906 = vst.msk [vmem:[#allocation3 + $0x70] sm:$0xff] %vm1891, %v1824
      %1907 = vst.msk [vmem:[#allocation3 + $0x78] sm:$0xff] %vm1891, %v1826
      %1908 = vst.msk [vmem:[#allocation3 + $0x80] sm:$0xff] %vm1891, %v1828
      %1909 = vst.msk [vmem:[#allocation3 + $0x88] sm:$0xff] %vm1891, %v1830
      %1910 = vst.msk [vmem:[#allocation3 + $0x90] sm:$0xff] %vm1891, %v1832
      %1911 = vst.msk [vmem:[#allocation3 + $0x98] sm:$0xff] %vm1891, %v1834
      %1912 = vst.msk [vmem:[#allocation3 + $0xa0] sm:$0xff] %vm1891, %v1836
      %1913 = vst.msk [vmem:[#allocation3 + $0xa8] sm:$0xff] %vm1891, %v1838
      %1914 = vst.msk [vmem:[#allocation3 + $0xb0] sm:$0xff] %vm1891, %v1840
      %1915 = vst.msk [vmem:[#allocation3 + $0xb8] sm:$0xff] %vm1891, %v1842
      %1916 = vst.msk [vmem:[#allocation3 + $0xc0] sm:$0xff] %vm1891, %v1844
      %1917 = vst.msk [vmem:[#allocation3 + $0xc8] sm:$0xff] %vm1891, %v1846
      %1918 = vst.msk [vmem:[#allocation3 + $0xd0] sm:$0xff] %vm1891, %v1848
      %1919 = vst.msk [vmem:[#allocation3 + $0xd8] sm:$0xff] %vm1891, %v1850
      %1920 = vst.msk [vmem:[#allocation3 + $0xe0] sm:$0xff] %vm1891, %v1852
      %1921 = vst.msk [vmem:[#allocation3 + $0xe8] sm:$0xff] %vm1891, %v1854
      %1922 = vst.msk [vmem:[#allocation3 + $0xf0] sm:$0xff] %vm1891, %v1856
      %1923 = vst.msk [vmem:[#allocation3 + $0xf8] sm:$0xff] %vm1891, %v1858
      %v1924 = vld [vmem:[#allocation3] sm:$0xff]
      %v1925 = vld [vmem:[#allocation3 + $0x8] sm:$0xff]
      %v1926 = vld [vmem:[#allocation3 + $0x10] sm:$0xff]
      %v1927 = vld [vmem:[#allocation3 + $0x18] sm:$0xff]
      %v1928 = vld [vmem:[#allocation3 + $0x20] sm:$0xff]
      %v1929 = vld [vmem:[#allocation3 + $0x28] sm:$0xff]
      %v1930 = vld [vmem:[#allocation3 + $0x30] sm:$0xff]
      %v1931 = vld [vmem:[#allocation3 + $0x38] sm:$0xff]
      %v1932 = vld [vmem:[#allocation3 + $0x40] sm:$0xff]
      %v1933 = vld [vmem:[#allocation3 + $0x48] sm:$0xff]
      %v1934 = vld [vmem:[#allocation3 + $0x50] sm:$0xff]
      %v1935 = vld [vmem:[#allocation3 + $0x58] sm:$0xff]
      %v1936 = vld [vmem:[#allocation3 + $0x60] sm:$0xff]
      %v1937 = vld [vmem:[#allocation3 + $0x68] sm:$0xff]
      %v1938 = vld [vmem:[#allocation3 + $0x70] sm:$0xff]
      %v1939 = vld [vmem:[#allocation3 + $0x78] sm:$0xff]
      %v1940 = vld [vmem:[#allocation3 + $0x80] sm:$0xff]
      %v1941 = vld [vmem:[#allocation3 + $0x88] sm:$0xff]
      %v1942 = vld [vmem:[#allocation3 + $0x90] sm:$0xff]
      %v1943 = vld [vmem:[#allocation3 + $0x98] sm:$0xff]
      %v1944 = vld [vmem:[#allocation3 + $0xa0] sm:$0xff]
      %v1945 = vld [vmem:[#allocation3 + $0xa8] sm:$0xff]
      %v1946 = vld [vmem:[#allocation3 + $0xb0] sm:$0xff]
      %v1947 = vld [vmem:[#allocation3 + $0xb8] sm:$0xff]
      %v1948 = vld [vmem:[#allocation3 + $0xc0] sm:$0xff]
      %v1949 = vld [vmem:[#allocation3 + $0xc8] sm:$0xff]
      %v1950 = vld [vmem:[#allocation3 + $0xd0] sm:$0xff]
      %v1951 = vld [vmem:[#allocation3 + $0xd8] sm:$0xff]
      %v1952 = vld [vmem:[#allocation3 + $0xe0] sm:$0xff]
      %v1953 = vld [vmem:[#allocation3 + $0xe8] sm:$0xff]
      %v1954 = vld [vmem:[#allocation3 + $0xf0] sm:$0xff]
      %v1955 = vld [vmem:[#allocation3 + $0xf8] sm:$0xff]
      %v1956 = vld [vmem:[%s1] sm:$0xff]
      %v1957 = vld [vmem:[%s1 + $0x8] sm:$0xff]
      %v1958 = vld [vmem:[%s1 + $0x10] sm:$0xff]
      %v1959 = vld [vmem:[%s1 + $0x18] sm:$0xff]
      %v1960 = vld [vmem:[%s1 + $0x20] sm:$0xf]
      %vm1961 = vcmask 293888
      %v1963 = vsel %vm1961, %v1924, 0
      %v1966 = vsel %vm1961, %v1925, 0
      %v1969 = vsel %vm1961, %v1926, 0
      %v1972 = vsel %vm1961, %v1927, 0
      %v1975 = vsel %vm1961, %v1928, 0
      %v1978 = vsel %vm1961, %v1929, 0
      %v1981 = vsel %vm1961, %v1930, 0
      %v1984 = vsel %vm1961, %v1931, 0
      %v1987 = vsel %vm1961, %v1932, 0
      %v1990 = vsel %vm1961, %v1933, 0
      %v1993 = vsel %vm1961, %v1934, 0
      %v1996 = vsel %vm1961, %v1935, 0
      %v1999 = vsel %vm1961, %v1936, 0
      %v2002 = vsel %vm1961, %v1937, 0
      %v2005 = vsel %vm1961, %v1938, 0
      %v2008 = vsel %vm1961, %v1939, 0
      %v2011 = vsel %vm1961, %v1940, 0
      %v2014 = vsel %vm1961, %v1941, 0
      %v2017 = vsel %vm1961, %v1942, 0
      %v2020 = vsel %vm1961, %v1943, 0
      %v2023 = vsel %vm1961, %v1944, 0
      %v2026 = vsel %vm1961, %v1945, 0
      %v2029 = vsel %vm1961, %v1946, 0
      %v2032 = vsel %vm1961, %v1947, 0
      %v2035 = vsel %vm1961, %v1948, 0
      %v2038 = vsel %vm1961, %v1949, 0
      %v2041 = vsel %vm1961, %v1950, 0
      %v2044 = vsel %vm1961, %v1951, 0
      %v2047 = vsel %vm1961, %v1952, 0
      %v2050 = vsel %vm1961, %v1953, 0
      %v2053 = vsel %vm1961, %v1954, 0
      %v2056 = vsel %vm1961, %v1955, 0
      %vm2058 = vcmask 1043456
      %v2060 = vsel %vm2058, %v1960, 0
      %2062 = vmatpush.msra.mxu0 0.0
      %2063 = vmatpush.msra.mxu0 0.0
      %2064 = vmatpush.msra.mxu0 0.0
      %2065 = vmatpush.msra.mxu0 0.0
      %2066 = vmatpush.msra.mxu0 0.0
      %2067 = vmatpush.msra.mxu0 0.0
      %2068 = vmatpush.msra.mxu0 0.0
      %2069 = vmatpush.msra.mxu0 0.0
      %2070 = vmatpush.msra.mxu0 0.0
      %2071 = vmatpush.msra.mxu0 0.0
      %2072 = vmatpush.msra.mxu0 0.0
      %2073 = vmatpush.msra.mxu0 %v2060
      %2074 = vmatpush.msra.mxu0 %v1959
      %2075 = vmatpush.msra.mxu0 %v1958
      %2076 = vmatpush.msra.mxu0 %v1957
      %2077 = vmatpush.msra.mxu0 %v1956
      %2078 = vmatmul.f32.gmra.mxu0 %v1963
      %v2079 = vpop.f32.mrf.mxu0
      %v2080 = vadd.f32 0.0, %v2079
      %2081 = vmatmul.f32.gmra.mxu0 %v1966
      %v2082 = vpop.f32.mrf.mxu0
      %v2083 = vadd.f32 0.0, %v2082
      %2084 = vmatmul.f32.gmra.mxu0 %v1969
      %v2085 = vpop.f32.mrf.mxu0
      %v2086 = vadd.f32 0.0, %v2085
      %2087 = vmatmul.f32.gmra.mxu0 %v1972
      %v2088 = vpop.f32.mrf.mxu0
      %v2089 = vadd.f32 0.0, %v2088
      %2090 = vmatmul.f32.gmra.mxu0 %v1975
      %v2091 = vpop.f32.mrf.mxu0
      %v2092 = vadd.f32 0.0, %v2091
      %2093 = vmatmul.f32.gmra.mxu0 %v1978
      %v2094 = vpop.f32.mrf.mxu0
      %v2095 = vadd.f32 0.0, %v2094
      %2096 = vmatmul.f32.gmra.mxu0 %v1981
      %v2097 = vpop.f32.mrf.mxu0
      %v2098 = vadd.f32 0.0, %v2097
      %2099 = vmatmul.f32.gmra.mxu0 %v1984
      %v2100 = vpop.f32.mrf.mxu0
      %v2101 = vadd.f32 0.0, %v2100
      %2102 = vmatmul.f32.gmra.mxu0 %v1987
      %v2103 = vpop.f32.mrf.mxu0
      %v2104 = vadd.f32 0.0, %v2103
      %2105 = vmatmul.f32.gmra.mxu0 %v1990
      %v2106 = vpop.f32.mrf.mxu0
      %v2107 = vadd.f32 0.0, %v2106
      %2108 = vmatmul.f32.gmra.mxu0 %v1993
      %v2109 = vpop.f32.mrf.mxu0
      %v2110 = vadd.f32 0.0, %v2109
      %2111 = vmatmul.f32.gmra.mxu0 %v1996
      %v2112 = vpop.f32.mrf.mxu0
      %v2113 = vadd.f32 0.0, %v2112
      %2114 = vmatmul.f32.gmra.mxu0 %v1999
      %v2115 = vpop.f32.mrf.mxu0
      %v2116 = vadd.f32 0.0, %v2115
      %2117 = vmatmul.f32.gmra.mxu0 %v2002
      %v2118 = vpop.f32.mrf.mxu0
      %v2119 = vadd.f32 0.0, %v2118
      %2120 = vmatmul.f32.gmra.mxu0 %v2005
      %v2121 = vpop.f32.mrf.mxu0
      %v2122 = vadd.f32 0.0, %v2121
      %2123 = vmatmul.f32.gmra.mxu0 %v2008
      %v2124 = vpop.f32.mrf.mxu0
      %v2125 = vadd.f32 0.0, %v2124
      %2126 = vmatmul.f32.gmra.mxu0 %v2011
      %v2127 = vpop.f32.mrf.mxu0
      %v2128 = vadd.f32 0.0, %v2127
      %2129 = vmatmul.f32.gmra.mxu0 %v2014
      %v2130 = vpop.f32.mrf.mxu0
      %v2131 = vadd.f32 0.0, %v2130
      %2132 = vmatmul.f32.gmra.mxu0 %v2017
      %v2133 = vpop.f32.mrf.mxu0
      %v2134 = vadd.f32 0.0, %v2133
      %2135 = vmatmul.f32.gmra.mxu0 %v2020
      %v2136 = vpop.f32.mrf.mxu0
      %v2137 = vadd.f32 0.0, %v2136
      %2138 = vmatmul.f32.gmra.mxu0 %v2023
      %v2139 = vpop.f32.mrf.mxu0
      %v2140 = vadd.f32 0.0, %v2139
      %2141 = vmatmul.f32.gmra.mxu0 %v2026
      %v2142 = vpop.f32.mrf.mxu0
      %v2143 = vadd.f32 0.0, %v2142
      %2144 = vmatmul.f32.gmra.mxu0 %v2029
      %v2145 = vpop.f32.mrf.mxu0
      %v2146 = vadd.f32 0.0, %v2145
      %2147 = vmatmul.f32.gmra.mxu0 %v2032
      %v2148 = vpop.f32.mrf.mxu0
      %v2149 = vadd.f32 0.0, %v2148
      %2150 = vmatmul.f32.gmra.mxu0 %v2035
      %v2151 = vpop.f32.mrf.mxu0
      %v2152 = vadd.f32 0.0, %v2151
      %2153 = vmatmul.f32.gmra.mxu0 %v2038
      %v2154 = vpop.f32.mrf.mxu0
      %v2155 = vadd.f32 0.0, %v2154
      %2156 = vmatmul.f32.gmra.mxu0 %v2041
      %v2157 = vpop.f32.mrf.mxu0
      %v2158 = vadd.f32 0.0, %v2157
      %2159 = vmatmul.f32.gmra.mxu0 %v2044
      %v2160 = vpop.f32.mrf.mxu0
      %v2161 = vadd.f32 0.0, %v2160
      %2162 = vmatmul.f32.gmra.mxu0 %v2047
      %v2163 = vpop.f32.mrf.mxu0
      %v2164 = vadd.f32 0.0, %v2163
      %2165 = vmatmul.f32.gmra.mxu0 %v2050
      %v2166 = vpop.f32.mrf.mxu0
      %v2167 = vadd.f32 0.0, %v2166
      %2168 = vmatmul.f32.gmra.mxu0 %v2053
      %v2169 = vpop.f32.mrf.mxu0
      %v2170 = vadd.f32 0.0, %v2169
      %2171 = vmatmul.f32.gmra.mxu0 %v2056
      %v2172 = vpop.f32.mrf.mxu0
      %v2173 = vadd.f32 0.0, %v2172
      %2174 = vdwg.mxu0
      %v2175 = vsel %vm204, %v2080, 0.0
      %v2176 = vsel %vm204, %v2083, 0.0
      %v2177 = vadd.f32 %v2175, %v2176
      %v2178 = vsel %vm204, %v2086, 0.0
      %v2179 = vadd.f32 %v2177, %v2178
      %v2180 = vsel %vm204, %v2089, 0.0
      %v2181 = vadd.f32 %v2179, %v2180
      %v2182 = vsel %vm204, %v2092, 0.0
      %v2183 = vadd.f32 %v2181, %v2182
      %v2184 = vsel %vm204, %v2095, 0.0
      %v2185 = vadd.f32 %v2183, %v2184
      %v2186 = vsel %vm204, %v2098, 0.0
      %v2187 = vadd.f32 %v2185, %v2186
      %v2188 = vsel %vm204, %v2101, 0.0
      %v2189 = vadd.f32 %v2187, %v2188
      %v2190 = vsel %vm204, %v2104, 0.0
      %v2191 = vadd.f32 %v2189, %v2190
      %v2192 = vsel %vm204, %v2107, 0.0
      %v2193 = vadd.f32 %v2191, %v2192
      %v2194 = vsel %vm204, %v2110, 0.0
      %v2195 = vadd.f32 %v2193, %v2194
      %v2196 = vsel %vm204, %v2113, 0.0
      %v2197 = vadd.f32 %v2195, %v2196
      %v2198 = vsel %vm204, %v2116, 0.0
      %v2199 = vadd.f32 %v2197, %v2198
      %v2200 = vsel %vm204, %v2119, 0.0
      %v2201 = vadd.f32 %v2199, %v2200
      %v2202 = vsel %vm204, %v2122, 0.0
      %v2203 = vadd.f32 %v2201, %v2202
      %v2204 = vsel %vm204, %v2125, 0.0
      %v2205 = vadd.f32 %v2203, %v2204
      %v2206 = vsel %vm204, %v2128, 0.0
      %v2207 = vadd.f32 %v2205, %v2206
      %v2208 = vsel %vm204, %v2131, 0.0
      %v2209 = vadd.f32 %v2207, %v2208
      %v2210 = vsel %vm204, %v2134, 0.0
      %v2211 = vadd.f32 %v2209, %v2210
      %v2212 = vsel %vm204, %v2137, 0.0
      %v2213 = vadd.f32 %v2211, %v2212
      %v2214 = vsel %vm204, %v2140, 0.0
      %v2215 = vadd.f32 %v2213, %v2214
      %v2216 = vsel %vm204, %v2143, 0.0
      %v2217 = vadd.f32 %v2215, %v2216
      %v2218 = vsel %vm204, %v2146, 0.0
      %v2219 = vadd.f32 %v2217, %v2218
      %v2220 = vsel %vm204, %v2149, 0.0
      %v2221 = vadd.f32 %v2219, %v2220
      %v2222 = vsel %vm204, %v2152, 0.0
      %v2223 = vadd.f32 %v2221, %v2222
      %v2224 = vsel %vm204, %v2155, 0.0
      %v2225 = vadd.f32 %v2223, %v2224
      %v2226 = vsel %vm204, %v2158, 0.0
      %v2227 = vadd.f32 %v2225, %v2226
      %v2228 = vsel %vm204, %v2161, 0.0
      %v2229 = vadd.f32 %v2227, %v2228
      %v2230 = vsel %vm204, %v2164, 0.0
      %v2231 = vadd.f32 %v2229, %v2230
      %v2232 = vsel %vm204, %v2167, 0.0
      %v2233 = vadd.f32 %v2231, %v2232
      %v2234 = vsel %vm204, %v2170, 0.0
      %v2235 = vadd.f32 %v2233, %v2234
      %v2236 = vsel %vm204, %v2173, 0.0
      %v2237 = vadd.f32 %v2235, %v2236
      %v2238 = vrot.slane %v2237, 4
      %v2239 = vadd.f32 %v2237, %v2238
      %v2240 = vrot.slane %v2239, 2
      %v2241 = vadd.f32 %v2239, %v2240
      %v2242 = vrot.slane %v2241, 1
      %v2243 = vadd.f32 %v2241, %v2242
      %v2244 = vrcp.pop 256.0
      %v2245 = vmul.f32 256.0, %v2244
      %v2246 = vsub.f32 1.0, %v2245
      %v2247 = vmul.f32 %v2244, %v2246
      %v2248 = vadd.f32 %v2244, %v2247
      %vm2249 = vweird.f32 %v2244
      %v2250 = vsel %vm2249, %v2244, %v2248
      %v2251 = vmul.f32 %v2243, %v2250
      %v2252 = vsub.f32 %v2080, %v2251
      %v2253 = vsub.f32 %v2083, %v2251
      %v2254 = vsub.f32 %v2086, %v2251
      %v2255 = vsub.f32 %v2089, %v2251
      %v2256 = vsub.f32 %v2092, %v2251
      %v2257 = vsub.f32 %v2095, %v2251
      %v2258 = vsub.f32 %v2098, %v2251
      %v2259 = vsub.f32 %v2101, %v2251
      %v2260 = vsub.f32 %v2104, %v2251
      %v2261 = vsub.f32 %v2107, %v2251
      %v2262 = vsub.f32 %v2110, %v2251
      %v2263 = vsub.f32 %v2113, %v2251
      %v2264 = vsub.f32 %v2116, %v2251
      %v2265 = vsub.f32 %v2119, %v2251
      %v2266 = vsub.f32 %v2122, %v2251
      %v2267 = vsub.f32 %v2125, %v2251
      %v2268 = vsub.f32 %v2128, %v2251
      %v2269 = vsub.f32 %v2131, %v2251
      %v2270 = vsub.f32 %v2134, %v2251
      %v2271 = vsub.f32 %v2137, %v2251
      %v2272 = vsub.f32 %v2140, %v2251
      %v2273 = vsub.f32 %v2143, %v2251
      %v2274 = vsub.f32 %v2146, %v2251
      %v2275 = vsub.f32 %v2149, %v2251
      %v2276 = vsub.f32 %v2152, %v2251
      %v2277 = vsub.f32 %v2155, %v2251
      %v2278 = vsub.f32 %v2158, %v2251
      %v2279 = vsub.f32 %v2161, %v2251
      %v2280 = vsub.f32 %v2164, %v2251
      %v2281 = vsub.f32 %v2167, %v2251
      %v2282 = vsub.f32 %v2170, %v2251
      %v2283 = vsub.f32 %v2173, %v2251
      %v2284 = vmul.f32 %v2252, %v2252
      %v2285 = vmul.f32 %v2253, %v2253
      %v2286 = vmul.f32 %v2254, %v2254
      %v2287 = vmul.f32 %v2255, %v2255
      %v2288 = vmul.f32 %v2256, %v2256
      %v2289 = vmul.f32 %v2257, %v2257
      %v2290 = vmul.f32 %v2258, %v2258
      %v2291 = vmul.f32 %v2259, %v2259
      %v2292 = vmul.f32 %v2260, %v2260
      %v2293 = vmul.f32 %v2261, %v2261
      %v2294 = vmul.f32 %v2262, %v2262
      %v2295 = vmul.f32 %v2263, %v2263
      %v2296 = vmul.f32 %v2264, %v2264
      %v2297 = vmul.f32 %v2265, %v2265
      %v2298 = vmul.f32 %v2266, %v2266
      %v2299 = vmul.f32 %v2267, %v2267
      %v2300 = vmul.f32 %v2268, %v2268
      %v2301 = vmul.f32 %v2269, %v2269
      %v2302 = vmul.f32 %v2270, %v2270
      %v2303 = vmul.f32 %v2271, %v2271
      %v2304 = vmul.f32 %v2272, %v2272
      %v2305 = vmul.f32 %v2273, %v2273
      %v2306 = vmul.f32 %v2274, %v2274
      %v2307 = vmul.f32 %v2275, %v2275
      %v2308 = vmul.f32 %v2276, %v2276
      %v2309 = vmul.f32 %v2277, %v2277
      %v2310 = vmul.f32 %v2278, %v2278
      %v2311 = vmul.f32 %v2279, %v2279
      %v2312 = vmul.f32 %v2280, %v2280
      %v2313 = vmul.f32 %v2281, %v2281
      %v2314 = vmul.f32 %v2282, %v2282
      %v2315 = vmul.f32 %v2283, %v2283
      %v2316 = vsel %vm204, %v2284, 0.0
      %v2317 = vsel %vm204, %v2285, 0.0
      %v2318 = vadd.f32 %v2316, %v2317
      %v2319 = vsel %vm204, %v2286, 0.0
      %v2320 = vadd.f32 %v2318, %v2319
      %v2321 = vsel %vm204, %v2287, 0.0
      %v2322 = vadd.f32 %v2320, %v2321
      %v2323 = vsel %vm204, %v2288, 0.0
      %v2324 = vadd.f32 %v2322, %v2323
      %v2325 = vsel %vm204, %v2289, 0.0
      %v2326 = vadd.f32 %v2324, %v2325
      %v2327 = vsel %vm204, %v2290, 0.0
      %v2328 = vadd.f32 %v2326, %v2327
      %v2329 = vsel %vm204, %v2291, 0.0
      %v2330 = vadd.f32 %v2328, %v2329
      %v2331 = vsel %vm204, %v2292, 0.0
      %v2332 = vadd.f32 %v2330, %v2331
      %v2333 = vsel %vm204, %v2293, 0.0
      %v2334 = vadd.f32 %v2332, %v2333
      %v2335 = vsel %vm204, %v2294, 0.0
      %v2336 = vadd.f32 %v2334, %v2335
      %v2337 = vsel %vm204, %v2295, 0.0
      %v2338 = vadd.f32 %v2336, %v2337
      %v2339 = vsel %vm204, %v2296, 0.0
      %v2340 = vadd.f32 %v2338, %v2339
      %v2341 = vsel %vm204, %v2297, 0.0
      %v2342 = vadd.f32 %v2340, %v2341
      %v2343 = vsel %vm204, %v2298, 0.0
      %v2344 = vadd.f32 %v2342, %v2343
      %v2345 = vsel %vm204, %v2299, 0.0
      %v2346 = vadd.f32 %v2344, %v2345
      %v2347 = vsel %vm204, %v2300, 0.0
      %v2348 = vadd.f32 %v2346, %v2347
      %v2349 = vsel %vm204, %v2301, 0.0
      %v2350 = vadd.f32 %v2348, %v2349
      %v2351 = vsel %vm204, %v2302, 0.0
      %v2352 = vadd.f32 %v2350, %v2351
      %v2353 = vsel %vm204, %v2303, 0.0
      %v2354 = vadd.f32 %v2352, %v2353
      %v2355 = vsel %vm204, %v2304, 0.0
      %v2356 = vadd.f32 %v2354, %v2355
      %v2357 = vsel %vm204, %v2305, 0.0
      %v2358 = vadd.f32 %v2356, %v2357
      %v2359 = vsel %vm204, %v2306, 0.0
      %v2360 = vadd.f32 %v2358, %v2359
      %v2361 = vsel %vm204, %v2307, 0.0
      %v2362 = vadd.f32 %v2360, %v2361
      %v2363 = vsel %vm204, %v2308, 0.0
      %v2364 = vadd.f32 %v2362, %v2363
      %v2365 = vsel %vm204, %v2309, 0.0
      %v2366 = vadd.f32 %v2364, %v2365
      %v2367 = vsel %vm204, %v2310, 0.0
      %v2368 = vadd.f32 %v2366, %v2367
      %v2369 = vsel %vm204, %v2311, 0.0
      %v2370 = vadd.f32 %v2368, %v2369
      %v2371 = vsel %vm204, %v2312, 0.0
      %v2372 = vadd.f32 %v2370, %v2371
      %v2373 = vsel %vm204, %v2313, 0.0
      %v2374 = vadd.f32 %v2372, %v2373
      %v2375 = vsel %vm204, %v2314, 0.0
      %v2376 = vadd.f32 %v2374, %v2375
      %v2377 = vsel %vm204, %v2315, 0.0
      %v2378 = vadd.f32 %v2376, %v2377
      %v2379 = vrot.slane %v2378, 4
      %v2380 = vadd.f32 %v2378, %v2379
      %v2381 = vrot.slane %v2380, 2
      %v2382 = vadd.f32 %v2380, %v2381
      %v2383 = vrot.slane %v2382, 1
      %v2384 = vadd.f32 %v2382, %v2383
      %v2385 = vmul.f32 %v2384, %v2250
      %v2386 = vadd.f32 %v2385, 1e-05
      %v2387 = vrsqrt.pop %v2386
      %v2388 = vmul.f32 %v2387, %v2386
      %v2389 = vmul.f32 %v2388, %v2387
      %v2390 = vmul.f32 0.5, %v2389
      %v2391 = vsub.f32 1.5, %v2390
      %v2392 = vmul.f32 %v2387, %v2391
      %vm2393 = vweird.f32 %v2386
      %vm2394 = vweird.f32 %v2387
      %vm2395 = vmor %vm2393, %vm2394
      %v2396 = vsel %vm2395, %v2387, %v2392
      %v2397 = vmul.f32 %v2252, %v2396
      %v2398 = vmul.f32 %v2253, %v2396
      %v2399 = vmul.f32 %v2254, %v2396
      %v2400 = vmul.f32 %v2255, %v2396
      %v2401 = vmul.f32 %v2256, %v2396
      %v2402 = vmul.f32 %v2257, %v2396
      %v2403 = vmul.f32 %v2258, %v2396
      %v2404 = vmul.f32 %v2259, %v2396
      %v2405 = vmul.f32 %v2260, %v2396
      %v2406 = vmul.f32 %v2261, %v2396
      %v2407 = vmul.f32 %v2262, %v2396
      %v2408 = vmul.f32 %v2263, %v2396
      %v2409 = vmul.f32 %v2264, %v2396
      %v2410 = vmul.f32 %v2265, %v2396
      %v2411 = vmul.f32 %v2266, %v2396
      %v2412 = vmul.f32 %v2267, %v2396
      %v2413 = vmul.f32 %v2268, %v2396
      %v2414 = vmul.f32 %v2269, %v2396
      %v2415 = vmul.f32 %v2270, %v2396
      %v2416 = vmul.f32 %v2271, %v2396
      %v2417 = vmul.f32 %v2272, %v2396
      %v2418 = vmul.f32 %v2273, %v2396
      %v2419 = vmul.f32 %v2274, %v2396
      %v2420 = vmul.f32 %v2275, %v2396
      %v2421 = vmul.f32 %v2276, %v2396
      %v2422 = vmul.f32 %v2277, %v2396
      %v2423 = vmul.f32 %v2278, %v2396
      %v2424 = vmul.f32 %v2279, %v2396
      %v2425 = vmul.f32 %v2280, %v2396
      %v2426 = vmul.f32 %v2281, %v2396
      %v2427 = vmul.f32 %v2282, %v2396
      %v2428 = vmul.f32 %v2283, %v2396
      %v2429 = vmax.f32 %v2397, 0.0
      %v2430 = vmax.f32 %v2398, 0.0
      %v2431 = vmax.f32 %v2399, 0.0
      %v2432 = vmax.f32 %v2400, 0.0
      %v2433 = vmax.f32 %v2401, 0.0
      %v2434 = vmax.f32 %v2402, 0.0
      %v2435 = vmax.f32 %v2403, 0.0
      %v2436 = vmax.f32 %v2404, 0.0
      %v2437 = vmax.f32 %v2405, 0.0
      %v2438 = vmax.f32 %v2406, 0.0
      %v2439 = vmax.f32 %v2407, 0.0
      %v2440 = vmax.f32 %v2408, 0.0
      %v2441 = vmax.f32 %v2409, 0.0
      %v2442 = vmax.f32 %v2410, 0.0
      %v2443 = vmax.f32 %v2411, 0.0
      %v2444 = vmax.f32 %v2412, 0.0
      %v2445 = vmax.f32 %v2413, 0.0
      %v2446 = vmax.f32 %v2414, 0.0
      %v2447 = vmax.f32 %v2415, 0.0
      %v2448 = vmax.f32 %v2416, 0.0
      %v2449 = vmax.f32 %v2417, 0.0
      %v2450 = vmax.f32 %v2418, 0.0
      %v2451 = vmax.f32 %v2419, 0.0
      %v2452 = vmax.f32 %v2420, 0.0
      %v2453 = vmax.f32 %v2421, 0.0
      %v2454 = vmax.f32 %v2422, 0.0
      %v2455 = vmax.f32 %v2423, 0.0
      %v2456 = vmax.f32 %v2424, 0.0
      %v2457 = vmax.f32 %v2425, 0.0
      %v2458 = vmax.f32 %v2426, 0.0
      %v2459 = vmax.f32 %v2427, 0.0
      %v2460 = vmax.f32 %v2428, 0.0
      %2461 = vst.msk [vmem:[%s203 + $0x1] sm:$0xff] %vm204, %v2429
      %2462 = vst.msk [vmem:[%s203 + $0x9] sm:$0xff] %vm204, %v2430
      %2463 = vst.msk [vmem:[%s203 + $0x19] sm:$0xff] %vm204, %v2431
      %2464 = vst.msk [vmem:[%s203 + $0x21] sm:$0xff] %vm204, %v2432
      %2465 = vst.msk [vmem:[%s203 + $0x31] sm:$0xff] %vm204, %v2433
      %2466 = vst.msk [vmem:[%s203 + $0x39] sm:$0xff] %vm204, %v2434
      %2467 = vst.msk [vmem:[%s203 + $0x49] sm:$0xff] %vm204, %v2435
      %2468 = vst.msk [vmem:[%s203 + $0x51] sm:$0xff] %vm204, %v2436
      %2469 = vst.msk [vmem:[%s203 + $0x61] sm:$0xff] %vm204, %v2437
      %2470 = vst.msk [vmem:[%s203 + $0x69] sm:$0xff] %vm204, %v2438
      %2471 = vst.msk [vmem:[%s203 + $0x79] sm:$0xff] %vm204, %v2439
      %2472 = vst.msk [vmem:[%s203 + $0x81] sm:$0xff] %vm204, %v2440
      %2473 = vst.msk [vmem:[%s203 + $0x91] sm:$0xff] %vm204, %v2441
      %2474 = vst.msk [vmem:[%s203 + $0x99] sm:$0xff] %vm204, %v2442
      %2475 = vst.msk [vmem:[%s203 + $0xa9] sm:$0xff] %vm204, %v2443
      %2476 = vst.msk [vmem:[%s203 + $0xb1] sm:$0xff] %vm204, %v2444
      %2477 = vst.msk [vmem:[%s203 + $0xc1] sm:$0xff] %vm204, %v2445
      %2478 = vst.msk [vmem:[%s203 + $0xc9] sm:$0xff] %vm204, %v2446
      %2479 = vst.msk [vmem:[%s203 + $0xd9] sm:$0xff] %vm204, %v2447
      %2480 = vst.msk [vmem:[%s203 + $0xe1] sm:$0xff] %vm204, %v2448
      %2481 = vst.msk [vmem:[%s203 + $0xf1] sm:$0xff] %vm204, %v2449
      %2482 = vst.msk [vmem:[%s203 + $0xf9] sm:$0xff] %vm204, %v2450
      %2483 = vst.msk [vmem:[%s203 + $0x109] sm:$0xff] %vm204, %v2451
      %2484 = vst.msk [vmem:[%s203 + $0x111] sm:$0xff] %vm204, %v2452
      %2485 = vst.msk [vmem:[%s203 + $0x121] sm:$0xff] %vm204, %v2453
      %2486 = vst.msk [vmem:[%s203 + $0x129] sm:$0xff] %vm204, %v2454
      %2487 = vst.msk [vmem:[%s203 + $0x139] sm:$0xff] %vm204, %v2455
      %2488 = vst.msk [vmem:[%s203 + $0x141] sm:$0xff] %vm204, %v2456
      %2489 = vst.msk [vmem:[%s203 + $0x151] sm:$0xff] %vm204, %v2457
      %2490 = vst.msk [vmem:[%s203 + $0x159] sm:$0xff] %vm204, %v2458
      %2491 = vst.msk [vmem:[%s203 + $0x169] sm:$0xff] %vm204, %v2459
      %2492 = vst.msk [vmem:[%s203 + $0x171] sm:$0xff] %vm204, %v2460
      %2493 = vst.msk [vmem:[#allocation2 + $0x1] sm:$0xff] %vm204, %v2431
      %2494 = vst.msk [vmem:[#allocation2 + $0x9] sm:$0xff] %vm204, %v2432
      %2495 = vst.msk [vmem:[%s239 + $0x1] sm:$0xff] %vm204, %v2457
      %2496 = vst.msk [vmem:[%s239 + $0x9] sm:$0xff] %vm204, %v2458
      %v2497 = vld [vmem:[#allocation2 + $0x2] sm:$0x1]
      %v2498 = vld [vmem:[#allocation2 + $0x1a] sm:$0x1]
      %v2499 = vld [vmem:[#allocation2 + $0x32] sm:$0x1]
      %v2500 = vld [vmem:[#allocation2 + $0x4a] sm:$0x1]
      %v2501 = vld [vmem:[#allocation2 + $0x62] sm:$0x1]
      %v2502 = vld [vmem:[#allocation2 + $0x7a] sm:$0x1]
      %v2503 = vld [vmem:[#allocation2 + $0x92] sm:$0x1]
      %v2504 = vld [vmem:[#allocation2 + $0xaa] sm:$0x1]
      %v2505 = vld [vmem:[#allocation2 + $0xc2] sm:$0x1]
      %v2506 = vld [vmem:[#allocation2 + $0xda] sm:$0x1]
      %v2507 = vld [vmem:[#allocation2 + $0xf2] sm:$0x1]
      %v2508 = vld [vmem:[#allocation2 + $0x10a] sm:$0x1]
      %v2509 = vld [vmem:[#allocation2 + $0x122] sm:$0x1]
      %v2510 = vld [vmem:[#allocation2 + $0x13a] sm:$0x1]
      %v2511 = vld [vmem:[#allocation2 + $0x152] sm:$0x1]
      %v2512 = vld [vmem:[#allocation2 + $0x16a] sm:$0x1]
      %v2513 = vld [vmem:[#allocation2 + $0x182] sm:$0x1]
      %v2514 = vld [vmem:[#allocation2 + $0x19a] sm:$0x1]
      %2515 = vst.msk [vmem:[#allocation2] sm:$0x1] %vm260, %v2497
      %2516 = vst.msk [vmem:[#allocation2 + $0x18] sm:$0x1] %vm260, %v2498
      %2517 = vst.msk [vmem:[#allocation2 + $0x30] sm:$0x1] %vm260, %v2499
      %2518 = vst.msk [vmem:[#allocation2 + $0x48] sm:$0x1] %vm260, %v2500
      %2519 = vst.msk [vmem:[#allocation2 + $0x60] sm:$0x1] %vm260, %v2501
      %2520 = vst.msk [vmem:[#allocation2 + $0x78] sm:$0x1] %vm260, %v2502
      %2521 = vst.msk [vmem:[#allocation2 + $0x90] sm:$0x1] %vm260, %v2503
      %2522 = vst.msk [vmem:[#allocation2 + $0xa8] sm:$0x1] %vm260, %v2504
      %2523 = vst.msk [vmem:[#allocation2 + $0xc0] sm:$0x1] %vm260, %v2505
      %2524 = vst.msk [vmem:[#allocation2 + $0xd8] sm:$0x1] %vm260, %v2506
      %2525 = vst.msk [vmem:[#allocation2 + $0xf0] sm:$0x1] %vm260, %v2507
      %2526 = vst.msk [vmem:[#allocation2 + $0x108] sm:$0x1] %vm260, %v2508
      %2527 = vst.msk [vmem:[#allocation2 + $0x120] sm:$0x1] %vm260, %v2509
      %2528 = vst.msk [vmem:[#allocation2 + $0x138] sm:$0x1] %vm260, %v2510
      %2529 = vst.msk [vmem:[#allocation2 + $0x150] sm:$0x1] %vm260, %v2511
      %2530 = vst.msk [vmem:[#allocation2 + $0x168] sm:$0x1] %vm260, %v2512
      %2531 = vst.msk [vmem:[#allocation2 + $0x180] sm:$0x1] %vm260, %v2513
      %2532 = vst.msk [vmem:[#allocation2 + $0x198] sm:$0x1] %vm260, %v2514
      %v2533 = vld [vmem:[#allocation2 + $0xf] sm:$0x1]
      %v2534 = vld [vmem:[#allocation2 + $0x27] sm:$0x1]
      %v2535 = vld [vmem:[#allocation2 + $0x3f] sm:$0x1]
      %v2536 = vld [vmem:[#allocation2 + $0x57] sm:$0x1]
      %v2537 = vld [vmem:[#allocation2 + $0x6f] sm:$0x1]
      %v2538 = vld [vmem:[#allocation2 + $0x87] sm:$0x1]
      %v2539 = vld [vmem:[#allocation2 + $0x9f] sm:$0x1]
      %v2540 = vld [vmem:[#allocation2 + $0xb7] sm:$0x1]
      %v2541 = vld [vmem:[#allocation2 + $0xcf] sm:$0x1]
      %v2542 = vld [vmem:[#allocation2 + $0xe7] sm:$0x1]
      %v2543 = vld [vmem:[#allocation2 + $0xff] sm:$0x1]
      %v2544 = vld [vmem:[#allocation2 + $0x117] sm:$0x1]
      %v2545 = vld [vmem:[#allocation2 + $0x12f] sm:$0x1]
      %v2546 = vld [vmem:[#allocation2 + $0x147] sm:$0x1]
      %v2547 = vld [vmem:[#allocation2 + $0x15f] sm:$0x1]
      %v2548 = vld [vmem:[#allocation2 + $0x177] sm:$0x1]
      %v2549 = vld [vmem:[#allocation2 + $0x18f] sm:$0x1]
      %v2550 = vld [vmem:[#allocation2 + $0x1a7] sm:$0x1]
      %2551 = vst.msk [vmem:[#allocation2 + $0x11] sm:$0x1] %vm260, %v2533
      %2552 = vst.msk [vmem:[#allocation2 + $0x29] sm:$0x1] %vm260, %v2534
      %2553 = vst.msk [vmem:[#allocation2 + $0x41] sm:$0x1] %vm260, %v2535
      %2554 = vst.msk [vmem:[#allocation2 + $0x59] sm:$0x1] %vm260, %v2536
      %2555 = vst.msk [vmem:[#allocation2 + $0x71] sm:$0x1] %vm260, %v2537
      %2556 = vst.msk [vmem:[#allocation2 + $0x89] sm:$0x1] %vm260, %v2538
      %2557 = vst.msk [vmem:[#allocation2 + $0xa1] sm:$0x1] %vm260, %v2539
      %2558 = vst.msk [vmem:[#allocation2 + $0xb9] sm:$0x1] %vm260, %v2540
      %2559 = vst.msk [vmem:[#allocation2 + $0xd1] sm:$0x1] %vm260, %v2541
      %2560 = vst.msk [vmem:[#allocation2 + $0xe9] sm:$0x1] %vm260, %v2542
      %2561 = vst.msk [vmem:[#allocation2 + $0x101] sm:$0x1] %vm260, %v2543
      %2562 = vst.msk [vmem:[#allocation2 + $0x119] sm:$0x1] %vm260, %v2544
      %2563 = vst.msk [vmem:[#allocation2 + $0x131] sm:$0x1] %vm260, %v2545
      %2564 = vst.msk [vmem:[#allocation2 + $0x149] sm:$0x1] %vm260, %v2546
      %2565 = vst.msk [vmem:[#allocation2 + $0x161] sm:$0x1] %vm260, %v2547
      %2566 = vst.msk [vmem:[#allocation2 + $0x179] sm:$0x1] %vm260, %v2548
      %2567 = vst.msk [vmem:[#allocation2 + $0x191] sm:$0x1] %vm260, %v2549
      %2568 = vst.msk [vmem:[#allocation2 + $0x1a9] sm:$0x1] %vm260, %v2550
      %v2569 = vld [vmem:[#allocation2] sm:$0xff]
      %v2570 = vld [vmem:[#allocation2 + $0x8] sm:$0xff]
      %v2571 = vld [vmem:[#allocation2 + $0x18] sm:$0xff]
      %v2572 = vld [vmem:[#allocation2 + $0x20] sm:$0xff]
      %v2573 = vld [vmem:[#allocation2 + $0x30] sm:$0xff]
      %v2574 = vld [vmem:[#allocation2 + $0x38] sm:$0xff]
      %v2575 = vld [vmem:[#allocation2 + $0x48] sm:$0xff]
      %v2576 = vld [vmem:[#allocation2 + $0x50] sm:$0xff]
      %v2577 = vld [vmem:[#allocation2 + $0x60] sm:$0xff]
      %v2578 = vld [vmem:[#allocation2 + $0x68] sm:$0xff]
      %v2579 = vld [vmem:[#allocation2 + $0x78] sm:$0xff]
      %v2580 = vld [vmem:[#allocation2 + $0x80] sm:$0xff]
      %v2581 = vld [vmem:[#allocation2 + $0x90] sm:$0xff]
      %v2582 = vld [vmem:[#allocation2 + $0x98] sm:$0xff]
      %v2583 = vld [vmem:[#allocation2 + $0xa8] sm:$0xff]
      %v2584 = vld [vmem:[#allocation2 + $0xb0] sm:$0xff]
      %v2585 = vld [vmem:[#allocation2 + $0xc0] sm:$0xff]
      %v2586 = vld [vmem:[#allocation2 + $0xc8] sm:$0xff]
      %v2587 = vld [vmem:[#allocation2 + $0xd8] sm:$0xff]
      %v2588 = vld [vmem:[#allocation2 + $0xe0] sm:$0xff]
      %v2589 = vld [vmem:[#allocation2 + $0xf0] sm:$0xff]
      %v2590 = vld [vmem:[#allocation2 + $0xf8] sm:$0xff]
      %v2591 = vld [vmem:[#allocation2 + $0x108] sm:$0xff]
      %v2592 = vld [vmem:[#allocation2 + $0x110] sm:$0xff]
      %v2593 = vld [vmem:[#allocation2 + $0x120] sm:$0xff]
      %v2594 = vld [vmem:[#allocation2 + $0x128] sm:$0xff]
      %v2595 = vld [vmem:[#allocation2 + $0x138] sm:$0xff]
      %v2596 = vld [vmem:[#allocation2 + $0x140] sm:$0xff]
      %v2597 = vld [vmem:[#allocation2 + $0x150] sm:$0xff]
      %v2598 = vld [vmem:[#allocation2 + $0x158] sm:$0xff]
      %v2599 = vld [vmem:[#allocation2 + $0x168] sm:$0xff]
      %v2600 = vld [vmem:[#allocation2 + $0x170] sm:$0xff]
      %2601 = vst.msk [vmem:[#allocation3] sm:$0xff] %vm204, %v2569
      %2602 = vst.msk [vmem:[#allocation3 + $0x8] sm:$0xff] %vm204, %v2570
      %2603 = vst.msk [vmem:[#allocation3 + $0x10] sm:$0xff] %vm204, %v2571
      %2604 = vst.msk [vmem:[#allocation3 + $0x18] sm:$0xff] %vm204, %v2572
      %2605 = vst.msk [vmem:[#allocation3 + $0x20] sm:$0xff] %vm204, %v2573
      %2606 = vst.msk [vmem:[#allocation3 + $0x28] sm:$0xff] %vm204, %v2574
      %2607 = vst.msk [vmem:[#allocation3 + $0x30] sm:$0xff] %vm204, %v2575
      %2608 = vst.msk [vmem:[#allocation3 + $0x38] sm:$0xff] %vm204, %v2576
      %2609 = vst.msk [vmem:[#allocation3 + $0x40] sm:$0xff] %vm204, %v2577
      %2610 = vst.msk [vmem:[#allocation3 + $0x48] sm:$0xff] %vm204, %v2578
      %2611 = vst.msk [vmem:[#allocation3 + $0x50] sm:$0xff] %vm204, %v2579
      %2612 = vst.msk [vmem:[#allocation3 + $0x58] sm:$0xff] %vm204, %v2580
      %2613 = vst.msk [vmem:[#allocation3 + $0x60] sm:$0xff] %vm204, %v2581
      %2614 = vst.msk [vmem:[#allocation3 + $0x68] sm:$0xff] %vm204, %v2582
      %2615 = vst.msk [vmem:[#allocation3 + $0x70] sm:$0xff] %vm204, %v2583
      %2616 = vst.msk [vmem:[#allocation3 + $0x78] sm:$0xff] %vm204, %v2584
      %2617 = vst.msk [vmem:[#allocation3 + $0x80] sm:$0xff] %vm204, %v2585
      %2618 = vst.msk [vmem:[#allocation3 + $0x88] sm:$0xff] %vm204, %v2586
      %2619 = vst.msk [vmem:[#allocation3 + $0x90] sm:$0xff] %vm204, %v2587
      %2620 = vst.msk [vmem:[#allocation3 + $0x98] sm:$0xff] %vm204, %v2588
      %2621 = vst.msk [vmem:[#allocation3 + $0xa0] sm:$0xff] %vm204, %v2589
      %2622 = vst.msk [vmem:[#allocation3 + $0xa8] sm:$0xff] %vm204, %v2590
      %2623 = vst.msk [vmem:[#allocation3 + $0xb0] sm:$0xff] %vm204, %v2591
      %2624 = vst.msk [vmem:[#allocation3 + $0xb8] sm:$0xff] %vm204, %v2592
      %2625 = vst.msk [vmem:[#allocation3 + $0xc0] sm:$0xff] %vm204, %v2593
      %2626 = vst.msk [vmem:[#allocation3 + $0xc8] sm:$0xff] %vm204, %v2594
      %2627 = vst.msk [vmem:[#allocation3 + $0xd0] sm:$0xff] %vm204, %v2595
      %2628 = vst.msk [vmem:[#allocation3 + $0xd8] sm:$0xff] %vm204, %v2596
      %2629 = vst.msk [vmem:[#allocation3 + $0xe0] sm:$0xff] %vm204, %v2597
      %2630 = vst.msk [vmem:[#allocation3 + $0xe8] sm:$0xff] %vm204, %v2598
      %2631 = vst.msk [vmem:[#allocation3 + $0xf0] sm:$0xff] %vm204, %v2599
      %2632 = vst.msk [vmem:[#allocation3 + $0xf8] sm:$0xff] %vm204, %v2600
      %v2633 = vld [vmem:[#allocation2 + $0x1] sm:$0xff]
      %v2634 = vld [vmem:[#allocation2 + $0x9] sm:$0xff]
      %v2635 = vld [vmem:[#allocation2 + $0x19] sm:$0xff]
      %v2636 = vld [vmem:[#allocation2 + $0x21] sm:$0xff]
      %v2637 = vld [vmem:[#allocation2 + $0x31] sm:$0xff]
      %v2638 = vld [vmem:[#allocation2 + $0x39] sm:$0xff]
      %v2639 = vld [vmem:[#allocation2 + $0x49] sm:$0xff]
      %v2640 = vld [vmem:[#allocation2 + $0x51] sm:$0xff]
      %v2641 = vld [vmem:[#allocation2 + $0x61] sm:$0xff]
      %v2642 = vld [vmem:[#allocation2 + $0x69] sm:$0xff]
      %v2643 = vld [vmem:[#allocation2 + $0x79] sm:$0xff]
      %v2644 = vld [vmem:[#allocation2 + $0x81] sm:$0xff]
      %v2645 = vld [vmem:[#allocation2 + $0x91] sm:$0xff]
      %v2646 = vld [vmem:[#allocation2 + $0x99] sm:$0xff]
      %v2647 = vld [vmem:[#allocation2 + $0xa9] sm:$0xff]
      %v2648 = vld [vmem:[#allocation2 + $0xb1] sm:$0xff]
      %v2649 = vld [vmem:[#allocation2 + $0xc1] sm:$0xff]
      %v2650 = vld [vmem:[#allocation2 + $0xc9] sm:$0xff]
      %v2651 = vld [vmem:[#allocation2 + $0xd9] sm:$0xff]
      %v2652 = vld [vmem:[#allocation2 + $0xe1] sm:$0xff]
      %v2653 = vld [vmem:[#allocation2 + $0xf1] sm:$0xff]
      %v2654 = vld [vmem:[#allocation2 + $0xf9] sm:$0xff]
      %v2655 = vld [vmem:[#allocation2 + $0x109] sm:$0xff]
      %v2656 = vld [vmem:[#allocation2 + $0x111] sm:$0xff]
      %v2657 = vld [vmem:[#allocation2 + $0x121] sm:$0xff]
      %v2658 = vld [vmem:[#allocation2 + $0x129] sm:$0xff]
      %v2659 = vld [vmem:[#allocation2 + $0x139] sm:$0xff]
      %v2660 = vld [vmem:[#allocation2 + $0x141] sm:$0xff]
      %v2661 = vld [vmem:[#allocation2 + $0x151] sm:$0xff]
      %v2662 = vld [vmem:[#allocation2 + $0x159] sm:$0xff]
      %v2663 = vld [vmem:[#allocation2 + $0x169] sm:$0xff]
      %v2664 = vld [vmem:[#allocation2 + $0x171] sm:$0xff]
      %2697 = vrot.lane.b32.xlu0 %v2633, 4
      %v2698 = vpop.permute.xlu0 %2697
      %2699 = vrot.lane.b32.xlu0 %v2634, 4
      %v2700 = vpop.permute.xlu0 %2699
      %2701 = vrot.lane.b32.xlu0 %v2635, 4
      %v2702 = vpop.permute.xlu0 %2701
      %2703 = vrot.lane.b32.xlu0 %v2636, 4
      %v2704 = vpop.permute.xlu0 %2703
      %2705 = vrot.lane.b32.xlu0 %v2637, 4
      %v2706 = vpop.permute.xlu0 %2705
      %2707 = vrot.lane.b32.xlu0 %v2638, 4
      %v2708 = vpop.permute.xlu0 %2707
      %2709 = vrot.lane.b32.xlu0 %v2639, 4
      %v2710 = vpop.permute.xlu0 %2709
      %2711 = vrot.lane.b32.xlu0 %v2640, 4
      %v2712 = vpop.permute.xlu0 %2711
      %2713 = vrot.lane.b32.xlu0 %v2641, 4
      %v2714 = vpop.permute.xlu0 %2713
      %2715 = vrot.lane.b32.xlu0 %v2642, 4
      %v2716 = vpop.permute.xlu0 %2715
      %2717 = vrot.lane.b32.xlu0 %v2643, 4
      %v2718 = vpop.permute.xlu0 %2717
      %2719 = vrot.lane.b32.xlu0 %v2644, 4
      %v2720 = vpop.permute.xlu0 %2719
      %2721 = vrot.lane.b32.xlu0 %v2645, 4
      %v2722 = vpop.permute.xlu0 %2721
      %2723 = vrot.lane.b32.xlu0 %v2646, 4
      %v2724 = vpop.permute.xlu0 %2723
      %2725 = vrot.lane.b32.xlu0 %v2647, 4
      %v2726 = vpop.permute.xlu0 %2725
      %2727 = vrot.lane.b32.xlu0 %v2648, 4
      %v2728 = vpop.permute.xlu0 %2727
      %2729 = vrot.lane.b32.xlu0 %v2649, 4
      %v2730 = vpop.permute.xlu0 %2729
      %2731 = vrot.lane.b32.xlu0 %v2650, 4
      %v2732 = vpop.permute.xlu0 %2731
      %2733 = vrot.lane.b32.xlu0 %v2651, 4
      %v2734 = vpop.permute.xlu0 %2733
      %2735 = vrot.lane.b32.xlu0 %v2652, 4
      %v2736 = vpop.permute.xlu0 %2735
      %2737 = vrot.lane.b32.xlu0 %v2653, 4
      %v2738 = vpop.permute.xlu0 %2737
      %2739 = vrot.lane.b32.xlu0 %v2654, 4
      %v2740 = vpop.permute.xlu0 %2739
      %2741 = vrot.lane.b32.xlu0 %v2655, 4
      %v2742 = vpop.permute.xlu0 %2741
      %2743 = vrot.lane.b32.xlu0 %v2656, 4
      %v2744 = vpop.permute.xlu0 %2743
      %2745 = vrot.lane.b32.xlu0 %v2657, 4
      %v2746 = vpop.permute.xlu0 %2745
      %2747 = vrot.lane.b32.xlu0 %v2658, 4
      %v2748 = vpop.permute.xlu0 %2747
      %2749 = vrot.lane.b32.xlu0 %v2659, 4
      %v2750 = vpop.permute.xlu0 %2749
      %2751 = vrot.lane.b32.xlu0 %v2660, 4
      %v2752 = vpop.permute.xlu0 %2751
      %2753 = vrot.lane.b32.xlu0 %v2661, 4
      %v2754 = vpop.permute.xlu0 %2753
      %2755 = vrot.lane.b32.xlu0 %v2662, 4
      %v2756 = vpop.permute.xlu0 %2755
      %2757 = vrot.lane.b32.xlu0 %v2663, 4
      %v2758 = vpop.permute.xlu0 %2757
      %2759 = vrot.lane.b32.xlu0 %v2664, 4
      %v2760 = vpop.permute.xlu0 %2759
      %2793 = vst.msk [vmem:[#allocation3] sm:$0xff] %vm539, %v2698
      %2794 = vst.msk [vmem:[#allocation3 + $0x8] sm:$0xff] %vm539, %v2700
      %2795 = vst.msk [vmem:[#allocation3 + $0x10] sm:$0xff] %vm539, %v2702
      %2796 = vst.msk [vmem:[#allocation3 + $0x18] sm:$0xff] %vm539, %v2704
      %2797 = vst.msk [vmem:[#allocation3 + $0x20] sm:$0xff] %vm539, %v2706
      %2798 = vst.msk [vmem:[#allocation3 + $0x28] sm:$0xff] %vm539, %v2708
      %2799 = vst.msk [vmem:[#allocation3 + $0x30] sm:$0xff] %vm539, %v2710
      %2800 = vst.msk [vmem:[#allocation3 + $0x38] sm:$0xff] %vm539, %v2712
      %2801 = vst.msk [vmem:[#allocation3 + $0x40] sm:$0xff] %vm539, %v2714
      %2802 = vst.msk [vmem:[#allocation3 + $0x48] sm:$0xff] %vm539, %v2716
      %2803 = vst.msk [vmem:[#allocation3 + $0x50] sm:$0xff] %vm539, %v2718
      %2804 = vst.msk [vmem:[#allocation3 + $0x58] sm:$0xff] %vm539, %v2720
      %2805 = vst.msk [vmem:[#allocation3 + $0x60] sm:$0xff] %vm539, %v2722
      %2806 = vst.msk [vmem:[#allocation3 + $0x68] sm:$0xff] %vm539, %v2724
      %2807 = vst.msk [vmem:[#allocation3 + $0x70] sm:$0xff] %vm539, %v2726
      %2808 = vst.msk [vmem:[#allocation3 + $0x78] sm:$0xff] %vm539, %v2728
      %2809 = vst.msk [vmem:[#allocation3 + $0x80] sm:$0xff] %vm539, %v2730
      %2810 = vst.msk [vmem:[#allocation3 + $0x88] sm:$0xff] %vm539, %v2732
      %2811 = vst.msk [vmem:[#allocation3 + $0x90] sm:$0xff] %vm539, %v2734
      %2812 = vst.msk [vmem:[#allocation3 + $0x98] sm:$0xff] %vm539, %v2736
      %2813 = vst.msk [vmem:[#allocation3 + $0xa0] sm:$0xff] %vm539, %v2738
      %2814 = vst.msk [vmem:[#allocation3 + $0xa8] sm:$0xff] %vm539, %v2740
      %2815 = vst.msk [vmem:[#allocation3 + $0xb0] sm:$0xff] %vm539, %v2742
      %2816 = vst.msk [vmem:[#allocation3 + $0xb8] sm:$0xff] %vm539, %v2744
      %2817 = vst.msk [vmem:[#allocation3 + $0xc0] sm:$0xff] %vm539, %v2746
      %2818 = vst.msk [vmem:[#allocation3 + $0xc8] sm:$0xff] %vm539, %v2748
      %2819 = vst.msk [vmem:[#allocation3 + $0xd0] sm:$0xff] %vm539, %v2750
      %2820 = vst.msk [vmem:[#allocation3 + $0xd8] sm:$0xff] %vm539, %v2752
      %2821 = vst.msk [vmem:[#allocation3 + $0xe0] sm:$0xff] %vm539, %v2754
      %2822 = vst.msk [vmem:[#allocation3 + $0xe8] sm:$0xff] %vm539, %v2756
      %2823 = vst.msk [vmem:[#allocation3 + $0xf0] sm:$0xff] %vm539, %v2758
      %2824 = vst.msk [vmem:[#allocation3 + $0xf8] sm:$0xff] %vm539, %v2760
      %v2825 = vld [vmem:[#allocation2 + $0x2] sm:$0xff]
      %v2826 = vld [vmem:[#allocation2 + $0xa] sm:$0xff]
      %v2827 = vld [vmem:[#allocation2 + $0x1a] sm:$0xff]
      %v2828 = vld [vmem:[#allocation2 + $0x22] sm:$0xff]
      %v2829 = vld [vmem:[#allocation2 + $0x32] sm:$0xff]
      %v2830 = vld [vmem:[#allocation2 + $0x3a] sm:$0xff]
      %v2831 = vld [vmem:[#allocation2 + $0x4a] sm:$0xff]
      %v2832 = vld [vmem:[#allocation2 + $0x52] sm:$0xff]
      %v2833 = vld [vmem:[#allocation2 + $0x62] sm:$0xff]
      %v2834 = vld [vmem:[#allocation2 + $0x6a] sm:$0xff]
      %v2835 = vld [vmem:[#allocation2 + $0x7a] sm:$0xff]
      %v2836 = vld [vmem:[#allocation2 + $0x82] sm:$0xff]
      %v2837 = vld [vmem:[#allocation2 + $0x92] sm:$0xff]
      %v2838 = vld [vmem:[#allocation2 + $0x9a] sm:$0xff]
      %v2839 = vld [vmem:[#allocation2 + $0xaa] sm:$0xff]
      %v2840 = vld [vmem:[#allocation2 + $0xb2] sm:$0xff]
      %v2841 = vld [vmem:[#allocation2 + $0xc2] sm:$0xff]
      %v2842 = vld [vmem:[#allocation2 + $0xca] sm:$0xff]
      %v2843 = vld [vmem:[#allocation2 + $0xda] sm:$0xff]
      %v2844 = vld [vmem:[#allocation2 + $0xe2] sm:$0xff]
      %v2845 = vld [vmem:[#allocation2 + $0xf2] sm:$0xff]
      %v2846 = vld [vmem:[#allocation2 + $0xfa] sm:$0xff]
      %v2847 = vld [vmem:[#allocation2 + $0x10a] sm:$0xff]
      %v2848 = vld [vmem:[#allocation2 + $0x112] sm:$0xff]
      %v2849 = vld [vmem:[#allocation2 + $0x122] sm:$0xff]
      %v2850 = vld [vmem:[#allocation2 + $0x12a] sm:$0xff]
      %v2851 = vld [vmem:[#allocation2 + $0x13a] sm:$0xff]
      %v2852 = vld [vmem:[#allocation2 + $0x142] sm:$0xff]
      %v2853 = vld [vmem:[#allocation2 + $0x152] sm:$0xff]
      %v2854 = vld [vmem:[#allocation2 + $0x15a] sm:$0xff]
      %v2855 = vld [vmem:[#allocation2 + $0x16a] sm:$0xff]
      %v2856 = vld [vmem:[#allocation2 + $0x172] sm:$0xff]
      %2889 = vrot.lane.b32.xlu0 %v2825, 8
      %v2890 = vpop.permute.xlu0 %2889
      %2891 = vrot.lane.b32.xlu0 %v2826, 8
      %v2892 = vpop.permute.xlu0 %2891
      %2893 = vrot.lane.b32.xlu0 %v2827, 8
      %v2894 = vpop.permute.xlu0 %2893
      %2895 = vrot.lane.b32.xlu0 %v2828, 8
      %v2896 = vpop.permute.xlu0 %2895
      %2897 = vrot.lane.b32.xlu0 %v2829, 8
      %v2898 = vpop.permute.xlu0 %2897
      %2899 = vrot.lane.b32.xlu0 %v2830, 8
      %v2900 = vpop.permute.xlu0 %2899
      %2901 = vrot.lane.b32.xlu0 %v2831, 8
      %v2902 = vpop.permute.xlu0 %2901
      %2903 = vrot.lane.b32.xlu0 %v2832, 8
      %v2904 = vpop.permute.xlu0 %2903
      %2905 = vrot.lane.b32.xlu0 %v2833, 8
      %v2906 = vpop.permute.xlu0 %2905
      %2907 = vrot.lane.b32.xlu0 %v2834, 8
      %v2908 = vpop.permute.xlu0 %2907
      %2909 = vrot.lane.b32.xlu0 %v2835, 8
      %v2910 = vpop.permute.xlu0 %2909
      %2911 = vrot.lane.b32.xlu0 %v2836, 8
      %v2912 = vpop.permute.xlu0 %2911
      %2913 = vrot.lane.b32.xlu0 %v2837, 8
      %v2914 = vpop.permute.xlu0 %2913
      %2915 = vrot.lane.b32.xlu0 %v2838, 8
      %v2916 = vpop.permute.xlu0 %2915
      %2917 = vrot.lane.b32.xlu0 %v2839, 8
      %v2918 = vpop.permute.xlu0 %2917
      %2919 = vrot.lane.b32.xlu0 %v2840, 8
      %v2920 = vpop.permute.xlu0 %2919
      %2921 = vrot.lane.b32.xlu0 %v2841, 8
      %v2922 = vpop.permute.xlu0 %2921
      %2923 = vrot.lane.b32.xlu0 %v2842, 8
      %v2924 = vpop.permute.xlu0 %2923
      %2925 = vrot.lane.b32.xlu0 %v2843, 8
      %v2926 = vpop.permute.xlu0 %2925
      %2927 = vrot.lane.b32.xlu0 %v2844, 8
      %v2928 = vpop.permute.xlu0 %2927
      %2929 = vrot.lane.b32.xlu0 %v2845, 8
      %v2930 = vpop.permute.xlu0 %2929
      %2931 = vrot.lane.b32.xlu0 %v2846, 8
      %v2932 = vpop.permute.xlu0 %2931
      %2933 = vrot.lane.b32.xlu0 %v2847, 8
      %v2934 = vpop.permute.xlu0 %2933
      %2935 = vrot.lane.b32.xlu0 %v2848, 8
      %v2936 = vpop.permute.xlu0 %2935
      %2937 = vrot.lane.b32.xlu0 %v2849, 8
      %v2938 = vpop.permute.xlu0 %2937
      %2939 = vrot.lane.b32.xlu0 %v2850, 8
      %v2940 = vpop.permute.xlu0 %2939
      %2941 = vrot.lane.b32.xlu0 %v2851, 8
      %v2942 = vpop.permute.xlu0 %2941
      %2943 = vrot.lane.b32.xlu0 %v2852, 8
      %v2944 = vpop.permute.xlu0 %2943
      %2945 = vrot.lane.b32.xlu0 %v2853, 8
      %v2946 = vpop.permute.xlu0 %2945
      %2947 = vrot.lane.b32.xlu0 %v2854, 8
      %v2948 = vpop.permute.xlu0 %2947
      %2949 = vrot.lane.b32.xlu0 %v2855, 8
      %v2950 = vpop.permute.xlu0 %2949
      %2951 = vrot.lane.b32.xlu0 %v2856, 8
      %v2952 = vpop.permute.xlu0 %2951
      %2985 = vst.msk [vmem:[#allocation3] sm:$0xff] %vm732, %v2890
      %2986 = vst.msk [vmem:[#allocation3 + $0x8] sm:$0xff] %vm732, %v2892
      %2987 = vst.msk [vmem:[#allocation3 + $0x10] sm:$0xff] %vm732, %v2894
      %2988 = vst.msk [vmem:[#allocation3 + $0x18] sm:$0xff] %vm732, %v2896
      %2989 = vst.msk [vmem:[#allocation3 + $0x20] sm:$0xff] %vm732, %v2898
      %2990 = vst.msk [vmem:[#allocation3 + $0x28] sm:$0xff] %vm732, %v2900
      %2991 = vst.msk [vmem:[#allocation3 + $0x30] sm:$0xff] %vm732, %v2902
      %2992 = vst.msk [vmem:[#allocation3 + $0x38] sm:$0xff] %vm732, %v2904
      %2993 = vst.msk [vmem:[#allocation3 + $0x40] sm:$0xff] %vm732, %v2906
      %2994 = vst.msk [vmem:[#allocation3 + $0x48] sm:$0xff] %vm732, %v2908
      %2995 = vst.msk [vmem:[#allocation3 + $0x50] sm:$0xff] %vm732, %v2910
      %2996 = vst.msk [vmem:[#allocation3 + $0x58] sm:$0xff] %vm732, %v2912
      %2997 = vst.msk [vmem:[#allocation3 + $0x60] sm:$0xff] %vm732, %v2914
      %2998 = vst.msk [vmem:[#allocation3 + $0x68] sm:$0xff] %vm732, %v2916
      %2999 = vst.msk [vmem:[#allocation3 + $0x70] sm:$0xff] %vm732, %v2918
      %3000 = vst.msk [vmem:[#allocation3 + $0x78] sm:$0xff] %vm732, %v2920
      %3001 = vst.msk [vmem:[#allocation3 + $0x80] sm:$0xff] %vm732, %v2922
      %3002 = vst.msk [vmem:[#allocation3 + $0x88] sm:$0xff] %vm732, %v2924
      %3003 = vst.msk [vmem:[#allocation3 + $0x90] sm:$0xff] %vm732, %v2926
      %3004 = vst.msk [vmem:[#allocation3 + $0x98] sm:$0xff] %vm732, %v2928
      %3005 = vst.msk [vmem:[#allocation3 + $0xa0] sm:$0xff] %vm732, %v2930
      %3006 = vst.msk [vmem:[#allocation3 + $0xa8] sm:$0xff] %vm732, %v2932
      %3007 = vst.msk [vmem:[#allocation3 + $0xb0] sm:$0xff] %vm732, %v2934
      %3008 = vst.msk [vmem:[#allocation3 + $0xb8] sm:$0xff] %vm732, %v2936
      %3009 = vst.msk [vmem:[#allocation3 + $0xc0] sm:$0xff] %vm732, %v2938
      %3010 = vst.msk [vmem:[#allocation3 + $0xc8] sm:$0xff] %vm732, %v2940
      %3011 = vst.msk [vmem:[#allocation3 + $0xd0] sm:$0xff] %vm732, %v2942
      %3012 = vst.msk [vmem:[#allocation3 + $0xd8] sm:$0xff] %vm732, %v2944
      %3013 = vst.msk [vmem:[#allocation3 + $0xe0] sm:$0xff] %vm732, %v2946
      %3014 = vst.msk [vmem:[#allocation3 + $0xe8] sm:$0xff] %vm732, %v2948
      %3015 = vst.msk [vmem:[#allocation3 + $0xf0] sm:$0xff] %vm732, %v2950
      %3016 = vst.msk [vmem:[#allocation3 + $0xf8] sm:$0xff] %vm732, %v2952
      %v3017 = vld [vmem:[%s203] sm:$0xff]
      %v3018 = vld [vmem:[%s203 + $0x8] sm:$0xff]
      %v3019 = vld [vmem:[%s203 + $0x18] sm:$0xff]
      %v3020 = vld [vmem:[%s203 + $0x20] sm:$0xff]
      %v3021 = vld [vmem:[%s203 + $0x30] sm:$0xff]
      %v3022 = vld [vmem:[%s203 + $0x38] sm:$0xff]
      %v3023 = vld [vmem:[%s203 + $0x48] sm:$0xff]
      %v3024 = vld [vmem:[%s203 + $0x50] sm:$0xff]
      %v3025 = vld [vmem:[%s203 + $0x60] sm:$0xff]
      %v3026 = vld [vmem:[%s203 + $0x68] sm:$0xff]
      %v3027 = vld [vmem:[%s203 + $0x78] sm:$0xff]
      %v3028 = vld [vmem:[%s203 + $0x80] sm:$0xff]
      %v3029 = vld [vmem:[%s203 + $0x90] sm:$0xff]
      %v3030 = vld [vmem:[%s203 + $0x98] sm:$0xff]
      %v3031 = vld [vmem:[%s203 + $0xa8] sm:$0xff]
      %v3032 = vld [vmem:[%s203 + $0xb0] sm:$0xff]
      %v3033 = vld [vmem:[%s203 + $0xc0] sm:$0xff]
      %v3034 = vld [vmem:[%s203 + $0xc8] sm:$0xff]
      %v3035 = vld [vmem:[%s203 + $0xd8] sm:$0xff]
      %v3036 = vld [vmem:[%s203 + $0xe0] sm:$0xff]
      %v3037 = vld [vmem:[%s203 + $0xf0] sm:$0xff]
      %v3038 = vld [vmem:[%s203 + $0xf8] sm:$0xff]
      %v3039 = vld [vmem:[%s203 + $0x108] sm:$0xff]
      %v3040 = vld [vmem:[%s203 + $0x110] sm:$0xff]
      %v3041 = vld [vmem:[%s203 + $0x120] sm:$0xff]
      %v3042 = vld [vmem:[%s203 + $0x128] sm:$0xff]
      %v3043 = vld [vmem:[%s203 + $0x138] sm:$0xff]
      %v3044 = vld [vmem:[%s203 + $0x140] sm:$0xff]
      %v3045 = vld [vmem:[%s203 + $0x150] sm:$0xff]
      %v3046 = vld [vmem:[%s203 + $0x158] sm:$0xff]
      %v3047 = vld [vmem:[%s203 + $0x168] sm:$0xff]
      %v3048 = vld [vmem:[%s203 + $0x170] sm:$0xff]
      %3081 = vrot.lane.b32.xlu0 %v3017, 12
      %v3082 = vpop.permute.xlu0 %3081
      %3083 = vrot.lane.b32.xlu0 %v3018, 12
      %v3084 = vpop.permute.xlu0 %3083
      %3085 = vrot.lane.b32.xlu0 %v3019, 12
      %v3086 = vpop.permute.xlu0 %3085
      %3087 = vrot.lane.b32.xlu0 %v3020, 12
      %v3088 = vpop.permute.xlu0 %3087
      %3089 = vrot.lane.b32.xlu0 %v3021, 12
      %v3090 = vpop.permute.xlu0 %3089
      %3091 = vrot.lane.b32.xlu0 %v3022, 12
      %v3092 = vpop.permute.xlu0 %3091
      %3093 = vrot.lane.b32.xlu0 %v3023, 12
      %v3094 = vpop.permute.xlu0 %3093
      %3095 = vrot.lane.b32.xlu0 %v3024, 12
      %v3096 = vpop.permute.xlu0 %3095
      %3097 = vrot.lane.b32.xlu0 %v3025, 12
      %v3098 = vpop.permute.xlu0 %3097
      %3099 = vrot.lane.b32.xlu0 %v3026, 12
      %v3100 = vpop.permute.xlu0 %3099
      %3101 = vrot.lane.b32.xlu0 %v3027, 12
      %v3102 = vpop.permute.xlu0 %3101
      %3103 = vrot.lane.b32.xlu0 %v3028, 12
      %v3104 = vpop.permute.xlu0 %3103
      %3105 = vrot.lane.b32.xlu0 %v3029, 12
      %v3106 = vpop.permute.xlu0 %3105
      %3107 = vrot.lane.b32.xlu0 %v3030, 12
      %v3108 = vpop.permute.xlu0 %3107
      %3109 = vrot.lane.b32.xlu0 %v3031, 12
      %v3110 = vpop.permute.xlu0 %3109
      %3111 = vrot.lane.b32.xlu0 %v3032, 12
      %v3112 = vpop.permute.xlu0 %3111
      %3113 = vrot.lane.b32.xlu0 %v3033, 12
      %v3114 = vpop.permute.xlu0 %3113
      %3115 = vrot.lane.b32.xlu0 %v3034, 12
      %v3116 = vpop.permute.xlu0 %3115
      %3117 = vrot.lane.b32.xlu0 %v3035, 12
      %v3118 = vpop.permute.xlu0 %3117
      %3119 = vrot.lane.b32.xlu0 %v3036, 12
      %v3120 = vpop.permute.xlu0 %3119
      %3121 = vrot.lane.b32.xlu0 %v3037, 12
      %v3122 = vpop.permute.xlu0 %3121
      %3123 = vrot.lane.b32.xlu0 %v3038, 12
      %v3124 = vpop.permute.xlu0 %3123
      %3125 = vrot.lane.b32.xlu0 %v3039, 12
      %v3126 = vpop.permute.xlu0 %3125
      %3127 = vrot.lane.b32.xlu0 %v3040, 12
      %v3128 = vpop.permute.xlu0 %3127
      %3129 = vrot.lane.b32.xlu0 %v3041, 12
      %v3130 = vpop.permute.xlu0 %3129
      %3131 = vrot.lane.b32.xlu0 %v3042, 12
      %v3132 = vpop.permute.xlu0 %3131
      %3133 = vrot.lane.b32.xlu0 %v3043, 12
      %v3134 = vpop.permute.xlu0 %3133
      %3135 = vrot.lane.b32.xlu0 %v3044, 12
      %v3136 = vpop.permute.xlu0 %3135
      %3137 = vrot.lane.b32.xlu0 %v3045, 12
      %v3138 = vpop.permute.xlu0 %3137
      %3139 = vrot.lane.b32.xlu0 %v3046, 12
      %v3140 = vpop.permute.xlu0 %3139
      %3141 = vrot.lane.b32.xlu0 %v3047, 12
      %v3142 = vpop.permute.xlu0 %3141
      %3143 = vrot.lane.b32.xlu0 %v3048, 12
      %v3144 = vpop.permute.xlu0 %3143
      %3177 = vst.msk [vmem:[#allocation3] sm:$0xff] %vm925, %v3082
      %3178 = vst.msk [vmem:[#allocation3 + $0x8] sm:$0xff] %vm925, %v3084
      %3179 = vst.msk [vmem:[#allocation3 + $0x10] sm:$0xff] %vm925, %v3086
      %3180 = vst.msk [vmem:[#allocation3 + $0x18] sm:$0xff] %vm925, %v3088
      %3181 = vst.msk [vmem:[#allocation3 + $0x20] sm:$0xff] %vm925, %v3090
      %3182 = vst.msk [vmem:[#allocation3 + $0x28] sm:$0xff] %vm925, %v3092
      %3183 = vst.msk [vmem:[#allocation3 + $0x30] sm:$0xff] %vm925, %v3094
      %3184 = vst.msk [vmem:[#allocation3 + $0x38] sm:$0xff] %vm925, %v3096
      %3185 = vst.msk [vmem:[#allocation3 + $0x40] sm:$0xff] %vm925, %v3098
      %3186 = vst.msk [vmem:[#allocation3 + $0x48] sm:$0xff] %vm925, %v3100
      %3187 = vst.msk [vmem:[#allocation3 + $0x50] sm:$0xff] %vm925, %v3102
      %3188 = vst.msk [vmem:[#allocation3 + $0x58] sm:$0xff] %vm925, %v3104
      %3189 = vst.msk [vmem:[#allocation3 + $0x60] sm:$0xff] %vm925, %v3106
      %3190 = vst.msk [vmem:[#allocation3 + $0x68] sm:$0xff] %vm925, %v3108
      %3191 = vst.msk [vmem:[#allocation3 + $0x70] sm:$0xff] %vm925, %v3110
      %3192 = vst.msk [vmem:[#allocation3 + $0x78] sm:$0xff] %vm925, %v3112
      %3193 = vst.msk [vmem:[#allocation3 + $0x80] sm:$0xff] %vm925, %v3114
      %3194 = vst.msk [vmem:[#allocation3 + $0x88] sm:$0xff] %vm925, %v3116
      %3195 = vst.msk [vmem:[#allocation3 + $0x90] sm:$0xff] %vm925, %v3118
      %3196 = vst.msk [vmem:[#allocation3 + $0x98] sm:$0xff] %vm925, %v3120
      %3197 = vst.msk [vmem:[#allocation3 + $0xa0] sm:$0xff] %vm925, %v3122
      %3198 = vst.msk [vmem:[#allocation3 + $0xa8] sm:$0xff] %vm925, %v3124
      %3199 = vst.msk [vmem:[#allocation3 + $0xb0] sm:$0xff] %vm925, %v3126
      %3200 = vst.msk [vmem:[#allocation3 + $0xb8] sm:$0xff] %vm925, %v3128
      %3201 = vst.msk [vmem:[#allocation3 + $0xc0] sm:$0xff] %vm925, %v3130
      %3202 = vst.msk [vmem:[#allocation3 + $0xc8] sm:$0xff] %vm925, %v3132
      %3203 = vst.msk [vmem:[#allocation3 + $0xd0] sm:$0xff] %vm925, %v3134
      %3204 = vst.msk [vmem:[#allocation3 + $0xd8] sm:$0xff] %vm925, %v3136
      %3205 = vst.msk [vmem:[#allocation3 + $0xe0] sm:$0xff] %vm925, %v3138
      %3206 = vst.msk [vmem:[#allocation3 + $0xe8] sm:$0xff] %vm925, %v3140
      %3207 = vst.msk [vmem:[#allocation3 + $0xf0] sm:$0xff] %vm925, %v3142
      %3208 = vst.msk [vmem:[#allocation3 + $0xf8] sm:$0xff] %vm925, %v3144
      %v3209 = vld [vmem:[%s203 + $0x1] sm:$0xff]
      %v3210 = vld [vmem:[%s203 + $0x9] sm:$0xff]
      %v3211 = vld [vmem:[%s203 + $0x19] sm:$0xff]
      %v3212 = vld [vmem:[%s203 + $0x21] sm:$0xff]
      %v3213 = vld [vmem:[%s203 + $0x31] sm:$0xff]
      %v3214 = vld [vmem:[%s203 + $0x39] sm:$0xff]
      %v3215 = vld [vmem:[%s203 + $0x49] sm:$0xff]
      %v3216 = vld [vmem:[%s203 + $0x51] sm:$0xff]
      %v3217 = vld [vmem:[%s203 + $0x61] sm:$0xff]
      %v3218 = vld [vmem:[%s203 + $0x69] sm:$0xff]
      %v3219 = vld [vmem:[%s203 + $0x79] sm:$0xff]
      %v3220 = vld [vmem:[%s203 + $0x81] sm:$0xff]
      %v3221 = vld [vmem:[%s203 + $0x91] sm:$0xff]
      %v3222 = vld [vmem:[%s203 + $0x99] sm:$0xff]
      %v3223 = vld [vmem:[%s203 + $0xa9] sm:$0xff]
      %v3224 = vld [vmem:[%s203 + $0xb1] sm:$0xff]
      %v3225 = vld [vmem:[%s203 + $0xc1] sm:$0xff]
      %v3226 = vld [vmem:[%s203 + $0xc9] sm:$0xff]
      %v3227 = vld [vmem:[%s203 + $0xd9] sm:$0xff]
      %v3228 = vld [vmem:[%s203 + $0xe1] sm:$0xff]
      %v3229 = vld [vmem:[%s203 + $0xf1] sm:$0xff]
      %v3230 = vld [vmem:[%s203 + $0xf9] sm:$0xff]
      %v3231 = vld [vmem:[%s203 + $0x109] sm:$0xff]
      %v3232 = vld [vmem:[%s203 + $0x111] sm:$0xff]
      %v3233 = vld [vmem:[%s203 + $0x121] sm:$0xff]
      %v3234 = vld [vmem:[%s203 + $0x129] sm:$0xff]
      %v3235 = vld [vmem:[%s203 + $0x139] sm:$0xff]
      %v3236 = vld [vmem:[%s203 + $0x141] sm:$0xff]
      %v3237 = vld [vmem:[%s203 + $0x151] sm:$0xff]
      %v3238 = vld [vmem:[%s203 + $0x159] sm:$0xff]
      %v3239 = vld [vmem:[%s203 + $0x169] sm:$0xff]
      %v3240 = vld [vmem:[%s203 + $0x171] sm:$0xff]
      %3273 = vrot.lane.b32.xlu0 %v3209, 16
      %v3274 = vpop.permute.xlu0 %3273
      %3275 = vrot.lane.b32.xlu0 %v3210, 16
      %v3276 = vpop.permute.xlu0 %3275
      %3277 = vrot.lane.b32.xlu0 %v3211, 16
      %v3278 = vpop.permute.xlu0 %3277
      %3279 = vrot.lane.b32.xlu0 %v3212, 16
      %v3280 = vpop.permute.xlu0 %3279
      %3281 = vrot.lane.b32.xlu0 %v3213, 16
      %v3282 = vpop.permute.xlu0 %3281
      %3283 = vrot.lane.b32.xlu0 %v3214, 16
      %v3284 = vpop.permute.xlu0 %3283
      %3285 = vrot.lane.b32.xlu0 %v3215, 16
      %v3286 = vpop.permute.xlu0 %3285
      %3287 = vrot.lane.b32.xlu0 %v3216, 16
      %v3288 = vpop.permute.xlu0 %3287
      %3289 = vrot.lane.b32.xlu0 %v3217, 16
      %v3290 = vpop.permute.xlu0 %3289
      %3291 = vrot.lane.b32.xlu0 %v3218, 16
      %v3292 = vpop.permute.xlu0 %3291
      %3293 = vrot.lane.b32.xlu0 %v3219, 16
      %v3294 = vpop.permute.xlu0 %3293
      %3295 = vrot.lane.b32.xlu0 %v3220, 16
      %v3296 = vpop.permute.xlu0 %3295
      %3297 = vrot.lane.b32.xlu0 %v3221, 16
      %v3298 = vpop.permute.xlu0 %3297
      %3299 = vrot.lane.b32.xlu0 %v3222, 16
      %v3300 = vpop.permute.xlu0 %3299
      %3301 = vrot.lane.b32.xlu0 %v3223, 16
      %v3302 = vpop.permute.xlu0 %3301
      %3303 = vrot.lane.b32.xlu0 %v3224, 16
      %v3304 = vpop.permute.xlu0 %3303
      %3305 = vrot.lane.b32.xlu0 %v3225, 16
      %v3306 = vpop.permute.xlu0 %3305
      %3307 = vrot.lane.b32.xlu0 %v3226, 16
      %v3308 = vpop.permute.xlu0 %3307
      %3309 = vrot.lane.b32.xlu0 %v3227, 16
      %v3310 = vpop.permute.xlu0 %3309
      %3311 = vrot.lane.b32.xlu0 %v3228, 16
      %v3312 = vpop.permute.xlu0 %3311
      %3313 = vrot.lane.b32.xlu0 %v3229, 16
      %v3314 = vpop.permute.xlu0 %3313
      %3315 = vrot.lane.b32.xlu0 %v3230, 16
      %v3316 = vpop.permute.xlu0 %3315
      %3317 = vrot.lane.b32.xlu0 %v3231, 16
      %v3318 = vpop.permute.xlu0 %3317
      %3319 = vrot.lane.b32.xlu0 %v3232, 16
      %v3320 = vpop.permute.xlu0 %3319
      %3321 = vrot.lane.b32.xlu0 %v3233, 16
      %v3322 = vpop.permute.xlu0 %3321
      %3323 = vrot.lane.b32.xlu0 %v3234, 16
      %v3324 = vpop.permute.xlu0 %3323
      %3325 = vrot.lane.b32.xlu0 %v3235, 16
      %v3326 = vpop.permute.xlu0 %3325
      %3327 = vrot.lane.b32.xlu0 %v3236, 16
      %v3328 = vpop.permute.xlu0 %3327
      %3329 = vrot.lane.b32.xlu0 %v3237, 16
      %v3330 = vpop.permute.xlu0 %3329
      %3331 = vrot.lane.b32.xlu0 %v3238, 16
      %v3332 = vpop.permute.xlu0 %3331
      %3333 = vrot.lane.b32.xlu0 %v3239, 16
      %v3334 = vpop.permute.xlu0 %3333
      %3335 = vrot.lane.b32.xlu0 %v3240, 16
      %v3336 = vpop.permute.xlu0 %3335
      %3369 = vst.msk [vmem:[#allocation3] sm:$0xff] %vm1118, %v3274
      %3370 = vst.msk [vmem:[#allocation3 + $0x8] sm:$0xff] %vm1118, %v3276
      %3371 = vst.msk [vmem:[#allocation3 + $0x10] sm:$0xff] %vm1118, %v3278
      %3372 = vst.msk [vmem:[#allocation3 + $0x18] sm:$0xff] %vm1118, %v3280
      %3373 = vst.msk [vmem:[#allocation3 + $0x20] sm:$0xff] %vm1118, %v3282
      %3374 = vst.msk [vmem:[#allocation3 + $0x28] sm:$0xff] %vm1118, %v3284
      %3375 = vst.msk [vmem:[#allocation3 + $0x30] sm:$0xff] %vm1118, %v3286
      %3376 = vst.msk [vmem:[#allocation3 + $0x38] sm:$0xff] %vm1118, %v3288
      %3377 = vst.msk [vmem:[#allocation3 + $0x40] sm:$0xff] %vm1118, %v3290
      %3378 = vst.msk [vmem:[#allocation3 + $0x48] sm:$0xff] %vm1118, %v3292
      %3379 = vst.msk [vmem:[#allocation3 + $0x50] sm:$0xff] %vm1118, %v3294
      %3380 = vst.msk [vmem:[#allocation3 + $0x58] sm:$0xff] %vm1118, %v3296
      %3381 = vst.msk [vmem:[#allocation3 + $0x60] sm:$0xff] %vm1118, %v3298
      %3382 = vst.msk [vmem:[#allocation3 + $0x68] sm:$0xff] %vm1118, %v3300
      %3383 = vst.msk [vmem:[#allocation3 + $0x70] sm:$0xff] %vm1118, %v3302
      %3384 = vst.msk [vmem:[#allocation3 + $0x78] sm:$0xff] %vm1118, %v3304
      %3385 = vst.msk [vmem:[#allocation3 + $0x80] sm:$0xff] %vm1118, %v3306
      %3386 = vst.msk [vmem:[#allocation3 + $0x88] sm:$0xff] %vm1118, %v3308
      %3387 = vst.msk [vmem:[#allocation3 + $0x90] sm:$0xff] %vm1118, %v3310
      %3388 = vst.msk [vmem:[#allocation3 + $0x98] sm:$0xff] %vm1118, %v3312
      %3389 = vst.msk [vmem:[#allocation3 + $0xa0] sm:$0xff] %vm1118, %v3314
      %3390 = vst.msk [vmem:[#allocation3 + $0xa8] sm:$0xff] %vm1118, %v3316
      %3391 = vst.msk [vmem:[#allocation3 + $0xb0] sm:$0xff] %vm1118, %v3318
      %3392 = vst.msk [vmem:[#allocation3 + $0xb8] sm:$0xff] %vm1118, %v3320
      %3393 = vst.msk [vmem:[#allocation3 + $0xc0] sm:$0xff] %vm1118, %v3322
      %3394 = vst.msk [vmem:[#allocation3 + $0xc8] sm:$0xff] %vm1118, %v3324
      %3395 = vst.msk [vmem:[#allocation3 + $0xd0] sm:$0xff] %vm1118, %v3326
      %3396 = vst.msk [vmem:[#allocation3 + $0xd8] sm:$0xff] %vm1118, %v3328
      %3397 = vst.msk [vmem:[#allocation3 + $0xe0] sm:$0xff] %vm1118, %v3330
      %3398 = vst.msk [vmem:[#allocation3 + $0xe8] sm:$0xff] %vm1118, %v3332
      %3399 = vst.msk [vmem:[#allocation3 + $0xf0] sm:$0xff] %vm1118, %v3334
      %3400 = vst.msk [vmem:[#allocation3 + $0xf8] sm:$0xff] %vm1118, %v3336
      %v3401 = vld [vmem:[%s203 + $0x2] sm:$0xff]
      %v3402 = vld [vmem:[%s203 + $0xa] sm:$0xff]
      %v3403 = vld [vmem:[%s203 + $0x1a] sm:$0xff]
      %v3404 = vld [vmem:[%s203 + $0x22] sm:$0xff]
      %v3405 = vld [vmem:[%s203 + $0x32] sm:$0xff]
      %v3406 = vld [vmem:[%s203 + $0x3a] sm:$0xff]
      %v3407 = vld [vmem:[%s203 + $0x4a] sm:$0xff]
      %v3408 = vld [vmem:[%s203 + $0x52] sm:$0xff]
      %v3409 = vld [vmem:[%s203 + $0x62] sm:$0xff]
      %v3410 = vld [vmem:[%s203 + $0x6a] sm:$0xff]
      %v3411 = vld [vmem:[%s203 + $0x7a] sm:$0xff]
      %v3412 = vld [vmem:[%s203 + $0x82] sm:$0xff]
      %v3413 = vld [vmem:[%s203 + $0x92] sm:$0xff]
      %v3414 = vld [vmem:[%s203 + $0x9a] sm:$0xff]
      %v3415 = vld [vmem:[%s203 + $0xaa] sm:$0xff]
      %v3416 = vld [vmem:[%s203 + $0xb2] sm:$0xff]
      %v3417 = vld [vmem:[%s203 + $0xc2] sm:$0xff]
      %v3418 = vld [vmem:[%s203 + $0xca] sm:$0xff]
      %v3419 = vld [vmem:[%s203 + $0xda] sm:$0xff]
      %v3420 = vld [vmem:[%s203 + $0xe2] sm:$0xff]
      %v3421 = vld [vmem:[%s203 + $0xf2] sm:$0xff]
      %v3422 = vld [vmem:[%s203 + $0xfa] sm:$0xff]
      %v3423 = vld [vmem:[%s203 + $0x10a] sm:$0xff]
      %v3424 = vld [vmem:[%s203 + $0x112] sm:$0xff]
      %v3425 = vld [vmem:[%s203 + $0x122] sm:$0xff]
      %v3426 = vld [vmem:[%s203 + $0x12a] sm:$0xff]
      %v3427 = vld [vmem:[%s203 + $0x13a] sm:$0xff]
      %v3428 = vld [vmem:[%s203 + $0x142] sm:$0xff]
      %v3429 = vld [vmem:[%s203 + $0x152] sm:$0xff]
      %v3430 = vld [vmem:[%s203 + $0x15a] sm:$0xff]
      %v3431 = vld [vmem:[%s203 + $0x16a] sm:$0xff]
      %v3432 = vld [vmem:[%s203 + $0x172] sm:$0xff]
      %3465 = vrot.lane.b32.xlu0 %v3401, 20
      %v3466 = vpop.permute.xlu0 %3465
      %3467 = vrot.lane.b32.xlu0 %v3402, 20
      %v3468 = vpop.permute.xlu0 %3467
      %3469 = vrot.lane.b32.xlu0 %v3403, 20
      %v3470 = vpop.permute.xlu0 %3469
      %3471 = vrot.lane.b32.xlu0 %v3404, 20
      %v3472 = vpop.permute.xlu0 %3471
      %3473 = vrot.lane.b32.xlu0 %v3405, 20
      %v3474 = vpop.permute.xlu0 %3473
      %3475 = vrot.lane.b32.xlu0 %v3406, 20
      %v3476 = vpop.permute.xlu0 %3475
      %3477 = vrot.lane.b32.xlu0 %v3407, 20
      %v3478 = vpop.permute.xlu0 %3477
      %3479 = vrot.lane.b32.xlu0 %v3408, 20
      %v3480 = vpop.permute.xlu0 %3479
      %3481 = vrot.lane.b32.xlu0 %v3409, 20
      %v3482 = vpop.permute.xlu0 %3481
      %3483 = vrot.lane.b32.xlu0 %v3410, 20
      %v3484 = vpop.permute.xlu0 %3483
      %3485 = vrot.lane.b32.xlu0 %v3411, 20
      %v3486 = vpop.permute.xlu0 %3485
      %3487 = vrot.lane.b32.xlu0 %v3412, 20
      %v3488 = vpop.permute.xlu0 %3487
      %3489 = vrot.lane.b32.xlu0 %v3413, 20
      %v3490 = vpop.permute.xlu0 %3489
      %3491 = vrot.lane.b32.xlu0 %v3414, 20
      %v3492 = vpop.permute.xlu0 %3491
      %3493 = vrot.lane.b32.xlu0 %v3415, 20
      %v3494 = vpop.permute.xlu0 %3493
      %3495 = vrot.lane.b32.xlu0 %v3416, 20
      %v3496 = vpop.permute.xlu0 %3495
      %3497 = vrot.lane.b32.xlu0 %v3417, 20
      %v3498 = vpop.permute.xlu0 %3497
      %3499 = vrot.lane.b32.xlu0 %v3418, 20
      %v3500 = vpop.permute.xlu0 %3499
      %3501 = vrot.lane.b32.xlu0 %v3419, 20
      %v3502 = vpop.permute.xlu0 %3501
      %3503 = vrot.lane.b32.xlu0 %v3420, 20
      %v3504 = vpop.permute.xlu0 %3503
      %3505 = vrot.lane.b32.xlu0 %v3421, 20
      %v3506 = vpop.permute.xlu0 %3505
      %3507 = vrot.lane.b32.xlu0 %v3422, 20
      %v3508 = vpop.permute.xlu0 %3507
      %3509 = vrot.lane.b32.xlu0 %v3423, 20
      %v3510 = vpop.permute.xlu0 %3509
      %3511 = vrot.lane.b32.xlu0 %v3424, 20
      %v3512 = vpop.permute.xlu0 %3511
      %3513 = vrot.lane.b32.xlu0 %v3425, 20
      %v3514 = vpop.permute.xlu0 %3513
      %3515 = vrot.lane.b32.xlu0 %v3426, 20
      %v3516 = vpop.permute.xlu0 %3515
      %3517 = vrot.lane.b32.xlu0 %v3427, 20
      %v3518 = vpop.permute.xlu0 %3517
      %3519 = vrot.lane.b32.xlu0 %v3428, 20
      %v3520 = vpop.permute.xlu0 %3519
      %3521 = vrot.lane.b32.xlu0 %v3429, 20
      %v3522 = vpop.permute.xlu0 %3521
      %3523 = vrot.lane.b32.xlu0 %v3430, 20
      %v3524 = vpop.permute.xlu0 %3523
      %3525 = vrot.lane.b32.xlu0 %v3431, 20
      %v3526 = vpop.permute.xlu0 %3525
      %3527 = vrot.lane.b32.xlu0 %v3432, 20
      %v3528 = vpop.permute.xlu0 %3527
      %3561 = vst.msk [vmem:[#allocation3] sm:$0xff] %vm1311, %v3466
      %3562 = vst.msk [vmem:[#allocation3 + $0x8] sm:$0xff] %vm1311, %v3468
      %3563 = vst.msk [vmem:[#allocation3 + $0x10] sm:$0xff] %vm1311, %v3470
      %3564 = vst.msk [vmem:[#allocation3 + $0x18] sm:$0xff] %vm1311, %v3472
      %3565 = vst.msk [vmem:[#allocation3 + $0x20] sm:$0xff] %vm1311, %v3474
      %3566 = vst.msk [vmem:[#allocation3 + $0x28] sm:$0xff] %vm1311, %v3476
      %3567 = vst.msk [vmem:[#allocation3 + $0x30] sm:$0xff] %vm1311, %v3478
      %3568 = vst.msk [vmem:[#allocation3 + $0x38] sm:$0xff] %vm1311, %v3480
      %3569 = vst.msk [vmem:[#allocation3 + $0x40] sm:$0xff] %vm1311, %v3482
      %3570 = vst.msk [vmem:[#allocation3 + $0x48] sm:$0xff] %vm1311, %v3484
      %3571 = vst.msk [vmem:[#allocation3 + $0x50] sm:$0xff] %vm1311, %v3486
      %3572 = vst.msk [vmem:[#allocation3 + $0x58] sm:$0xff] %vm1311, %v3488
      %3573 = vst.msk [vmem:[#allocation3 + $0x60] sm:$0xff] %vm1311, %v3490
      %3574 = vst.msk [vmem:[#allocation3 + $0x68] sm:$0xff] %vm1311, %v3492
      %3575 = vst.msk [vmem:[#allocation3 + $0x70] sm:$0xff] %vm1311, %v3494
      %3576 = vst.msk [vmem:[#allocation3 + $0x78] sm:$0xff] %vm1311, %v3496
      %3577 = vst.msk [vmem:[#allocation3 + $0x80] sm:$0xff] %vm1311, %v3498
      %3578 = vst.msk [vmem:[#allocation3 + $0x88] sm:$0xff] %vm1311, %v3500
      %3579 = vst.msk [vmem:[#allocation3 + $0x90] sm:$0xff] %vm1311, %v3502
      %3580 = vst.msk [vmem:[#allocation3 + $0x98] sm:$0xff] %vm1311, %v3504
      %3581 = vst.msk [vmem:[#allocation3 + $0xa0] sm:$0xff] %vm1311, %v3506
      %3582 = vst.msk [vmem:[#allocation3 + $0xa8] sm:$0xff] %vm1311, %v3508
      %3583 = vst.msk [vmem:[#allocation3 + $0xb0] sm:$0xff] %vm1311, %v3510
      %3584 = vst.msk [vmem:[#allocation3 + $0xb8] sm:$0xff] %vm1311, %v3512
      %3585 = vst.msk [vmem:[#allocation3 + $0xc0] sm:$0xff] %vm1311, %v3514
      %3586 = vst.msk [vmem:[#allocation3 + $0xc8] sm:$0xff] %vm1311, %v3516
      %3587 = vst.msk [vmem:[#allocation3 + $0xd0] sm:$0xff] %vm1311, %v3518
      %3588 = vst.msk [vmem:[#allocation3 + $0xd8] sm:$0xff] %vm1311, %v3520
      %3589 = vst.msk [vmem:[#allocation3 + $0xe0] sm:$0xff] %vm1311, %v3522
      %3590 = vst.msk [vmem:[#allocation3 + $0xe8] sm:$0xff] %vm1311, %v3524
      %3591 = vst.msk [vmem:[#allocation3 + $0xf0] sm:$0xff] %vm1311, %v3526
      %3592 = vst.msk [vmem:[#allocation3 + $0xf8] sm:$0xff] %vm1311, %v3528
      %v3593 = vld [vmem:[%s1344] sm:$0xff]
      %v3594 = vld [vmem:[%s1344 + $0x8] sm:$0xff]
      %v3595 = vld [vmem:[%s1344 + $0x18] sm:$0xff]
      %v3596 = vld [vmem:[%s1344 + $0x20] sm:$0xff]
      %v3597 = vld [vmem:[%s1344 + $0x30] sm:$0xff]
      %v3598 = vld [vmem:[%s1344 + $0x38] sm:$0xff]
      %v3599 = vld [vmem:[%s1344 + $0x48] sm:$0xff]
      %v3600 = vld [vmem:[%s1344 + $0x50] sm:$0xff]
      %v3601 = vld [vmem:[%s1344 + $0x60] sm:$0xff]
      %v3602 = vld [vmem:[%s1344 + $0x68] sm:$0xff]
      %v3603 = vld [vmem:[%s1344 + $0x78] sm:$0xff]
      %v3604 = vld [vmem:[%s1344 + $0x80] sm:$0xff]
      %v3605 = vld [vmem:[%s1344 + $0x90] sm:$0xff]
      %v3606 = vld [vmem:[%s1344 + $0x98] sm:$0xff]
      %v3607 = vld [vmem:[%s1344 + $0xa8] sm:$0xff]
      %v3608 = vld [vmem:[%s1344 + $0xb0] sm:$0xff]
      %v3609 = vld [vmem:[%s1344 + $0xc0] sm:$0xff]
      %v3610 = vld [vmem:[%s1344 + $0xc8] sm:$0xff]
      %v3611 = vld [vmem:[%s1344 + $0xd8] sm:$0xff]
      %v3612 = vld [vmem:[%s1344 + $0xe0] sm:$0xff]
      %v3613 = vld [vmem:[%s1344 + $0xf0] sm:$0xff]
      %v3614 = vld [vmem:[%s1344 + $0xf8] sm:$0xff]
      %v3615 = vld [vmem:[%s1344 + $0x108] sm:$0xff]
      %v3616 = vld [vmem:[%s1344 + $0x110] sm:$0xff]
      %v3617 = vld [vmem:[%s1344 + $0x120] sm:$0xff]
      %v3618 = vld [vmem:[%s1344 + $0x128] sm:$0xff]
      %v3619 = vld [vmem:[%s1344 + $0x138] sm:$0xff]
      %v3620 = vld [vmem:[%s1344 + $0x140] sm:$0xff]
      %v3621 = vld [vmem:[%s1344 + $0x150] sm:$0xff]
      %v3622 = vld [vmem:[%s1344 + $0x158] sm:$0xff]
      %v3623 = vld [vmem:[%s1344 + $0x168] sm:$0xff]
      %v3624 = vld [vmem:[%s1344 + $0x170] sm:$0xff]
      %3657 = vrot.lane.b32.xlu0 %v3593, 24
      %v3658 = vpop.permute.xlu0 %3657
      %3659 = vrot.lane.b32.xlu0 %v3594, 24
      %v3660 = vpop.permute.xlu0 %3659
      %3661 = vrot.lane.b32.xlu0 %v3595, 24
      %v3662 = vpop.permute.xlu0 %3661
      %3663 = vrot.lane.b32.xlu0 %v3596, 24
      %v3664 = vpop.permute.xlu0 %3663
      %3665 = vrot.lane.b32.xlu0 %v3597, 24
      %v3666 = vpop.permute.xlu0 %3665
      %3667 = vrot.lane.b32.xlu0 %v3598, 24
      %v3668 = vpop.permute.xlu0 %3667
      %3669 = vrot.lane.b32.xlu0 %v3599, 24
      %v3670 = vpop.permute.xlu0 %3669
      %3671 = vrot.lane.b32.xlu0 %v3600, 24
      %v3672 = vpop.permute.xlu0 %3671
      %3673 = vrot.lane.b32.xlu0 %v3601, 24
      %v3674 = vpop.permute.xlu0 %3673
      %3675 = vrot.lane.b32.xlu0 %v3602, 24
      %v3676 = vpop.permute.xlu0 %3675
      %3677 = vrot.lane.b32.xlu0 %v3603, 24
      %v3678 = vpop.permute.xlu0 %3677
      %3679 = vrot.lane.b32.xlu0 %v3604, 24
      %v3680 = vpop.permute.xlu0 %3679
      %3681 = vrot.lane.b32.xlu0 %v3605, 24
      %v3682 = vpop.permute.xlu0 %3681
      %3683 = vrot.lane.b32.xlu0 %v3606, 24
      %v3684 = vpop.permute.xlu0 %3683
      %3685 = vrot.lane.b32.xlu0 %v3607, 24
      %v3686 = vpop.permute.xlu0 %3685
      %3687 = vrot.lane.b32.xlu0 %v3608, 24
      %v3688 = vpop.permute.xlu0 %3687
      %3689 = vrot.lane.b32.xlu0 %v3609, 24
      %v3690 = vpop.permute.xlu0 %3689
      %3691 = vrot.lane.b32.xlu0 %v3610, 24
      %v3692 = vpop.permute.xlu0 %3691
      %3693 = vrot.lane.b32.xlu0 %v3611, 24
      %v3694 = vpop.permute.xlu0 %3693
      %3695 = vrot.lane.b32.xlu0 %v3612, 24
      %v3696 = vpop.permute.xlu0 %3695
      %3697 = vrot.lane.b32.xlu0 %v3613, 24
      %v3698 = vpop.permute.xlu0 %3697
      %3699 = vrot.lane.b32.xlu0 %v3614, 24
      %v3700 = vpop.permute.xlu0 %3699
      %3701 = vrot.lane.b32.xlu0 %v3615, 24
      %v3702 = vpop.permute.xlu0 %3701
      %3703 = vrot.lane.b32.xlu0 %v3616, 24
      %v3704 = vpop.permute.xlu0 %3703
      %3705 = vrot.lane.b32.xlu0 %v3617, 24
      %v3706 = vpop.permute.xlu0 %3705
      %3707 = vrot.lane.b32.xlu0 %v3618, 24
      %v3708 = vpop.permute.xlu0 %3707
      %3709 = vrot.lane.b32.xlu0 %v3619, 24
      %v3710 = vpop.permute.xlu0 %3709
      %3711 = vrot.lane.b32.xlu0 %v3620, 24
      %v3712 = vpop.permute.xlu0 %3711
      %3713 = vrot.lane.b32.xlu0 %v3621, 24
      %v3714 = vpop.permute.xlu0 %3713
      %3715 = vrot.lane.b32.xlu0 %v3622, 24
      %v3716 = vpop.permute.xlu0 %3715
      %3717 = vrot.lane.b32.xlu0 %v3623, 24
      %v3718 = vpop.permute.xlu0 %3717
      %3719 = vrot.lane.b32.xlu0 %v3624, 24
      %v3720 = vpop.permute.xlu0 %3719
      %3753 = vst.msk [vmem:[#allocation3] sm:$0xff] %vm1505, %v3658
      %3754 = vst.msk [vmem:[#allocation3 + $0x8] sm:$0xff] %vm1505, %v3660
      %3755 = vst.msk [vmem:[#allocation3 + $0x10] sm:$0xff] %vm1505, %v3662
      %3756 = vst.msk [vmem:[#allocation3 + $0x18] sm:$0xff] %vm1505, %v3664
      %3757 = vst.msk [vmem:[#allocation3 + $0x20] sm:$0xff] %vm1505, %v3666
      %3758 = vst.msk [vmem:[#allocation3 + $0x28] sm:$0xff] %vm1505, %v3668
      %3759 = vst.msk [vmem:[#allocation3 + $0x30] sm:$0xff] %vm1505, %v3670
      %3760 = vst.msk [vmem:[#allocation3 + $0x38] sm:$0xff] %vm1505, %v3672
      %3761 = vst.msk [vmem:[#allocation3 + $0x40] sm:$0xff] %vm1505, %v3674
      %3762 = vst.msk [vmem:[#allocation3 + $0x48] sm:$0xff] %vm1505, %v3676
      %3763 = vst.msk [vmem:[#allocation3 + $0x50] sm:$0xff] %vm1505, %v3678
      %3764 = vst.msk [vmem:[#allocation3 + $0x58] sm:$0xff] %vm1505, %v3680
      %3765 = vst.msk [vmem:[#allocation3 + $0x60] sm:$0xff] %vm1505, %v3682
      %3766 = vst.msk [vmem:[#allocation3 + $0x68] sm:$0xff] %vm1505, %v3684
      %3767 = vst.msk [vmem:[#allocation3 + $0x70] sm:$0xff] %vm1505, %v3686
      %3768 = vst.msk [vmem:[#allocation3 + $0x78] sm:$0xff] %vm1505, %v3688
      %3769 = vst.msk [vmem:[#allocation3 + $0x80] sm:$0xff] %vm1505, %v3690
      %3770 = vst.msk [vmem:[#allocation3 + $0x88] sm:$0xff] %vm1505, %v3692
      %3771 = vst.msk [vmem:[#allocation3 + $0x90] sm:$0xff] %vm1505, %v3694
      %3772 = vst.msk [vmem:[#allocation3 + $0x98] sm:$0xff] %vm1505, %v3696
      %3773 = vst.msk [vmem:[#allocation3 + $0xa0] sm:$0xff] %vm1505, %v3698
      %3774 = vst.msk [vmem:[#allocation3 + $0xa8] sm:$0xff] %vm1505, %v3700
      %3775 = vst.msk [vmem:[#allocation3 + $0xb0] sm:$0xff] %vm1505, %v3702
      %3776 = vst.msk [vmem:[#allocation3 + $0xb8] sm:$0xff] %vm1505, %v3704
      %3777 = vst.msk [vmem:[#allocation3 + $0xc0] sm:$0xff] %vm1505, %v3706
      %3778 = vst.msk [vmem:[#allocation3 + $0xc8] sm:$0xff] %vm1505, %v3708
      %3779 = vst.msk [vmem:[#allocation3 + $0xd0] sm:$0xff] %vm1505, %v3710
      %3780 = vst.msk [vmem:[#allocation3 + $0xd8] sm:$0xff] %vm1505, %v3712
      %3781 = vst.msk [vmem:[#allocation3 + $0xe0] sm:$0xff] %vm1505, %v3714
      %3782 = vst.msk [vmem:[#allocation3 + $0xe8] sm:$0xff] %vm1505, %v3716
      %3783 = vst.msk [vmem:[#allocation3 + $0xf0] sm:$0xff] %vm1505, %v3718
      %3784 = vst.msk [vmem:[#allocation3 + $0xf8] sm:$0xff] %vm1505, %v3720
      %v3785 = vld [vmem:[%s1344 + $0x1] sm:$0xff]
      %v3786 = vld [vmem:[%s1344 + $0x9] sm:$0xff]
      %v3787 = vld [vmem:[%s1344 + $0x19] sm:$0xff]
      %v3788 = vld [vmem:[%s1344 + $0x21] sm:$0xff]
      %v3789 = vld [vmem:[%s1344 + $0x31] sm:$0xff]
      %v3790 = vld [vmem:[%s1344 + $0x39] sm:$0xff]
      %v3791 = vld [vmem:[%s1344 + $0x49] sm:$0xff]
      %v3792 = vld [vmem:[%s1344 + $0x51] sm:$0xff]
      %v3793 = vld [vmem:[%s1344 + $0x61] sm:$0xff]
      %v3794 = vld [vmem:[%s1344 + $0x69] sm:$0xff]
      %v3795 = vld [vmem:[%s1344 + $0x79] sm:$0xff]
      %v3796 = vld [vmem:[%s1344 + $0x81] sm:$0xff]
      %v3797 = vld [vmem:[%s1344 + $0x91] sm:$0xff]
      %v3798 = vld [vmem:[%s1344 + $0x99] sm:$0xff]
      %v3799 = vld [vmem:[%s1344 + $0xa9] sm:$0xff]
      %v3800 = vld [vmem:[%s1344 + $0xb1] sm:$0xff]
      %v3801 = vld [vmem:[%s1344 + $0xc1] sm:$0xff]
      %v3802 = vld [vmem:[%s1344 + $0xc9] sm:$0xff]
      %v3803 = vld [vmem:[%s1344 + $0xd9] sm:$0xff]
      %v3804 = vld [vmem:[%s1344 + $0xe1] sm:$0xff]
      %v3805 = vld [vmem:[%s1344 + $0xf1] sm:$0xff]
      %v3806 = vld [vmem:[%s1344 + $0xf9] sm:$0xff]
      %v3807 = vld [vmem:[%s1344 + $0x109] sm:$0xff]
      %v3808 = vld [vmem:[%s1344 + $0x111] sm:$0xff]
      %v3809 = vld [vmem:[%s1344 + $0x121] sm:$0xff]
      %v3810 = vld [vmem:[%s1344 + $0x129] sm:$0xff]
      %v3811 = vld [vmem:[%s1344 + $0x139] sm:$0xff]
      %v3812 = vld [vmem:[%s1344 + $0x141] sm:$0xff]
      %v3813 = vld [vmem:[%s1344 + $0x151] sm:$0xff]
      %v3814 = vld [vmem:[%s1344 + $0x159] sm:$0xff]
      %v3815 = vld [vmem:[%s1344 + $0x169] sm:$0xff]
      %v3816 = vld [vmem:[%s1344 + $0x171] sm:$0xff]
      %3849 = vrot.lane.b32.xlu0 %v3785, 28
      %v3850 = vpop.permute.xlu0 %3849
      %3851 = vrot.lane.b32.xlu0 %v3786, 28
      %v3852 = vpop.permute.xlu0 %3851
      %3853 = vrot.lane.b32.xlu0 %v3787, 28
      %v3854 = vpop.permute.xlu0 %3853
      %3855 = vrot.lane.b32.xlu0 %v3788, 28
      %v3856 = vpop.permute.xlu0 %3855
      %3857 = vrot.lane.b32.xlu0 %v3789, 28
      %v3858 = vpop.permute.xlu0 %3857
      %3859 = vrot.lane.b32.xlu0 %v3790, 28
      %v3860 = vpop.permute.xlu0 %3859
      %3861 = vrot.lane.b32.xlu0 %v3791, 28
      %v3862 = vpop.permute.xlu0 %3861
      %3863 = vrot.lane.b32.xlu0 %v3792, 28
      %v3864 = vpop.permute.xlu0 %3863
      %3865 = vrot.lane.b32.xlu0 %v3793, 28
      %v3866 = vpop.permute.xlu0 %3865
      %3867 = vrot.lane.b32.xlu0 %v3794, 28
      %v3868 = vpop.permute.xlu0 %3867
      %3869 = vrot.lane.b32.xlu0 %v3795, 28
      %v3870 = vpop.permute.xlu0 %3869
      %3871 = vrot.lane.b32.xlu0 %v3796, 28
      %v3872 = vpop.permute.xlu0 %3871
      %3873 = vrot.lane.b32.xlu0 %v3797, 28
      %v3874 = vpop.permute.xlu0 %3873
      %3875 = vrot.lane.b32.xlu0 %v3798, 28
      %v3876 = vpop.permute.xlu0 %3875
      %3877 = vrot.lane.b32.xlu0 %v3799, 28
      %v3878 = vpop.permute.xlu0 %3877
      %3879 = vrot.lane.b32.xlu0 %v3800, 28
      %v3880 = vpop.permute.xlu0 %3879
      %3881 = vrot.lane.b32.xlu0 %v3801, 28
      %v3882 = vpop.permute.xlu0 %3881
      %3883 = vrot.lane.b32.xlu0 %v3802, 28
      %v3884 = vpop.permute.xlu0 %3883
      %3885 = vrot.lane.b32.xlu0 %v3803, 28
      %v3886 = vpop.permute.xlu0 %3885
      %3887 = vrot.lane.b32.xlu0 %v3804, 28
      %v3888 = vpop.permute.xlu0 %3887
      %3889 = vrot.lane.b32.xlu0 %v3805, 28
      %v3890 = vpop.permute.xlu0 %3889
      %3891 = vrot.lane.b32.xlu0 %v3806, 28
      %v3892 = vpop.permute.xlu0 %3891
      %3893 = vrot.lane.b32.xlu0 %v3807, 28
      %v3894 = vpop.permute.xlu0 %3893
      %3895 = vrot.lane.b32.xlu0 %v3808, 28
      %v3896 = vpop.permute.xlu0 %3895
      %3897 = vrot.lane.b32.xlu0 %v3809, 28
      %v3898 = vpop.permute.xlu0 %3897
      %3899 = vrot.lane.b32.xlu0 %v3810, 28
      %v3900 = vpop.permute.xlu0 %3899
      %3901 = vrot.lane.b32.xlu0 %v3811, 28
      %v3902 = vpop.permute.xlu0 %3901
      %3903 = vrot.lane.b32.xlu0 %v3812, 28
      %v3904 = vpop.permute.xlu0 %3903
      %3905 = vrot.lane.b32.xlu0 %v3813, 28
      %v3906 = vpop.permute.xlu0 %3905
      %3907 = vrot.lane.b32.xlu0 %v3814, 28
      %v3908 = vpop.permute.xlu0 %3907
      %3909 = vrot.lane.b32.xlu0 %v3815, 28
      %v3910 = vpop.permute.xlu0 %3909
      %3911 = vrot.lane.b32.xlu0 %v3816, 28
      %v3912 = vpop.permute.xlu0 %3911
      %3945 = vst.msk [vmem:[#allocation3] sm:$0xff] %vm1698, %v3850
      %3946 = vst.msk [vmem:[#allocation3 + $0x8] sm:$0xff] %vm1698, %v3852
      %3947 = vst.msk [vmem:[#allocation3 + $0x10] sm:$0xff] %vm1698, %v3854
      %3948 = vst.msk [vmem:[#allocation3 + $0x18] sm:$0xff] %vm1698, %v3856
      %3949 = vst.msk [vmem:[#allocation3 + $0x20] sm:$0xff] %vm1698, %v3858
      %3950 = vst.msk [vmem:[#allocation3 + $0x28] sm:$0xff] %vm1698, %v3860
      %3951 = vst.msk [vmem:[#allocation3 + $0x30] sm:$0xff] %vm1698, %v3862
      %3952 = vst.msk [vmem:[#allocation3 + $0x38] sm:$0xff] %vm1698, %v3864
      %3953 = vst.msk [vmem:[#allocation3 + $0x40] sm:$0xff] %vm1698, %v3866
      %3954 = vst.msk [vmem:[#allocation3 + $0x48] sm:$0xff] %vm1698, %v3868
      %3955 = vst.msk [vmem:[#allocation3 + $0x50] sm:$0xff] %vm1698, %v3870
      %3956 = vst.msk [vmem:[#allocation3 + $0x58] sm:$0xff] %vm1698, %v3872
      %3957 = vst.msk [vmem:[#allocation3 + $0x60] sm:$0xff] %vm1698, %v3874
      %3958 = vst.msk [vmem:[#allocation3 + $0x68] sm:$0xff] %vm1698, %v3876
      %3959 = vst.msk [vmem:[#allocation3 + $0x70] sm:$0xff] %vm1698, %v3878
      %3960 = vst.msk [vmem:[#allocation3 + $0x78] sm:$0xff] %vm1698, %v3880
      %3961 = vst.msk [vmem:[#allocation3 + $0x80] sm:$0xff] %vm1698, %v3882
      %3962 = vst.msk [vmem:[#allocation3 + $0x88] sm:$0xff] %vm1698, %v3884
      %3963 = vst.msk [vmem:[#allocation3 + $0x90] sm:$0xff] %vm1698, %v3886
      %3964 = vst.msk [vmem:[#allocation3 + $0x98] sm:$0xff] %vm1698, %v3888
      %3965 = vst.msk [vmem:[#allocation3 + $0xa0] sm:$0xff] %vm1698, %v3890
      %3966 = vst.msk [vmem:[#allocation3 + $0xa8] sm:$0xff] %vm1698, %v3892
      %3967 = vst.msk [vmem:[#allocation3 + $0xb0] sm:$0xff] %vm1698, %v3894
      %3968 = vst.msk [vmem:[#allocation3 + $0xb8] sm:$0xff] %vm1698, %v3896
      %3969 = vst.msk [vmem:[#allocation3 + $0xc0] sm:$0xff] %vm1698, %v3898
      %3970 = vst.msk [vmem:[#allocation3 + $0xc8] sm:$0xff] %vm1698, %v3900
      %3971 = vst.msk [vmem:[#allocation3 + $0xd0] sm:$0xff] %vm1698, %v3902
      %3972 = vst.msk [vmem:[#allocation3 + $0xd8] sm:$0xff] %vm1698, %v3904
      %3973 = vst.msk [vmem:[#allocation3 + $0xe0] sm:$0xff] %vm1698, %v3906
      %3974 = vst.msk [vmem:[#allocation3 + $0xe8] sm:$0xff] %vm1698, %v3908
      %3975 = vst.msk [vmem:[#allocation3 + $0xf0] sm:$0xff] %vm1698, %v3910
      %3976 = vst.msk [vmem:[#allocation3 + $0xf8] sm:$0xff] %vm1698, %v3912
      %v3977 = vld [vmem:[%s1344 + $0x2] sm:$0xff]
      %v3978 = vld [vmem:[%s1344 + $0xa] sm:$0xff]
      %v3979 = vld [vmem:[%s1344 + $0x1a] sm:$0xff]
      %v3980 = vld [vmem:[%s1344 + $0x22] sm:$0xff]
      %v3981 = vld [vmem:[%s1344 + $0x32] sm:$0xff]
      %v3982 = vld [vmem:[%s1344 + $0x3a] sm:$0xff]
      %v3983 = vld [vmem:[%s1344 + $0x4a] sm:$0xff]
      %v3984 = vld [vmem:[%s1344 + $0x52] sm:$0xff]
      %v3985 = vld [vmem:[%s1344 + $0x62] sm:$0xff]
      %v3986 = vld [vmem:[%s1344 + $0x6a] sm:$0xff]
      %v3987 = vld [vmem:[%s1344 + $0x7a] sm:$0xff]
      %v3988 = vld [vmem:[%s1344 + $0x82] sm:$0xff]
      %v3989 = vld [vmem:[%s1344 + $0x92] sm:$0xff]
      %v3990 = vld [vmem:[%s1344 + $0x9a] sm:$0xff]
      %v3991 = vld [vmem:[%s1344 + $0xaa] sm:$0xff]
      %v3992 = vld [vmem:[%s1344 + $0xb2] sm:$0xff]
      %v3993 = vld [vmem:[%s1344 + $0xc2] sm:$0xff]
      %v3994 = vld [vmem:[%s1344 + $0xca] sm:$0xff]
      %v3995 = vld [vmem:[%s1344 + $0xda] sm:$0xff]
      %v3996 = vld [vmem:[%s1344 + $0xe2] sm:$0xff]
      %v3997 = vld [vmem:[%s1344 + $0xf2] sm:$0xff]
      %v3998 = vld [vmem:[%s1344 + $0xfa] sm:$0xff]
      %v3999 = vld [vmem:[%s1344 + $0x10a] sm:$0xff]
      %v4000 = vld [vmem:[%s1344 + $0x112] sm:$0xff]
      %v4001 = vld [vmem:[%s1344 + $0x122] sm:$0xff]
      %v4002 = vld [vmem:[%s1344 + $0x12a] sm:$0xff]
      %v4003 = vld [vmem:[%s1344 + $0x13a] sm:$0xff]
      %v4004 = vld [vmem:[%s1344 + $0x142] sm:$0xff]
      %v4005 = vld [vmem:[%s1344 + $0x152] sm:$0xff]
      %v4006 = vld [vmem:[%s1344 + $0x15a] sm:$0xff]
      %v4007 = vld [vmem:[%s1344 + $0x16a] sm:$0xff]
      %v4008 = vld [vmem:[%s1344 + $0x172] sm:$0xff]
      %4041 = vrot.lane.b32.xlu0 %v3977, 32
      %v4042 = vpop.permute.xlu0 %4041
      %4043 = vrot.lane.b32.xlu0 %v3978, 32
      %v4044 = vpop.permute.xlu0 %4043
      %4045 = vrot.lane.b32.xlu0 %v3979, 32
      %v4046 = vpop.permute.xlu0 %4045
      %4047 = vrot.lane.b32.xlu0 %v3980, 32
      %v4048 = vpop.permute.xlu0 %4047
      %4049 = vrot.lane.b32.xlu0 %v3981, 32
      %v4050 = vpop.permute.xlu0 %4049
      %4051 = vrot.lane.b32.xlu0 %v3982, 32
      %v4052 = vpop.permute.xlu0 %4051
      %4053 = vrot.lane.b32.xlu0 %v3983, 32
      %v4054 = vpop.permute.xlu0 %4053
      %4055 = vrot.lane.b32.xlu0 %v3984, 32
      %v4056 = vpop.permute.xlu0 %4055
      %4057 = vrot.lane.b32.xlu0 %v3985, 32
      %v4058 = vpop.permute.xlu0 %4057
      %4059 = vrot.lane.b32.xlu0 %v3986, 32
      %v4060 = vpop.permute.xlu0 %4059
      %4061 = vrot.lane.b32.xlu0 %v3987, 32
      %v4062 = vpop.permute.xlu0 %4061
      %4063 = vrot.lane.b32.xlu0 %v3988, 32
      %v4064 = vpop.permute.xlu0 %4063
      %4065 = vrot.lane.b32.xlu0 %v3989, 32
      %v4066 = vpop.permute.xlu0 %4065
      %4067 = vrot.lane.b32.xlu0 %v3990, 32
      %v4068 = vpop.permute.xlu0 %4067
      %4069 = vrot.lane.b32.xlu0 %v3991, 32
      %v4070 = vpop.permute.xlu0 %4069
      %4071 = vrot.lane.b32.xlu0 %v3992, 32
      %v4072 = vpop.permute.xlu0 %4071
      %4073 = vrot.lane.b32.xlu0 %v3993, 32
      %v4074 = vpop.permute.xlu0 %4073
      %4075 = vrot.lane.b32.xlu0 %v3994, 32
      %v4076 = vpop.permute.xlu0 %4075
      %4077 = vrot.lane.b32.xlu0 %v3995, 32
      %v4078 = vpop.permute.xlu0 %4077
      %4079 = vrot.lane.b32.xlu0 %v3996, 32
      %v4080 = vpop.permute.xlu0 %4079
      %4081 = vrot.lane.b32.xlu0 %v3997, 32
      %v4082 = vpop.permute.xlu0 %4081
      %4083 = vrot.lane.b32.xlu0 %v3998, 32
      %v4084 = vpop.permute.xlu0 %4083
      %4085 = vrot.lane.b32.xlu0 %v3999, 32
      %v4086 = vpop.permute.xlu0 %4085
      %4087 = vrot.lane.b32.xlu0 %v4000, 32
      %v4088 = vpop.permute.xlu0 %4087
      %4089 = vrot.lane.b32.xlu0 %v4001, 32
      %v4090 = vpop.permute.xlu0 %4089
      %4091 = vrot.lane.b32.xlu0 %v4002, 32
      %v4092 = vpop.permute.xlu0 %4091
      %4093 = vrot.lane.b32.xlu0 %v4003, 32
      %v4094 = vpop.permute.xlu0 %4093
      %4095 = vrot.lane.b32.xlu0 %v4004, 32
      %v4096 = vpop.permute.xlu0 %4095
      %4097 = vrot.lane.b32.xlu0 %v4005, 32
      %v4098 = vpop.permute.xlu0 %4097
      %4099 = vrot.lane.b32.xlu0 %v4006, 32
      %v4100 = vpop.permute.xlu0 %4099
      %4101 = vrot.lane.b32.xlu0 %v4007, 32
      %v4102 = vpop.permute.xlu0 %4101
      %4103 = vrot.lane.b32.xlu0 %v4008, 32
      %v4104 = vpop.permute.xlu0 %4103
      %4137 = vst.msk [vmem:[#allocation3] sm:$0xff] %vm1891, %v4042
      %4138 = vst.msk [vmem:[#allocation3 + $0x8] sm:$0xff] %vm1891, %v4044
      %4139 = vst.msk [vmem:[#allocation3 + $0x10] sm:$0xff] %vm1891, %v4046
      %4140 = vst.msk [vmem:[#allocation3 + $0x18] sm:$0xff] %vm1891, %v4048
      %4141 = vst.msk [vmem:[#allocation3 + $0x20] sm:$0xff] %vm1891, %v4050
      %4142 = vst.msk [vmem:[#allocation3 + $0x28] sm:$0xff] %vm1891, %v4052
      %4143 = vst.msk [vmem:[#allocation3 + $0x30] sm:$0xff] %vm1891, %v4054
      %4144 = vst.msk [vmem:[#allocation3 + $0x38] sm:$0xff] %vm1891, %v4056
      %4145 = vst.msk [vmem:[#allocation3 + $0x40] sm:$0xff] %vm1891, %v4058
      %4146 = vst.msk [vmem:[#allocation3 + $0x48] sm:$0xff] %vm1891, %v4060
      %4147 = vst.msk [vmem:[#allocation3 + $0x50] sm:$0xff] %vm1891, %v4062
      %4148 = vst.msk [vmem:[#allocation3 + $0x58] sm:$0xff] %vm1891, %v4064
      %4149 = vst.msk [vmem:[#allocation3 + $0x60] sm:$0xff] %vm1891, %v4066
      %4150 = vst.msk [vmem:[#allocation3 + $0x68] sm:$0xff] %vm1891, %v4068
      %4151 = vst.msk [vmem:[#allocation3 + $0x70] sm:$0xff] %vm1891, %v4070
      %4152 = vst.msk [vmem:[#allocation3 + $0x78] sm:$0xff] %vm1891, %v4072
      %4153 = vst.msk [vmem:[#allocation3 + $0x80] sm:$0xff] %vm1891, %v4074
      %4154 = vst.msk [vmem:[#allocation3 + $0x88] sm:$0xff] %vm1891, %v4076
      %4155 = vst.msk [vmem:[#allocation3 + $0x90] sm:$0xff] %vm1891, %v4078
      %4156 = vst.msk [vmem:[#allocation3 + $0x98] sm:$0xff] %vm1891, %v4080
      %4157 = vst.msk [vmem:[#allocation3 + $0xa0] sm:$0xff] %vm1891, %v4082
      %4158 = vst.msk [vmem:[#allocation3 + $0xa8] sm:$0xff] %vm1891, %v4084
      %4159 = vst.msk [vmem:[#allocation3 + $0xb0] sm:$0xff] %vm1891, %v4086
      %4160 = vst.msk [vmem:[#allocation3 + $0xb8] sm:$0xff] %vm1891, %v4088
      %4161 = vst.msk [vmem:[#allocation3 + $0xc0] sm:$0xff] %vm1891, %v4090
      %4162 = vst.msk [vmem:[#allocation3 + $0xc8] sm:$0xff] %vm1891, %v4092
      %4163 = vst.msk [vmem:[#allocation3 + $0xd0] sm:$0xff] %vm1891, %v4094
      %4164 = vst.msk [vmem:[#allocation3 + $0xd8] sm:$0xff] %vm1891, %v4096
      %4165 = vst.msk [vmem:[#allocation3 + $0xe0] sm:$0xff] %vm1891, %v4098
      %4166 = vst.msk [vmem:[#allocation3 + $0xe8] sm:$0xff] %vm1891, %v4100
      %4167 = vst.msk [vmem:[#allocation3 + $0xf0] sm:$0xff] %vm1891, %v4102
      %4168 = vst.msk [vmem:[#allocation3 + $0xf8] sm:$0xff] %vm1891, %v4104
      %v4169 = vld [vmem:[#allocation3] sm:$0xff]
      %v4170 = vld [vmem:[#allocation3 + $0x8] sm:$0xff]
      %v4171 = vld [vmem:[#allocation3 + $0x10] sm:$0xff]
      %v4172 = vld [vmem:[#allocation3 + $0x18] sm:$0xff]
      %v4173 = vld [vmem:[#allocation3 + $0x20] sm:$0xff]
      %v4174 = vld [vmem:[#allocation3 + $0x28] sm:$0xff]
      %v4175 = vld [vmem:[#allocation3 + $0x30] sm:$0xff]
      %v4176 = vld [vmem:[#allocation3 + $0x38] sm:$0xff]
      %v4177 = vld [vmem:[#allocation3 + $0x40] sm:$0xff]
      %v4178 = vld [vmem:[#allocation3 + $0x48] sm:$0xff]
      %v4179 = vld [vmem:[#allocation3 + $0x50] sm:$0xff]
      %v4180 = vld [vmem:[#allocation3 + $0x58] sm:$0xff]
      %v4181 = vld [vmem:[#allocation3 + $0x60] sm:$0xff]
      %v4182 = vld [vmem:[#allocation3 + $0x68] sm:$0xff]
      %v4183 = vld [vmem:[#allocation3 + $0x70] sm:$0xff]
      %v4184 = vld [vmem:[#allocation3 + $0x78] sm:$0xff]
      %v4185 = vld [vmem:[#allocation3 + $0x80] sm:$0xff]
      %v4186 = vld [vmem:[#allocation3 + $0x88] sm:$0xff]
      %v4187 = vld [vmem:[#allocation3 + $0x90] sm:$0xff]
      %v4188 = vld [vmem:[#allocation3 + $0x98] sm:$0xff]
      %v4189 = vld [vmem:[#allocation3 + $0xa0] sm:$0xff]
      %v4190 = vld [vmem:[#allocation3 + $0xa8] sm:$0xff]
      %v4191 = vld [vmem:[#allocation3 + $0xb0] sm:$0xff]
      %v4192 = vld [vmem:[#allocation3 + $0xb8] sm:$0xff]
      %v4193 = vld [vmem:[#allocation3 + $0xc0] sm:$0xff]
      %v4194 = vld [vmem:[#allocation3 + $0xc8] sm:$0xff]
      %v4195 = vld [vmem:[#allocation3 + $0xd0] sm:$0xff]
      %v4196 = vld [vmem:[#allocation3 + $0xd8] sm:$0xff]
      %v4197 = vld [vmem:[#allocation3 + $0xe0] sm:$0xff]
      %v4198 = vld [vmem:[#allocation3 + $0xe8] sm:$0xff]
      %v4199 = vld [vmem:[#allocation3 + $0xf0] sm:$0xff]
      %v4200 = vld [vmem:[#allocation3 + $0xf8] sm:$0xff]
      %v4201 = vld [vmem:[%s2] sm:$0xff]
      %v4202 = vld [vmem:[%s2 + $0x8] sm:$0xff]
      %v4203 = vld [vmem:[%s2 + $0x10] sm:$0xff]
      %v4204 = vld [vmem:[%s2 + $0x18] sm:$0xff]
      %v4205 = vld [vmem:[%s2 + $0x20] sm:$0xf]
      %v4207 = vsel %vm1961, %v4169, 0
      %v4210 = vsel %vm1961, %v4170, 0
      %v4213 = vsel %vm1961, %v4171, 0
      %v4216 = vsel %vm1961, %v4172, 0
      %v4219 = vsel %vm1961, %v4173, 0
      %v4222 = vsel %vm1961, %v4174, 0
      %v4225 = vsel %vm1961, %v4175, 0
      %v4228 = vsel %vm1961, %v4176, 0
      %v4231 = vsel %vm1961, %v4177, 0
      %v4234 = vsel %vm1961, %v4178, 0
      %v4237 = vsel %vm1961, %v4179, 0
      %v4240 = vsel %vm1961, %v4180, 0
      %v4243 = vsel %vm1961, %v4181, 0
      %v4246 = vsel %vm1961, %v4182, 0
      %v4249 = vsel %vm1961, %v4183, 0
      %v4252 = vsel %vm1961, %v4184, 0
      %v4255 = vsel %vm1961, %v4185, 0
      %v4258 = vsel %vm1961, %v4186, 0
      %v4261 = vsel %vm1961, %v4187, 0
      %v4264 = vsel %vm1961, %v4188, 0
      %v4267 = vsel %vm1961, %v4189, 0
      %v4270 = vsel %vm1961, %v4190, 0
      %v4273 = vsel %vm1961, %v4191, 0
      %v4276 = vsel %vm1961, %v4192, 0
      %v4279 = vsel %vm1961, %v4193, 0
      %v4282 = vsel %vm1961, %v4194, 0
      %v4285 = vsel %vm1961, %v4195, 0
      %v4288 = vsel %vm1961, %v4196, 0
      %v4291 = vsel %vm1961, %v4197, 0
      %v4294 = vsel %vm1961, %v4198, 0
      %v4297 = vsel %vm1961, %v4199, 0
      %v4300 = vsel %vm1961, %v4200, 0
      %v4303 = vsel %vm2058, %v4205, 0
      %4305 = vmatpush.msra.mxu0 0.0
      %4306 = vmatpush.msra.mxu0 0.0
      %4307 = vmatpush.msra.mxu0 0.0
      %4308 = vmatpush.msra.mxu0 0.0
      %4309 = vmatpush.msra.mxu0 0.0
      %4310 = vmatpush.msra.mxu0 0.0
      %4311 = vmatpush.msra.mxu0 0.0
      %4312 = vmatpush.msra.mxu0 0.0
      %4313 = vmatpush.msra.mxu0 0.0
      %4314 = vmatpush.msra.mxu0 0.0
      %4315 = vmatpush.msra.mxu0 0.0
      %4316 = vmatpush.msra.mxu0 %v4303
      %4317 = vmatpush.msra.mxu0 %v4204
      %4318 = vmatpush.msra.mxu0 %v4203
      %4319 = vmatpush.msra.mxu0 %v4202
      %4320 = vmatpush.msra.mxu0 %v4201
      %4321 = vmatmul.f32.gmra.mxu0 %v4207
      %v4322 = vpop.f32.mrf.mxu0
      %v4323 = vadd.f32 0.0, %v4322
      %4324 = vmatmul.f32.gmra.mxu0 %v4210
      %v4325 = vpop.f32.mrf.mxu0
      %v4326 = vadd.f32 0.0, %v4325
      %4327 = vmatmul.f32.gmra.mxu0 %v4213
      %v4328 = vpop.f32.mrf.mxu0
      %v4329 = vadd.f32 0.0, %v4328
      %4330 = vmatmul.f32.gmra.mxu0 %v4216
      %v4331 = vpop.f32.mrf.mxu0
      %v4332 = vadd.f32 0.0, %v4331
      %4333 = vmatmul.f32.gmra.mxu0 %v4219
      %v4334 = vpop.f32.mrf.mxu0
      %v4335 = vadd.f32 0.0, %v4334
      %4336 = vmatmul.f32.gmra.mxu0 %v4222
      %v4337 = vpop.f32.mrf.mxu0
      %v4338 = vadd.f32 0.0, %v4337
      %4339 = vmatmul.f32.gmra.mxu0 %v4225
      %v4340 = vpop.f32.mrf.mxu0
      %v4341 = vadd.f32 0.0, %v4340
      %4342 = vmatmul.f32.gmra.mxu0 %v4228
      %v4343 = vpop.f32.mrf.mxu0
      %v4344 = vadd.f32 0.0, %v4343
      %4345 = vmatmul.f32.gmra.mxu0 %v4231
      %v4346 = vpop.f32.mrf.mxu0
      %v4347 = vadd.f32 0.0, %v4346
      %4348 = vmatmul.f32.gmra.mxu0 %v4234
      %v4349 = vpop.f32.mrf.mxu0
      %v4350 = vadd.f32 0.0, %v4349
      %4351 = vmatmul.f32.gmra.mxu0 %v4237
      %v4352 = vpop.f32.mrf.mxu0
      %v4353 = vadd.f32 0.0, %v4352
      %4354 = vmatmul.f32.gmra.mxu0 %v4240
      %v4355 = vpop.f32.mrf.mxu0
      %v4356 = vadd.f32 0.0, %v4355
      %4357 = vmatmul.f32.gmra.mxu0 %v4243
      %v4358 = vpop.f32.mrf.mxu0
      %v4359 = vadd.f32 0.0, %v4358
      %4360 = vmatmul.f32.gmra.mxu0 %v4246
      %v4361 = vpop.f32.mrf.mxu0
      %v4362 = vadd.f32 0.0, %v4361
      %4363 = vmatmul.f32.gmra.mxu0 %v4249
      %v4364 = vpop.f32.mrf.mxu0
      %v4365 = vadd.f32 0.0, %v4364
      %4366 = vmatmul.f32.gmra.mxu0 %v4252
      %v4367 = vpop.f32.mrf.mxu0
      %v4368 = vadd.f32 0.0, %v4367
      %4369 = vmatmul.f32.gmra.mxu0 %v4255
      %v4370 = vpop.f32.mrf.mxu0
      %v4371 = vadd.f32 0.0, %v4370
      %4372 = vmatmul.f32.gmra.mxu0 %v4258
      %v4373 = vpop.f32.mrf.mxu0
      %v4374 = vadd.f32 0.0, %v4373
      %4375 = vmatmul.f32.gmra.mxu0 %v4261
      %v4376 = vpop.f32.mrf.mxu0
      %v4377 = vadd.f32 0.0, %v4376
      %4378 = vmatmul.f32.gmra.mxu0 %v4264
      %v4379 = vpop.f32.mrf.mxu0
      %v4380 = vadd.f32 0.0, %v4379
      %4381 = vmatmul.f32.gmra.mxu0 %v4267
      %v4382 = vpop.f32.mrf.mxu0
      %v4383 = vadd.f32 0.0, %v4382
      %4384 = vmatmul.f32.gmra.mxu0 %v4270
      %v4385 = vpop.f32.mrf.mxu0
      %v4386 = vadd.f32 0.0, %v4385
      %4387 = vmatmul.f32.gmra.mxu0 %v4273
      %v4388 = vpop.f32.mrf.mxu0
      %v4389 = vadd.f32 0.0, %v4388
      %4390 = vmatmul.f32.gmra.mxu0 %v4276
      %v4391 = vpop.f32.mrf.mxu0
      %v4392 = vadd.f32 0.0, %v4391
      %4393 = vmatmul.f32.gmra.mxu0 %v4279
      %v4394 = vpop.f32.mrf.mxu0
      %v4395 = vadd.f32 0.0, %v4394
      %4396 = vmatmul.f32.gmra.mxu0 %v4282
      %v4397 = vpop.f32.mrf.mxu0
      %v4398 = vadd.f32 0.0, %v4397
      %4399 = vmatmul.f32.gmra.mxu0 %v4285
      %v4400 = vpop.f32.mrf.mxu0
      %v4401 = vadd.f32 0.0, %v4400
      %4402 = vmatmul.f32.gmra.mxu0 %v4288
      %v4403 = vpop.f32.mrf.mxu0
      %v4404 = vadd.f32 0.0, %v4403
      %4405 = vmatmul.f32.gmra.mxu0 %v4291
      %v4406 = vpop.f32.mrf.mxu0
      %v4407 = vadd.f32 0.0, %v4406
      %4408 = vmatmul.f32.gmra.mxu0 %v4294
      %v4409 = vpop.f32.mrf.mxu0
      %v4410 = vadd.f32 0.0, %v4409
      %4411 = vmatmul.f32.gmra.mxu0 %v4297
      %v4412 = vpop.f32.mrf.mxu0
      %v4413 = vadd.f32 0.0, %v4412
      %4414 = vmatmul.f32.gmra.mxu0 %v4300
      %v4415 = vpop.f32.mrf.mxu0
      %v4416 = vadd.f32 0.0, %v4415
      %4417 = vdwg.mxu0
      %v4418 = vsel %vm204, %v4323, 0.0
      %v4419 = vsel %vm204, %v4326, 0.0
      %v4420 = vadd.f32 %v4418, %v4419
      %v4421 = vsel %vm204, %v4329, 0.0
      %v4422 = vadd.f32 %v4420, %v4421
      %v4423 = vsel %vm204, %v4332, 0.0
      %v4424 = vadd.f32 %v4422, %v4423
      %v4425 = vsel %vm204, %v4335, 0.0
      %v4426 = vadd.f32 %v4424, %v4425
      %v4427 = vsel %vm204, %v4338, 0.0
      %v4428 = vadd.f32 %v4426, %v4427
      %v4429 = vsel %vm204, %v4341, 0.0
      %v4430 = vadd.f32 %v4428, %v4429
      %v4431 = vsel %vm204, %v4344, 0.0
      %v4432 = vadd.f32 %v4430, %v4431
      %v4433 = vsel %vm204, %v4347, 0.0
      %v4434 = vadd.f32 %v4432, %v4433
      %v4435 = vsel %vm204, %v4350, 0.0
      %v4436 = vadd.f32 %v4434, %v4435
      %v4437 = vsel %vm204, %v4353, 0.0
      %v4438 = vadd.f32 %v4436, %v4437
      %v4439 = vsel %vm204, %v4356, 0.0
      %v4440 = vadd.f32 %v4438, %v4439
      %v4441 = vsel %vm204, %v4359, 0.0
      %v4442 = vadd.f32 %v4440, %v4441
      %v4443 = vsel %vm204, %v4362, 0.0
      %v4444 = vadd.f32 %v4442, %v4443
      %v4445 = vsel %vm204, %v4365, 0.0
      %v4446 = vadd.f32 %v4444, %v4445
      %v4447 = vsel %vm204, %v4368, 0.0
      %v4448 = vadd.f32 %v4446, %v4447
      %v4449 = vsel %vm204, %v4371, 0.0
      %v4450 = vadd.f32 %v4448, %v4449
      %v4451 = vsel %vm204, %v4374, 0.0
      %v4452 = vadd.f32 %v4450, %v4451
      %v4453 = vsel %vm204, %v4377, 0.0
      %v4454 = vadd.f32 %v4452, %v4453
      %v4455 = vsel %vm204, %v4380, 0.0
      %v4456 = vadd.f32 %v4454, %v4455
      %v4457 = vsel %vm204, %v4383, 0.0
      %v4458 = vadd.f32 %v4456, %v4457
      %v4459 = vsel %vm204, %v4386, 0.0
      %v4460 = vadd.f32 %v4458, %v4459
      %v4461 = vsel %vm204, %v4389, 0.0
      %v4462 = vadd.f32 %v4460, %v4461
      %v4463 = vsel %vm204, %v4392, 0.0
      %v4464 = vadd.f32 %v4462, %v4463
      %v4465 = vsel %vm204, %v4395, 0.0
      %v4466 = vadd.f32 %v4464, %v4465
      %v4467 = vsel %vm204, %v4398, 0.0
      %v4468 = vadd.f32 %v4466, %v4467
      %v4469 = vsel %vm204, %v4401, 0.0
      %v4470 = vadd.f32 %v4468, %v4469
      %v4471 = vsel %vm204, %v4404, 0.0
      %v4472 = vadd.f32 %v4470, %v4471
      %v4473 = vsel %vm204, %v4407, 0.0
      %v4474 = vadd.f32 %v4472, %v4473
      %v4475 = vsel %vm204, %v4410, 0.0
      %v4476 = vadd.f32 %v4474, %v4475
      %v4477 = vsel %vm204, %v4413, 0.0
      %v4478 = vadd.f32 %v4476, %v4477
      %v4479 = vsel %vm204, %v4416, 0.0
      %v4480 = vadd.f32 %v4478, %v4479
      %v4481 = vrot.slane %v4480, 4
      %v4482 = vadd.f32 %v4480, %v4481
      %v4483 = vrot.slane %v4482, 2
      %v4484 = vadd.f32 %v4482, %v4483
      %v4485 = vrot.slane %v4484, 1
      %v4486 = vadd.f32 %v4484, %v4485
      %v4487 = vmul.f32 %v4486, %v2250
      %v4488 = vsub.f32 %v4323, %v4487
      %v4489 = vsub.f32 %v4326, %v4487
      %v4490 = vsub.f32 %v4329, %v4487
      %v4491 = vsub.f32 %v4332, %v4487
      %v4492 = vsub.f32 %v4335, %v4487
      %v4493 = vsub.f32 %v4338, %v4487
      %v4494 = vsub.f32 %v4341, %v4487
      %v4495 = vsub.f32 %v4344, %v4487
      %v4496 = vsub.f32 %v4347, %v4487
      %v4497 = vsub.f32 %v4350, %v4487
      %v4498 = vsub.f32 %v4353, %v4487
      %v4499 = vsub.f32 %v4356, %v4487
      %v4500 = vsub.f32 %v4359, %v4487
      %v4501 = vsub.f32 %v4362, %v4487
      %v4502 = vsub.f32 %v4365, %v4487
      %v4503 = vsub.f32 %v4368, %v4487
      %v4504 = vsub.f32 %v4371, %v4487
      %v4505 = vsub.f32 %v4374, %v4487
      %v4506 = vsub.f32 %v4377, %v4487
      %v4507 = vsub.f32 %v4380, %v4487
      %v4508 = vsub.f32 %v4383, %v4487
      %v4509 = vsub.f32 %v4386, %v4487
      %v4510 = vsub.f32 %v4389, %v4487
      %v4511 = vsub.f32 %v4392, %v4487
      %v4512 = vsub.f32 %v4395, %v4487
      %v4513 = vsub.f32 %v4398, %v4487
      %v4514 = vsub.f32 %v4401, %v4487
      %v4515 = vsub.f32 %v4404, %v4487
      %v4516 = vsub.f32 %v4407, %v4487
      %v4517 = vsub.f32 %v4410, %v4487
      %v4518 = vsub.f32 %v4413, %v4487
      %v4519 = vsub.f32 %v4416, %v4487
      %v4520 = vmul.f32 %v4488, %v4488
      %v4521 = vmul.f32 %v4489, %v4489
      %v4522 = vmul.f32 %v4490, %v4490
      %v4523 = vmul.f32 %v4491, %v4491
      %v4524 = vmul.f32 %v4492, %v4492
      %v4525 = vmul.f32 %v4493, %v4493
      %v4526 = vmul.f32 %v4494, %v4494
      %v4527 = vmul.f32 %v4495, %v4495
      %v4528 = vmul.f32 %v4496, %v4496
      %v4529 = vmul.f32 %v4497, %v4497
      %v4530 = vmul.f32 %v4498, %v4498
      %v4531 = vmul.f32 %v4499, %v4499
      %v4532 = vmul.f32 %v4500, %v4500
      %v4533 = vmul.f32 %v4501, %v4501
      %v4534 = vmul.f32 %v4502, %v4502
      %v4535 = vmul.f32 %v4503, %v4503
      %v4536 = vmul.f32 %v4504, %v4504
      %v4537 = vmul.f32 %v4505, %v4505
      %v4538 = vmul.f32 %v4506, %v4506
      %v4539 = vmul.f32 %v4507, %v4507
      %v4540 = vmul.f32 %v4508, %v4508
      %v4541 = vmul.f32 %v4509, %v4509
      %v4542 = vmul.f32 %v4510, %v4510
      %v4543 = vmul.f32 %v4511, %v4511
      %v4544 = vmul.f32 %v4512, %v4512
      %v4545 = vmul.f32 %v4513, %v4513
      %v4546 = vmul.f32 %v4514, %v4514
      %v4547 = vmul.f32 %v4515, %v4515
      %v4548 = vmul.f32 %v4516, %v4516
      %v4549 = vmul.f32 %v4517, %v4517
      %v4550 = vmul.f32 %v4518, %v4518
      %v4551 = vmul.f32 %v4519, %v4519
      %v4552 = vsel %vm204, %v4520, 0.0
      %v4553 = vsel %vm204, %v4521, 0.0
      %v4554 = vadd.f32 %v4552, %v4553
      %v4555 = vsel %vm204, %v4522, 0.0
      %v4556 = vadd.f32 %v4554, %v4555
      %v4557 = vsel %vm204, %v4523, 0.0
      %v4558 = vadd.f32 %v4556, %v4557
      %v4559 = vsel %vm204, %v4524, 0.0
      %v4560 = vadd.f32 %v4558, %v4559
      %v4561 = vsel %vm204, %v4525, 0.0
      %v4562 = vadd.f32 %v4560, %v4561
      %v4563 = vsel %vm204, %v4526, 0.0
      %v4564 = vadd.f32 %v4562, %v4563
      %v4565 = vsel %vm204, %v4527, 0.0
      %v4566 = vadd.f32 %v4564, %v4565
      %v4567 = vsel %vm204, %v4528, 0.0
      %v4568 = vadd.f32 %v4566, %v4567
      %v4569 = vsel %vm204, %v4529, 0.0
      %v4570 = vadd.f32 %v4568, %v4569
      %v4571 = vsel %vm204, %v4530, 0.0
      %v4572 = vadd.f32 %v4570, %v4571
      %v4573 = vsel %vm204, %v4531, 0.0
      %v4574 = vadd.f32 %v4572, %v4573
      %v4575 = vsel %vm204, %v4532, 0.0
      %v4576 = vadd.f32 %v4574, %v4575
      %v4577 = vsel %vm204, %v4533, 0.0
      %v4578 = vadd.f32 %v4576, %v4577
      %v4579 = vsel %vm204, %v4534, 0.0
      %v4580 = vadd.f32 %v4578, %v4579
      %v4581 = vsel %vm204, %v4535, 0.0
      %v4582 = vadd.f32 %v4580, %v4581
      %v4583 = vsel %vm204, %v4536, 0.0
      %v4584 = vadd.f32 %v4582, %v4583
      %v4585 = vsel %vm204, %v4537, 0.0
      %v4586 = vadd.f32 %v4584, %v4585
      %v4587 = vsel %vm204, %v4538, 0.0
      %v4588 = vadd.f32 %v4586, %v4587
      %v4589 = vsel %vm204, %v4539, 0.0
      %v4590 = vadd.f32 %v4588, %v4589
      %v4591 = vsel %vm204, %v4540, 0.0
      %v4592 = vadd.f32 %v4590, %v4591
      %v4593 = vsel %vm204, %v4541, 0.0
      %v4594 = vadd.f32 %v4592, %v4593
      %v4595 = vsel %vm204, %v4542, 0.0
      %v4596 = vadd.f32 %v4594, %v4595
      %v4597 = vsel %vm204, %v4543, 0.0
      %v4598 = vadd.f32 %v4596, %v4597
      %v4599 = vsel %vm204, %v4544, 0.0
      %v4600 = vadd.f32 %v4598, %v4599
      %v4601 = vsel %vm204, %v4545, 0.0
      %v4602 = vadd.f32 %v4600, %v4601
      %v4603 = vsel %vm204, %v4546, 0.0
      %v4604 = vadd.f32 %v4602, %v4603
      %v4605 = vsel %vm204, %v4547, 0.0
      %v4606 = vadd.f32 %v4604, %v4605
      %v4607 = vsel %vm204, %v4548, 0.0
      %v4608 = vadd.f32 %v4606, %v4607
      %v4609 = vsel %vm204, %v4549, 0.0
      %v4610 = vadd.f32 %v4608, %v4609
      %v4611 = vsel %vm204, %v4550, 0.0
      %v4612 = vadd.f32 %v4610, %v4611
      %v4613 = vsel %vm204, %v4551, 0.0
      %v4614 = vadd.f32 %v4612, %v4613
      %v4615 = vrot.slane %v4614, 4
      %v4616 = vadd.f32 %v4614, %v4615
      %v4617 = vrot.slane %v4616, 2
      %v4618 = vadd.f32 %v4616, %v4617
      %v4619 = vrot.slane %v4618, 1
      %v4620 = vadd.f32 %v4618, %v4619
      %v4621 = vmul.f32 %v4620, %v2250
      %v4622 = vadd.f32 %v4621, 1e-05
      %v4623 = vrsqrt.pop %v4622
      %v4624 = vmul.f32 %v4623, %v4622
      %v4625 = vmul.f32 %v4624, %v4623
      %v4626 = vmul.f32 0.5, %v4625
      %v4627 = vsub.f32 1.5, %v4626
      %v4628 = vmul.f32 %v4623, %v4627
      %vm4629 = vweird.f32 %v4622
      %vm4630 = vweird.f32 %v4623
      %vm4631 = vmor %vm4629, %vm4630
      %v4632 = vsel %vm4631, %v4623, %v4628
      %v4633 = vmul.f32 %v4488, %v4632
      %v4634 = vmul.f32 %v4489, %v4632
      %v4635 = vmul.f32 %v4490, %v4632
      %v4636 = vmul.f32 %v4491, %v4632
      %v4637 = vmul.f32 %v4492, %v4632
      %v4638 = vmul.f32 %v4493, %v4632
      %v4639 = vmul.f32 %v4494, %v4632
      %v4640 = vmul.f32 %v4495, %v4632
      %v4641 = vmul.f32 %v4496, %v4632
      %v4642 = vmul.f32 %v4497, %v4632
      %v4643 = vmul.f32 %v4498, %v4632
      %v4644 = vmul.f32 %v4499, %v4632
      %v4645 = vmul.f32 %v4500, %v4632
      %v4646 = vmul.f32 %v4501, %v4632
      %v4647 = vmul.f32 %v4502, %v4632
      %v4648 = vmul.f32 %v4503, %v4632
      %v4649 = vmul.f32 %v4504, %v4632
      %v4650 = vmul.f32 %v4505, %v4632
      %v4651 = vmul.f32 %v4506, %v4632
      %v4652 = vmul.f32 %v4507, %v4632
      %v4653 = vmul.f32 %v4508, %v4632
      %v4654 = vmul.f32 %v4509, %v4632
      %v4655 = vmul.f32 %v4510, %v4632
      %v4656 = vmul.f32 %v4511, %v4632
      %v4657 = vmul.f32 %v4512, %v4632
      %v4658 = vmul.f32 %v4513, %v4632
      %v4659 = vmul.f32 %v4514, %v4632
      %v4660 = vmul.f32 %v4515, %v4632
      %v4661 = vmul.f32 %v4516, %v4632
      %v4662 = vmul.f32 %v4517, %v4632
      %v4663 = vmul.f32 %v4518, %v4632
      %v4664 = vmul.f32 %v4519, %v4632
      %4665 = vst.msk [vmem:[%s203 + $0x1] sm:$0xff] %vm204, %v4633
      %4666 = vst.msk [vmem:[%s203 + $0x9] sm:$0xff] %vm204, %v4634
      %4667 = vst.msk [vmem:[%s203 + $0x19] sm:$0xff] %vm204, %v4635
      %4668 = vst.msk [vmem:[%s203 + $0x21] sm:$0xff] %vm204, %v4636
      %4669 = vst.msk [vmem:[%s203 + $0x31] sm:$0xff] %vm204, %v4637
      %4670 = vst.msk [vmem:[%s203 + $0x39] sm:$0xff] %vm204, %v4638
      %4671 = vst.msk [vmem:[%s203 + $0x49] sm:$0xff] %vm204, %v4639
      %4672 = vst.msk [vmem:[%s203 + $0x51] sm:$0xff] %vm204, %v4640
      %4673 = vst.msk [vmem:[%s203 + $0x61] sm:$0xff] %vm204, %v4641
      %4674 = vst.msk [vmem:[%s203 + $0x69] sm:$0xff] %vm204, %v4642
      %4675 = vst.msk [vmem:[%s203 + $0x79] sm:$0xff] %vm204, %v4643
      %4676 = vst.msk [vmem:[%s203 + $0x81] sm:$0xff] %vm204, %v4644
      %4677 = vst.msk [vmem:[%s203 + $0x91] sm:$0xff] %vm204, %v4645
      %4678 = vst.msk [vmem:[%s203 + $0x99] sm:$0xff] %vm204, %v4646
      %4679 = vst.msk [vmem:[%s203 + $0xa9] sm:$0xff] %vm204, %v4647
      %4680 = vst.msk [vmem:[%s203 + $0xb1] sm:$0xff] %vm204, %v4648
      %4681 = vst.msk [vmem:[%s203 + $0xc1] sm:$0xff] %vm204, %v4649
      %4682 = vst.msk [vmem:[%s203 + $0xc9] sm:$0xff] %vm204, %v4650
      %4683 = vst.msk [vmem:[%s203 + $0xd9] sm:$0xff] %vm204, %v4651
      %4684 = vst.msk [vmem:[%s203 + $0xe1] sm:$0xff] %vm204, %v4652
      %4685 = vst.msk [vmem:[%s203 + $0xf1] sm:$0xff] %vm204, %v4653
      %4686 = vst.msk [vmem:[%s203 + $0xf9] sm:$0xff] %vm204, %v4654
      %4687 = vst.msk [vmem:[%s203 + $0x109] sm:$0xff] %vm204, %v4655
      %4688 = vst.msk [vmem:[%s203 + $0x111] sm:$0xff] %vm204, %v4656
      %4689 = vst.msk [vmem:[%s203 + $0x121] sm:$0xff] %vm204, %v4657
      %4690 = vst.msk [vmem:[%s203 + $0x129] sm:$0xff] %vm204, %v4658
      %4691 = vst.msk [vmem:[%s203 + $0x139] sm:$0xff] %vm204, %v4659
      %4692 = vst.msk [vmem:[%s203 + $0x141] sm:$0xff] %vm204, %v4660
      %4693 = vst.msk [vmem:[%s203 + $0x151] sm:$0xff] %vm204, %v4661
      %4694 = vst.msk [vmem:[%s203 + $0x159] sm:$0xff] %vm204, %v4662
      %4695 = vst.msk [vmem:[%s203 + $0x169] sm:$0xff] %vm204, %v4663
      %4696 = vst.msk [vmem:[%s203 + $0x171] sm:$0xff] %vm204, %v4664
      %4697 = vst.msk [vmem:[#allocation2 + $0x1] sm:$0xff] %vm204, %v4635
      %4698 = vst.msk [vmem:[#allocation2 + $0x9] sm:$0xff] %vm204, %v4636
      %4699 = vst.msk [vmem:[%s239 + $0x1] sm:$0xff] %vm204, %v4661
      %4700 = vst.msk [vmem:[%s239 + $0x9] sm:$0xff] %vm204, %v4662
      %v4701 = vld [vmem:[#allocation2 + $0x2] sm:$0x1]
      %v4702 = vld [vmem:[#allocation2 + $0x1a] sm:$0x1]
      %v4703 = vld [vmem:[#allocation2 + $0x32] sm:$0x1]
      %v4704 = vld [vmem:[#allocation2 + $0x4a] sm:$0x1]
      %v4705 = vld [vmem:[#allocation2 + $0x62] sm:$0x1]
      %v4706 = vld [vmem:[#allocation2 + $0x7a] sm:$0x1]
      %v4707 = vld [vmem:[#allocation2 + $0x92] sm:$0x1]
      %v4708 = vld [vmem:[#allocation2 + $0xaa] sm:$0x1]
      %v4709 = vld [vmem:[#allocation2 + $0xc2] sm:$0x1]
      %v4710 = vld [vmem:[#allocation2 + $0xda] sm:$0x1]
      %v4711 = vld [vmem:[#allocation2 + $0xf2] sm:$0x1]
      %v4712 = vld [vmem:[#allocation2 + $0x10a] sm:$0x1]
      %v4713 = vld [vmem:[#allocation2 + $0x122] sm:$0x1]
      %v4714 = vld [vmem:[#allocation2 + $0x13a] sm:$0x1]
      %v4715 = vld [vmem:[#allocation2 + $0x152] sm:$0x1]
      %v4716 = vld [vmem:[#allocation2 + $0x16a] sm:$0x1]
      %v4717 = vld [vmem:[#allocation2 + $0x182] sm:$0x1]
      %v4718 = vld [vmem:[#allocation2 + $0x19a] sm:$0x1]
      %4719 = vst.msk [vmem:[#allocation2] sm:$0x1] %vm260, %v4701
      %4720 = vst.msk [vmem:[#allocation2 + $0x18] sm:$0x1] %vm260, %v4702
      %4721 = vst.msk [vmem:[#allocation2 + $0x30] sm:$0x1] %vm260, %v4703
      %4722 = vst.msk [vmem:[#allocation2 + $0x48] sm:$0x1] %vm260, %v4704
      %4723 = vst.msk [vmem:[#allocation2 + $0x60] sm:$0x1] %vm260, %v4705
      %4724 = vst.msk [vmem:[#allocation2 + $0x78] sm:$0x1] %vm260, %v4706
      %4725 = vst.msk [vmem:[#allocation2 + $0x90] sm:$0x1] %vm260, %v4707
      %4726 = vst.msk [vmem:[#allocation2 + $0xa8] sm:$0x1] %vm260, %v4708
      %4727 = vst.msk [vmem:[#allocation2 + $0xc0] sm:$0x1] %vm260, %v4709
      %4728 = vst.msk [vmem:[#allocation2 + $0xd8] sm:$0x1] %vm260, %v4710
      %4729 = vst.msk [vmem:[#allocation2 + $0xf0] sm:$0x1] %vm260, %v4711
      %4730 = vst.msk [vmem:[#allocation2 + $0x108] sm:$0x1] %vm260, %v4712
      %4731 = vst.msk [vmem:[#allocation2 + $0x120] sm:$0x1] %vm260, %v4713
      %4732 = vst.msk [vmem:[#allocation2 + $0x138] sm:$0x1] %vm260, %v4714
      %4733 = vst.msk [vmem:[#allocation2 + $0x150] sm:$0x1] %vm260, %v4715
      %4734 = vst.msk [vmem:[#allocation2 + $0x168] sm:$0x1] %vm260, %v4716
      %4735 = vst.msk [vmem:[#allocation2 + $0x180] sm:$0x1] %vm260, %v4717
      %4736 = vst.msk [vmem:[#allocation2 + $0x198] sm:$0x1] %vm260, %v4718
      %v4737 = vld [vmem:[#allocation2 + $0xf] sm:$0x1]
      %v4738 = vld [vmem:[#allocation2 + $0x27] sm:$0x1]
      %v4739 = vld [vmem:[#allocation2 + $0x3f] sm:$0x1]
      %v4740 = vld [vmem:[#allocation2 + $0x57] sm:$0x1]
      %v4741 = vld [vmem:[#allocation2 + $0x6f] sm:$0x1]
      %v4742 = vld [vmem:[#allocation2 + $0x87] sm:$0x1]
      %v4743 = vld [vmem:[#allocation2 + $0x9f] sm:$0x1]
      %v4744 = vld [vmem:[#allocation2 + $0xb7] sm:$0x1]
      %v4745 = vld [vmem:[#allocation2 + $0xcf] sm:$0x1]
      %v4746 = vld [vmem:[#allocation2 + $0xe7] sm:$0x1]
      %v4747 = vld [vmem:[#allocation2 + $0xff] sm:$0x1]
      %v4748 = vld [vmem:[#allocation2 + $0x117] sm:$0x1]
      %v4749 = vld [vmem:[#allocation2 + $0x12f] sm:$0x1]
      %v4750 = vld [vmem:[#allocation2 + $0x147] sm:$0x1]
      %v4751 = vld [vmem:[#allocation2 + $0x15f] sm:$0x1]
      %v4752 = vld [vmem:[#allocation2 + $0x177] sm:$0x1]
      %v4753 = vld [vmem:[#allocation2 + $0x18f] sm:$0x1]
      %v4754 = vld [vmem:[#allocation2 + $0x1a7] sm:$0x1]
      %4755 = vst.msk [vmem:[#allocation2 + $0x11] sm:$0x1] %vm260, %v4737
      %4756 = vst.msk [vmem:[#allocation2 + $0x29] sm:$0x1] %vm260, %v4738
      %4757 = vst.msk [vmem:[#allocation2 + $0x41] sm:$0x1] %vm260, %v4739
      %4758 = vst.msk [vmem:[#allocation2 + $0x59] sm:$0x1] %vm260, %v4740
      %4759 = vst.msk [vmem:[#allocation2 + $0x71] sm:$0x1] %vm260, %v4741
      %4760 = vst.msk [vmem:[#allocation2 + $0x89] sm:$0x1] %vm260, %v4742
      %4761 = vst.msk [vmem:[#allocation2 + $0xa1] sm:$0x1] %vm260, %v4743
      %4762 = vst.msk [vmem:[#allocation2 + $0xb9] sm:$0x1] %vm260, %v4744
      %4763 = vst.msk [vmem:[#allocation2 + $0xd1] sm:$0x1] %vm260, %v4745
      %4764 = vst.msk [vmem:[#allocation2 + $0xe9] sm:$0x1] %vm260, %v4746
      %4765 = vst.msk [vmem:[#allocation2 + $0x101] sm:$0x1] %vm260, %v4747
      %4766 = vst.msk [vmem:[#allocation2 + $0x119] sm:$0x1] %vm260, %v4748
      %4767 = vst.msk [vmem:[#allocation2 + $0x131] sm:$0x1] %vm260, %v4749
      %4768 = vst.msk [vmem:[#allocation2 + $0x149] sm:$0x1] %vm260, %v4750
      %4769 = vst.msk [vmem:[#allocation2 + $0x161] sm:$0x1] %vm260, %v4751
      %4770 = vst.msk [vmem:[#allocation2 + $0x179] sm:$0x1] %vm260, %v4752
      %4771 = vst.msk [vmem:[#allocation2 + $0x191] sm:$0x1] %vm260, %v4753
      %4772 = vst.msk [vmem:[#allocation2 + $0x1a9] sm:$0x1] %vm260, %v4754
      %v4773 = vld [vmem:[#allocation2] sm:$0xff]
      %v4774 = vld [vmem:[#allocation2 + $0x8] sm:$0xff]
      %v4775 = vld [vmem:[#allocation2 + $0x18] sm:$0xff]
      %v4776 = vld [vmem:[#allocation2 + $0x20] sm:$0xff]
      %v4777 = vld [vmem:[#allocation2 + $0x30] sm:$0xff]
      %v4778 = vld [vmem:[#allocation2 + $0x38] sm:$0xff]
      %v4779 = vld [vmem:[#allocation2 + $0x48] sm:$0xff]
      %v4780 = vld [vmem:[#allocation2 + $0x50] sm:$0xff]
      %v4781 = vld [vmem:[#allocation2 + $0x60] sm:$0xff]
      %v4782 = vld [vmem:[#allocation2 + $0x68] sm:$0xff]
      %v4783 = vld [vmem:[#allocation2 + $0x78] sm:$0xff]
      %v4784 = vld [vmem:[#allocation2 + $0x80] sm:$0xff]
      %v4785 = vld [vmem:[#allocation2 + $0x90] sm:$0xff]
      %v4786 = vld [vmem:[#allocation2 + $0x98] sm:$0xff]
      %v4787 = vld [vmem:[#allocation2 + $0xa8] sm:$0xff]
      %v4788 = vld [vmem:[#allocation2 + $0xb0] sm:$0xff]
      %v4789 = vld [vmem:[#allocation2 + $0xc0] sm:$0xff]
      %v4790 = vld [vmem:[#allocation2 + $0xc8] sm:$0xff]
      %v4791 = vld [vmem:[#allocation2 + $0xd8] sm:$0xff]
      %v4792 = vld [vmem:[#allocation2 + $0xe0] sm:$0xff]
      %v4793 = vld [vmem:[#allocation2 + $0xf0] sm:$0xff]
      %v4794 = vld [vmem:[#allocation2 + $0xf8] sm:$0xff]
      %v4795 = vld [vmem:[#allocation2 + $0x108] sm:$0xff]
      %v4796 = vld [vmem:[#allocation2 + $0x110] sm:$0xff]
      %v4797 = vld [vmem:[#allocation2 + $0x120] sm:$0xff]
      %v4798 = vld [vmem:[#allocation2 + $0x128] sm:$0xff]
      %v4799 = vld [vmem:[#allocation2 + $0x138] sm:$0xff]
      %v4800 = vld [vmem:[#allocation2 + $0x140] sm:$0xff]
      %v4801 = vld [vmem:[#allocation2 + $0x150] sm:$0xff]
      %v4802 = vld [vmem:[#allocation2 + $0x158] sm:$0xff]
      %v4803 = vld [vmem:[#allocation2 + $0x168] sm:$0xff]
      %v4804 = vld [vmem:[#allocation2 + $0x170] sm:$0xff]
      %4805 = vst.msk [vmem:[#allocation3] sm:$0xff] %vm204, %v4773
      %4806 = vst.msk [vmem:[#allocation3 + $0x8] sm:$0xff] %vm204, %v4774
      %4807 = vst.msk [vmem:[#allocation3 + $0x10] sm:$0xff] %vm204, %v4775
      %4808 = vst.msk [vmem:[#allocation3 + $0x18] sm:$0xff] %vm204, %v4776
      %4809 = vst.msk [vmem:[#allocation3 + $0x20] sm:$0xff] %vm204, %v4777
      %4810 = vst.msk [vmem:[#allocation3 + $0x28] sm:$0xff] %vm204, %v4778
      %4811 = vst.msk [vmem:[#allocation3 + $0x30] sm:$0xff] %vm204, %v4779
      %4812 = vst.msk [vmem:[#allocation3 + $0x38] sm:$0xff] %vm204, %v4780
      %4813 = vst.msk [vmem:[#allocation3 + $0x40] sm:$0xff] %vm204, %v4781
      %4814 = vst.msk [vmem:[#allocation3 + $0x48] sm:$0xff] %vm204, %v4782
      %4815 = vst.msk [vmem:[#allocation3 + $0x50] sm:$0xff] %vm204, %v4783
      %4816 = vst.msk [vmem:[#allocation3 + $0x58] sm:$0xff] %vm204, %v4784
      %4817 = vst.msk [vmem:[#allocation3 + $0x60] sm:$0xff] %vm204, %v4785
      %4818 = vst.msk [vmem:[#allocation3 + $0x68] sm:$0xff] %vm204, %v4786
      %4819 = vst.msk [vmem:[#allocation3 + $0x70] sm:$0xff] %vm204, %v4787
      %4820 = vst.msk [vmem:[#allocation3 + $0x78] sm:$0xff] %vm204, %v4788
      %4821 = vst.msk [vmem:[#allocation3 + $0x80] sm:$0xff] %vm204, %v4789
      %4822 = vst.msk [vmem:[#allocation3 + $0x88] sm:$0xff] %vm204, %v4790
      %4823 = vst.msk [vmem:[#allocation3 + $0x90] sm:$0xff] %vm204, %v4791
      %4824 = vst.msk [vmem:[#allocation3 + $0x98] sm:$0xff] %vm204, %v4792
      %4825 = vst.msk [vmem:[#allocation3 + $0xa0] sm:$0xff] %vm204, %v4793
      %4826 = vst.msk [vmem:[#allocation3 + $0xa8] sm:$0xff] %vm204, %v4794
      %4827 = vst.msk [vmem:[#allocation3 + $0xb0] sm:$0xff] %vm204, %v4795
      %4828 = vst.msk [vmem:[#allocation3 + $0xb8] sm:$0xff] %vm204, %v4796
      %4829 = vst.msk [vmem:[#allocation3 + $0xc0] sm:$0xff] %vm204, %v4797
      %4830 = vst.msk [vmem:[#allocation3 + $0xc8] sm:$0xff] %vm204, %v4798
      %4831 = vst.msk [vmem:[#allocation3 + $0xd0] sm:$0xff] %vm204, %v4799
      %4832 = vst.msk [vmem:[#allocation3 + $0xd8] sm:$0xff] %vm204, %v4800
      %4833 = vst.msk [vmem:[#allocation3 + $0xe0] sm:$0xff] %vm204, %v4801
      %4834 = vst.msk [vmem:[#allocation3 + $0xe8] sm:$0xff] %vm204, %v4802
      %4835 = vst.msk [vmem:[#allocation3 + $0xf0] sm:$0xff] %vm204, %v4803
      %4836 = vst.msk [vmem:[#allocation3 + $0xf8] sm:$0xff] %vm204, %v4804
      %v4837 = vld [vmem:[#allocation2 + $0x1] sm:$0xff]
      %v4838 = vld [vmem:[#allocation2 + $0x9] sm:$0xff]
      %v4839 = vld [vmem:[#allocation2 + $0x19] sm:$0xff]
      %v4840 = vld [vmem:[#allocation2 + $0x21] sm:$0xff]
      %v4841 = vld [vmem:[#allocation2 + $0x31] sm:$0xff]
      %v4842 = vld [vmem:[#allocation2 + $0x39] sm:$0xff]
      %v4843 = vld [vmem:[#allocation2 + $0x49] sm:$0xff]
      %v4844 = vld [vmem:[#allocation2 + $0x51] sm:$0xff]
      %v4845 = vld [vmem:[#allocation2 + $0x61] sm:$0xff]
      %v4846 = vld [vmem:[#allocation2 + $0x69] sm:$0xff]
      %v4847 = vld [vmem:[#allocation2 + $0x79] sm:$0xff]
      %v4848 = vld [vmem:[#allocation2 + $0x81] sm:$0xff]
      %v4849 = vld [vmem:[#allocation2 + $0x91] sm:$0xff]
      %v4850 = vld [vmem:[#allocation2 + $0x99] sm:$0xff]
      %v4851 = vld [vmem:[#allocation2 + $0xa9] sm:$0xff]
      %v4852 = vld [vmem:[#allocation2 + $0xb1] sm:$0xff]
      %v4853 = vld [vmem:[#allocation2 + $0xc1] sm:$0xff]
      %v4854 = vld [vmem:[#allocation2 + $0xc9] sm:$0xff]
      %v4855 = vld [vmem:[#allocation2 + $0xd9] sm:$0xff]
      %v4856 = vld [vmem:[#allocation2 + $0xe1] sm:$0xff]
      %v4857 = vld [vmem:[#allocation2 + $0xf1] sm:$0xff]
      %v4858 = vld [vmem:[#allocation2 + $0xf9] sm:$0xff]
      %v4859 = vld [vmem:[#allocation2 + $0x109] sm:$0xff]
      %v4860 = vld [vmem:[#allocation2 + $0x111] sm:$0xff]
      %v4861 = vld [vmem:[#allocation2 + $0x121] sm:$0xff]
      %v4862 = vld [vmem:[#allocation2 + $0x129] sm:$0xff]
      %v4863 = vld [vmem:[#allocation2 + $0x139] sm:$0xff]
      %v4864 = vld [vmem:[#allocation2 + $0x141] sm:$0xff]
      %v4865 = vld [vmem:[#allocation2 + $0x151] sm:$0xff]
      %v4866 = vld [vmem:[#allocation2 + $0x159] sm:$0xff]
      %v4867 = vld [vmem:[#allocation2 + $0x169] sm:$0xff]
      %v4868 = vld [vmem:[#allocation2 + $0x171] sm:$0xff]
      %4901 = vrot.lane.b32.xlu0 %v4837, 4
      %v4902 = vpop.permute.xlu0 %4901
      %4903 = vrot.lane.b32.xlu0 %v4838, 4
      %v4904 = vpop.permute.xlu0 %4903
      %4905 = vrot.lane.b32.xlu0 %v4839, 4
      %v4906 = vpop.permute.xlu0 %4905
      %4907 = vrot.lane.b32.xlu0 %v4840, 4
      %v4908 = vpop.permute.xlu0 %4907
      %4909 = vrot.lane.b32.xlu0 %v4841, 4
      %v4910 = vpop.permute.xlu0 %4909
      %4911 = vrot.lane.b32.xlu0 %v4842, 4
      %v4912 = vpop.permute.xlu0 %4911
      %4913 = vrot.lane.b32.xlu0 %v4843, 4
      %v4914 = vpop.permute.xlu0 %4913
      %4915 = vrot.lane.b32.xlu0 %v4844, 4
      %v4916 = vpop.permute.xlu0 %4915
      %4917 = vrot.lane.b32.xlu0 %v4845, 4
      %v4918 = vpop.permute.xlu0 %4917
      %4919 = vrot.lane.b32.xlu0 %v4846, 4
      %v4920 = vpop.permute.xlu0 %4919
      %4921 = vrot.lane.b32.xlu0 %v4847, 4
      %v4922 = vpop.permute.xlu0 %4921
      %4923 = vrot.lane.b32.xlu0 %v4848, 4
      %v4924 = vpop.permute.xlu0 %4923
      %4925 = vrot.lane.b32.xlu0 %v4849, 4
      %v4926 = vpop.permute.xlu0 %4925
      %4927 = vrot.lane.b32.xlu0 %v4850, 4
      %v4928 = vpop.permute.xlu0 %4927
      %4929 = vrot.lane.b32.xlu0 %v4851, 4
      %v4930 = vpop.permute.xlu0 %4929
      %4931 = vrot.lane.b32.xlu0 %v4852, 4
      %v4932 = vpop.permute.xlu0 %4931
      %4933 = vrot.lane.b32.xlu0 %v4853, 4
      %v4934 = vpop.permute.xlu0 %4933
      %4935 = vrot.lane.b32.xlu0 %v4854, 4
      %v4936 = vpop.permute.xlu0 %4935
      %4937 = vrot.lane.b32.xlu0 %v4855, 4
      %v4938 = vpop.permute.xlu0 %4937
      %4939 = vrot.lane.b32.xlu0 %v4856, 4
      %v4940 = vpop.permute.xlu0 %4939
      %4941 = vrot.lane.b32.xlu0 %v4857, 4
      %v4942 = vpop.permute.xlu0 %4941
      %4943 = vrot.lane.b32.xlu0 %v4858, 4
      %v4944 = vpop.permute.xlu0 %4943
      %4945 = vrot.lane.b32.xlu0 %v4859, 4
      %v4946 = vpop.permute.xlu0 %4945
      %4947 = vrot.lane.b32.xlu0 %v4860, 4
      %v4948 = vpop.permute.xlu0 %4947
      %4949 = vrot.lane.b32.xlu0 %v4861, 4
      %v4950 = vpop.permute.xlu0 %4949
      %4951 = vrot.lane.b32.xlu0 %v4862, 4
      %v4952 = vpop.permute.xlu0 %4951
      %4953 = vrot.lane.b32.xlu0 %v4863, 4
      %v4954 = vpop.permute.xlu0 %4953
      %4955 = vrot.lane.b32.xlu0 %v4864, 4
      %v4956 = vpop.permute.xlu0 %4955
      %4957 = vrot.lane.b32.xlu0 %v4865, 4
      %v4958 = vpop.permute.xlu0 %4957
      %4959 = vrot.lane.b32.xlu0 %v4866, 4
      %v4960 = vpop.permute.xlu0 %4959
      %4961 = vrot.lane.b32.xlu0 %v4867, 4
      %v4962 = vpop.permute.xlu0 %4961
      %4963 = vrot.lane.b32.xlu0 %v4868, 4
      %v4964 = vpop.permute.xlu0 %4963
      %4997 = vst.msk [vmem:[#allocation3] sm:$0xff] %vm539, %v4902
      %4998 = vst.msk [vmem:[#allocation3 + $0x8] sm:$0xff] %vm539, %v4904
      %4999 = vst.msk [vmem:[#allocation3 + $0x10] sm:$0xff] %vm539, %v4906
      %5000 = vst.msk [vmem:[#allocation3 + $0x18] sm:$0xff] %vm539, %v4908
      %5001 = vst.msk [vmem:[#allocation3 + $0x20] sm:$0xff] %vm539, %v4910
      %5002 = vst.msk [vmem:[#allocation3 + $0x28] sm:$0xff] %vm539, %v4912
      %5003 = vst.msk [vmem:[#allocation3 + $0x30] sm:$0xff] %vm539, %v4914
      %5004 = vst.msk [vmem:[#allocation3 + $0x38] sm:$0xff] %vm539, %v4916
      %5005 = vst.msk [vmem:[#allocation3 + $0x40] sm:$0xff] %vm539, %v4918
      %5006 = vst.msk [vmem:[#allocation3 + $0x48] sm:$0xff] %vm539, %v4920
      %5007 = vst.msk [vmem:[#allocation3 + $0x50] sm:$0xff] %vm539, %v4922
      %5008 = vst.msk [vmem:[#allocation3 + $0x58] sm:$0xff] %vm539, %v4924
      %5009 = vst.msk [vmem:[#allocation3 + $0x60] sm:$0xff] %vm539, %v4926
      %5010 = vst.msk [vmem:[#allocation3 + $0x68] sm:$0xff] %vm539, %v4928
      %5011 = vst.msk [vmem:[#allocation3 + $0x70] sm:$0xff] %vm539, %v4930
      %5012 = vst.msk [vmem:[#allocation3 + $0x78] sm:$0xff] %vm539, %v4932
      %5013 = vst.msk [vmem:[#allocation3 + $0x80] sm:$0xff] %vm539, %v4934
      %5014 = vst.msk [vmem:[#allocation3 + $0x88] sm:$0xff] %vm539, %v4936
      %5015 = vst.msk [vmem:[#allocation3 + $0x90] sm:$0xff] %vm539, %v4938
      %5016 = vst.msk [vmem:[#allocation3 + $0x98] sm:$0xff] %vm539, %v4940
      %5017 = vst.msk [vmem:[#allocation3 + $0xa0] sm:$0xff] %vm539, %v4942
      %5018 = vst.msk [vmem:[#allocation3 + $0xa8] sm:$0xff] %vm539, %v4944
      %5019 = vst.msk [vmem:[#allocation3 + $0xb0] sm:$0xff] %vm539, %v4946
      %5020 = vst.msk [vmem:[#allocation3 + $0xb8] sm:$0xff] %vm539, %v4948
      %5021 = vst.msk [vmem:[#allocation3 + $0xc0] sm:$0xff] %vm539, %v4950
      %5022 = vst.msk [vmem:[#allocation3 + $0xc8] sm:$0xff] %vm539, %v4952
      %5023 = vst.msk [vmem:[#allocation3 + $0xd0] sm:$0xff] %vm539, %v4954
      %5024 = vst.msk [vmem:[#allocation3 + $0xd8] sm:$0xff] %vm539, %v4956
      %5025 = vst.msk [vmem:[#allocation3 + $0xe0] sm:$0xff] %vm539, %v4958
      %5026 = vst.msk [vmem:[#allocation3 + $0xe8] sm:$0xff] %vm539, %v4960
      %5027 = vst.msk [vmem:[#allocation3 + $0xf0] sm:$0xff] %vm539, %v4962
      %5028 = vst.msk [vmem:[#allocation3 + $0xf8] sm:$0xff] %vm539, %v4964
      %v5029 = vld [vmem:[#allocation2 + $0x2] sm:$0xff]
      %v5030 = vld [vmem:[#allocation2 + $0xa] sm:$0xff]
      %v5031 = vld [vmem:[#allocation2 + $0x1a] sm:$0xff]
      %v5032 = vld [vmem:[#allocation2 + $0x22] sm:$0xff]
      %v5033 = vld [vmem:[#allocation2 + $0x32] sm:$0xff]
      %v5034 = vld [vmem:[#allocation2 + $0x3a] sm:$0xff]
      %v5035 = vld [vmem:[#allocation2 + $0x4a] sm:$0xff]
      %v5036 = vld [vmem:[#allocation2 + $0x52] sm:$0xff]
      %v5037 = vld [vmem:[#allocation2 + $0x62] sm:$0xff]
      %v5038 = vld [vmem:[#allocation2 + $0x6a] sm:$0xff]
      %v5039 = vld [vmem:[#allocation2 + $0x7a] sm:$0xff]
      %v5040 = vld [vmem:[#allocation2 + $0x82] sm:$0xff]
      %v5041 = vld [vmem:[#allocation2 + $0x92] sm:$0xff]
      %v5042 = vld [vmem:[#allocation2 + $0x9a] sm:$0xff]
      %v5043 = vld [vmem:[#allocation2 + $0xaa] sm:$0xff]
      %v5044 = vld [vmem:[#allocation2 + $0xb2] sm:$0xff]
      %v5045 = vld [vmem:[#allocation2 + $0xc2] sm:$0xff]
      %v5046 = vld [vmem:[#allocation2 + $0xca] sm:$0xff]
      %v5047 = vld [vmem:[#allocation2 + $0xda] sm:$0xff]
      %v5048 = vld [vmem:[#allocation2 + $0xe2] sm:$0xff]
      %v5049 = vld [vmem:[#allocation2 + $0xf2] sm:$0xff]
      %v5050 = vld [vmem:[#allocation2 + $0xfa] sm:$0xff]
      %v5051 = vld [vmem:[#allocation2 + $0x10a] sm:$0xff]
      %v5052 = vld [vmem:[#allocation2 + $0x112] sm:$0xff]
      %v5053 = vld [vmem:[#allocation2 + $0x122] sm:$0xff]
      %v5054 = vld [vmem:[#allocation2 + $0x12a] sm:$0xff]
      %v5055 = vld [vmem:[#allocation2 + $0x13a] sm:$0xff]
      %v5056 = vld [vmem:[#allocation2 + $0x142] sm:$0xff]
      %v5057 = vld [vmem:[#allocation2 + $0x152] sm:$0xff]
      %v5058 = vld [vmem:[#allocation2 + $0x15a] sm:$0xff]
      %v5059 = vld [vmem:[#allocation2 + $0x16a] sm:$0xff]
      %v5060 = vld [vmem:[#allocation2 + $0x172] sm:$0xff]
      %5093 = vrot.lane.b32.xlu0 %v5029, 8
      %v5094 = vpop.permute.xlu0 %5093
      %5095 = vrot.lane.b32.xlu0 %v5030, 8
      %v5096 = vpop.permute.xlu0 %5095
      %5097 = vrot.lane.b32.xlu0 %v5031, 8
      %v5098 = vpop.permute.xlu0 %5097
      %5099 = vrot.lane.b32.xlu0 %v5032, 8
      %v5100 = vpop.permute.xlu0 %5099
      %5101 = vrot.lane.b32.xlu0 %v5033, 8
      %v5102 = vpop.permute.xlu0 %5101
      %5103 = vrot.lane.b32.xlu0 %v5034, 8
      %v5104 = vpop.permute.xlu0 %5103
      %5105 = vrot.lane.b32.xlu0 %v5035, 8
      %v5106 = vpop.permute.xlu0 %5105
      %5107 = vrot.lane.b32.xlu0 %v5036, 8
      %v5108 = vpop.permute.xlu0 %5107
      %5109 = vrot.lane.b32.xlu0 %v5037, 8
      %v5110 = vpop.permute.xlu0 %5109
      %5111 = vrot.lane.b32.xlu0 %v5038, 8
      %v5112 = vpop.permute.xlu0 %5111
      %5113 = vrot.lane.b32.xlu0 %v5039, 8
      %v5114 = vpop.permute.xlu0 %5113
      %5115 = vrot.lane.b32.xlu0 %v5040, 8
      %v5116 = vpop.permute.xlu0 %5115
      %5117 = vrot.lane.b32.xlu0 %v5041, 8
      %v5118 = vpop.permute.xlu0 %5117
      %5119 = vrot.lane.b32.xlu0 %v5042, 8
      %v5120 = vpop.permute.xlu0 %5119
      %5121 = vrot.lane.b32.xlu0 %v5043, 8
      %v5122 = vpop.permute.xlu0 %5121
      %5123 = vrot.lane.b32.xlu0 %v5044, 8
      %v5124 = vpop.permute.xlu0 %5123
      %5125 = vrot.lane.b32.xlu0 %v5045, 8
      %v5126 = vpop.permute.xlu0 %5125
      %5127 = vrot.lane.b32.xlu0 %v5046, 8
      %v5128 = vpop.permute.xlu0 %5127
      %5129 = vrot.lane.b32.xlu0 %v5047, 8
      %v5130 = vpop.permute.xlu0 %5129
      %5131 = vrot.lane.b32.xlu0 %v5048, 8
      %v5132 = vpop.permute.xlu0 %5131
      %5133 = vrot.lane.b32.xlu0 %v5049, 8
      %v5134 = vpop.permute.xlu0 %5133
      %5135 = vrot.lane.b32.xlu0 %v5050, 8
      %v5136 = vpop.permute.xlu0 %5135
      %5137 = vrot.lane.b32.xlu0 %v5051, 8
      %v5138 = vpop.permute.xlu0 %5137
      %5139 = vrot.lane.b32.xlu0 %v5052, 8
      %v5140 = vpop.permute.xlu0 %5139
      %5141 = vrot.lane.b32.xlu0 %v5053, 8
      %v5142 = vpop.permute.xlu0 %5141
      %5143 = vrot.lane.b32.xlu0 %v5054, 8
      %v5144 = vpop.permute.xlu0 %5143
      %5145 = vrot.lane.b32.xlu0 %v5055, 8
      %v5146 = vpop.permute.xlu0 %5145
      %5147 = vrot.lane.b32.xlu0 %v5056, 8
      %v5148 = vpop.permute.xlu0 %5147
      %5149 = vrot.lane.b32.xlu0 %v5057, 8
      %v5150 = vpop.permute.xlu0 %5149
      %5151 = vrot.lane.b32.xlu0 %v5058, 8
      %v5152 = vpop.permute.xlu0 %5151
      %5153 = vrot.lane.b32.xlu0 %v5059, 8
      %v5154 = vpop.permute.xlu0 %5153
      %5155 = vrot.lane.b32.xlu0 %v5060, 8
      %v5156 = vpop.permute.xlu0 %5155
      %5189 = vst.msk [vmem:[#allocation3] sm:$0xff] %vm732, %v5094
      %5190 = vst.msk [vmem:[#allocation3 + $0x8] sm:$0xff] %vm732, %v5096
      %5191 = vst.msk [vmem:[#allocation3 + $0x10] sm:$0xff] %vm732, %v5098
      %5192 = vst.msk [vmem:[#allocation3 + $0x18] sm:$0xff] %vm732, %v5100
      %5193 = vst.msk [vmem:[#allocation3 + $0x20] sm:$0xff] %vm732, %v5102
      %5194 = vst.msk [vmem:[#allocation3 + $0x28] sm:$0xff] %vm732, %v5104
      %5195 = vst.msk [vmem:[#allocation3 + $0x30] sm:$0xff] %vm732, %v5106
      %5196 = vst.msk [vmem:[#allocation3 + $0x38] sm:$0xff] %vm732, %v5108
      %5197 = vst.msk [vmem:[#allocation3 + $0x40] sm:$0xff] %vm732, %v5110
      %5198 = vst.msk [vmem:[#allocation3 + $0x48] sm:$0xff] %vm732, %v5112
      %5199 = vst.msk [vmem:[#allocation3 + $0x50] sm:$0xff] %vm732, %v5114
      %5200 = vst.msk [vmem:[#allocation3 + $0x58] sm:$0xff] %vm732, %v5116
      %5201 = vst.msk [vmem:[#allocation3 + $0x60] sm:$0xff] %vm732, %v5118
      %5202 = vst.msk [vmem:[#allocation3 + $0x68] sm:$0xff] %vm732, %v5120
      %5203 = vst.msk [vmem:[#allocation3 + $0x70] sm:$0xff] %vm732, %v5122
      %5204 = vst.msk [vmem:[#allocation3 + $0x78] sm:$0xff] %vm732, %v5124
      %5205 = vst.msk [vmem:[#allocation3 + $0x80] sm:$0xff] %vm732, %v5126
      %5206 = vst.msk [vmem:[#allocation3 + $0x88] sm:$0xff] %vm732, %v5128
      %5207 = vst.msk [vmem:[#allocation3 + $0x90] sm:$0xff] %vm732, %v5130
      %5208 = vst.msk [vmem:[#allocation3 + $0x98] sm:$0xff] %vm732, %v5132
      %5209 = vst.msk [vmem:[#allocation3 + $0xa0] sm:$0xff] %vm732, %v5134
      %5210 = vst.msk [vmem:[#allocation3 + $0xa8] sm:$0xff] %vm732, %v5136
      %5211 = vst.msk [vmem:[#allocation3 + $0xb0] sm:$0xff] %vm732, %v5138
      %5212 = vst.msk [vmem:[#allocation3 + $0xb8] sm:$0xff] %vm732, %v5140
      %5213 = vst.msk [vmem:[#allocation3 + $0xc0] sm:$0xff] %vm732, %v5142
      %5214 = vst.msk [vmem:[#allocation3 + $0xc8] sm:$0xff] %vm732, %v5144
      %5215 = vst.msk [vmem:[#allocation3 + $0xd0] sm:$0xff] %vm732, %v5146
      %5216 = vst.msk [vmem:[#allocation3 + $0xd8] sm:$0xff] %vm732, %v5148
      %5217 = vst.msk [vmem:[#allocation3 + $0xe0] sm:$0xff] %vm732, %v5150
      %5218 = vst.msk [vmem:[#allocation3 + $0xe8] sm:$0xff] %vm732, %v5152
      %5219 = vst.msk [vmem:[#allocation3 + $0xf0] sm:$0xff] %vm732, %v5154
      %5220 = vst.msk [vmem:[#allocation3 + $0xf8] sm:$0xff] %vm732, %v5156
      %v5221 = vld [vmem:[%s203] sm:$0xff]
      %v5222 = vld [vmem:[%s203 + $0x8] sm:$0xff]
      %v5223 = vld [vmem:[%s203 + $0x18] sm:$0xff]
      %v5224 = vld [vmem:[%s203 + $0x20] sm:$0xff]
      %v5225 = vld [vmem:[%s203 + $0x30] sm:$0xff]
      %v5226 = vld [vmem:[%s203 + $0x38] sm:$0xff]
      %v5227 = vld [vmem:[%s203 + $0x48] sm:$0xff]
      %v5228 = vld [vmem:[%s203 + $0x50] sm:$0xff]
      %v5229 = vld [vmem:[%s203 + $0x60] sm:$0xff]
      %v5230 = vld [vmem:[%s203 + $0x68] sm:$0xff]
      %v5231 = vld [vmem:[%s203 + $0x78] sm:$0xff]
      %v5232 = vld [vmem:[%s203 + $0x80] sm:$0xff]
      %v5233 = vld [vmem:[%s203 + $0x90] sm:$0xff]
      %v5234 = vld [vmem:[%s203 + $0x98] sm:$0xff]
      %v5235 = vld [vmem:[%s203 + $0xa8] sm:$0xff]
      %v5236 = vld [vmem:[%s203 + $0xb0] sm:$0xff]
      %v5237 = vld [vmem:[%s203 + $0xc0] sm:$0xff]
      %v5238 = vld [vmem:[%s203 + $0xc8] sm:$0xff]
      %v5239 = vld [vmem:[%s203 + $0xd8] sm:$0xff]
      %v5240 = vld [vmem:[%s203 + $0xe0] sm:$0xff]
      %v5241 = vld [vmem:[%s203 + $0xf0] sm:$0xff]
      %v5242 = vld [vmem:[%s203 + $0xf8] sm:$0xff]
      %v5243 = vld [vmem:[%s203 + $0x108] sm:$0xff]
      %v5244 = vld [vmem:[%s203 + $0x110] sm:$0xff]
      %v5245 = vld [vmem:[%s203 + $0x120] sm:$0xff]
      %v5246 = vld [vmem:[%s203 + $0x128] sm:$0xff]
      %v5247 = vld [vmem:[%s203 + $0x138] sm:$0xff]
      %v5248 = vld [vmem:[%s203 + $0x140] sm:$0xff]
      %v5249 = vld [vmem:[%s203 + $0x150] sm:$0xff]
      %v5250 = vld [vmem:[%s203 + $0x158] sm:$0xff]
      %v5251 = vld [vmem:[%s203 + $0x168] sm:$0xff]
      %v5252 = vld [vmem:[%s203 + $0x170] sm:$0xff]
      %5285 = vrot.lane.b32.xlu0 %v5221, 12
      %v5286 = vpop.permute.xlu0 %5285
      %5287 = vrot.lane.b32.xlu0 %v5222, 12
      %v5288 = vpop.permute.xlu0 %5287
      %5289 = vrot.lane.b32.xlu0 %v5223, 12
      %v5290 = vpop.permute.xlu0 %5289
      %5291 = vrot.lane.b32.xlu0 %v5224, 12
      %v5292 = vpop.permute.xlu0 %5291
      %5293 = vrot.lane.b32.xlu0 %v5225, 12
      %v5294 = vpop.permute.xlu0 %5293
      %5295 = vrot.lane.b32.xlu0 %v5226, 12
      %v5296 = vpop.permute.xlu0 %5295
      %5297 = vrot.lane.b32.xlu0 %v5227, 12
      %v5298 = vpop.permute.xlu0 %5297
      %5299 = vrot.lane.b32.xlu0 %v5228, 12
      %v5300 = vpop.permute.xlu0 %5299
      %5301 = vrot.lane.b32.xlu0 %v5229, 12
      %v5302 = vpop.permute.xlu0 %5301
      %5303 = vrot.lane.b32.xlu0 %v5230, 12
      %v5304 = vpop.permute.xlu0 %5303
      %5305 = vrot.lane.b32.xlu0 %v5231, 12
      %v5306 = vpop.permute.xlu0 %5305
      %5307 = vrot.lane.b32.xlu0 %v5232, 12
      %v5308 = vpop.permute.xlu0 %5307
      %5309 = vrot.lane.b32.xlu0 %v5233, 12
      %v5310 = vpop.permute.xlu0 %5309
      %5311 = vrot.lane.b32.xlu0 %v5234, 12
      %v5312 = vpop.permute.xlu0 %5311
      %5313 = vrot.lane.b32.xlu0 %v5235, 12
      %v5314 = vpop.permute.xlu0 %5313
      %5315 = vrot.lane.b32.xlu0 %v5236, 12
      %v5316 = vpop.permute.xlu0 %5315
      %5317 = vrot.lane.b32.xlu0 %v5237, 12
      %v5318 = vpop.permute.xlu0 %5317
      %5319 = vrot.lane.b32.xlu0 %v5238, 12
      %v5320 = vpop.permute.xlu0 %5319
      %5321 = vrot.lane.b32.xlu0 %v5239, 12
      %v5322 = vpop.permute.xlu0 %5321
      %5323 = vrot.lane.b32.xlu0 %v5240, 12
      %v5324 = vpop.permute.xlu0 %5323
      %5325 = vrot.lane.b32.xlu0 %v5241, 12
      %v5326 = vpop.permute.xlu0 %5325
      %5327 = vrot.lane.b32.xlu0 %v5242, 12
      %v5328 = vpop.permute.xlu0 %5327
      %5329 = vrot.lane.b32.xlu0 %v5243, 12
      %v5330 = vpop.permute.xlu0 %5329
      %5331 = vrot.lane.b32.xlu0 %v5244, 12
      %v5332 = vpop.permute.xlu0 %5331
      %5333 = vrot.lane.b32.xlu0 %v5245, 12
      %v5334 = vpop.permute.xlu0 %5333
      %5335 = vrot.lane.b32.xlu0 %v5246, 12
      %v5336 = vpop.permute.xlu0 %5335
      %5337 = vrot.lane.b32.xlu0 %v5247, 12
      %v5338 = vpop.permute.xlu0 %5337
      %5339 = vrot.lane.b32.xlu0 %v5248, 12
      %v5340 = vpop.permute.xlu0 %5339
      %5341 = vrot.lane.b32.xlu0 %v5249, 12
      %v5342 = vpop.permute.xlu0 %5341
      %5343 = vrot.lane.b32.xlu0 %v5250, 12
      %v5344 = vpop.permute.xlu0 %5343
      %5345 = vrot.lane.b32.xlu0 %v5251, 12
      %v5346 = vpop.permute.xlu0 %5345
      %5347 = vrot.lane.b32.xlu0 %v5252, 12
      %v5348 = vpop.permute.xlu0 %5347
      %5381 = vst.msk [vmem:[#allocation3] sm:$0xff] %vm925, %v5286
      %5382 = vst.msk [vmem:[#allocation3 + $0x8] sm:$0xff] %vm925, %v5288
      %5383 = vst.msk [vmem:[#allocation3 + $0x10] sm:$0xff] %vm925, %v5290
      %5384 = vst.msk [vmem:[#allocation3 + $0x18] sm:$0xff] %vm925, %v5292
      %5385 = vst.msk [vmem:[#allocation3 + $0x20] sm:$0xff] %vm925, %v5294
      %5386 = vst.msk [vmem:[#allocation3 + $0x28] sm:$0xff] %vm925, %v5296
      %5387 = vst.msk [vmem:[#allocation3 + $0x30] sm:$0xff] %vm925, %v5298
      %5388 = vst.msk [vmem:[#allocation3 + $0x38] sm:$0xff] %vm925, %v5300
      %5389 = vst.msk [vmem:[#allocation3 + $0x40] sm:$0xff] %vm925, %v5302
      %5390 = vst.msk [vmem:[#allocation3 + $0x48] sm:$0xff] %vm925, %v5304
      %5391 = vst.msk [vmem:[#allocation3 + $0x50] sm:$0xff] %vm925, %v5306
      %5392 = vst.msk [vmem:[#allocation3 + $0x58] sm:$0xff] %vm925, %v5308
      %5393 = vst.msk [vmem:[#allocation3 + $0x60] sm:$0xff] %vm925, %v5310
      %5394 = vst.msk [vmem:[#allocation3 + $0x68] sm:$0xff] %vm925, %v5312
      %5395 = vst.msk [vmem:[#allocation3 + $0x70] sm:$0xff] %vm925, %v5314
      %5396 = vst.msk [vmem:[#allocation3 + $0x78] sm:$0xff] %vm925, %v5316
      %5397 = vst.msk [vmem:[#allocation3 + $0x80] sm:$0xff] %vm925, %v5318
      %5398 = vst.msk [vmem:[#allocation3 + $0x88] sm:$0xff] %vm925, %v5320
      %5399 = vst.msk [vmem:[#allocation3 + $0x90] sm:$0xff] %vm925, %v5322
      %5400 = vst.msk [vmem:[#allocation3 + $0x98] sm:$0xff] %vm925, %v5324
      %5401 = vst.msk [vmem:[#allocation3 + $0xa0] sm:$0xff] %vm925, %v5326
      %5402 = vst.msk [vmem:[#allocation3 + $0xa8] sm:$0xff] %vm925, %v5328
      %5403 = vst.msk [vmem:[#allocation3 + $0xb0] sm:$0xff] %vm925, %v5330
      %5404 = vst.msk [vmem:[#allocation3 + $0xb8] sm:$0xff] %vm925, %v5332
      %5405 = vst.msk [vmem:[#allocation3 + $0xc0] sm:$0xff] %vm925, %v5334
      %5406 = vst.msk [vmem:[#allocation3 + $0xc8] sm:$0xff] %vm925, %v5336
      %5407 = vst.msk [vmem:[#allocation3 + $0xd0] sm:$0xff] %vm925, %v5338
      %5408 = vst.msk [vmem:[#allocation3 + $0xd8] sm:$0xff] %vm925, %v5340
      %5409 = vst.msk [vmem:[#allocation3 + $0xe0] sm:$0xff] %vm925, %v5342
      %5410 = vst.msk [vmem:[#allocation3 + $0xe8] sm:$0xff] %vm925, %v5344
      %5411 = vst.msk [vmem:[#allocation3 + $0xf0] sm:$0xff] %vm925, %v5346
      %5412 = vst.msk [vmem:[#allocation3 + $0xf8] sm:$0xff] %vm925, %v5348
      %v5413 = vld [vmem:[%s203 + $0x1] sm:$0xff]
      %v5414 = vld [vmem:[%s203 + $0x9] sm:$0xff]
      %v5415 = vld [vmem:[%s203 + $0x19] sm:$0xff]
      %v5416 = vld [vmem:[%s203 + $0x21] sm:$0xff]
      %v5417 = vld [vmem:[%s203 + $0x31] sm:$0xff]
      %v5418 = vld [vmem:[%s203 + $0x39] sm:$0xff]
      %v5419 = vld [vmem:[%s203 + $0x49] sm:$0xff]
      %v5420 = vld [vmem:[%s203 + $0x51] sm:$0xff]
      %v5421 = vld [vmem:[%s203 + $0x61] sm:$0xff]
      %v5422 = vld [vmem:[%s203 + $0x69] sm:$0xff]
      %v5423 = vld [vmem:[%s203 + $0x79] sm:$0xff]
      %v5424 = vld [vmem:[%s203 + $0x81] sm:$0xff]
      %v5425 = vld [vmem:[%s203 + $0x91] sm:$0xff]
      %v5426 = vld [vmem:[%s203 + $0x99] sm:$0xff]
      %v5427 = vld [vmem:[%s203 + $0xa9] sm:$0xff]
      %v5428 = vld [vmem:[%s203 + $0xb1] sm:$0xff]
      %v5429 = vld [vmem:[%s203 + $0xc1] sm:$0xff]
      %v5430 = vld [vmem:[%s203 + $0xc9] sm:$0xff]
      %v5431 = vld [vmem:[%s203 + $0xd9] sm:$0xff]
      %v5432 = vld [vmem:[%s203 + $0xe1] sm:$0xff]
      %v5433 = vld [vmem:[%s203 + $0xf1] sm:$0xff]
      %v5434 = vld [vmem:[%s203 + $0xf9] sm:$0xff]
      %v5435 = vld [vmem:[%s203 + $0x109] sm:$0xff]
      %v5436 = vld [vmem:[%s203 + $0x111] sm:$0xff]
      %v5437 = vld [vmem:[%s203 + $0x121] sm:$0xff]
      %v5438 = vld [vmem:[%s203 + $0x129] sm:$0xff]
      %v5439 = vld [vmem:[%s203 + $0x139] sm:$0xff]
      %v5440 = vld [vmem:[%s203 + $0x141] sm:$0xff]
      %v5441 = vld [vmem:[%s203 + $0x151] sm:$0xff]
      %v5442 = vld [vmem:[%s203 + $0x159] sm:$0xff]
      %v5443 = vld [vmem:[%s203 + $0x169] sm:$0xff]
      %v5444 = vld [vmem:[%s203 + $0x171] sm:$0xff]
      %5477 = vrot.lane.b32.xlu0 %v5413, 16
      %v5478 = vpop.permute.xlu0 %5477
      %5479 = vrot.lane.b32.xlu0 %v5414, 16
      %v5480 = vpop.permute.xlu0 %5479
      %5481 = vrot.lane.b32.xlu0 %v5415, 16
      %v5482 = vpop.permute.xlu0 %5481
      %5483 = vrot.lane.b32.xlu0 %v5416, 16
      %v5484 = vpop.permute.xlu0 %5483
      %5485 = vrot.lane.b32.xlu0 %v5417, 16
      %v5486 = vpop.permute.xlu0 %5485
      %5487 = vrot.lane.b32.xlu0 %v5418, 16
      %v5488 = vpop.permute.xlu0 %5487
      %5489 = vrot.lane.b32.xlu0 %v5419, 16
      %v5490 = vpop.permute.xlu0 %5489
      %5491 = vrot.lane.b32.xlu0 %v5420, 16
      %v5492 = vpop.permute.xlu0 %5491
      %5493 = vrot.lane.b32.xlu0 %v5421, 16
      %v5494 = vpop.permute.xlu0 %5493
      %5495 = vrot.lane.b32.xlu0 %v5422, 16
      %v5496 = vpop.permute.xlu0 %5495
      %5497 = vrot.lane.b32.xlu0 %v5423, 16
      %v5498 = vpop.permute.xlu0 %5497
      %5499 = vrot.lane.b32.xlu0 %v5424, 16
      %v5500 = vpop.permute.xlu0 %5499
      %5501 = vrot.lane.b32.xlu0 %v5425, 16
      %v5502 = vpop.permute.xlu0 %5501
      %5503 = vrot.lane.b32.xlu0 %v5426, 16
      %v5504 = vpop.permute.xlu0 %5503
      %5505 = vrot.lane.b32.xlu0 %v5427, 16
      %v5506 = vpop.permute.xlu0 %5505
      %5507 = vrot.lane.b32.xlu0 %v5428, 16
      %v5508 = vpop.permute.xlu0 %5507
      %5509 = vrot.lane.b32.xlu0 %v5429, 16
      %v5510 = vpop.permute.xlu0 %5509
      %5511 = vrot.lane.b32.xlu0 %v5430, 16
      %v5512 = vpop.permute.xlu0 %5511
      %5513 = vrot.lane.b32.xlu0 %v5431, 16
      %v5514 = vpop.permute.xlu0 %5513
      %5515 = vrot.lane.b32.xlu0 %v5432, 16
      %v5516 = vpop.permute.xlu0 %5515
      %5517 = vrot.lane.b32.xlu0 %v5433, 16
      %v5518 = vpop.permute.xlu0 %5517
      %5519 = vrot.lane.b32.xlu0 %v5434, 16
      %v5520 = vpop.permute.xlu0 %5519
      %5521 = vrot.lane.b32.xlu0 %v5435, 16
      %v5522 = vpop.permute.xlu0 %5521
      %5523 = vrot.lane.b32.xlu0 %v5436, 16
      %v5524 = vpop.permute.xlu0 %5523
      %5525 = vrot.lane.b32.xlu0 %v5437, 16
      %v5526 = vpop.permute.xlu0 %5525
      %5527 = vrot.lane.b32.xlu0 %v5438, 16
      %v5528 = vpop.permute.xlu0 %5527
      %5529 = vrot.lane.b32.xlu0 %v5439, 16
      %v5530 = vpop.permute.xlu0 %5529
      %5531 = vrot.lane.b32.xlu0 %v5440, 16
      %v5532 = vpop.permute.xlu0 %5531
      %5533 = vrot.lane.b32.xlu0 %v5441, 16
      %v5534 = vpop.permute.xlu0 %5533
      %5535 = vrot.lane.b32.xlu0 %v5442, 16
      %v5536 = vpop.permute.xlu0 %5535
      %5537 = vrot.lane.b32.xlu0 %v5443, 16
      %v5538 = vpop.permute.xlu0 %5537
      %5539 = vrot.lane.b32.xlu0 %v5444, 16
      %v5540 = vpop.permute.xlu0 %5539
      %5573 = vst.msk [vmem:[#allocation3] sm:$0xff] %vm1118, %v5478
      %5574 = vst.msk [vmem:[#allocation3 + $0x8] sm:$0xff] %vm1118, %v5480
      %5575 = vst.msk [vmem:[#allocation3 + $0x10] sm:$0xff] %vm1118, %v5482
      %5576 = vst.msk [vmem:[#allocation3 + $0x18] sm:$0xff] %vm1118, %v5484
      %5577 = vst.msk [vmem:[#allocation3 + $0x20] sm:$0xff] %vm1118, %v5486
      %5578 = vst.msk [vmem:[#allocation3 + $0x28] sm:$0xff] %vm1118, %v5488
      %5579 = vst.msk [vmem:[#allocation3 + $0x30] sm:$0xff] %vm1118, %v5490
      %5580 = vst.msk [vmem:[#allocation3 + $0x38] sm:$0xff] %vm1118, %v5492
      %5581 = vst.msk [vmem:[#allocation3 + $0x40] sm:$0xff] %vm1118, %v5494
      %5582 = vst.msk [vmem:[#allocation3 + $0x48] sm:$0xff] %vm1118, %v5496
      %5583 = vst.msk [vmem:[#allocation3 + $0x50] sm:$0xff] %vm1118, %v5498
      %5584 = vst.msk [vmem:[#allocation3 + $0x58] sm:$0xff] %vm1118, %v5500
      %5585 = vst.msk [vmem:[#allocation3 + $0x60] sm:$0xff] %vm1118, %v5502
      %5586 = vst.msk [vmem:[#allocation3 + $0x68] sm:$0xff] %vm1118, %v5504
      %5587 = vst.msk [vmem:[#allocation3 + $0x70] sm:$0xff] %vm1118, %v5506
      %5588 = vst.msk [vmem:[#allocation3 + $0x78] sm:$0xff] %vm1118, %v5508
      %5589 = vst.msk [vmem:[#allocation3 + $0x80] sm:$0xff] %vm1118, %v5510
      %5590 = vst.msk [vmem:[#allocation3 + $0x88] sm:$0xff] %vm1118, %v5512
      %5591 = vst.msk [vmem:[#allocation3 + $0x90] sm:$0xff] %vm1118, %v5514
      %5592 = vst.msk [vmem:[#allocation3 + $0x98] sm:$0xff] %vm1118, %v5516
      %5593 = vst.msk [vmem:[#allocation3 + $0xa0] sm:$0xff] %vm1118, %v5518
      %5594 = vst.msk [vmem:[#allocation3 + $0xa8] sm:$0xff] %vm1118, %v5520
      %5595 = vst.msk [vmem:[#allocation3 + $0xb0] sm:$0xff] %vm1118, %v5522
      %5596 = vst.msk [vmem:[#allocation3 + $0xb8] sm:$0xff] %vm1118, %v5524
      %5597 = vst.msk [vmem:[#allocation3 + $0xc0] sm:$0xff] %vm1118, %v5526
      %5598 = vst.msk [vmem:[#allocation3 + $0xc8] sm:$0xff] %vm1118, %v5528
      %5599 = vst.msk [vmem:[#allocation3 + $0xd0] sm:$0xff] %vm1118, %v5530
      %5600 = vst.msk [vmem:[#allocation3 + $0xd8] sm:$0xff] %vm1118, %v5532
      %5601 = vst.msk [vmem:[#allocation3 + $0xe0] sm:$0xff] %vm1118, %v5534
      %5602 = vst.msk [vmem:[#allocation3 + $0xe8] sm:$0xff] %vm1118, %v5536
      %5603 = vst.msk [vmem:[#allocation3 + $0xf0] sm:$0xff] %vm1118, %v5538
      %5604 = vst.msk [vmem:[#allocation3 + $0xf8] sm:$0xff] %vm1118, %v5540
      %v5605 = vld [vmem:[%s203 + $0x2] sm:$0xff]
      %v5606 = vld [vmem:[%s203 + $0xa] sm:$0xff]
      %v5607 = vld [vmem:[%s203 + $0x1a] sm:$0xff]
      %v5608 = vld [vmem:[%s203 + $0x22] sm:$0xff]
      %v5609 = vld [vmem:[%s203 + $0x32] sm:$0xff]
      %v5610 = vld [vmem:[%s203 + $0x3a] sm:$0xff]
      %v5611 = vld [vmem:[%s203 + $0x4a] sm:$0xff]
      %v5612 = vld [vmem:[%s203 + $0x52] sm:$0xff]
      %v5613 = vld [vmem:[%s203 + $0x62] sm:$0xff]
      %v5614 = vld [vmem:[%s203 + $0x6a] sm:$0xff]
      %v5615 = vld [vmem:[%s203 + $0x7a] sm:$0xff]
      %v5616 = vld [vmem:[%s203 + $0x82] sm:$0xff]
      %v5617 = vld [vmem:[%s203 + $0x92] sm:$0xff]
      %v5618 = vld [vmem:[%s203 + $0x9a] sm:$0xff]
      %v5619 = vld [vmem:[%s203 + $0xaa] sm:$0xff]
      %v5620 = vld [vmem:[%s203 + $0xb2] sm:$0xff]
      %v5621 = vld [vmem:[%s203 + $0xc2] sm:$0xff]
      %v5622 = vld [vmem:[%s203 + $0xca] sm:$0xff]
      %v5623 = vld [vmem:[%s203 + $0xda] sm:$0xff]
      %v5624 = vld [vmem:[%s203 + $0xe2] sm:$0xff]
      %v5625 = vld [vmem:[%s203 + $0xf2] sm:$0xff]
      %v5626 = vld [vmem:[%s203 + $0xfa] sm:$0xff]
      %v5627 = vld [vmem:[%s203 + $0x10a] sm:$0xff]
      %v5628 = vld [vmem:[%s203 + $0x112] sm:$0xff]
      %v5629 = vld [vmem:[%s203 + $0x122] sm:$0xff]
      %v5630 = vld [vmem:[%s203 + $0x12a] sm:$0xff]
      %v5631 = vld [vmem:[%s203 + $0x13a] sm:$0xff]
      %v5632 = vld [vmem:[%s203 + $0x142] sm:$0xff]
      %v5633 = vld [vmem:[%s203 + $0x152] sm:$0xff]
      %v5634 = vld [vmem:[%s203 + $0x15a] sm:$0xff]
      %v5635 = vld [vmem:[%s203 + $0x16a] sm:$0xff]
      %v5636 = vld [vmem:[%s203 + $0x172] sm:$0xff]
      %5669 = vrot.lane.b32.xlu0 %v5605, 20
      %v5670 = vpop.permute.xlu0 %5669
      %5671 = vrot.lane.b32.xlu0 %v5606, 20
      %v5672 = vpop.permute.xlu0 %5671
      %5673 = vrot.lane.b32.xlu0 %v5607, 20
      %v5674 = vpop.permute.xlu0 %5673
      %5675 = vrot.lane.b32.xlu0 %v5608, 20
      %v5676 = vpop.permute.xlu0 %5675
      %5677 = vrot.lane.b32.xlu0 %v5609, 20
      %v5678 = vpop.permute.xlu0 %5677
      %5679 = vrot.lane.b32.xlu0 %v5610, 20
      %v5680 = vpop.permute.xlu0 %5679
      %5681 = vrot.lane.b32.xlu0 %v5611, 20
      %v5682 = vpop.permute.xlu0 %5681
      %5683 = vrot.lane.b32.xlu0 %v5612, 20
      %v5684 = vpop.permute.xlu0 %5683
      %5685 = vrot.lane.b32.xlu0 %v5613, 20
      %v5686 = vpop.permute.xlu0 %5685
      %5687 = vrot.lane.b32.xlu0 %v5614, 20
      %v5688 = vpop.permute.xlu0 %5687
      %5689 = vrot.lane.b32.xlu0 %v5615, 20
      %v5690 = vpop.permute.xlu0 %5689
      %5691 = vrot.lane.b32.xlu0 %v5616, 20
      %v5692 = vpop.permute.xlu0 %5691
      %5693 = vrot.lane.b32.xlu0 %v5617, 20
      %v5694 = vpop.permute.xlu0 %5693
      %5695 = vrot.lane.b32.xlu0 %v5618, 20
      %v5696 = vpop.permute.xlu0 %5695
      %5697 = vrot.lane.b32.xlu0 %v5619, 20
      %v5698 = vpop.permute.xlu0 %5697
      %5699 = vrot.lane.b32.xlu0 %v5620, 20
      %v5700 = vpop.permute.xlu0 %5699
      %5701 = vrot.lane.b32.xlu0 %v5621, 20
      %v5702 = vpop.permute.xlu0 %5701
      %5703 = vrot.lane.b32.xlu0 %v5622, 20
      %v5704 = vpop.permute.xlu0 %5703
      %5705 = vrot.lane.b32.xlu0 %v5623, 20
      %v5706 = vpop.permute.xlu0 %5705
      %5707 = vrot.lane.b32.xlu0 %v5624, 20
      %v5708 = vpop.permute.xlu0 %5707
      %5709 = vrot.lane.b32.xlu0 %v5625, 20
      %v5710 = vpop.permute.xlu0 %5709
      %5711 = vrot.lane.b32.xlu0 %v5626, 20
      %v5712 = vpop.permute.xlu0 %5711
      %5713 = vrot.lane.b32.xlu0 %v5627, 20
      %v5714 = vpop.permute.xlu0 %5713
      %5715 = vrot.lane.b32.xlu0 %v5628, 20
      %v5716 = vpop.permute.xlu0 %5715
      %5717 = vrot.lane.b32.xlu0 %v5629, 20
      %v5718 = vpop.permute.xlu0 %5717
      %5719 = vrot.lane.b32.xlu0 %v5630, 20
      %v5720 = vpop.permute.xlu0 %5719
      %5721 = vrot.lane.b32.xlu0 %v5631, 20
      %v5722 = vpop.permute.xlu0 %5721
      %5723 = vrot.lane.b32.xlu0 %v5632, 20
      %v5724 = vpop.permute.xlu0 %5723
      %5725 = vrot.lane.b32.xlu0 %v5633, 20
      %v5726 = vpop.permute.xlu0 %5725
      %5727 = vrot.lane.b32.xlu0 %v5634, 20
      %v5728 = vpop.permute.xlu0 %5727
      %5729 = vrot.lane.b32.xlu0 %v5635, 20
      %v5730 = vpop.permute.xlu0 %5729
      %5731 = vrot.lane.b32.xlu0 %v5636, 20
      %v5732 = vpop.permute.xlu0 %5731
      %5765 = vst.msk [vmem:[#allocation3] sm:$0xff] %vm1311, %v5670
      %5766 = vst.msk [vmem:[#allocation3 + $0x8] sm:$0xff] %vm1311, %v5672
      %5767 = vst.msk [vmem:[#allocation3 + $0x10] sm:$0xff] %vm1311, %v5674
      %5768 = vst.msk [vmem:[#allocation3 + $0x18] sm:$0xff] %vm1311, %v5676
      %5769 = vst.msk [vmem:[#allocation3 + $0x20] sm:$0xff] %vm1311, %v5678
      %5770 = vst.msk [vmem:[#allocation3 + $0x28] sm:$0xff] %vm1311, %v5680
      %5771 = vst.msk [vmem:[#allocation3 + $0x30] sm:$0xff] %vm1311, %v5682
      %5772 = vst.msk [vmem:[#allocation3 + $0x38] sm:$0xff] %vm1311, %v5684
      %5773 = vst.msk [vmem:[#allocation3 + $0x40] sm:$0xff] %vm1311, %v5686
      %5774 = vst.msk [vmem:[#allocation3 + $0x48] sm:$0xff] %vm1311, %v5688
      %5775 = vst.msk [vmem:[#allocation3 + $0x50] sm:$0xff] %vm1311, %v5690
      %5776 = vst.msk [vmem:[#allocation3 + $0x58] sm:$0xff] %vm1311, %v5692
      %5777 = vst.msk [vmem:[#allocation3 + $0x60] sm:$0xff] %vm1311, %v5694
      %5778 = vst.msk [vmem:[#allocation3 + $0x68] sm:$0xff] %vm1311, %v5696
      %5779 = vst.msk [vmem:[#allocation3 + $0x70] sm:$0xff] %vm1311, %v5698
      %5780 = vst.msk [vmem:[#allocation3 + $0x78] sm:$0xff] %vm1311, %v5700
      %5781 = vst.msk [vmem:[#allocation3 + $0x80] sm:$0xff] %vm1311, %v5702
      %5782 = vst.msk [vmem:[#allocation3 + $0x88] sm:$0xff] %vm1311, %v5704
      %5783 = vst.msk [vmem:[#allocation3 + $0x90] sm:$0xff] %vm1311, %v5706
      %5784 = vst.msk [vmem:[#allocation3 + $0x98] sm:$0xff] %vm1311, %v5708
      %5785 = vst.msk [vmem:[#allocation3 + $0xa0] sm:$0xff] %vm1311, %v5710
      %5786 = vst.msk [vmem:[#allocation3 + $0xa8] sm:$0xff] %vm1311, %v5712
      %5787 = vst.msk [vmem:[#allocation3 + $0xb0] sm:$0xff] %vm1311, %v5714
      %5788 = vst.msk [vmem:[#allocation3 + $0xb8] sm:$0xff] %vm1311, %v5716
      %5789 = vst.msk [vmem:[#allocation3 + $0xc0] sm:$0xff] %vm1311, %v5718
      %5790 = vst.msk [vmem:[#allocation3 + $0xc8] sm:$0xff] %vm1311, %v5720
      %5791 = vst.msk [vmem:[#allocation3 + $0xd0] sm:$0xff] %vm1311, %v5722
      %5792 = vst.msk [vmem:[#allocation3 + $0xd8] sm:$0xff] %vm1311, %v5724
      %5793 = vst.msk [vmem:[#allocation3 + $0xe0] sm:$0xff] %vm1311, %v5726
      %5794 = vst.msk [vmem:[#allocation3 + $0xe8] sm:$0xff] %vm1311, %v5728
      %5795 = vst.msk [vmem:[#allocation3 + $0xf0] sm:$0xff] %vm1311, %v5730
      %5796 = vst.msk [vmem:[#allocation3 + $0xf8] sm:$0xff] %vm1311, %v5732
      %v5797 = vld [vmem:[%s1344] sm:$0xff]
      %v5798 = vld [vmem:[%s1344 + $0x8] sm:$0xff]
      %v5799 = vld [vmem:[%s1344 + $0x18] sm:$0xff]
      %v5800 = vld [vmem:[%s1344 + $0x20] sm:$0xff]
      %v5801 = vld [vmem:[%s1344 + $0x30] sm:$0xff]
      %v5802 = vld [vmem:[%s1344 + $0x38] sm:$0xff]
      %v5803 = vld [vmem:[%s1344 + $0x48] sm:$0xff]
      %v5804 = vld [vmem:[%s1344 + $0x50] sm:$0xff]
      %v5805 = vld [vmem:[%s1344 + $0x60] sm:$0xff]
      %v5806 = vld [vmem:[%s1344 + $0x68] sm:$0xff]
      %v5807 = vld [vmem:[%s1344 + $0x78] sm:$0xff]
      %v5808 = vld [vmem:[%s1344 + $0x80] sm:$0xff]
      %v5809 = vld [vmem:[%s1344 + $0x90] sm:$0xff]
      %v5810 = vld [vmem:[%s1344 + $0x98] sm:$0xff]
      %v5811 = vld [vmem:[%s1344 + $0xa8] sm:$0xff]
      %v5812 = vld [vmem:[%s1344 + $0xb0] sm:$0xff]
      %v5813 = vld [vmem:[%s1344 + $0xc0] sm:$0xff]
      %v5814 = vld [vmem:[%s1344 + $0xc8] sm:$0xff]
      %v5815 = vld [vmem:[%s1344 + $0xd8] sm:$0xff]
      %v5816 = vld [vmem:[%s1344 + $0xe0] sm:$0xff]
      %v5817 = vld [vmem:[%s1344 + $0xf0] sm:$0xff]
      %v5818 = vld [vmem:[%s1344 + $0xf8] sm:$0xff]
      %v5819 = vld [vmem:[%s1344 + $0x108] sm:$0xff]
      %v5820 = vld [vmem:[%s1344 + $0x110] sm:$0xff]
      %v5821 = vld [vmem:[%s1344 + $0x120] sm:$0xff]
      %v5822 = vld [vmem:[%s1344 + $0x128] sm:$0xff]
      %v5823 = vld [vmem:[%s1344 + $0x138] sm:$0xff]
      %v5824 = vld [vmem:[%s1344 + $0x140] sm:$0xff]
      %v5825 = vld [vmem:[%s1344 + $0x150] sm:$0xff]
      %v5826 = vld [vmem:[%s1344 + $0x158] sm:$0xff]
      %v5827 = vld [vmem:[%s1344 + $0x168] sm:$0xff]
      %v5828 = vld [vmem:[%s1344 + $0x170] sm:$0xff]
      %5861 = vrot.lane.b32.xlu0 %v5797, 24
      %v5862 = vpop.permute.xlu0 %5861
      %5863 = vrot.lane.b32.xlu0 %v5798, 24
      %v5864 = vpop.permute.xlu0 %5863
      %5865 = vrot.lane.b32.xlu0 %v5799, 24
      %v5866 = vpop.permute.xlu0 %5865
      %5867 = vrot.lane.b32.xlu0 %v5800, 24
      %v5868 = vpop.permute.xlu0 %5867
      %5869 = vrot.lane.b32.xlu0 %v5801, 24
      %v5870 = vpop.permute.xlu0 %5869
      %5871 = vrot.lane.b32.xlu0 %v5802, 24
      %v5872 = vpop.permute.xlu0 %5871
      %5873 = vrot.lane.b32.xlu0 %v5803, 24
      %v5874 = vpop.permute.xlu0 %5873
      %5875 = vrot.lane.b32.xlu0 %v5804, 24
      %v5876 = vpop.permute.xlu0 %5875
      %5877 = vrot.lane.b32.xlu0 %v5805, 24
      %v5878 = vpop.permute.xlu0 %5877
      %5879 = vrot.lane.b32.xlu0 %v5806, 24
      %v5880 = vpop.permute.xlu0 %5879
      %5881 = vrot.lane.b32.xlu0 %v5807, 24
      %v5882 = vpop.permute.xlu0 %5881
      %5883 = vrot.lane.b32.xlu0 %v5808, 24
      %v5884 = vpop.permute.xlu0 %5883
      %5885 = vrot.lane.b32.xlu0 %v5809, 24
      %v5886 = vpop.permute.xlu0 %5885
      %5887 = vrot.lane.b32.xlu0 %v5810, 24
      %v5888 = vpop.permute.xlu0 %5887
      %5889 = vrot.lane.b32.xlu0 %v5811, 24
      %v5890 = vpop.permute.xlu0 %5889
      %5891 = vrot.lane.b32.xlu0 %v5812, 24
      %v5892 = vpop.permute.xlu0 %5891
      %5893 = vrot.lane.b32.xlu0 %v5813, 24
      %v5894 = vpop.permute.xlu0 %5893
      %5895 = vrot.lane.b32.xlu0 %v5814, 24
      %v5896 = vpop.permute.xlu0 %5895
      %5897 = vrot.lane.b32.xlu0 %v5815, 24
      %v5898 = vpop.permute.xlu0 %5897
      %5899 = vrot.lane.b32.xlu0 %v5816, 24
      %v5900 = vpop.permute.xlu0 %5899
      %5901 = vrot.lane.b32.xlu0 %v5817, 24
      %v5902 = vpop.permute.xlu0 %5901
      %5903 = vrot.lane.b32.xlu0 %v5818, 24
      %v5904 = vpop.permute.xlu0 %5903
      %5905 = vrot.lane.b32.xlu0 %v5819, 24
      %v5906 = vpop.permute.xlu0 %5905
      %5907 = vrot.lane.b32.xlu0 %v5820, 24
      %v5908 = vpop.permute.xlu0 %5907
      %5909 = vrot.lane.b32.xlu0 %v5821, 24
      %v5910 = vpop.permute.xlu0 %5909
      %5911 = vrot.lane.b32.xlu0 %v5822, 24
      %v5912 = vpop.permute.xlu0 %5911
      %5913 = vrot.lane.b32.xlu0 %v5823, 24
      %v5914 = vpop.permute.xlu0 %5913
      %5915 = vrot.lane.b32.xlu0 %v5824, 24
      %v5916 = vpop.permute.xlu0 %5915
      %5917 = vrot.lane.b32.xlu0 %v5825, 24
      %v5918 = vpop.permute.xlu0 %5917
      %5919 = vrot.lane.b32.xlu0 %v5826, 24
      %v5920 = vpop.permute.xlu0 %5919
      %5921 = vrot.lane.b32.xlu0 %v5827, 24
      %v5922 = vpop.permute.xlu0 %5921
      %5923 = vrot.lane.b32.xlu0 %v5828, 24
      %v5924 = vpop.permute.xlu0 %5923
      %5957 = vst.msk [vmem:[#allocation3] sm:$0xff] %vm1505, %v5862
      %5958 = vst.msk [vmem:[#allocation3 + $0x8] sm:$0xff] %vm1505, %v5864
      %5959 = vst.msk [vmem:[#allocation3 + $0x10] sm:$0xff] %vm1505, %v5866
      %5960 = vst.msk [vmem:[#allocation3 + $0x18] sm:$0xff] %vm1505, %v5868
      %5961 = vst.msk [vmem:[#allocation3 + $0x20] sm:$0xff] %vm1505, %v5870
      %5962 = vst.msk [vmem:[#allocation3 + $0x28] sm:$0xff] %vm1505, %v5872
      %5963 = vst.msk [vmem:[#allocation3 + $0x30] sm:$0xff] %vm1505, %v5874
      %5964 = vst.msk [vmem:[#allocation3 + $0x38] sm:$0xff] %vm1505, %v5876
      %5965 = vst.msk [vmem:[#allocation3 + $0x40] sm:$0xff] %vm1505, %v5878
      %5966 = vst.msk [vmem:[#allocation3 + $0x48] sm:$0xff] %vm1505, %v5880
      %5967 = vst.msk [vmem:[#allocation3 + $0x50] sm:$0xff] %vm1505, %v5882
      %5968 = vst.msk [vmem:[#allocation3 + $0x58] sm:$0xff] %vm1505, %v5884
      %5969 = vst.msk [vmem:[#allocation3 + $0x60] sm:$0xff] %vm1505, %v5886
      %5970 = vst.msk [vmem:[#allocation3 + $0x68] sm:$0xff] %vm1505, %v5888
      %5971 = vst.msk [vmem:[#allocation3 + $0x70] sm:$0xff] %vm1505, %v5890
      %5972 = vst.msk [vmem:[#allocation3 + $0x78] sm:$0xff] %vm1505, %v5892
      %5973 = vst.msk [vmem:[#allocation3 + $0x80] sm:$0xff] %vm1505, %v5894
      %5974 = vst.msk [vmem:[#allocation3 + $0x88] sm:$0xff] %vm1505, %v5896
      %5975 = vst.msk [vmem:[#allocation3 + $0x90] sm:$0xff] %vm1505, %v5898
      %5976 = vst.msk [vmem:[#allocation3 + $0x98] sm:$0xff] %vm1505, %v5900
      %5977 = vst.msk [vmem:[#allocation3 + $0xa0] sm:$0xff] %vm1505, %v5902
      %5978 = vst.msk [vmem:[#allocation3 + $0xa8] sm:$0xff] %vm1505, %v5904
      %5979 = vst.msk [vmem:[#allocation3 + $0xb0] sm:$0xff] %vm1505, %v5906
      %5980 = vst.msk [vmem:[#allocation3 + $0xb8] sm:$0xff] %vm1505, %v5908
      %5981 = vst.msk [vmem:[#allocation3 + $0xc0] sm:$0xff] %vm1505, %v5910
      %5982 = vst.msk [vmem:[#allocation3 + $0xc8] sm:$0xff] %vm1505, %v5912
      %5983 = vst.msk [vmem:[#allocation3 + $0xd0] sm:$0xff] %vm1505, %v5914
      %5984 = vst.msk [vmem:[#allocation3 + $0xd8] sm:$0xff] %vm1505, %v5916
      %5985 = vst.msk [vmem:[#allocation3 + $0xe0] sm:$0xff] %vm1505, %v5918
      %5986 = vst.msk [vmem:[#allocation3 + $0xe8] sm:$0xff] %vm1505, %v5920
      %5987 = vst.msk [vmem:[#allocation3 + $0xf0] sm:$0xff] %vm1505, %v5922
      %5988 = vst.msk [vmem:[#allocation3 + $0xf8] sm:$0xff] %vm1505, %v5924
      %v5989 = vld [vmem:[%s1344 + $0x1] sm:$0xff]
      %v5990 = vld [vmem:[%s1344 + $0x9] sm:$0xff]
      %v5991 = vld [vmem:[%s1344 + $0x19] sm:$0xff]
      %v5992 = vld [vmem:[%s1344 + $0x21] sm:$0xff]
      %v5993 = vld [vmem:[%s1344 + $0x31] sm:$0xff]
      %v5994 = vld [vmem:[%s1344 + $0x39] sm:$0xff]
      %v5995 = vld [vmem:[%s1344 + $0x49] sm:$0xff]
      %v5996 = vld [vmem:[%s1344 + $0x51] sm:$0xff]
      %v5997 = vld [vmem:[%s1344 + $0x61] sm:$0xff]
      %v5998 = vld [vmem:[%s1344 + $0x69] sm:$0xff]
      %v5999 = vld [vmem:[%s1344 + $0x79] sm:$0xff]
      %v6000 = vld [vmem:[%s1344 + $0x81] sm:$0xff]
      %v6001 = vld [vmem:[%s1344 + $0x91] sm:$0xff]
      %v6002 = vld [vmem:[%s1344 + $0x99] sm:$0xff]
      %v6003 = vld [vmem:[%s1344 + $0xa9] sm:$0xff]
      %v6004 = vld [vmem:[%s1344 + $0xb1] sm:$0xff]
      %v6005 = vld [vmem:[%s1344 + $0xc1] sm:$0xff]
      %v6006 = vld [vmem:[%s1344 + $0xc9] sm:$0xff]
      %v6007 = vld [vmem:[%s1344 + $0xd9] sm:$0xff]
      %v6008 = vld [vmem:[%s1344 + $0xe1] sm:$0xff]
      %v6009 = vld [vmem:[%s1344 + $0xf1] sm:$0xff]
      %v6010 = vld [vmem:[%s1344 + $0xf9] sm:$0xff]
      %v6011 = vld [vmem:[%s1344 + $0x109] sm:$0xff]
      %v6012 = vld [vmem:[%s1344 + $0x111] sm:$0xff]
      %v6013 = vld [vmem:[%s1344 + $0x121] sm:$0xff]
      %v6014 = vld [vmem:[%s1344 + $0x129] sm:$0xff]
      %v6015 = vld [vmem:[%s1344 + $0x139] sm:$0xff]
      %v6016 = vld [vmem:[%s1344 + $0x141] sm:$0xff]
      %v6017 = vld [vmem:[%s1344 + $0x151] sm:$0xff]
      %v6018 = vld [vmem:[%s1344 + $0x159] sm:$0xff]
      %v6019 = vld [vmem:[%s1344 + $0x169] sm:$0xff]
      %v6020 = vld [vmem:[%s1344 + $0x171] sm:$0xff]
      %6053 = vrot.lane.b32.xlu0 %v5989, 28
      %v6054 = vpop.permute.xlu0 %6053
      %6055 = vrot.lane.b32.xlu0 %v5990, 28
      %v6056 = vpop.permute.xlu0 %6055
      %6057 = vrot.lane.b32.xlu0 %v5991, 28
      %v6058 = vpop.permute.xlu0 %6057
      %6059 = vrot.lane.b32.xlu0 %v5992, 28
      %v6060 = vpop.permute.xlu0 %6059
      %6061 = vrot.lane.b32.xlu0 %v5993, 28
      %v6062 = vpop.permute.xlu0 %6061
      %6063 = vrot.lane.b32.xlu0 %v5994, 28
      %v6064 = vpop.permute.xlu0 %6063
      %6065 = vrot.lane.b32.xlu0 %v5995, 28
      %v6066 = vpop.permute.xlu0 %6065
      %6067 = vrot.lane.b32.xlu0 %v5996, 28
      %v6068 = vpop.permute.xlu0 %6067
      %6069 = vrot.lane.b32.xlu0 %v5997, 28
      %v6070 = vpop.permute.xlu0 %6069
      %6071 = vrot.lane.b32.xlu0 %v5998, 28
      %v6072 = vpop.permute.xlu0 %6071
      %6073 = vrot.lane.b32.xlu0 %v5999, 28
      %v6074 = vpop.permute.xlu0 %6073
      %6075 = vrot.lane.b32.xlu0 %v6000, 28
      %v6076 = vpop.permute.xlu0 %6075
      %6077 = vrot.lane.b32.xlu0 %v6001, 28
      %v6078 = vpop.permute.xlu0 %6077
      %6079 = vrot.lane.b32.xlu0 %v6002, 28
      %v6080 = vpop.permute.xlu0 %6079
      %6081 = vrot.lane.b32.xlu0 %v6003, 28
      %v6082 = vpop.permute.xlu0 %6081
      %6083 = vrot.lane.b32.xlu0 %v6004, 28
      %v6084 = vpop.permute.xlu0 %6083
      %6085 = vrot.lane.b32.xlu0 %v6005, 28
      %v6086 = vpop.permute.xlu0 %6085
      %6087 = vrot.lane.b32.xlu0 %v6006, 28
      %v6088 = vpop.permute.xlu0 %6087
      %6089 = vrot.lane.b32.xlu0 %v6007, 28
      %v6090 = vpop.permute.xlu0 %6089
      %6091 = vrot.lane.b32.xlu0 %v6008, 28
      %v6092 = vpop.permute.xlu0 %6091
      %6093 = vrot.lane.b32.xlu0 %v6009, 28
      %v6094 = vpop.permute.xlu0 %6093
      %6095 = vrot.lane.b32.xlu0 %v6010, 28
      %v6096 = vpop.permute.xlu0 %6095
      %6097 = vrot.lane.b32.xlu0 %v6011, 28
      %v6098 = vpop.permute.xlu0 %6097
      %6099 = vrot.lane.b32.xlu0 %v6012, 28
      %v6100 = vpop.permute.xlu0 %6099
      %6101 = vrot.lane.b32.xlu0 %v6013, 28
      %v6102 = vpop.permute.xlu0 %6101
      %6103 = vrot.lane.b32.xlu0 %v6014, 28
      %v6104 = vpop.permute.xlu0 %6103
      %6105 = vrot.lane.b32.xlu0 %v6015, 28
      %v6106 = vpop.permute.xlu0 %6105
      %6107 = vrot.lane.b32.xlu0 %v6016, 28
      %v6108 = vpop.permute.xlu0 %6107
      %6109 = vrot.lane.b32.xlu0 %v6017, 28
      %v6110 = vpop.permute.xlu0 %6109
      %6111 = vrot.lane.b32.xlu0 %v6018, 28
      %v6112 = vpop.permute.xlu0 %6111
      %6113 = vrot.lane.b32.xlu0 %v6019, 28
      %v6114 = vpop.permute.xlu0 %6113
      %6115 = vrot.lane.b32.xlu0 %v6020, 28
      %v6116 = vpop.permute.xlu0 %6115
      %6149 = vst.msk [vmem:[#allocation3] sm:$0xff] %vm1698, %v6054
      %6150 = vst.msk [vmem:[#allocation3 + $0x8] sm:$0xff] %vm1698, %v6056
      %6151 = vst.msk [vmem:[#allocation3 + $0x10] sm:$0xff] %vm1698, %v6058
      %6152 = vst.msk [vmem:[#allocation3 + $0x18] sm:$0xff] %vm1698, %v6060
      %6153 = vst.msk [vmem:[#allocation3 + $0x20] sm:$0xff] %vm1698, %v6062
      %6154 = vst.msk [vmem:[#allocation3 + $0x28] sm:$0xff] %vm1698, %v6064
      %6155 = vst.msk [vmem:[#allocation3 + $0x30] sm:$0xff] %vm1698, %v6066
      %6156 = vst.msk [vmem:[#allocation3 + $0x38] sm:$0xff] %vm1698, %v6068
      %6157 = vst.msk [vmem:[#allocation3 + $0x40] sm:$0xff] %vm1698, %v6070
      %6158 = vst.msk [vmem:[#allocation3 + $0x48] sm:$0xff] %vm1698, %v6072
      %6159 = vst.msk [vmem:[#allocation3 + $0x50] sm:$0xff] %vm1698, %v6074
      %6160 = vst.msk [vmem:[#allocation3 + $0x58] sm:$0xff] %vm1698, %v6076
      %6161 = vst.msk [vmem:[#allocation3 + $0x60] sm:$0xff] %vm1698, %v6078
      %6162 = vst.msk [vmem:[#allocation3 + $0x68] sm:$0xff] %vm1698, %v6080
      %6163 = vst.msk [vmem:[#allocation3 + $0x70] sm:$0xff] %vm1698, %v6082
      %6164 = vst.msk [vmem:[#allocation3 + $0x78] sm:$0xff] %vm1698, %v6084
      %6165 = vst.msk [vmem:[#allocation3 + $0x80] sm:$0xff] %vm1698, %v6086
      %6166 = vst.msk [vmem:[#allocation3 + $0x88] sm:$0xff] %vm1698, %v6088
      %6167 = vst.msk [vmem:[#allocation3 + $0x90] sm:$0xff] %vm1698, %v6090
      %6168 = vst.msk [vmem:[#allocation3 + $0x98] sm:$0xff] %vm1698, %v6092
      %6169 = vst.msk [vmem:[#allocation3 + $0xa0] sm:$0xff] %vm1698, %v6094
      %6170 = vst.msk [vmem:[#allocation3 + $0xa8] sm:$0xff] %vm1698, %v6096
      %6171 = vst.msk [vmem:[#allocation3 + $0xb0] sm:$0xff] %vm1698, %v6098
      %6172 = vst.msk [vmem:[#allocation3 + $0xb8] sm:$0xff] %vm1698, %v6100
      %6173 = vst.msk [vmem:[#allocation3 + $0xc0] sm:$0xff] %vm1698, %v6102
      %6174 = vst.msk [vmem:[#allocation3 + $0xc8] sm:$0xff] %vm1698, %v6104
      %6175 = vst.msk [vmem:[#allocation3 + $0xd0] sm:$0xff] %vm1698, %v6106
      %6176 = vst.msk [vmem:[#allocation3 + $0xd8] sm:$0xff] %vm1698, %v6108
      %6177 = vst.msk [vmem:[#allocation3 + $0xe0] sm:$0xff] %vm1698, %v6110
      %6178 = vst.msk [vmem:[#allocation3 + $0xe8] sm:$0xff] %vm1698, %v6112
      %6179 = vst.msk [vmem:[#allocation3 + $0xf0] sm:$0xff] %vm1698, %v6114
      %6180 = vst.msk [vmem:[#allocation3 + $0xf8] sm:$0xff] %vm1698, %v6116
      %v6181 = vld [vmem:[%s1344 + $0x2] sm:$0xff]
      %v6182 = vld [vmem:[%s1344 + $0xa] sm:$0xff]
      %v6183 = vld [vmem:[%s1344 + $0x1a] sm:$0xff]
      %v6184 = vld [vmem:[%s1344 + $0x22] sm:$0xff]
      %v6185 = vld [vmem:[%s1344 + $0x32] sm:$0xff]
      %v6186 = vld [vmem:[%s1344 + $0x3a] sm:$0xff]
      %v6187 = vld [vmem:[%s1344 + $0x4a] sm:$0xff]
      %v6188 = vld [vmem:[%s1344 + $0x52] sm:$0xff]
      %v6189 = vld [vmem:[%s1344 + $0x62] sm:$0xff]
      %v6190 = vld [vmem:[%s1344 + $0x6a] sm:$0xff]
      %v6191 = vld [vmem:[%s1344 + $0x7a] sm:$0xff]
      %v6192 = vld [vmem:[%s1344 + $0x82] sm:$0xff]
      %v6193 = vld [vmem:[%s1344 + $0x92] sm:$0xff]
      %v6194 = vld [vmem:[%s1344 + $0x9a] sm:$0xff]
      %v6195 = vld [vmem:[%s1344 + $0xaa] sm:$0xff]
      %v6196 = vld [vmem:[%s1344 + $0xb2] sm:$0xff]
      %v6197 = vld [vmem:[%s1344 + $0xc2] sm:$0xff]
      %v6198 = vld [vmem:[%s1344 + $0xca] sm:$0xff]
      %v6199 = vld [vmem:[%s1344 + $0xda] sm:$0xff]
      %v6200 = vld [vmem:[%s1344 + $0xe2] sm:$0xff]
      %v6201 = vld [vmem:[%s1344 + $0xf2] sm:$0xff]
      %v6202 = vld [vmem:[%s1344 + $0xfa] sm:$0xff]
      %v6203 = vld [vmem:[%s1344 + $0x10a] sm:$0xff]
      %v6204 = vld [vmem:[%s1344 + $0x112] sm:$0xff]
      %v6205 = vld [vmem:[%s1344 + $0x122] sm:$0xff]
      %v6206 = vld [vmem:[%s1344 + $0x12a] sm:$0xff]
      %v6207 = vld [vmem:[%s1344 + $0x13a] sm:$0xff]
      %v6208 = vld [vmem:[%s1344 + $0x142] sm:$0xff]
      %v6209 = vld [vmem:[%s1344 + $0x152] sm:$0xff]
      %v6210 = vld [vmem:[%s1344 + $0x15a] sm:$0xff]
      %v6211 = vld [vmem:[%s1344 + $0x16a] sm:$0xff]
      %v6212 = vld [vmem:[%s1344 + $0x172] sm:$0xff]
      %6245 = vrot.lane.b32.xlu0 %v6181, 32
      %v6246 = vpop.permute.xlu0 %6245
      %6247 = vrot.lane.b32.xlu0 %v6182, 32
      %v6248 = vpop.permute.xlu0 %6247
      %6249 = vrot.lane.b32.xlu0 %v6183, 32
      %v6250 = vpop.permute.xlu0 %6249
      %6251 = vrot.lane.b32.xlu0 %v6184, 32
      %v6252 = vpop.permute.xlu0 %6251
      %6253 = vrot.lane.b32.xlu0 %v6185, 32
      %v6254 = vpop.permute.xlu0 %6253
      %6255 = vrot.lane.b32.xlu0 %v6186, 32
      %v6256 = vpop.permute.xlu0 %6255
      %6257 = vrot.lane.b32.xlu0 %v6187, 32
      %v6258 = vpop.permute.xlu0 %6257
      %6259 = vrot.lane.b32.xlu0 %v6188, 32
      %v6260 = vpop.permute.xlu0 %6259
      %6261 = vrot.lane.b32.xlu0 %v6189, 32
      %v6262 = vpop.permute.xlu0 %6261
      %6263 = vrot.lane.b32.xlu0 %v6190, 32
      %v6264 = vpop.permute.xlu0 %6263
      %6265 = vrot.lane.b32.xlu0 %v6191, 32
      %v6266 = vpop.permute.xlu0 %6265
      %6267 = vrot.lane.b32.xlu0 %v6192, 32
      %v6268 = vpop.permute.xlu0 %6267
      %6269 = vrot.lane.b32.xlu0 %v6193, 32
      %v6270 = vpop.permute.xlu0 %6269
      %6271 = vrot.lane.b32.xlu0 %v6194, 32
      %v6272 = vpop.permute.xlu0 %6271
      %6273 = vrot.lane.b32.xlu0 %v6195, 32
      %v6274 = vpop.permute.xlu0 %6273
      %6275 = vrot.lane.b32.xlu0 %v6196, 32
      %v6276 = vpop.permute.xlu0 %6275
      %6277 = vrot.lane.b32.xlu0 %v6197, 32
      %v6278 = vpop.permute.xlu0 %6277
      %6279 = vrot.lane.b32.xlu0 %v6198, 32
      %v6280 = vpop.permute.xlu0 %6279
      %6281 = vrot.lane.b32.xlu0 %v6199, 32
      %v6282 = vpop.permute.xlu0 %6281
      %6283 = vrot.lane.b32.xlu0 %v6200, 32
      %v6284 = vpop.permute.xlu0 %6283
      %6285 = vrot.lane.b32.xlu0 %v6201, 32
      %v6286 = vpop.permute.xlu0 %6285
      %6287 = vrot.lane.b32.xlu0 %v6202, 32
      %v6288 = vpop.permute.xlu0 %6287
      %6289 = vrot.lane.b32.xlu0 %v6203, 32
      %v6290 = vpop.permute.xlu0 %6289
      %6291 = vrot.lane.b32.xlu0 %v6204, 32
      %v6292 = vpop.permute.xlu0 %6291
      %6293 = vrot.lane.b32.xlu0 %v6205, 32
      %v6294 = vpop.permute.xlu0 %6293
      %6295 = vrot.lane.b32.xlu0 %v6206, 32
      %v6296 = vpop.permute.xlu0 %6295
      %6297 = vrot.lane.b32.xlu0 %v6207, 32
      %v6298 = vpop.permute.xlu0 %6297
      %6299 = vrot.lane.b32.xlu0 %v6208, 32
      %v6300 = vpop.permute.xlu0 %6299
      %6301 = vrot.lane.b32.xlu0 %v6209, 32
      %v6302 = vpop.permute.xlu0 %6301
      %6303 = vrot.lane.b32.xlu0 %v6210, 32
      %v6304 = vpop.permute.xlu0 %6303
      %6305 = vrot.lane.b32.xlu0 %v6211, 32
      %v6306 = vpop.permute.xlu0 %6305
      %6307 = vrot.lane.b32.xlu0 %v6212, 32
      %v6308 = vpop.permute.xlu0 %6307
      %6341 = vst.msk [vmem:[#allocation3] sm:$0xff] %vm1891, %v6246
      %6342 = vst.msk [vmem:[#allocation3 + $0x8] sm:$0xff] %vm1891, %v6248
      %6343 = vst.msk [vmem:[#allocation3 + $0x10] sm:$0xff] %vm1891, %v6250
      %6344 = vst.msk [vmem:[#allocation3 + $0x18] sm:$0xff] %vm1891, %v6252
      %6345 = vst.msk [vmem:[#allocation3 + $0x20] sm:$0xff] %vm1891, %v6254
      %6346 = vst.msk [vmem:[#allocation3 + $0x28] sm:$0xff] %vm1891, %v6256
      %6347 = vst.msk [vmem:[#allocation3 + $0x30] sm:$0xff] %vm1891, %v6258
      %6348 = vst.msk [vmem:[#allocation3 + $0x38] sm:$0xff] %vm1891, %v6260
      %6349 = vst.msk [vmem:[#allocation3 + $0x40] sm:$0xff] %vm1891, %v6262
      %6350 = vst.msk [vmem:[#allocation3 + $0x48] sm:$0xff] %vm1891, %v6264
      %6351 = vst.msk [vmem:[#allocation3 + $0x50] sm:$0xff] %vm1891, %v6266
      %6352 = vst.msk [vmem:[#allocation3 + $0x58] sm:$0xff] %vm1891, %v6268
      %6353 = vst.msk [vmem:[#allocation3 + $0x60] sm:$0xff] %vm1891, %v6270
      %6354 = vst.msk [vmem:[#allocation3 + $0x68] sm:$0xff] %vm1891, %v6272
      %6355 = vst.msk [vmem:[#allocation3 + $0x70] sm:$0xff] %vm1891, %v6274
      %6356 = vst.msk [vmem:[#allocation3 + $0x78] sm:$0xff] %vm1891, %v6276
      %6357 = vst.msk [vmem:[#allocation3 + $0x80] sm:$0xff] %vm1891, %v6278
      %6358 = vst.msk [vmem:[#allocation3 + $0x88] sm:$0xff] %vm1891, %v6280
      %6359 = vst.msk [vmem:[#allocation3 + $0x90] sm:$0xff] %vm1891, %v6282
      %6360 = vst.msk [vmem:[#allocation3 + $0x98] sm:$0xff] %vm1891, %v6284
      %6361 = vst.msk [vmem:[#allocation3 + $0xa0] sm:$0xff] %vm1891, %v6286
      %6362 = vst.msk [vmem:[#allocation3 + $0xa8] sm:$0xff] %vm1891, %v6288
      %6363 = vst.msk [vmem:[#allocation3 + $0xb0] sm:$0xff] %vm1891, %v6290
      %6364 = vst.msk [vmem:[#allocation3 + $0xb8] sm:$0xff] %vm1891, %v6292
      %6365 = vst.msk [vmem:[#allocation3 + $0xc0] sm:$0xff] %vm1891, %v6294
      %6366 = vst.msk [vmem:[#allocation3 + $0xc8] sm:$0xff] %vm1891, %v6296
      %6367 = vst.msk [vmem:[#allocation3 + $0xd0] sm:$0xff] %vm1891, %v6298
      %6368 = vst.msk [vmem:[#allocation3 + $0xd8] sm:$0xff] %vm1891, %v6300
      %6369 = vst.msk [vmem:[#allocation3 + $0xe0] sm:$0xff] %vm1891, %v6302
      %6370 = vst.msk [vmem:[#allocation3 + $0xe8] sm:$0xff] %vm1891, %v6304
      %6371 = vst.msk [vmem:[#allocation3 + $0xf0] sm:$0xff] %vm1891, %v6306
      %6372 = vst.msk [vmem:[#allocation3 + $0xf8] sm:$0xff] %vm1891, %v6308
      %v6373 = vld [vmem:[#allocation3] sm:$0xff]
      %v6374 = vld [vmem:[#allocation3 + $0x8] sm:$0xff]
      %v6375 = vld [vmem:[#allocation3 + $0x10] sm:$0xff]
      %v6376 = vld [vmem:[#allocation3 + $0x18] sm:$0xff]
      %v6377 = vld [vmem:[#allocation3 + $0x20] sm:$0xff]
      %v6378 = vld [vmem:[#allocation3 + $0x28] sm:$0xff]
      %v6379 = vld [vmem:[#allocation3 + $0x30] sm:$0xff]
      %v6380 = vld [vmem:[#allocation3 + $0x38] sm:$0xff]
      %v6381 = vld [vmem:[#allocation3 + $0x40] sm:$0xff]
      %v6382 = vld [vmem:[#allocation3 + $0x48] sm:$0xff]
      %v6383 = vld [vmem:[#allocation3 + $0x50] sm:$0xff]
      %v6384 = vld [vmem:[#allocation3 + $0x58] sm:$0xff]
      %v6385 = vld [vmem:[#allocation3 + $0x60] sm:$0xff]
      %v6386 = vld [vmem:[#allocation3 + $0x68] sm:$0xff]
      %v6387 = vld [vmem:[#allocation3 + $0x70] sm:$0xff]
      %v6388 = vld [vmem:[#allocation3 + $0x78] sm:$0xff]
      %v6389 = vld [vmem:[#allocation3 + $0x80] sm:$0xff]
      %v6390 = vld [vmem:[#allocation3 + $0x88] sm:$0xff]
      %v6391 = vld [vmem:[#allocation3 + $0x90] sm:$0xff]
      %v6392 = vld [vmem:[#allocation3 + $0x98] sm:$0xff]
      %v6393 = vld [vmem:[#allocation3 + $0xa0] sm:$0xff]
      %v6394 = vld [vmem:[#allocation3 + $0xa8] sm:$0xff]
      %v6395 = vld [vmem:[#allocation3 + $0xb0] sm:$0xff]
      %v6396 = vld [vmem:[#allocation3 + $0xb8] sm:$0xff]
      %v6397 = vld [vmem:[#allocation3 + $0xc0] sm:$0xff]
      %v6398 = vld [vmem:[#allocation3 + $0xc8] sm:$0xff]
      %v6399 = vld [vmem:[#allocation3 + $0xd0] sm:$0xff]
      %v6400 = vld [vmem:[#allocation3 + $0xd8] sm:$0xff]
      %v6401 = vld [vmem:[#allocation3 + $0xe0] sm:$0xff]
      %v6402 = vld [vmem:[#allocation3 + $0xe8] sm:$0xff]
      %v6403 = vld [vmem:[#allocation3 + $0xf0] sm:$0xff]
      %v6404 = vld [vmem:[#allocation3 + $0xf8] sm:$0xff]
      %v6405 = vld [vmem:[%s1] sm:$0xff]
      %v6406 = vld [vmem:[%s1 + $0x8] sm:$0xff]
      %v6407 = vld [vmem:[%s1 + $0x10] sm:$0xff]
      %v6408 = vld [vmem:[%s1 + $0x18] sm:$0xff]
      %v6409 = vld [vmem:[%s1 + $0x20] sm:$0xf]
      %v6411 = vsel %vm1961, %v6373, 0
      %v6414 = vsel %vm1961, %v6374, 0
      %v6417 = vsel %vm1961, %v6375, 0
      %v6420 = vsel %vm1961, %v6376, 0
      %v6423 = vsel %vm1961, %v6377, 0
      %v6426 = vsel %vm1961, %v6378, 0
      %v6429 = vsel %vm1961, %v6379, 0
      %v6432 = vsel %vm1961, %v6380, 0
      %v6435 = vsel %vm1961, %v6381, 0
      %v6438 = vsel %vm1961, %v6382, 0
      %v6441 = vsel %vm1961, %v6383, 0
      %v6444 = vsel %vm1961, %v6384, 0
      %v6447 = vsel %vm1961, %v6385, 0
      %v6450 = vsel %vm1961, %v6386, 0
      %v6453 = vsel %vm1961, %v6387, 0
      %v6456 = vsel %vm1961, %v6388, 0
      %v6459 = vsel %vm1961, %v6389, 0
      %v6462 = vsel %vm1961, %v6390, 0
      %v6465 = vsel %vm1961, %v6391, 0
      %v6468 = vsel %vm1961, %v6392, 0
      %v6471 = vsel %vm1961, %v6393, 0
      %v6474 = vsel %vm1961, %v6394, 0
      %v6477 = vsel %vm1961, %v6395, 0
      %v6480 = vsel %vm1961, %v6396, 0
      %v6483 = vsel %vm1961, %v6397, 0
      %v6486 = vsel %vm1961, %v6398, 0
      %v6489 = vsel %vm1961, %v6399, 0
      %v6492 = vsel %vm1961, %v6400, 0
      %v6495 = vsel %vm1961, %v6401, 0
      %v6498 = vsel %vm1961, %v6402, 0
      %v6501 = vsel %vm1961, %v6403, 0
      %v6504 = vsel %vm1961, %v6404, 0
      %v6507 = vsel %vm2058, %v6409, 0
      %6509 = vmatpush.msra.mxu0 0.0
      %6510 = vmatpush.msra.mxu0 0.0
      %6511 = vmatpush.msra.mxu0 0.0
      %6512 = vmatpush.msra.mxu0 0.0
      %6513 = vmatpush.msra.mxu0 0.0
      %6514 = vmatpush.msra.mxu0 0.0
      %6515 = vmatpush.msra.mxu0 0.0
      %6516 = vmatpush.msra.mxu0 0.0
      %6517 = vmatpush.msra.mxu0 0.0
      %6518 = vmatpush.msra.mxu0 0.0
      %6519 = vmatpush.msra.mxu0 0.0
      %6520 = vmatpush.msra.mxu0 %v6507
      %6521 = vmatpush.msra.mxu0 %v6408
      %6522 = vmatpush.msra.mxu0 %v6407
      %6523 = vmatpush.msra.mxu0 %v6406
      %6524 = vmatpush.msra.mxu0 %v6405
      %6525 = vmatmul.f32.gmra.mxu0 %v6411
      %v6526 = vpop.f32.mrf.mxu0
      %v6527 = vadd.f32 0.0, %v6526
      %6528 = vmatmul.f32.gmra.mxu0 %v6414
      %v6529 = vpop.f32.mrf.mxu0
      %v6530 = vadd.f32 0.0, %v6529
      %6531 = vmatmul.f32.gmra.mxu0 %v6417
      %v6532 = vpop.f32.mrf.mxu0
      %v6533 = vadd.f32 0.0, %v6532
      %6534 = vmatmul.f32.gmra.mxu0 %v6420
      %v6535 = vpop.f32.mrf.mxu0
      %v6536 = vadd.f32 0.0, %v6535
      %6537 = vmatmul.f32.gmra.mxu0 %v6423
      %v6538 = vpop.f32.mrf.mxu0
      %v6539 = vadd.f32 0.0, %v6538
      %6540 = vmatmul.f32.gmra.mxu0 %v6426
      %v6541 = vpop.f32.mrf.mxu0
      %v6542 = vadd.f32 0.0, %v6541
      %6543 = vmatmul.f32.gmra.mxu0 %v6429
      %v6544 = vpop.f32.mrf.mxu0
      %v6545 = vadd.f32 0.0, %v6544
      %6546 = vmatmul.f32.gmra.mxu0 %v6432
      %v6547 = vpop.f32.mrf.mxu0
      %v6548 = vadd.f32 0.0, %v6547
      %6549 = vmatmul.f32.gmra.mxu0 %v6435
      %v6550 = vpop.f32.mrf.mxu0
      %v6551 = vadd.f32 0.0, %v6550
      %6552 = vmatmul.f32.gmra.mxu0 %v6438
      %v6553 = vpop.f32.mrf.mxu0
      %v6554 = vadd.f32 0.0, %v6553
      %6555 = vmatmul.f32.gmra.mxu0 %v6441
      %v6556 = vpop.f32.mrf.mxu0
      %v6557 = vadd.f32 0.0, %v6556
      %6558 = vmatmul.f32.gmra.mxu0 %v6444
      %v6559 = vpop.f32.mrf.mxu0
      %v6560 = vadd.f32 0.0, %v6559
      %6561 = vmatmul.f32.gmra.mxu0 %v6447
      %v6562 = vpop.f32.mrf.mxu0
      %v6563 = vadd.f32 0.0, %v6562
      %6564 = vmatmul.f32.gmra.mxu0 %v6450
      %v6565 = vpop.f32.mrf.mxu0
      %v6566 = vadd.f32 0.0, %v6565
      %6567 = vmatmul.f32.gmra.mxu0 %v6453
      %v6568 = vpop.f32.mrf.mxu0
      %v6569 = vadd.f32 0.0, %v6568
      %6570 = vmatmul.f32.gmra.mxu0 %v6456
      %v6571 = vpop.f32.mrf.mxu0
      %v6572 = vadd.f32 0.0, %v6571
      %6573 = vmatmul.f32.gmra.mxu0 %v6459
      %v6574 = vpop.f32.mrf.mxu0
      %v6575 = vadd.f32 0.0, %v6574
      %6576 = vmatmul.f32.gmra.mxu0 %v6462
      %v6577 = vpop.f32.mrf.mxu0
      %v6578 = vadd.f32 0.0, %v6577
      %6579 = vmatmul.f32.gmra.mxu0 %v6465
      %v6580 = vpop.f32.mrf.mxu0
      %v6581 = vadd.f32 0.0, %v6580
      %6582 = vmatmul.f32.gmra.mxu0 %v6468
      %v6583 = vpop.f32.mrf.mxu0
      %v6584 = vadd.f32 0.0, %v6583
      %6585 = vmatmul.f32.gmra.mxu0 %v6471
      %v6586 = vpop.f32.mrf.mxu0
      %v6587 = vadd.f32 0.0, %v6586
      %6588 = vmatmul.f32.gmra.mxu0 %v6474
      %v6589 = vpop.f32.mrf.mxu0
      %v6590 = vadd.f32 0.0, %v6589
      %6591 = vmatmul.f32.gmra.mxu0 %v6477
      %v6592 = vpop.f32.mrf.mxu0
      %v6593 = vadd.f32 0.0, %v6592
      %6594 = vmatmul.f32.gmra.mxu0 %v6480
      %v6595 = vpop.f32.mrf.mxu0
      %v6596 = vadd.f32 0.0, %v6595
      %6597 = vmatmul.f32.gmra.mxu0 %v6483
      %v6598 = vpop.f32.mrf.mxu0
      %v6599 = vadd.f32 0.0, %v6598
      %6600 = vmatmul.f32.gmra.mxu0 %v6486
      %v6601 = vpop.f32.mrf.mxu0
      %v6602 = vadd.f32 0.0, %v6601
      %6603 = vmatmul.f32.gmra.mxu0 %v6489
      %v6604 = vpop.f32.mrf.mxu0
      %v6605 = vadd.f32 0.0, %v6604
      %6606 = vmatmul.f32.gmra.mxu0 %v6492
      %v6607 = vpop.f32.mrf.mxu0
      %v6608 = vadd.f32 0.0, %v6607
      %6609 = vmatmul.f32.gmra.mxu0 %v6495
      %v6610 = vpop.f32.mrf.mxu0
      %v6611 = vadd.f32 0.0, %v6610
      %6612 = vmatmul.f32.gmra.mxu0 %v6498
      %v6613 = vpop.f32.mrf.mxu0
      %v6614 = vadd.f32 0.0, %v6613
      %6615 = vmatmul.f32.gmra.mxu0 %v6501
      %v6616 = vpop.f32.mrf.mxu0
      %v6617 = vadd.f32 0.0, %v6616
      %6618 = vmatmul.f32.gmra.mxu0 %v6504
      %v6619 = vpop.f32.mrf.mxu0
      %v6620 = vadd.f32 0.0, %v6619
      %6621 = vdwg.mxu0
      %v6622 = vsel %vm204, %v6527, 0.0
      %v6623 = vsel %vm204, %v6530, 0.0
      %v6624 = vadd.f32 %v6622, %v6623
      %v6625 = vsel %vm204, %v6533, 0.0
      %v6626 = vadd.f32 %v6624, %v6625
      %v6627 = vsel %vm204, %v6536, 0.0
      %v6628 = vadd.f32 %v6626, %v6627
      %v6629 = vsel %vm204, %v6539, 0.0
      %v6630 = vadd.f32 %v6628, %v6629
      %v6631 = vsel %vm204, %v6542, 0.0
      %v6632 = vadd.f32 %v6630, %v6631
      %v6633 = vsel %vm204, %v6545, 0.0
      %v6634 = vadd.f32 %v6632, %v6633
      %v6635 = vsel %vm204, %v6548, 0.0
      %v6636 = vadd.f32 %v6634, %v6635
      %v6637 = vsel %vm204, %v6551, 0.0
      %v6638 = vadd.f32 %v6636, %v6637
      %v6639 = vsel %vm204, %v6554, 0.0
      %v6640 = vadd.f32 %v6638, %v6639
      %v6641 = vsel %vm204, %v6557, 0.0
      %v6642 = vadd.f32 %v6640, %v6641
      %v6643 = vsel %vm204, %v6560, 0.0
      %v6644 = vadd.f32 %v6642, %v6643
      %v6645 = vsel %vm204, %v6563, 0.0
      %v6646 = vadd.f32 %v6644, %v6645
      %v6647 = vsel %vm204, %v6566, 0.0
      %v6648 = vadd.f32 %v6646, %v6647
      %v6649 = vsel %vm204, %v6569, 0.0
      %v6650 = vadd.f32 %v6648, %v6649
      %v6651 = vsel %vm204, %v6572, 0.0
      %v6652 = vadd.f32 %v6650, %v6651
      %v6653 = vsel %vm204, %v6575, 0.0
      %v6654 = vadd.f32 %v6652, %v6653
      %v6655 = vsel %vm204, %v6578, 0.0
      %v6656 = vadd.f32 %v6654, %v6655
      %v6657 = vsel %vm204, %v6581, 0.0
      %v6658 = vadd.f32 %v6656, %v6657
      %v6659 = vsel %vm204, %v6584, 0.0
      %v6660 = vadd.f32 %v6658, %v6659
      %v6661 = vsel %vm204, %v6587, 0.0
      %v6662 = vadd.f32 %v6660, %v6661
      %v6663 = vsel %vm204, %v6590, 0.0
      %v6664 = vadd.f32 %v6662, %v6663
      %v6665 = vsel %vm204, %v6593, 0.0
      %v6666 = vadd.f32 %v6664, %v6665
      %v6667 = vsel %vm204, %v6596, 0.0
      %v6668 = vadd.f32 %v6666, %v6667
      %v6669 = vsel %vm204, %v6599, 0.0
      %v6670 = vadd.f32 %v6668, %v6669
      %v6671 = vsel %vm204, %v6602, 0.0
      %v6672 = vadd.f32 %v6670, %v6671
      %v6673 = vsel %vm204, %v6605, 0.0
      %v6674 = vadd.f32 %v6672, %v6673
      %v6675 = vsel %vm204, %v6608, 0.0
      %v6676 = vadd.f32 %v6674, %v6675
      %v6677 = vsel %vm204, %v6611, 0.0
      %v6678 = vadd.f32 %v6676, %v6677
      %v6679 = vsel %vm204, %v6614, 0.0
      %v6680 = vadd.f32 %v6678, %v6679
      %v6681 = vsel %vm204, %v6617, 0.0
      %v6682 = vadd.f32 %v6680, %v6681
      %v6683 = vsel %vm204, %v6620, 0.0
      %v6684 = vadd.f32 %v6682, %v6683
      %v6685 = vrot.slane %v6684, 4
      %v6686 = vadd.f32 %v6684, %v6685
      %v6687 = vrot.slane %v6686, 2
      %v6688 = vadd.f32 %v6686, %v6687
      %v6689 = vrot.slane %v6688, 1
      %v6690 = vadd.f32 %v6688, %v6689
      %v6691 = vmul.f32 %v6690, %v2250
      %v6692 = vsub.f32 %v6527, %v6691
      %v6693 = vsub.f32 %v6530, %v6691
      %v6694 = vsub.f32 %v6533, %v6691
      %v6695 = vsub.f32 %v6536, %v6691
      %v6696 = vsub.f32 %v6539, %v6691
      %v6697 = vsub.f32 %v6542, %v6691
      %v6698 = vsub.f32 %v6545, %v6691
      %v6699 = vsub.f32 %v6548, %v6691
      %v6700 = vsub.f32 %v6551, %v6691
      %v6701 = vsub.f32 %v6554, %v6691
      %v6702 = vsub.f32 %v6557, %v6691
      %v6703 = vsub.f32 %v6560, %v6691
      %v6704 = vsub.f32 %v6563, %v6691
      %v6705 = vsub.f32 %v6566, %v6691
      %v6706 = vsub.f32 %v6569, %v6691
      %v6707 = vsub.f32 %v6572, %v6691
      %v6708 = vsub.f32 %v6575, %v6691
      %v6709 = vsub.f32 %v6578, %v6691
      %v6710 = vsub.f32 %v6581, %v6691
      %v6711 = vsub.f32 %v6584, %v6691
      %v6712 = vsub.f32 %v6587, %v6691
      %v6713 = vsub.f32 %v6590, %v6691
      %v6714 = vsub.f32 %v6593, %v6691
      %v6715 = vsub.f32 %v6596, %v6691
      %v6716 = vsub.f32 %v6599, %v6691
      %v6717 = vsub.f32 %v6602, %v6691
      %v6718 = vsub.f32 %v6605, %v6691
      %v6719 = vsub.f32 %v6608, %v6691
      %v6720 = vsub.f32 %v6611, %v6691
      %v6721 = vsub.f32 %v6614, %v6691
      %v6722 = vsub.f32 %v6617, %v6691
      %v6723 = vsub.f32 %v6620, %v6691
      %v6724 = vmul.f32 %v6692, %v6692
      %v6725 = vmul.f32 %v6693, %v6693
      %v6726 = vmul.f32 %v6694, %v6694
      %v6727 = vmul.f32 %v6695, %v6695
      %v6728 = vmul.f32 %v6696, %v6696
      %v6729 = vmul.f32 %v6697, %v6697
      %v6730 = vmul.f32 %v6698, %v6698
      %v6731 = vmul.f32 %v6699, %v6699
      %v6732 = vmul.f32 %v6700, %v6700
      %v6733 = vmul.f32 %v6701, %v6701
      %v6734 = vmul.f32 %v6702, %v6702
      %v6735 = vmul.f32 %v6703, %v6703
      %v6736 = vmul.f32 %v6704, %v6704
      %v6737 = vmul.f32 %v6705, %v6705
      %v6738 = vmul.f32 %v6706, %v6706
      %v6739 = vmul.f32 %v6707, %v6707
      %v6740 = vmul.f32 %v6708, %v6708
      %v6741 = vmul.f32 %v6709, %v6709
      %v6742 = vmul.f32 %v6710, %v6710
      %v6743 = vmul.f32 %v6711, %v6711
      %v6744 = vmul.f32 %v6712, %v6712
      %v6745 = vmul.f32 %v6713, %v6713
      %v6746 = vmul.f32 %v6714, %v6714
      %v6747 = vmul.f32 %v6715, %v6715
      %v6748 = vmul.f32 %v6716, %v6716
      %v6749 = vmul.f32 %v6717, %v6717
      %v6750 = vmul.f32 %v6718, %v6718
      %v6751 = vmul.f32 %v6719, %v6719
      %v6752 = vmul.f32 %v6720, %v6720
      %v6753 = vmul.f32 %v6721, %v6721
      %v6754 = vmul.f32 %v6722, %v6722
      %v6755 = vmul.f32 %v6723, %v6723
      %v6756 = vsel %vm204, %v6724, 0.0
      %v6757 = vsel %vm204, %v6725, 0.0
      %v6758 = vadd.f32 %v6756, %v6757
      %v6759 = vsel %vm204, %v6726, 0.0
      %v6760 = vadd.f32 %v6758, %v6759
      %v6761 = vsel %vm204, %v6727, 0.0
      %v6762 = vadd.f32 %v6760, %v6761
      %v6763 = vsel %vm204, %v6728, 0.0
      %v6764 = vadd.f32 %v6762, %v6763
      %v6765 = vsel %vm204, %v6729, 0.0
      %v6766 = vadd.f32 %v6764, %v6765
      %v6767 = vsel %vm204, %v6730, 0.0
      %v6768 = vadd.f32 %v6766, %v6767
      %v6769 = vsel %vm204, %v6731, 0.0
      %v6770 = vadd.f32 %v6768, %v6769
      %v6771 = vsel %vm204, %v6732, 0.0
      %v6772 = vadd.f32 %v6770, %v6771
      %v6773 = vsel %vm204, %v6733, 0.0
      %v6774 = vadd.f32 %v6772, %v6773
      %v6775 = vsel %vm204, %v6734, 0.0
      %v6776 = vadd.f32 %v6774, %v6775
      %v6777 = vsel %vm204, %v6735, 0.0
      %v6778 = vadd.f32 %v6776, %v6777
      %v6779 = vsel %vm204, %v6736, 0.0
      %v6780 = vadd.f32 %v6778, %v6779
      %v6781 = vsel %vm204, %v6737, 0.0
      %v6782 = vadd.f32 %v6780, %v6781
      %v6783 = vsel %vm204, %v6738, 0.0
      %v6784 = vadd.f32 %v6782, %v6783
      %v6785 = vsel %vm204, %v6739, 0.0
      %v6786 = vadd.f32 %v6784, %v6785
      %v6787 = vsel %vm204, %v6740, 0.0
      %v6788 = vadd.f32 %v6786, %v6787
      %v6789 = vsel %vm204, %v6741, 0.0
      %v6790 = vadd.f32 %v6788, %v6789
      %v6791 = vsel %vm204, %v6742, 0.0
      %v6792 = vadd.f32 %v6790, %v6791
      %v6793 = vsel %vm204, %v6743, 0.0
      %v6794 = vadd.f32 %v6792, %v6793
      %v6795 = vsel %vm204, %v6744, 0.0
      %v6796 = vadd.f32 %v6794, %v6795
      %v6797 = vsel %vm204, %v6745, 0.0
      %v6798 = vadd.f32 %v6796, %v6797
      %v6799 = vsel %vm204, %v6746, 0.0
      %v6800 = vadd.f32 %v6798, %v6799
      %v6801 = vsel %vm204, %v6747, 0.0
      %v6802 = vadd.f32 %v6800, %v6801
      %v6803 = vsel %vm204, %v6748, 0.0
      %v6804 = vadd.f32 %v6802, %v6803
      %v6805 = vsel %vm204, %v6749, 0.0
      %v6806 = vadd.f32 %v6804, %v6805
      %v6807 = vsel %vm204, %v6750, 0.0
      %v6808 = vadd.f32 %v6806, %v6807
      %v6809 = vsel %vm204, %v6751, 0.0
      %v6810 = vadd.f32 %v6808, %v6809
      %v6811 = vsel %vm204, %v6752, 0.0
      %v6812 = vadd.f32 %v6810, %v6811
      %v6813 = vsel %vm204, %v6753, 0.0
      %v6814 = vadd.f32 %v6812, %v6813
      %v6815 = vsel %vm204, %v6754, 0.0
      %v6816 = vadd.f32 %v6814, %v6815
      %v6817 = vsel %vm204, %v6755, 0.0
      %v6818 = vadd.f32 %v6816, %v6817
      %v6819 = vrot.slane %v6818, 4
      %v6820 = vadd.f32 %v6818, %v6819
      %v6821 = vrot.slane %v6820, 2
      %v6822 = vadd.f32 %v6820, %v6821
      %v6823 = vrot.slane %v6822, 1
      %v6824 = vadd.f32 %v6822, %v6823
      %v6825 = vmul.f32 %v6824, %v2250
      %v6826 = vadd.f32 %v6825, 1e-05
      %v6827 = vrsqrt.pop %v6826
      %v6828 = vmul.f32 %v6827, %v6826
      %v6829 = vmul.f32 %v6828, %v6827
      %v6830 = vmul.f32 0.5, %v6829
      %v6831 = vsub.f32 1.5, %v6830
      %v6832 = vmul.f32 %v6827, %v6831
      %vm6833 = vweird.f32 %v6826
      %vm6834 = vweird.f32 %v6827
      %vm6835 = vmor %vm6833, %vm6834
      %v6836 = vsel %vm6835, %v6827, %v6832
      %v6837 = vmul.f32 %v6692, %v6836
      %v6838 = vmul.f32 %v6693, %v6836
      %v6839 = vmul.f32 %v6694, %v6836
      %v6840 = vmul.f32 %v6695, %v6836
      %v6841 = vmul.f32 %v6696, %v6836
      %v6842 = vmul.f32 %v6697, %v6836
      %v6843 = vmul.f32 %v6698, %v6836
      %v6844 = vmul.f32 %v6699, %v6836
      %v6845 = vmul.f32 %v6700, %v6836
      %v6846 = vmul.f32 %v6701, %v6836
      %v6847 = vmul.f32 %v6702, %v6836
      %v6848 = vmul.f32 %v6703, %v6836
      %v6849 = vmul.f32 %v6704, %v6836
      %v6850 = vmul.f32 %v6705, %v6836
      %v6851 = vmul.f32 %v6706, %v6836
      %v6852 = vmul.f32 %v6707, %v6836
      %v6853 = vmul.f32 %v6708, %v6836
      %v6854 = vmul.f32 %v6709, %v6836
      %v6855 = vmul.f32 %v6710, %v6836
      %v6856 = vmul.f32 %v6711, %v6836
      %v6857 = vmul.f32 %v6712, %v6836
      %v6858 = vmul.f32 %v6713, %v6836
      %v6859 = vmul.f32 %v6714, %v6836
      %v6860 = vmul.f32 %v6715, %v6836
      %v6861 = vmul.f32 %v6716, %v6836
      %v6862 = vmul.f32 %v6717, %v6836
      %v6863 = vmul.f32 %v6718, %v6836
      %v6864 = vmul.f32 %v6719, %v6836
      %v6865 = vmul.f32 %v6720, %v6836
      %v6866 = vmul.f32 %v6721, %v6836
      %v6867 = vmul.f32 %v6722, %v6836
      %v6868 = vmul.f32 %v6723, %v6836
      %v6869 = vmax.f32 %v6837, 0.0
      %v6870 = vmax.f32 %v6838, 0.0
      %v6871 = vmax.f32 %v6839, 0.0
      %v6872 = vmax.f32 %v6840, 0.0
      %v6873 = vmax.f32 %v6841, 0.0
      %v6874 = vmax.f32 %v6842, 0.0
      %v6875 = vmax.f32 %v6843, 0.0
      %v6876 = vmax.f32 %v6844, 0.0
      %v6877 = vmax.f32 %v6845, 0.0
      %v6878 = vmax.f32 %v6846, 0.0
      %v6879 = vmax.f32 %v6847, 0.0
      %v6880 = vmax.f32 %v6848, 0.0
      %v6881 = vmax.f32 %v6849, 0.0
      %v6882 = vmax.f32 %v6850, 0.0
      %v6883 = vmax.f32 %v6851, 0.0
      %v6884 = vmax.f32 %v6852, 0.0
      %v6885 = vmax.f32 %v6853, 0.0
      %v6886 = vmax.f32 %v6854, 0.0
      %v6887 = vmax.f32 %v6855, 0.0
      %v6888 = vmax.f32 %v6856, 0.0
      %v6889 = vmax.f32 %v6857, 0.0
      %v6890 = vmax.f32 %v6858, 0.0
      %v6891 = vmax.f32 %v6859, 0.0
      %v6892 = vmax.f32 %v6860, 0.0
      %v6893 = vmax.f32 %v6861, 0.0
      %v6894 = vmax.f32 %v6862, 0.0
      %v6895 = vmax.f32 %v6863, 0.0
      %v6896 = vmax.f32 %v6864, 0.0
      %v6897 = vmax.f32 %v6865, 0.0
      %v6898 = vmax.f32 %v6866, 0.0
      %v6899 = vmax.f32 %v6867, 0.0
      %v6900 = vmax.f32 %v6868, 0.0
      %6901 = vst.msk [vmem:[%s203 + $0x1] sm:$0xff] %vm204, %v6869
      %6902 = vst.msk [vmem:[%s203 + $0x9] sm:$0xff] %vm204, %v6870
      %6903 = vst.msk [vmem:[%s203 + $0x19] sm:$0xff] %vm204, %v6871
      %6904 = vst.msk [vmem:[%s203 + $0x21] sm:$0xff] %vm204, %v6872
      %6905 = vst.msk [vmem:[%s203 + $0x31] sm:$0xff] %vm204, %v6873
      %6906 = vst.msk [vmem:[%s203 + $0x39] sm:$0xff] %vm204, %v6874
      %6907 = vst.msk [vmem:[%s203 + $0x49] sm:$0xff] %vm204, %v6875
      %6908 = vst.msk [vmem:[%s203 + $0x51] sm:$0xff] %vm204, %v6876
      %6909 = vst.msk [vmem:[%s203 + $0x61] sm:$0xff] %vm204, %v6877
      %6910 = vst.msk [vmem:[%s203 + $0x69] sm:$0xff] %vm204, %v6878
      %6911 = vst.msk [vmem:[%s203 + $0x79] sm:$0xff] %vm204, %v6879
      %6912 = vst.msk [vmem:[%s203 + $0x81] sm:$0xff] %vm204, %v6880
      %6913 = vst.msk [vmem:[%s203 + $0x91] sm:$0xff] %vm204, %v6881
      %6914 = vst.msk [vmem:[%s203 + $0x99] sm:$0xff] %vm204, %v6882
      %6915 = vst.msk [vmem:[%s203 + $0xa9] sm:$0xff] %vm204, %v6883
      %6916 = vst.msk [vmem:[%s203 + $0xb1] sm:$0xff] %vm204, %v6884
      %6917 = vst.msk [vmem:[%s203 + $0xc1] sm:$0xff] %vm204, %v6885
      %6918 = vst.msk [vmem:[%s203 + $0xc9] sm:$0xff] %vm204, %v6886
      %6919 = vst.msk [vmem:[%s203 + $0xd9] sm:$0xff] %vm204, %v6887
      %6920 = vst.msk [vmem:[%s203 + $0xe1] sm:$0xff] %vm204, %v6888
      %6921 = vst.msk [vmem:[%s203 + $0xf1] sm:$0xff] %vm204, %v6889
      %6922 = vst.msk [vmem:[%s203 + $0xf9] sm:$0xff] %vm204, %v6890
      %6923 = vst.msk [vmem:[%s203 + $0x109] sm:$0xff] %vm204, %v6891
      %6924 = vst.msk [vmem:[%s203 + $0x111] sm:$0xff] %vm204, %v6892
      %6925 = vst.msk [vmem:[%s203 + $0x121] sm:$0xff] %vm204, %v6893
      %6926 = vst.msk [vmem:[%s203 + $0x129] sm:$0xff] %vm204, %v6894
      %6927 = vst.msk [vmem:[%s203 + $0x139] sm:$0xff] %vm204, %v6895
      %6928 = vst.msk [vmem:[%s203 + $0x141] sm:$0xff] %vm204, %v6896
      %6929 = vst.msk [vmem:[%s203 + $0x151] sm:$0xff] %vm204, %v6897
      %6930 = vst.msk [vmem:[%s203 + $0x159] sm:$0xff] %vm204, %v6898
      %6931 = vst.msk [vmem:[%s203 + $0x169] sm:$0xff] %vm204, %v6899
      %6932 = vst.msk [vmem:[%s203 + $0x171] sm:$0xff] %vm204, %v6900
      %6933 = vst.msk [vmem:[#allocation2 + $0x1] sm:$0xff] %vm204, %v6871
      %6934 = vst.msk [vmem:[#allocation2 + $0x9] sm:$0xff] %vm204, %v6872
      %6935 = vst.msk [vmem:[%s239 + $0x1] sm:$0xff] %vm204, %v6897
      %6936 = vst.msk [vmem:[%s239 + $0x9] sm:$0xff] %vm204, %v6898
      %v6937 = vld [vmem:[#allocation2 + $0x2] sm:$0x1]
      %v6938 = vld [vmem:[#allocation2 + $0x1a] sm:$0x1]
      %v6939 = vld [vmem:[#allocation2 + $0x32] sm:$0x1]
      %v6940 = vld [vmem:[#allocation2 + $0x4a] sm:$0x1]
      %v6941 = vld [vmem:[#allocation2 + $0x62] sm:$0x1]
      %v6942 = vld [vmem:[#allocation2 + $0x7a] sm:$0x1]
      %v6943 = vld [vmem:[#allocation2 + $0x92] sm:$0x1]
      %v6944 = vld [vmem:[#allocation2 + $0xaa] sm:$0x1]
      %v6945 = vld [vmem:[#allocation2 + $0xc2] sm:$0x1]
      %v6946 = vld [vmem:[#allocation2 + $0xda] sm:$0x1]
      %v6947 = vld [vmem:[#allocation2 + $0xf2] sm:$0x1]
      %v6948 = vld [vmem:[#allocation2 + $0x10a] sm:$0x1]
      %v6949 = vld [vmem:[#allocation2 + $0x122] sm:$0x1]
      %v6950 = vld [vmem:[#allocation2 + $0x13a] sm:$0x1]
      %v6951 = vld [vmem:[#allocation2 + $0x152] sm:$0x1]
      %v6952 = vld [vmem:[#allocation2 + $0x16a] sm:$0x1]
      %v6953 = vld [vmem:[#allocation2 + $0x182] sm:$0x1]
      %v6954 = vld [vmem:[#allocation2 + $0x19a] sm:$0x1]
      %6955 = vst.msk [vmem:[#allocation2] sm:$0x1] %vm260, %v6937
      %6956 = vst.msk [vmem:[#allocation2 + $0x18] sm:$0x1] %vm260, %v6938
      %6957 = vst.msk [vmem:[#allocation2 + $0x30] sm:$0x1] %vm260, %v6939
      %6958 = vst.msk [vmem:[#allocation2 + $0x48] sm:$0x1] %vm260, %v6940
      %6959 = vst.msk [vmem:[#allocation2 + $0x60] sm:$0x1] %vm260, %v6941
      %6960 = vst.msk [vmem:[#allocation2 + $0x78] sm:$0x1] %vm260, %v6942
      %6961 = vst.msk [vmem:[#allocation2 + $0x90] sm:$0x1] %vm260, %v6943
      %6962 = vst.msk [vmem:[#allocation2 + $0xa8] sm:$0x1] %vm260, %v6944
      %6963 = vst.msk [vmem:[#allocation2 + $0xc0] sm:$0x1] %vm260, %v6945
      %6964 = vst.msk [vmem:[#allocation2 + $0xd8] sm:$0x1] %vm260, %v6946
      %6965 = vst.msk [vmem:[#allocation2 + $0xf0] sm:$0x1] %vm260, %v6947
      %6966 = vst.msk [vmem:[#allocation2 + $0x108] sm:$0x1] %vm260, %v6948
      %6967 = vst.msk [vmem:[#allocation2 + $0x120] sm:$0x1] %vm260, %v6949
      %6968 = vst.msk [vmem:[#allocation2 + $0x138] sm:$0x1] %vm260, %v6950
      %6969 = vst.msk [vmem:[#allocation2 + $0x150] sm:$0x1] %vm260, %v6951
      %6970 = vst.msk [vmem:[#allocation2 + $0x168] sm:$0x1] %vm260, %v6952
      %6971 = vst.msk [vmem:[#allocation2 + $0x180] sm:$0x1] %vm260, %v6953
      %6972 = vst.msk [vmem:[#allocation2 + $0x198] sm:$0x1] %vm260, %v6954
      %v6973 = vld [vmem:[#allocation2 + $0xf] sm:$0x1]
      %v6974 = vld [vmem:[#allocation2 + $0x27] sm:$0x1]
      %v6975 = vld [vmem:[#allocation2 + $0x3f] sm:$0x1]
      %v6976 = vld [vmem:[#allocation2 + $0x57] sm:$0x1]
      %v6977 = vld [vmem:[#allocation2 + $0x6f] sm:$0x1]
      %v6978 = vld [vmem:[#allocation2 + $0x87] sm:$0x1]
      %v6979 = vld [vmem:[#allocation2 + $0x9f] sm:$0x1]
      %v6980 = vld [vmem:[#allocation2 + $0xb7] sm:$0x1]
      %v6981 = vld [vmem:[#allocation2 + $0xcf] sm:$0x1]
      %v6982 = vld [vmem:[#allocation2 + $0xe7] sm:$0x1]
      %v6983 = vld [vmem:[#allocation2 + $0xff] sm:$0x1]
      %v6984 = vld [vmem:[#allocation2 + $0x117] sm:$0x1]
      %v6985 = vld [vmem:[#allocation2 + $0x12f] sm:$0x1]
      %v6986 = vld [vmem:[#allocation2 + $0x147] sm:$0x1]
      %v6987 = vld [vmem:[#allocation2 + $0x15f] sm:$0x1]
      %v6988 = vld [vmem:[#allocation2 + $0x177] sm:$0x1]
      %v6989 = vld [vmem:[#allocation2 + $0x18f] sm:$0x1]
      %v6990 = vld [vmem:[#allocation2 + $0x1a7] sm:$0x1]
      %6991 = vst.msk [vmem:[#allocation2 + $0x11] sm:$0x1] %vm260, %v6973
      %6992 = vst.msk [vmem:[#allocation2 + $0x29] sm:$0x1] %vm260, %v6974
      %6993 = vst.msk [vmem:[#allocation2 + $0x41] sm:$0x1] %vm260, %v6975
      %6994 = vst.msk [vmem:[#allocation2 + $0x59] sm:$0x1] %vm260, %v6976
      %6995 = vst.msk [vmem:[#allocation2 + $0x71] sm:$0x1] %vm260, %v6977
      %6996 = vst.msk [vmem:[#allocation2 + $0x89] sm:$0x1] %vm260, %v6978
      %6997 = vst.msk [vmem:[#allocation2 + $0xa1] sm:$0x1] %vm260, %v6979
      %6998 = vst.msk [vmem:[#allocation2 + $0xb9] sm:$0x1] %vm260, %v6980
      %6999 = vst.msk [vmem:[#allocation2 + $0xd1] sm:$0x1] %vm260, %v6981
      %7000 = vst.msk [vmem:[#allocation2 + $0xe9] sm:$0x1] %vm260, %v6982
      %7001 = vst.msk [vmem:[#allocation2 + $0x101] sm:$0x1] %vm260, %v6983
      %7002 = vst.msk [vmem:[#allocation2 + $0x119] sm:$0x1] %vm260, %v6984
      %7003 = vst.msk [vmem:[#allocation2 + $0x131] sm:$0x1] %vm260, %v6985
      %7004 = vst.msk [vmem:[#allocation2 + $0x149] sm:$0x1] %vm260, %v6986
      %7005 = vst.msk [vmem:[#allocation2 + $0x161] sm:$0x1] %vm260, %v6987
      %7006 = vst.msk [vmem:[#allocation2 + $0x179] sm:$0x1] %vm260, %v6988
      %7007 = vst.msk [vmem:[#allocation2 + $0x191] sm:$0x1] %vm260, %v6989
      %7008 = vst.msk [vmem:[#allocation2 + $0x1a9] sm:$0x1] %vm260, %v6990
      %v7009 = vld [vmem:[#allocation2] sm:$0xff]
      %v7010 = vld [vmem:[#allocation2 + $0x8] sm:$0xff]
      %v7011 = vld [vmem:[#allocation2 + $0x18] sm:$0xff]
      %v7012 = vld [vmem:[#allocation2 + $0x20] sm:$0xff]
      %v7013 = vld [vmem:[#allocation2 + $0x30] sm:$0xff]
      %v7014 = vld [vmem:[#allocation2 + $0x38] sm:$0xff]
      %v7015 = vld [vmem:[#allocation2 + $0x48] sm:$0xff]
      %v7016 = vld [vmem:[#allocation2 + $0x50] sm:$0xff]
      %v7017 = vld [vmem:[#allocation2 + $0x60] sm:$0xff]
      %v7018 = vld [vmem:[#allocation2 + $0x68] sm:$0xff]
      %v7019 = vld [vmem:[#allocation2 + $0x78] sm:$0xff]
      %v7020 = vld [vmem:[#allocation2 + $0x80] sm:$0xff]
      %v7021 = vld [vmem:[#allocation2 + $0x90] sm:$0xff]
      %v7022 = vld [vmem:[#allocation2 + $0x98] sm:$0xff]
      %v7023 = vld [vmem:[#allocation2 + $0xa8] sm:$0xff]
      %v7024 = vld [vmem:[#allocation2 + $0xb0] sm:$0xff]
      %v7025 = vld [vmem:[#allocation2 + $0xc0] sm:$0xff]
      %v7026 = vld [vmem:[#allocation2 + $0xc8] sm:$0xff]
      %v7027 = vld [vmem:[#allocation2 + $0xd8] sm:$0xff]
      %v7028 = vld [vmem:[#allocation2 + $0xe0] sm:$0xff]
      %v7029 = vld [vmem:[#allocation2 + $0xf0] sm:$0xff]
      %v7030 = vld [vmem:[#allocation2 + $0xf8] sm:$0xff]
      %v7031 = vld [vmem:[#allocation2 + $0x108] sm:$0xff]
      %v7032 = vld [vmem:[#allocation2 + $0x110] sm:$0xff]
      %v7033 = vld [vmem:[#allocation2 + $0x120] sm:$0xff]
      %v7034 = vld [vmem:[#allocation2 + $0x128] sm:$0xff]
      %v7035 = vld [vmem:[#allocation2 + $0x138] sm:$0xff]
      %v7036 = vld [vmem:[#allocation2 + $0x140] sm:$0xff]
      %v7037 = vld [vmem:[#allocation2 + $0x150] sm:$0xff]
      %v7038 = vld [vmem:[#allocation2 + $0x158] sm:$0xff]
      %v7039 = vld [vmem:[#allocation2 + $0x168] sm:$0xff]
      %v7040 = vld [vmem:[#allocation2 + $0x170] sm:$0xff]
      %7041 = vst.msk [vmem:[#allocation3] sm:$0xff] %vm204, %v7009
      %7042 = vst.msk [vmem:[#allocation3 + $0x8] sm:$0xff] %vm204, %v7010
      %7043 = vst.msk [vmem:[#allocation3 + $0x10] sm:$0xff] %vm204, %v7011
      %7044 = vst.msk [vmem:[#allocation3 + $0x18] sm:$0xff] %vm204, %v7012
      %7045 = vst.msk [vmem:[#allocation3 + $0x20] sm:$0xff] %vm204, %v7013
      %7046 = vst.msk [vmem:[#allocation3 + $0x28] sm:$0xff] %vm204, %v7014
      %7047 = vst.msk [vmem:[#allocation3 + $0x30] sm:$0xff] %vm204, %v7015
      %7048 = vst.msk [vmem:[#allocation3 + $0x38] sm:$0xff] %vm204, %v7016
      %7049 = vst.msk [vmem:[#allocation3 + $0x40] sm:$0xff] %vm204, %v7017
      %7050 = vst.msk [vmem:[#allocation3 + $0x48] sm:$0xff] %vm204, %v7018
      %7051 = vst.msk [vmem:[#allocation3 + $0x50] sm:$0xff] %vm204, %v7019
      %7052 = vst.msk [vmem:[#allocation3 + $0x58] sm:$0xff] %vm204, %v7020
      %7053 = vst.msk [vmem:[#allocation3 + $0x60] sm:$0xff] %vm204, %v7021
      %7054 = vst.msk [vmem:[#allocation3 + $0x68] sm:$0xff] %vm204, %v7022
      %7055 = vst.msk [vmem:[#allocation3 + $0x70] sm:$0xff] %vm204, %v7023
      %7056 = vst.msk [vmem:[#allocation3 + $0x78] sm:$0xff] %vm204, %v7024
      %7057 = vst.msk [vmem:[#allocation3 + $0x80] sm:$0xff] %vm204, %v7025
      %7058 = vst.msk [vmem:[#allocation3 + $0x88] sm:$0xff] %vm204, %v7026
      %7059 = vst.msk [vmem:[#allocation3 + $0x90] sm:$0xff] %vm204, %v7027
      %7060 = vst.msk [vmem:[#allocation3 + $0x98] sm:$0xff] %vm204, %v7028
      %7061 = vst.msk [vmem:[#allocation3 + $0xa0] sm:$0xff] %vm204, %v7029
      %7062 = vst.msk [vmem:[#allocation3 + $0xa8] sm:$0xff] %vm204, %v7030
      %7063 = vst.msk [vmem:[#allocation3 + $0xb0] sm:$0xff] %vm204, %v7031
      %7064 = vst.msk [vmem:[#allocation3 + $0xb8] sm:$0xff] %vm204, %v7032
      %7065 = vst.msk [vmem:[#allocation3 + $0xc0] sm:$0xff] %vm204, %v7033
      %7066 = vst.msk [vmem:[#allocation3 + $0xc8] sm:$0xff] %vm204, %v7034
      %7067 = vst.msk [vmem:[#allocation3 + $0xd0] sm:$0xff] %vm204, %v7035
      %7068 = vst.msk [vmem:[#allocation3 + $0xd8] sm:$0xff] %vm204, %v7036
      %7069 = vst.msk [vmem:[#allocation3 + $0xe0] sm:$0xff] %vm204, %v7037
      %7070 = vst.msk [vmem:[#allocation3 + $0xe8] sm:$0xff] %vm204, %v7038
      %7071 = vst.msk [vmem:[#allocation3 + $0xf0] sm:$0xff] %vm204, %v7039
      %7072 = vst.msk [vmem:[#allocation3 + $0xf8] sm:$0xff] %vm204, %v7040
      %v7073 = vld [vmem:[#allocation2 + $0x1] sm:$0xff]
      %v7074 = vld [vmem:[#allocation2 + $0x9] sm:$0xff]
      %v7075 = vld [vmem:[#allocation2 + $0x19] sm:$0xff]
      %v7076 = vld [vmem:[#allocation2 + $0x21] sm:$0xff]
      %v7077 = vld [vmem:[#allocation2 + $0x31] sm:$0xff]
      %v7078 = vld [vmem:[#allocation2 + $0x39] sm:$0xff]
      %v7079 = vld [vmem:[#allocation2 + $0x49] sm:$0xff]
      %v7080 = vld [vmem:[#allocation2 + $0x51] sm:$0xff]
      %v7081 = vld [vmem:[#allocation2 + $0x61] sm:$0xff]
      %v7082 = vld [vmem:[#allocation2 + $0x69] sm:$0xff]
      %v7083 = vld [vmem:[#allocation2 + $0x79] sm:$0xff]
      %v7084 = vld [vmem:[#allocation2 + $0x81] sm:$0xff]
      %v7085 = vld [vmem:[#allocation2 + $0x91] sm:$0xff]
      %v7086 = vld [vmem:[#allocation2 + $0x99] sm:$0xff]
      %v7087 = vld [vmem:[#allocation2 + $0xa9] sm:$0xff]
      %v7088 = vld [vmem:[#allocation2 + $0xb1] sm:$0xff]
      %v7089 = vld [vmem:[#allocation2 + $0xc1] sm:$0xff]
      %v7090 = vld [vmem:[#allocation2 + $0xc9] sm:$0xff]
      %v7091 = vld [vmem:[#allocation2 + $0xd9] sm:$0xff]
      %v7092 = vld [vmem:[#allocation2 + $0xe1] sm:$0xff]
      %v7093 = vld [vmem:[#allocation2 + $0xf1] sm:$0xff]
      %v7094 = vld [vmem:[#allocation2 + $0xf9] sm:$0xff]
      %v7095 = vld [vmem:[#allocation2 + $0x109] sm:$0xff]
      %v7096 = vld [vmem:[#allocation2 + $0x111] sm:$0xff]
      %v7097 = vld [vmem:[#allocation2 + $0x121] sm:$0xff]
      %v7098 = vld [vmem:[#allocation2 + $0x129] sm:$0xff]
      %v7099 = vld [vmem:[#allocation2 + $0x139] sm:$0xff]
      %v7100 = vld [vmem:[#allocation2 + $0x141] sm:$0xff]
      %v7101 = vld [vmem:[#allocation2 + $0x151] sm:$0xff]
      %v7102 = vld [vmem:[#allocation2 + $0x159] sm:$0xff]
      %v7103 = vld [vmem:[#allocation2 + $0x169] sm:$0xff]
      %v7104 = vld [vmem:[#allocation2 + $0x171] sm:$0xff]
      %7137 = vrot.lane.b32.xlu0 %v7073, 4
      %v7138 = vpop.permute.xlu0 %7137
      %7139 = vrot.lane.b32.xlu0 %v7074, 4
      %v7140 = vpop.permute.xlu0 %7139
      %7141 = vrot.lane.b32.xlu0 %v7075, 4
      %v7142 = vpop.permute.xlu0 %7141
      %7143 = vrot.lane.b32.xlu0 %v7076, 4
      %v7144 = vpop.permute.xlu0 %7143
      %7145 = vrot.lane.b32.xlu0 %v7077, 4
      %v7146 = vpop.permute.xlu0 %7145
      %7147 = vrot.lane.b32.xlu0 %v7078, 4
      %v7148 = vpop.permute.xlu0 %7147
      %7149 = vrot.lane.b32.xlu0 %v7079, 4
      %v7150 = vpop.permute.xlu0 %7149
      %7151 = vrot.lane.b32.xlu0 %v7080, 4
      %v7152 = vpop.permute.xlu0 %7151
      %7153 = vrot.lane.b32.xlu0 %v7081, 4
      %v7154 = vpop.permute.xlu0 %7153
      %7155 = vrot.lane.b32.xlu0 %v7082, 4
      %v7156 = vpop.permute.xlu0 %7155
      %7157 = vrot.lane.b32.xlu0 %v7083, 4
      %v7158 = vpop.permute.xlu0 %7157
      %7159 = vrot.lane.b32.xlu0 %v7084, 4
      %v7160 = vpop.permute.xlu0 %7159
      %7161 = vrot.lane.b32.xlu0 %v7085, 4
      %v7162 = vpop.permute.xlu0 %7161
      %7163 = vrot.lane.b32.xlu0 %v7086, 4
      %v7164 = vpop.permute.xlu0 %7163
      %7165 = vrot.lane.b32.xlu0 %v7087, 4
      %v7166 = vpop.permute.xlu0 %7165
      %7167 = vrot.lane.b32.xlu0 %v7088, 4
      %v7168 = vpop.permute.xlu0 %7167
      %7169 = vrot.lane.b32.xlu0 %v7089, 4
      %v7170 = vpop.permute.xlu0 %7169
      %7171 = vrot.lane.b32.xlu0 %v7090, 4
      %v7172 = vpop.permute.xlu0 %7171
      %7173 = vrot.lane.b32.xlu0 %v7091, 4
      %v7174 = vpop.permute.xlu0 %7173
      %7175 = vrot.lane.b32.xlu0 %v7092, 4
      %v7176 = vpop.permute.xlu0 %7175
      %7177 = vrot.lane.b32.xlu0 %v7093, 4
      %v7178 = vpop.permute.xlu0 %7177
      %7179 = vrot.lane.b32.xlu0 %v7094, 4
      %v7180 = vpop.permute.xlu0 %7179
      %7181 = vrot.lane.b32.xlu0 %v7095, 4
      %v7182 = vpop.permute.xlu0 %7181
      %7183 = vrot.lane.b32.xlu0 %v7096, 4
      %v7184 = vpop.permute.xlu0 %7183
      %7185 = vrot.lane.b32.xlu0 %v7097, 4
      %v7186 = vpop.permute.xlu0 %7185
      %7187 = vrot.lane.b32.xlu0 %v7098, 4
      %v7188 = vpop.permute.xlu0 %7187
      %7189 = vrot.lane.b32.xlu0 %v7099, 4
      %v7190 = vpop.permute.xlu0 %7189
      %7191 = vrot.lane.b32.xlu0 %v7100, 4
      %v7192 = vpop.permute.xlu0 %7191
      %7193 = vrot.lane.b32.xlu0 %v7101, 4
      %v7194 = vpop.permute.xlu0 %7193
      %7195 = vrot.lane.b32.xlu0 %v7102, 4
      %v7196 = vpop.permute.xlu0 %7195
      %7197 = vrot.lane.b32.xlu0 %v7103, 4
      %v7198 = vpop.permute.xlu0 %7197
      %7199 = vrot.lane.b32.xlu0 %v7104, 4
      %v7200 = vpop.permute.xlu0 %7199
      %7233 = vst.msk [vmem:[#allocation3] sm:$0xff] %vm539, %v7138
      %7234 = vst.msk [vmem:[#allocation3 + $0x8] sm:$0xff] %vm539, %v7140
      %7235 = vst.msk [vmem:[#allocation3 + $0x10] sm:$0xff] %vm539, %v7142
      %7236 = vst.msk [vmem:[#allocation3 + $0x18] sm:$0xff] %vm539, %v7144
      %7237 = vst.msk [vmem:[#allocation3 + $0x20] sm:$0xff] %vm539, %v7146
      %7238 = vst.msk [vmem:[#allocation3 + $0x28] sm:$0xff] %vm539, %v7148
      %7239 = vst.msk [vmem:[#allocation3 + $0x30] sm:$0xff] %vm539, %v7150
      %7240 = vst.msk [vmem:[#allocation3 + $0x38] sm:$0xff] %vm539, %v7152
      %7241 = vst.msk [vmem:[#allocation3 + $0x40] sm:$0xff] %vm539, %v7154
      %7242 = vst.msk [vmem:[#allocation3 + $0x48] sm:$0xff] %vm539, %v7156
      %7243 = vst.msk [vmem:[#allocation3 + $0x50] sm:$0xff] %vm539, %v7158
      %7244 = vst.msk [vmem:[#allocation3 + $0x58] sm:$0xff] %vm539, %v7160
      %7245 = vst.msk [vmem:[#allocation3 + $0x60] sm:$0xff] %vm539, %v7162
      %7246 = vst.msk [vmem:[#allocation3 + $0x68] sm:$0xff] %vm539, %v7164
      %7247 = vst.msk [vmem:[#allocation3 + $0x70] sm:$0xff] %vm539, %v7166
      %7248 = vst.msk [vmem:[#allocation3 + $0x78] sm:$0xff] %vm539, %v7168
      %7249 = vst.msk [vmem:[#allocation3 + $0x80] sm:$0xff] %vm539, %v7170
      %7250 = vst.msk [vmem:[#allocation3 + $0x88] sm:$0xff] %vm539, %v7172
      %7251 = vst.msk [vmem:[#allocation3 + $0x90] sm:$0xff] %vm539, %v7174
      %7252 = vst.msk [vmem:[#allocation3 + $0x98] sm:$0xff] %vm539, %v7176
      %7253 = vst.msk [vmem:[#allocation3 + $0xa0] sm:$0xff] %vm539, %v7178
      %7254 = vst.msk [vmem:[#allocation3 + $0xa8] sm:$0xff] %vm539, %v7180
      %7255 = vst.msk [vmem:[#allocation3 + $0xb0] sm:$0xff] %vm539, %v7182
      %7256 = vst.msk [vmem:[#allocation3 + $0xb8] sm:$0xff] %vm539, %v7184
      %7257 = vst.msk [vmem:[#allocation3 + $0xc0] sm:$0xff] %vm539, %v7186
      %7258 = vst.msk [vmem:[#allocation3 + $0xc8] sm:$0xff] %vm539, %v7188
      %7259 = vst.msk [vmem:[#allocation3 + $0xd0] sm:$0xff] %vm539, %v7190
      %7260 = vst.msk [vmem:[#allocation3 + $0xd8] sm:$0xff] %vm539, %v7192
      %7261 = vst.msk [vmem:[#allocation3 + $0xe0] sm:$0xff] %vm539, %v7194
      %7262 = vst.msk [vmem:[#allocation3 + $0xe8] sm:$0xff] %vm539, %v7196
      %7263 = vst.msk [vmem:[#allocation3 + $0xf0] sm:$0xff] %vm539, %v7198
      %7264 = vst.msk [vmem:[#allocation3 + $0xf8] sm:$0xff] %vm539, %v7200
      %v7265 = vld [vmem:[#allocation2 + $0x2] sm:$0xff]
      %v7266 = vld [vmem:[#allocation2 + $0xa] sm:$0xff]
      %v7267 = vld [vmem:[#allocation2 + $0x1a] sm:$0xff]
      %v7268 = vld [vmem:[#allocation2 + $0x22] sm:$0xff]
      %v7269 = vld [vmem:[#allocation2 + $0x32] sm:$0xff]
      %v7270 = vld [vmem:[#allocation2 + $0x3a] sm:$0xff]
      %v7271 = vld [vmem:[#allocation2 + $0x4a] sm:$0xff]
      %v7272 = vld [vmem:[#allocation2 + $0x52] sm:$0xff]
      %v7273 = vld [vmem:[#allocation2 + $0x62] sm:$0xff]
      %v7274 = vld [vmem:[#allocation2 + $0x6a] sm:$0xff]
      %v7275 = vld [vmem:[#allocation2 + $0x7a] sm:$0xff]
      %v7276 = vld [vmem:[#allocation2 + $0x82] sm:$0xff]
      %v7277 = vld [vmem:[#allocation2 + $0x92] sm:$0xff]
      %v7278 = vld [vmem:[#allocation2 + $0x9a] sm:$0xff]
      %v7279 = vld [vmem:[#allocation2 + $0xaa] sm:$0xff]
      %v7280 = vld [vmem:[#allocation2 + $0xb2] sm:$0xff]
      %v7281 = vld [vmem:[#allocation2 + $0xc2] sm:$0xff]
      %v7282 = vld [vmem:[#allocation2 + $0xca] sm:$0xff]
      %v7283 = vld [vmem:[#allocation2 + $0xda] sm:$0xff]
      %v7284 = vld [vmem:[#allocation2 + $0xe2] sm:$0xff]
      %v7285 = vld [vmem:[#allocation2 + $0xf2] sm:$0xff]
      %v7286 = vld [vmem:[#allocation2 + $0xfa] sm:$0xff]
      %v7287 = vld [vmem:[#allocation2 + $0x10a] sm:$0xff]
      %v7288 = vld [vmem:[#allocation2 + $0x112] sm:$0xff]
      %v7289 = vld [vmem:[#allocation2 + $0x122] sm:$0xff]
      %v7290 = vld [vmem:[#allocation2 + $0x12a] sm:$0xff]
      %v7291 = vld [vmem:[#allocation2 + $0x13a] sm:$0xff]
      %v7292 = vld [vmem:[#allocation2 + $0x142] sm:$0xff]
      %v7293 = vld [vmem:[#allocation2 + $0x152] sm:$0xff]
      %v7294 = vld [vmem:[#allocation2 + $0x15a] sm:$0xff]
      %v7295 = vld [vmem:[#allocation2 + $0x16a] sm:$0xff]
      %v7296 = vld [vmem:[#allocation2 + $0x172] sm:$0xff]
      %7329 = vrot.lane.b32.xlu0 %v7265, 8
      %v7330 = vpop.permute.xlu0 %7329
      %7331 = vrot.lane.b32.xlu0 %v7266, 8
      %v7332 = vpop.permute.xlu0 %7331
      %7333 = vrot.lane.b32.xlu0 %v7267, 8
      %v7334 = vpop.permute.xlu0 %7333
      %7335 = vrot.lane.b32.xlu0 %v7268, 8
      %v7336 = vpop.permute.xlu0 %7335
      %7337 = vrot.lane.b32.xlu0 %v7269, 8
      %v7338 = vpop.permute.xlu0 %7337
      %7339 = vrot.lane.b32.xlu0 %v7270, 8
      %v7340 = vpop.permute.xlu0 %7339
      %7341 = vrot.lane.b32.xlu0 %v7271, 8
      %v7342 = vpop.permute.xlu0 %7341
      %7343 = vrot.lane.b32.xlu0 %v7272, 8
      %v7344 = vpop.permute.xlu0 %7343
      %7345 = vrot.lane.b32.xlu0 %v7273, 8
      %v7346 = vpop.permute.xlu0 %7345
      %7347 = vrot.lane.b32.xlu0 %v7274, 8
      %v7348 = vpop.permute.xlu0 %7347
      %7349 = vrot.lane.b32.xlu0 %v7275, 8
      %v7350 = vpop.permute.xlu0 %7349
      %7351 = vrot.lane.b32.xlu0 %v7276, 8
      %v7352 = vpop.permute.xlu0 %7351
      %7353 = vrot.lane.b32.xlu0 %v7277, 8
      %v7354 = vpop.permute.xlu0 %7353
      %7355 = vrot.lane.b32.xlu0 %v7278, 8
      %v7356 = vpop.permute.xlu0 %7355
      %7357 = vrot.lane.b32.xlu0 %v7279, 8
      %v7358 = vpop.permute.xlu0 %7357
      %7359 = vrot.lane.b32.xlu0 %v7280, 8
      %v7360 = vpop.permute.xlu0 %7359
      %7361 = vrot.lane.b32.xlu0 %v7281, 8
      %v7362 = vpop.permute.xlu0 %7361
      %7363 = vrot.lane.b32.xlu0 %v7282, 8
      %v7364 = vpop.permute.xlu0 %7363
      %7365 = vrot.lane.b32.xlu0 %v7283, 8
      %v7366 = vpop.permute.xlu0 %7365
      %7367 = vrot.lane.b32.xlu0 %v7284, 8
      %v7368 = vpop.permute.xlu0 %7367
      %7369 = vrot.lane.b32.xlu0 %v7285, 8
      %v7370 = vpop.permute.xlu0 %7369
      %7371 = vrot.lane.b32.xlu0 %v7286, 8
      %v7372 = vpop.permute.xlu0 %7371
      %7373 = vrot.lane.b32.xlu0 %v7287, 8
      %v7374 = vpop.permute.xlu0 %7373
      %7375 = vrot.lane.b32.xlu0 %v7288, 8
      %v7376 = vpop.permute.xlu0 %7375
      %7377 = vrot.lane.b32.xlu0 %v7289, 8
      %v7378 = vpop.permute.xlu0 %7377
      %7379 = vrot.lane.b32.xlu0 %v7290, 8
      %v7380 = vpop.permute.xlu0 %7379
      %7381 = vrot.lane.b32.xlu0 %v7291, 8
      %v7382 = vpop.permute.xlu0 %7381
      %7383 = vrot.lane.b32.xlu0 %v7292, 8
      %v7384 = vpop.permute.xlu0 %7383
      %7385 = vrot.lane.b32.xlu0 %v7293, 8
      %v7386 = vpop.permute.xlu0 %7385
      %7387 = vrot.lane.b32.xlu0 %v7294, 8
      %v7388 = vpop.permute.xlu0 %7387
      %7389 = vrot.lane.b32.xlu0 %v7295, 8
      %v7390 = vpop.permute.xlu0 %7389
      %7391 = vrot.lane.b32.xlu0 %v7296, 8
      %v7392 = vpop.permute.xlu0 %7391
      %7425 = vst.msk [vmem:[#allocation3] sm:$0xff] %vm732, %v7330
      %7426 = vst.msk [vmem:[#allocation3 + $0x8] sm:$0xff] %vm732, %v7332
      %7427 = vst.msk [vmem:[#allocation3 + $0x10] sm:$0xff] %vm732, %v7334
      %7428 = vst.msk [vmem:[#allocation3 + $0x18] sm:$0xff] %vm732, %v7336
      %7429 = vst.msk [vmem:[#allocation3 + $0x20] sm:$0xff] %vm732, %v7338
      %7430 = vst.msk [vmem:[#allocation3 + $0x28] sm:$0xff] %vm732, %v7340
      %7431 = vst.msk [vmem:[#allocation3 + $0x30] sm:$0xff] %vm732, %v7342
      %7432 = vst.msk [vmem:[#allocation3 + $0x38] sm:$0xff] %vm732, %v7344
      %7433 = vst.msk [vmem:[#allocation3 + $0x40] sm:$0xff] %vm732, %v7346
      %7434 = vst.msk [vmem:[#allocation3 + $0x48] sm:$0xff] %vm732, %v7348
      %7435 = vst.msk [vmem:[#allocation3 + $0x50] sm:$0xff] %vm732, %v7350
      %7436 = vst.msk [vmem:[#allocation3 + $0x58] sm:$0xff] %vm732, %v7352
      %7437 = vst.msk [vmem:[#allocation3 + $0x60] sm:$0xff] %vm732, %v7354
      %7438 = vst.msk [vmem:[#allocation3 + $0x68] sm:$0xff] %vm732, %v7356
      %7439 = vst.msk [vmem:[#allocation3 + $0x70] sm:$0xff] %vm732, %v7358
      %7440 = vst.msk [vmem:[#allocation3 + $0x78] sm:$0xff] %vm732, %v7360
      %7441 = vst.msk [vmem:[#allocation3 + $0x80] sm:$0xff] %vm732, %v7362
      %7442 = vst.msk [vmem:[#allocation3 + $0x88] sm:$0xff] %vm732, %v7364
      %7443 = vst.msk [vmem:[#allocation3 + $0x90] sm:$0xff] %vm732, %v7366
      %7444 = vst.msk [vmem:[#allocation3 + $0x98] sm:$0xff] %vm732, %v7368
      %7445 = vst.msk [vmem:[#allocation3 + $0xa0] sm:$0xff] %vm732, %v7370
      %7446 = vst.msk [vmem:[#allocation3 + $0xa8] sm:$0xff] %vm732, %v7372
      %7447 = vst.msk [vmem:[#allocation3 + $0xb0] sm:$0xff] %vm732, %v7374
      %7448 = vst.msk [vmem:[#allocation3 + $0xb8] sm:$0xff] %vm732, %v7376
      %7449 = vst.msk [vmem:[#allocation3 + $0xc0] sm:$0xff] %vm732, %v7378
      %7450 = vst.msk [vmem:[#allocation3 + $0xc8] sm:$0xff] %vm732, %v7380
      %7451 = vst.msk [vmem:[#allocation3 + $0xd0] sm:$0xff] %vm732, %v7382
      %7452 = vst.msk [vmem:[#allocation3 + $0xd8] sm:$0xff] %vm732, %v7384
      %7453 = vst.msk [vmem:[#allocation3 + $0xe0] sm:$0xff] %vm732, %v7386
      %7454 = vst.msk [vmem:[#allocation3 + $0xe8] sm:$0xff] %vm732, %v7388
      %7455 = vst.msk [vmem:[#allocation3 + $0xf0] sm:$0xff] %vm732, %v7390
      %7456 = vst.msk [vmem:[#allocation3 + $0xf8] sm:$0xff] %vm732, %v7392
      %v7457 = vld [vmem:[%s203] sm:$0xff]
      %v7458 = vld [vmem:[%s203 + $0x8] sm:$0xff]
      %v7459 = vld [vmem:[%s203 + $0x18] sm:$0xff]
      %v7460 = vld [vmem:[%s203 + $0x20] sm:$0xff]
      %v7461 = vld [vmem:[%s203 + $0x30] sm:$0xff]
      %v7462 = vld [vmem:[%s203 + $0x38] sm:$0xff]
      %v7463 = vld [vmem:[%s203 + $0x48] sm:$0xff]
      %v7464 = vld [vmem:[%s203 + $0x50] sm:$0xff]
      %v7465 = vld [vmem:[%s203 + $0x60] sm:$0xff]
      %v7466 = vld [vmem:[%s203 + $0x68] sm:$0xff]
      %v7467 = vld [vmem:[%s203 + $0x78] sm:$0xff]
      %v7468 = vld [vmem:[%s203 + $0x80] sm:$0xff]
      %v7469 = vld [vmem:[%s203 + $0x90] sm:$0xff]
      %v7470 = vld [vmem:[%s203 + $0x98] sm:$0xff]
      %v7471 = vld [vmem:[%s203 + $0xa8] sm:$0xff]
      %v7472 = vld [vmem:[%s203 + $0xb0] sm:$0xff]
      %v7473 = vld [vmem:[%s203 + $0xc0] sm:$0xff]
      %v7474 = vld [vmem:[%s203 + $0xc8] sm:$0xff]
      %v7475 = vld [vmem:[%s203 + $0xd8] sm:$0xff]
      %v7476 = vld [vmem:[%s203 + $0xe0] sm:$0xff]
      %v7477 = vld [vmem:[%s203 + $0xf0] sm:$0xff]
      %v7478 = vld [vmem:[%s203 + $0xf8] sm:$0xff]
      %v7479 = vld [vmem:[%s203 + $0x108] sm:$0xff]
      %v7480 = vld [vmem:[%s203 + $0x110] sm:$0xff]
      %v7481 = vld [vmem:[%s203 + $0x120] sm:$0xff]
      %v7482 = vld [vmem:[%s203 + $0x128] sm:$0xff]
      %v7483 = vld [vmem:[%s203 + $0x138] sm:$0xff]
      %v7484 = vld [vmem:[%s203 + $0x140] sm:$0xff]
      %v7485 = vld [vmem:[%s203 + $0x150] sm:$0xff]
      %v7486 = vld [vmem:[%s203 + $0x158] sm:$0xff]
      %v7487 = vld [vmem:[%s203 + $0x168] sm:$0xff]
      %v7488 = vld [vmem:[%s203 + $0x170] sm:$0xff]
      %7521 = vrot.lane.b32.xlu0 %v7457, 12
      %v7522 = vpop.permute.xlu0 %7521
      %7523 = vrot.lane.b32.xlu0 %v7458, 12
      %v7524 = vpop.permute.xlu0 %7523
      %7525 = vrot.lane.b32.xlu0 %v7459, 12
      %v7526 = vpop.permute.xlu0 %7525
      %7527 = vrot.lane.b32.xlu0 %v7460, 12
      %v7528 = vpop.permute.xlu0 %7527
      %7529 = vrot.lane.b32.xlu0 %v7461, 12
      %v7530 = vpop.permute.xlu0 %7529
      %7531 = vrot.lane.b32.xlu0 %v7462, 12
      %v7532 = vpop.permute.xlu0 %7531
      %7533 = vrot.lane.b32.xlu0 %v7463, 12
      %v7534 = vpop.permute.xlu0 %7533
      %7535 = vrot.lane.b32.xlu0 %v7464, 12
      %v7536 = vpop.permute.xlu0 %7535
      %7537 = vrot.lane.b32.xlu0 %v7465, 12
      %v7538 = vpop.permute.xlu0 %7537
      %7539 = vrot.lane.b32.xlu0 %v7466, 12
      %v7540 = vpop.permute.xlu0 %7539
      %7541 = vrot.lane.b32.xlu0 %v7467, 12
      %v7542 = vpop.permute.xlu0 %7541
      %7543 = vrot.lane.b32.xlu0 %v7468, 12
      %v7544 = vpop.permute.xlu0 %7543
      %7545 = vrot.lane.b32.xlu0 %v7469, 12
      %v7546 = vpop.permute.xlu0 %7545
      %7547 = vrot.lane.b32.xlu0 %v7470, 12
      %v7548 = vpop.permute.xlu0 %7547
      %7549 = vrot.lane.b32.xlu0 %v7471, 12
      %v7550 = vpop.permute.xlu0 %7549
      %7551 = vrot.lane.b32.xlu0 %v7472, 12
      %v7552 = vpop.permute.xlu0 %7551
      %7553 = vrot.lane.b32.xlu0 %v7473, 12
      %v7554 = vpop.permute.xlu0 %7553
      %7555 = vrot.lane.b32.xlu0 %v7474, 12
      %v7556 = vpop.permute.xlu0 %7555
      %7557 = vrot.lane.b32.xlu0 %v7475, 12
      %v7558 = vpop.permute.xlu0 %7557
      %7559 = vrot.lane.b32.xlu0 %v7476, 12
      %v7560 = vpop.permute.xlu0 %7559
      %7561 = vrot.lane.b32.xlu0 %v7477, 12
      %v7562 = vpop.permute.xlu0 %7561
      %7563 = vrot.lane.b32.xlu0 %v7478, 12
      %v7564 = vpop.permute.xlu0 %7563
      %7565 = vrot.lane.b32.xlu0 %v7479, 12
      %v7566 = vpop.permute.xlu0 %7565
      %7567 = vrot.lane.b32.xlu0 %v7480, 12
      %v7568 = vpop.permute.xlu0 %7567
      %7569 = vrot.lane.b32.xlu0 %v7481, 12
      %v7570 = vpop.permute.xlu0 %7569
      %7571 = vrot.lane.b32.xlu0 %v7482, 12
      %v7572 = vpop.permute.xlu0 %7571
      %7573 = vrot.lane.b32.xlu0 %v7483, 12
      %v7574 = vpop.permute.xlu0 %7573
      %7575 = vrot.lane.b32.xlu0 %v7484, 12
      %v7576 = vpop.permute.xlu0 %7575
      %7577 = vrot.lane.b32.xlu0 %v7485, 12
      %v7578 = vpop.permute.xlu0 %7577
      %7579 = vrot.lane.b32.xlu0 %v7486, 12
      %v7580 = vpop.permute.xlu0 %7579
      %7581 = vrot.lane.b32.xlu0 %v7487, 12
      %v7582 = vpop.permute.xlu0 %7581
      %7583 = vrot.lane.b32.xlu0 %v7488, 12
      %v7584 = vpop.permute.xlu0 %7583
      %7617 = vst.msk [vmem:[#allocation3] sm:$0xff] %vm925, %v7522
      %7618 = vst.msk [vmem:[#allocation3 + $0x8] sm:$0xff] %vm925, %v7524
      %7619 = vst.msk [vmem:[#allocation3 + $0x10] sm:$0xff] %vm925, %v7526
      %7620 = vst.msk [vmem:[#allocation3 + $0x18] sm:$0xff] %vm925, %v7528
      %7621 = vst.msk [vmem:[#allocation3 + $0x20] sm:$0xff] %vm925, %v7530
      %7622 = vst.msk [vmem:[#allocation3 + $0x28] sm:$0xff] %vm925, %v7532
      %7623 = vst.msk [vmem:[#allocation3 + $0x30] sm:$0xff] %vm925, %v7534
      %7624 = vst.msk [vmem:[#allocation3 + $0x38] sm:$0xff] %vm925, %v7536
      %7625 = vst.msk [vmem:[#allocation3 + $0x40] sm:$0xff] %vm925, %v7538
      %7626 = vst.msk [vmem:[#allocation3 + $0x48] sm:$0xff] %vm925, %v7540
      %7627 = vst.msk [vmem:[#allocation3 + $0x50] sm:$0xff] %vm925, %v7542
      %7628 = vst.msk [vmem:[#allocation3 + $0x58] sm:$0xff] %vm925, %v7544
      %7629 = vst.msk [vmem:[#allocation3 + $0x60] sm:$0xff] %vm925, %v7546
      %7630 = vst.msk [vmem:[#allocation3 + $0x68] sm:$0xff] %vm925, %v7548
      %7631 = vst.msk [vmem:[#allocation3 + $0x70] sm:$0xff] %vm925, %v7550
      %7632 = vst.msk [vmem:[#allocation3 + $0x78] sm:$0xff] %vm925, %v7552
      %7633 = vst.msk [vmem:[#allocation3 + $0x80] sm:$0xff] %vm925, %v7554
      %7634 = vst.msk [vmem:[#allocation3 + $0x88] sm:$0xff] %vm925, %v7556
      %7635 = vst.msk [vmem:[#allocation3 + $0x90] sm:$0xff] %vm925, %v7558
      %7636 = vst.msk [vmem:[#allocation3 + $0x98] sm:$0xff] %vm925, %v7560
      %7637 = vst.msk [vmem:[#allocation3 + $0xa0] sm:$0xff] %vm925, %v7562
      %7638 = vst.msk [vmem:[#allocation3 + $0xa8] sm:$0xff] %vm925, %v7564
      %7639 = vst.msk [vmem:[#allocation3 + $0xb0] sm:$0xff] %vm925, %v7566
      %7640 = vst.msk [vmem:[#allocation3 + $0xb8] sm:$0xff] %vm925, %v7568
      %7641 = vst.msk [vmem:[#allocation3 + $0xc0] sm:$0xff] %vm925, %v7570
      %7642 = vst.msk [vmem:[#allocation3 + $0xc8] sm:$0xff] %vm925, %v7572
      %7643 = vst.msk [vmem:[#allocation3 + $0xd0] sm:$0xff] %vm925, %v7574
      %7644 = vst.msk [vmem:[#allocation3 + $0xd8] sm:$0xff] %vm925, %v7576
      %7645 = vst.msk [vmem:[#allocation3 + $0xe0] sm:$0xff] %vm925, %v7578
      %7646 = vst.msk [vmem:[#allocation3 + $0xe8] sm:$0xff] %vm925, %v7580
      %7647 = vst.msk [vmem:[#allocation3 + $0xf0] sm:$0xff] %vm925, %v7582
      %7648 = vst.msk [vmem:[#allocation3 + $0xf8] sm:$0xff] %vm925, %v7584
      %v7649 = vld [vmem:[%s203 + $0x1] sm:$0xff]
      %v7650 = vld [vmem:[%s203 + $0x9] sm:$0xff]
      %v7651 = vld [vmem:[%s203 + $0x19] sm:$0xff]
      %v7652 = vld [vmem:[%s203 + $0x21] sm:$0xff]
      %v7653 = vld [vmem:[%s203 + $0x31] sm:$0xff]
      %v7654 = vld [vmem:[%s203 + $0x39] sm:$0xff]
      %v7655 = vld [vmem:[%s203 + $0x49] sm:$0xff]
      %v7656 = vld [vmem:[%s203 + $0x51] sm:$0xff]
      %v7657 = vld [vmem:[%s203 + $0x61] sm:$0xff]
      %v7658 = vld [vmem:[%s203 + $0x69] sm:$0xff]
      %v7659 = vld [vmem:[%s203 + $0x79] sm:$0xff]
      %v7660 = vld [vmem:[%s203 + $0x81] sm:$0xff]
      %v7661 = vld [vmem:[%s203 + $0x91] sm:$0xff]
      %v7662 = vld [vmem:[%s203 + $0x99] sm:$0xff]
      %v7663 = vld [vmem:[%s203 + $0xa9] sm:$0xff]
      %v7664 = vld [vmem:[%s203 + $0xb1] sm:$0xff]
      %v7665 = vld [vmem:[%s203 + $0xc1] sm:$0xff]
      %v7666 = vld [vmem:[%s203 + $0xc9] sm:$0xff]
      %v7667 = vld [vmem:[%s203 + $0xd9] sm:$0xff]
      %v7668 = vld [vmem:[%s203 + $0xe1] sm:$0xff]
      %v7669 = vld [vmem:[%s203 + $0xf1] sm:$0xff]
      %v7670 = vld [vmem:[%s203 + $0xf9] sm:$0xff]
      %v7671 = vld [vmem:[%s203 + $0x109] sm:$0xff]
      %v7672 = vld [vmem:[%s203 + $0x111] sm:$0xff]
      %v7673 = vld [vmem:[%s203 + $0x121] sm:$0xff]
      %v7674 = vld [vmem:[%s203 + $0x129] sm:$0xff]
      %v7675 = vld [vmem:[%s203 + $0x139] sm:$0xff]
      %v7676 = vld [vmem:[%s203 + $0x141] sm:$0xff]
      %v7677 = vld [vmem:[%s203 + $0x151] sm:$0xff]
      %v7678 = vld [vmem:[%s203 + $0x159] sm:$0xff]
      %v7679 = vld [vmem:[%s203 + $0x169] sm:$0xff]
      %v7680 = vld [vmem:[%s203 + $0x171] sm:$0xff]
      %7713 = vrot.lane.b32.xlu0 %v7649, 16
      %v7714 = vpop.permute.xlu0 %7713
      %7715 = vrot.lane.b32.xlu0 %v7650, 16
      %v7716 = vpop.permute.xlu0 %7715
      %7717 = vrot.lane.b32.xlu0 %v7651, 16
      %v7718 = vpop.permute.xlu0 %7717
      %7719 = vrot.lane.b32.xlu0 %v7652, 16
      %v7720 = vpop.permute.xlu0 %7719
      %7721 = vrot.lane.b32.xlu0 %v7653, 16
      %v7722 = vpop.permute.xlu0 %7721
      %7723 = vrot.lane.b32.xlu0 %v7654, 16
      %v7724 = vpop.permute.xlu0 %7723
      %7725 = vrot.lane.b32.xlu0 %v7655, 16
      %v7726 = vpop.permute.xlu0 %7725
      %7727 = vrot.lane.b32.xlu0 %v7656, 16
      %v7728 = vpop.permute.xlu0 %7727
      %7729 = vrot.lane.b32.xlu0 %v7657, 16
      %v7730 = vpop.permute.xlu0 %7729
      %7731 = vrot.lane.b32.xlu0 %v7658, 16
      %v7732 = vpop.permute.xlu0 %7731
      %7733 = vrot.lane.b32.xlu0 %v7659, 16
      %v7734 = vpop.permute.xlu0 %7733
      %7735 = vrot.lane.b32.xlu0 %v7660, 16
      %v7736 = vpop.permute.xlu0 %7735
      %7737 = vrot.lane.b32.xlu0 %v7661, 16
      %v7738 = vpop.permute.xlu0 %7737
      %7739 = vrot.lane.b32.xlu0 %v7662, 16
      %v7740 = vpop.permute.xlu0 %7739
      %7741 = vrot.lane.b32.xlu0 %v7663, 16
      %v7742 = vpop.permute.xlu0 %7741
      %7743 = vrot.lane.b32.xlu0 %v7664, 16
      %v7744 = vpop.permute.xlu0 %7743
      %7745 = vrot.lane.b32.xlu0 %v7665, 16
      %v7746 = vpop.permute.xlu0 %7745
      %7747 = vrot.lane.b32.xlu0 %v7666, 16
      %v7748 = vpop.permute.xlu0 %7747
      %7749 = vrot.lane.b32.xlu0 %v7667, 16
      %v7750 = vpop.permute.xlu0 %7749
      %7751 = vrot.lane.b32.xlu0 %v7668, 16
      %v7752 = vpop.permute.xlu0 %7751
      %7753 = vrot.lane.b32.xlu0 %v7669, 16
      %v7754 = vpop.permute.xlu0 %7753
      %7755 = vrot.lane.b32.xlu0 %v7670, 16
      %v7756 = vpop.permute.xlu0 %7755
      %7757 = vrot.lane.b32.xlu0 %v7671, 16
      %v7758 = vpop.permute.xlu0 %7757
      %7759 = vrot.lane.b32.xlu0 %v7672, 16
      %v7760 = vpop.permute.xlu0 %7759
      %7761 = vrot.lane.b32.xlu0 %v7673, 16
      %v7762 = vpop.permute.xlu0 %7761
      %7763 = vrot.lane.b32.xlu0 %v7674, 16
      %v7764 = vpop.permute.xlu0 %7763
      %7765 = vrot.lane.b32.xlu0 %v7675, 16
      %v7766 = vpop.permute.xlu0 %7765
      %7767 = vrot.lane.b32.xlu0 %v7676, 16
      %v7768 = vpop.permute.xlu0 %7767
      %7769 = vrot.lane.b32.xlu0 %v7677, 16
      %v7770 = vpop.permute.xlu0 %7769
      %7771 = vrot.lane.b32.xlu0 %v7678, 16
      %v7772 = vpop.permute.xlu0 %7771
      %7773 = vrot.lane.b32.xlu0 %v7679, 16
      %v7774 = vpop.permute.xlu0 %7773
      %7775 = vrot.lane.b32.xlu0 %v7680, 16
      %v7776 = vpop.permute.xlu0 %7775
      %7809 = vst.msk [vmem:[#allocation3] sm:$0xff] %vm1118, %v7714
      %7810 = vst.msk [vmem:[#allocation3 + $0x8] sm:$0xff] %vm1118, %v7716
      %7811 = vst.msk [vmem:[#allocation3 + $0x10] sm:$0xff] %vm1118, %v7718
      %7812 = vst.msk [vmem:[#allocation3 + $0x18] sm:$0xff] %vm1118, %v7720
      %7813 = vst.msk [vmem:[#allocation3 + $0x20] sm:$0xff] %vm1118, %v7722
      %7814 = vst.msk [vmem:[#allocation3 + $0x28] sm:$0xff] %vm1118, %v7724
      %7815 = vst.msk [vmem:[#allocation3 + $0x30] sm:$0xff] %vm1118, %v7726
      %7816 = vst.msk [vmem:[#allocation3 + $0x38] sm:$0xff] %vm1118, %v7728
      %7817 = vst.msk [vmem:[#allocation3 + $0x40] sm:$0xff] %vm1118, %v7730
      %7818 = vst.msk [vmem:[#allocation3 + $0x48] sm:$0xff] %vm1118, %v7732
      %7819 = vst.msk [vmem:[#allocation3 + $0x50] sm:$0xff] %vm1118, %v7734
      %7820 = vst.msk [vmem:[#allocation3 + $0x58] sm:$0xff] %vm1118, %v7736
      %7821 = vst.msk [vmem:[#allocation3 + $0x60] sm:$0xff] %vm1118, %v7738
      %7822 = vst.msk [vmem:[#allocation3 + $0x68] sm:$0xff] %vm1118, %v7740
      %7823 = vst.msk [vmem:[#allocation3 + $0x70] sm:$0xff] %vm1118, %v7742
      %7824 = vst.msk [vmem:[#allocation3 + $0x78] sm:$0xff] %vm1118, %v7744
      %7825 = vst.msk [vmem:[#allocation3 + $0x80] sm:$0xff] %vm1118, %v7746
      %7826 = vst.msk [vmem:[#allocation3 + $0x88] sm:$0xff] %vm1118, %v7748
      %7827 = vst.msk [vmem:[#allocation3 + $0x90] sm:$0xff] %vm1118, %v7750
      %7828 = vst.msk [vmem:[#allocation3 + $0x98] sm:$0xff] %vm1118, %v7752
      %7829 = vst.msk [vmem:[#allocation3 + $0xa0] sm:$0xff] %vm1118, %v7754
      %7830 = vst.msk [vmem:[#allocation3 + $0xa8] sm:$0xff] %vm1118, %v7756
      %7831 = vst.msk [vmem:[#allocation3 + $0xb0] sm:$0xff] %vm1118, %v7758
      %7832 = vst.msk [vmem:[#allocation3 + $0xb8] sm:$0xff] %vm1118, %v7760
      %7833 = vst.msk [vmem:[#allocation3 + $0xc0] sm:$0xff] %vm1118, %v7762
      %7834 = vst.msk [vmem:[#allocation3 + $0xc8] sm:$0xff] %vm1118, %v7764
      %7835 = vst.msk [vmem:[#allocation3 + $0xd0] sm:$0xff] %vm1118, %v7766
      %7836 = vst.msk [vmem:[#allocation3 + $0xd8] sm:$0xff] %vm1118, %v7768
      %7837 = vst.msk [vmem:[#allocation3 + $0xe0] sm:$0xff] %vm1118, %v7770
      %7838 = vst.msk [vmem:[#allocation3 + $0xe8] sm:$0xff] %vm1118, %v7772
      %7839 = vst.msk [vmem:[#allocation3 + $0xf0] sm:$0xff] %vm1118, %v7774
      %7840 = vst.msk [vmem:[#allocation3 + $0xf8] sm:$0xff] %vm1118, %v7776
      %v7841 = vld [vmem:[%s203 + $0x2] sm:$0xff]
      %v7842 = vld [vmem:[%s203 + $0xa] sm:$0xff]
      %v7843 = vld [vmem:[%s203 + $0x1a] sm:$0xff]
      %v7844 = vld [vmem:[%s203 + $0x22] sm:$0xff]
      %v7845 = vld [vmem:[%s203 + $0x32] sm:$0xff]
      %v7846 = vld [vmem:[%s203 + $0x3a] sm:$0xff]
      %v7847 = vld [vmem:[%s203 + $0x4a] sm:$0xff]
      %v7848 = vld [vmem:[%s203 + $0x52] sm:$0xff]
      %v7849 = vld [vmem:[%s203 + $0x62] sm:$0xff]
      %v7850 = vld [vmem:[%s203 + $0x6a] sm:$0xff]
      %v7851 = vld [vmem:[%s203 + $0x7a] sm:$0xff]
      %v7852 = vld [vmem:[%s203 + $0x82] sm:$0xff]
      %v7853 = vld [vmem:[%s203 + $0x92] sm:$0xff]
      %v7854 = vld [vmem:[%s203 + $0x9a] sm:$0xff]
      %v7855 = vld [vmem:[%s203 + $0xaa] sm:$0xff]
      %v7856 = vld [vmem:[%s203 + $0xb2] sm:$0xff]
      %v7857 = vld [vmem:[%s203 + $0xc2] sm:$0xff]
      %v7858 = vld [vmem:[%s203 + $0xca] sm:$0xff]
      %v7859 = vld [vmem:[%s203 + $0xda] sm:$0xff]
      %v7860 = vld [vmem:[%s203 + $0xe2] sm:$0xff]
      %v7861 = vld [vmem:[%s203 + $0xf2] sm:$0xff]
      %v7862 = vld [vmem:[%s203 + $0xfa] sm:$0xff]
      %v7863 = vld [vmem:[%s203 + $0x10a] sm:$0xff]
      %v7864 = vld [vmem:[%s203 + $0x112] sm:$0xff]
      %v7865 = vld [vmem:[%s203 + $0x122] sm:$0xff]
      %v7866 = vld [vmem:[%s203 + $0x12a] sm:$0xff]
      %v7867 = vld [vmem:[%s203 + $0x13a] sm:$0xff]
      %v7868 = vld [vmem:[%s203 + $0x142] sm:$0xff]
      %v7869 = vld [vmem:[%s203 + $0x152] sm:$0xff]
      %v7870 = vld [vmem:[%s203 + $0x15a] sm:$0xff]
      %v7871 = vld [vmem:[%s203 + $0x16a] sm:$0xff]
      %v7872 = vld [vmem:[%s203 + $0x172] sm:$0xff]
      %7905 = vrot.lane.b32.xlu0 %v7841, 20
      %v7906 = vpop.permute.xlu0 %7905
      %7907 = vrot.lane.b32.xlu0 %v7842, 20
      %v7908 = vpop.permute.xlu0 %7907
      %7909 = vrot.lane.b32.xlu0 %v7843, 20
      %v7910 = vpop.permute.xlu0 %7909
      %7911 = vrot.lane.b32.xlu0 %v7844, 20
      %v7912 = vpop.permute.xlu0 %7911
      %7913 = vrot.lane.b32.xlu0 %v7845, 20
      %v7914 = vpop.permute.xlu0 %7913
      %7915 = vrot.lane.b32.xlu0 %v7846, 20
      %v7916 = vpop.permute.xlu0 %7915
      %7917 = vrot.lane.b32.xlu0 %v7847, 20
      %v7918 = vpop.permute.xlu0 %7917
      %7919 = vrot.lane.b32.xlu0 %v7848, 20
      %v7920 = vpop.permute.xlu0 %7919
      %7921 = vrot.lane.b32.xlu0 %v7849, 20
      %v7922 = vpop.permute.xlu0 %7921
      %7923 = vrot.lane.b32.xlu0 %v7850, 20
      %v7924 = vpop.permute.xlu0 %7923
      %7925 = vrot.lane.b32.xlu0 %v7851, 20
      %v7926 = vpop.permute.xlu0 %7925
      %7927 = vrot.lane.b32.xlu0 %v7852, 20
      %v7928 = vpop.permute.xlu0 %7927
      %7929 = vrot.lane.b32.xlu0 %v7853, 20
      %v7930 = vpop.permute.xlu0 %7929
      %7931 = vrot.lane.b32.xlu0 %v7854, 20
      %v7932 = vpop.permute.xlu0 %7931
      %7933 = vrot.lane.b32.xlu0 %v7855, 20
      %v7934 = vpop.permute.xlu0 %7933
      %7935 = vrot.lane.b32.xlu0 %v7856, 20
      %v7936 = vpop.permute.xlu0 %7935
      %7937 = vrot.lane.b32.xlu0 %v7857, 20
      %v7938 = vpop.permute.xlu0 %7937
      %7939 = vrot.lane.b32.xlu0 %v7858, 20
      %v7940 = vpop.permute.xlu0 %7939
      %7941 = vrot.lane.b32.xlu0 %v7859, 20
      %v7942 = vpop.permute.xlu0 %7941
      %7943 = vrot.lane.b32.xlu0 %v7860, 20
      %v7944 = vpop.permute.xlu0 %7943
      %7945 = vrot.lane.b32.xlu0 %v7861, 20
      %v7946 = vpop.permute.xlu0 %7945
      %7947 = vrot.lane.b32.xlu0 %v7862, 20
      %v7948 = vpop.permute.xlu0 %7947
      %7949 = vrot.lane.b32.xlu0 %v7863, 20
      %v7950 = vpop.permute.xlu0 %7949
      %7951 = vrot.lane.b32.xlu0 %v7864, 20
      %v7952 = vpop.permute.xlu0 %7951
      %7953 = vrot.lane.b32.xlu0 %v7865, 20
      %v7954 = vpop.permute.xlu0 %7953
      %7955 = vrot.lane.b32.xlu0 %v7866, 20
      %v7956 = vpop.permute.xlu0 %7955
      %7957 = vrot.lane.b32.xlu0 %v7867, 20
      %v7958 = vpop.permute.xlu0 %7957
      %7959 = vrot.lane.b32.xlu0 %v7868, 20
      %v7960 = vpop.permute.xlu0 %7959
      %7961 = vrot.lane.b32.xlu0 %v7869, 20
      %v7962 = vpop.permute.xlu0 %7961
      %7963 = vrot.lane.b32.xlu0 %v7870, 20
      %v7964 = vpop.permute.xlu0 %7963
      %7965 = vrot.lane.b32.xlu0 %v7871, 20
      %v7966 = vpop.permute.xlu0 %7965
      %7967 = vrot.lane.b32.xlu0 %v7872, 20
      %v7968 = vpop.permute.xlu0 %7967
      %8001 = vst.msk [vmem:[#allocation3] sm:$0xff] %vm1311, %v7906
      %8002 = vst.msk [vmem:[#allocation3 + $0x8] sm:$0xff] %vm1311, %v7908
      %8003 = vst.msk [vmem:[#allocation3 + $0x10] sm:$0xff] %vm1311, %v7910
      %8004 = vst.msk [vmem:[#allocation3 + $0x18] sm:$0xff] %vm1311, %v7912
      %8005 = vst.msk [vmem:[#allocation3 + $0x20] sm:$0xff] %vm1311, %v7914
      %8006 = vst.msk [vmem:[#allocation3 + $0x28] sm:$0xff] %vm1311, %v7916
      %8007 = vst.msk [vmem:[#allocation3 + $0x30] sm:$0xff] %vm1311, %v7918
      %8008 = vst.msk [vmem:[#allocation3 + $0x38] sm:$0xff] %vm1311, %v7920
      %8009 = vst.msk [vmem:[#allocation3 + $0x40] sm:$0xff] %vm1311, %v7922
      %8010 = vst.msk [vmem:[#allocation3 + $0x48] sm:$0xff] %vm1311, %v7924
      %8011 = vst.msk [vmem:[#allocation3 + $0x50] sm:$0xff] %vm1311, %v7926
      %8012 = vst.msk [vmem:[#allocation3 + $0x58] sm:$0xff] %vm1311, %v7928
      %8013 = vst.msk [vmem:[#allocation3 + $0x60] sm:$0xff] %vm1311, %v7930
      %8014 = vst.msk [vmem:[#allocation3 + $0x68] sm:$0xff] %vm1311, %v7932
      %8015 = vst.msk [vmem:[#allocation3 + $0x70] sm:$0xff] %vm1311, %v7934
      %8016 = vst.msk [vmem:[#allocation3 + $0x78] sm:$0xff] %vm1311, %v7936
      %8017 = vst.msk [vmem:[#allocation3 + $0x80] sm:$0xff] %vm1311, %v7938
      %8018 = vst.msk [vmem:[#allocation3 + $0x88] sm:$0xff] %vm1311, %v7940
      %8019 = vst.msk [vmem:[#allocation3 + $0x90] sm:$0xff] %vm1311, %v7942
      %8020 = vst.msk [vmem:[#allocation3 + $0x98] sm:$0xff] %vm1311, %v7944
      %8021 = vst.msk [vmem:[#allocation3 + $0xa0] sm:$0xff] %vm1311, %v7946
      %8022 = vst.msk [vmem:[#allocation3 + $0xa8] sm:$0xff] %vm1311, %v7948
      %8023 = vst.msk [vmem:[#allocation3 + $0xb0] sm:$0xff] %vm1311, %v7950
      %8024 = vst.msk [vmem:[#allocation3 + $0xb8] sm:$0xff] %vm1311, %v7952
      %8025 = vst.msk [vmem:[#allocation3 + $0xc0] sm:$0xff] %vm1311, %v7954
      %8026 = vst.msk [vmem:[#allocation3 + $0xc8] sm:$0xff] %vm1311, %v7956
      %8027 = vst.msk [vmem:[#allocation3 + $0xd0] sm:$0xff] %vm1311, %v7958
      %8028 = vst.msk [vmem:[#allocation3 + $0xd8] sm:$0xff] %vm1311, %v7960
      %8029 = vst.msk [vmem:[#allocation3 + $0xe0] sm:$0xff] %vm1311, %v7962
      %8030 = vst.msk [vmem:[#allocation3 + $0xe8] sm:$0xff] %vm1311, %v7964
      %8031 = vst.msk [vmem:[#allocation3 + $0xf0] sm:$0xff] %vm1311, %v7966
      %8032 = vst.msk [vmem:[#allocation3 + $0xf8] sm:$0xff] %vm1311, %v7968
      %v8033 = vld [vmem:[%s1344] sm:$0xff]
      %v8034 = vld [vmem:[%s1344 + $0x8] sm:$0xff]
      %v8035 = vld [vmem:[%s1344 + $0x18] sm:$0xff]
      %v8036 = vld [vmem:[%s1344 + $0x20] sm:$0xff]
      %v8037 = vld [vmem:[%s1344 + $0x30] sm:$0xff]
      %v8038 = vld [vmem:[%s1344 + $0x38] sm:$0xff]
      %v8039 = vld [vmem:[%s1344 + $0x48] sm:$0xff]
      %v8040 = vld [vmem:[%s1344 + $0x50] sm:$0xff]
      %v8041 = vld [vmem:[%s1344 + $0x60] sm:$0xff]
      %v8042 = vld [vmem:[%s1344 + $0x68] sm:$0xff]
      %v8043 = vld [vmem:[%s1344 + $0x78] sm:$0xff]
      %v8044 = vld [vmem:[%s1344 + $0x80] sm:$0xff]
      %v8045 = vld [vmem:[%s1344 + $0x90] sm:$0xff]
      %v8046 = vld [vmem:[%s1344 + $0x98] sm:$0xff]
      %v8047 = vld [vmem:[%s1344 + $0xa8] sm:$0xff]
      %v8048 = vld [vmem:[%s1344 + $0xb0] sm:$0xff]
      %v8049 = vld [vmem:[%s1344 + $0xc0] sm:$0xff]
      %v8050 = vld [vmem:[%s1344 + $0xc8] sm:$0xff]
      %v8051 = vld [vmem:[%s1344 + $0xd8] sm:$0xff]
      %v8052 = vld [vmem:[%s1344 + $0xe0] sm:$0xff]
      %v8053 = vld [vmem:[%s1344 + $0xf0] sm:$0xff]
      %v8054 = vld [vmem:[%s1344 + $0xf8] sm:$0xff]
      %v8055 = vld [vmem:[%s1344 + $0x108] sm:$0xff]
      %v8056 = vld [vmem:[%s1344 + $0x110] sm:$0xff]
      %v8057 = vld [vmem:[%s1344 + $0x120] sm:$0xff]
      %v8058 = vld [vmem:[%s1344 + $0x128] sm:$0xff]
      %v8059 = vld [vmem:[%s1344 + $0x138] sm:$0xff]
      %v8060 = vld [vmem:[%s1344 + $0x140] sm:$0xff]
      %v8061 = vld [vmem:[%s1344 + $0x150] sm:$0xff]
      %v8062 = vld [vmem:[%s1344 + $0x158] sm:$0xff]
      %v8063 = vld [vmem:[%s1344 + $0x168] sm:$0xff]
      %v8064 = vld [vmem:[%s1344 + $0x170] sm:$0xff]
      %8097 = vrot.lane.b32.xlu0 %v8033, 24
      %v8098 = vpop.permute.xlu0 %8097
      %8099 = vrot.lane.b32.xlu0 %v8034, 24
      %v8100 = vpop.permute.xlu0 %8099
      %8101 = vrot.lane.b32.xlu0 %v8035, 24
      %v8102 = vpop.permute.xlu0 %8101
      %8103 = vrot.lane.b32.xlu0 %v8036, 24
      %v8104 = vpop.permute.xlu0 %8103
      %8105 = vrot.lane.b32.xlu0 %v8037, 24
      %v8106 = vpop.permute.xlu0 %8105
      %8107 = vrot.lane.b32.xlu0 %v8038, 24
      %v8108 = vpop.permute.xlu0 %8107
      %8109 = vrot.lane.b32.xlu0 %v8039, 24
      %v8110 = vpop.permute.xlu0 %8109
      %8111 = vrot.lane.b32.xlu0 %v8040, 24
      %v8112 = vpop.permute.xlu0 %8111
      %8113 = vrot.lane.b32.xlu0 %v8041, 24
      %v8114 = vpop.permute.xlu0 %8113
      %8115 = vrot.lane.b32.xlu0 %v8042, 24
      %v8116 = vpop.permute.xlu0 %8115
      %8117 = vrot.lane.b32.xlu0 %v8043, 24
      %v8118 = vpop.permute.xlu0 %8117
      %8119 = vrot.lane.b32.xlu0 %v8044, 24
      %v8120 = vpop.permute.xlu0 %8119
      %8121 = vrot.lane.b32.xlu0 %v8045, 24
      %v8122 = vpop.permute.xlu0 %8121
      %8123 = vrot.lane.b32.xlu0 %v8046, 24
      %v8124 = vpop.permute.xlu0 %8123
      %8125 = vrot.lane.b32.xlu0 %v8047, 24
      %v8126 = vpop.permute.xlu0 %8125
      %8127 = vrot.lane.b32.xlu0 %v8048, 24
      %v8128 = vpop.permute.xlu0 %8127
      %8129 = vrot.lane.b32.xlu0 %v8049, 24
      %v8130 = vpop.permute.xlu0 %8129
      %8131 = vrot.lane.b32.xlu0 %v8050, 24
      %v8132 = vpop.permute.xlu0 %8131
      %8133 = vrot.lane.b32.xlu0 %v8051, 24
      %v8134 = vpop.permute.xlu0 %8133
      %8135 = vrot.lane.b32.xlu0 %v8052, 24
      %v8136 = vpop.permute.xlu0 %8135
      %8137 = vrot.lane.b32.xlu0 %v8053, 24
      %v8138 = vpop.permute.xlu0 %8137
      %8139 = vrot.lane.b32.xlu0 %v8054, 24
      %v8140 = vpop.permute.xlu0 %8139
      %8141 = vrot.lane.b32.xlu0 %v8055, 24
      %v8142 = vpop.permute.xlu0 %8141
      %8143 = vrot.lane.b32.xlu0 %v8056, 24
      %v8144 = vpop.permute.xlu0 %8143
      %8145 = vrot.lane.b32.xlu0 %v8057, 24
      %v8146 = vpop.permute.xlu0 %8145
      %8147 = vrot.lane.b32.xlu0 %v8058, 24
      %v8148 = vpop.permute.xlu0 %8147
      %8149 = vrot.lane.b32.xlu0 %v8059, 24
      %v8150 = vpop.permute.xlu0 %8149
      %8151 = vrot.lane.b32.xlu0 %v8060, 24
      %v8152 = vpop.permute.xlu0 %8151
      %8153 = vrot.lane.b32.xlu0 %v8061, 24
      %v8154 = vpop.permute.xlu0 %8153
      %8155 = vrot.lane.b32.xlu0 %v8062, 24
      %v8156 = vpop.permute.xlu0 %8155
      %8157 = vrot.lane.b32.xlu0 %v8063, 24
      %v8158 = vpop.permute.xlu0 %8157
      %8159 = vrot.lane.b32.xlu0 %v8064, 24
      %v8160 = vpop.permute.xlu0 %8159
      %8193 = vst.msk [vmem:[#allocation3] sm:$0xff] %vm1505, %v8098
      %8194 = vst.msk [vmem:[#allocation3 + $0x8] sm:$0xff] %vm1505, %v8100
      %8195 = vst.msk [vmem:[#allocation3 + $0x10] sm:$0xff] %vm1505, %v8102
      %8196 = vst.msk [vmem:[#allocation3 + $0x18] sm:$0xff] %vm1505, %v8104
      %8197 = vst.msk [vmem:[#allocation3 + $0x20] sm:$0xff] %vm1505, %v8106
      %8198 = vst.msk [vmem:[#allocation3 + $0x28] sm:$0xff] %vm1505, %v8108
      %8199 = vst.msk [vmem:[#allocation3 + $0x30] sm:$0xff] %vm1505, %v8110
      %8200 = vst.msk [vmem:[#allocation3 + $0x38] sm:$0xff] %vm1505, %v8112
      %8201 = vst.msk [vmem:[#allocation3 + $0x40] sm:$0xff] %vm1505, %v8114
      %8202 = vst.msk [vmem:[#allocation3 + $0x48] sm:$0xff] %vm1505, %v8116
      %8203 = vst.msk [vmem:[#allocation3 + $0x50] sm:$0xff] %vm1505, %v8118
      %8204 = vst.msk [vmem:[#allocation3 + $0x58] sm:$0xff] %vm1505, %v8120
      %8205 = vst.msk [vmem:[#allocation3 + $0x60] sm:$0xff] %vm1505, %v8122
      %8206 = vst.msk [vmem:[#allocation3 + $0x68] sm:$0xff] %vm1505, %v8124
      %8207 = vst.msk [vmem:[#allocation3 + $0x70] sm:$0xff] %vm1505, %v8126
      %8208 = vst.msk [vmem:[#allocation3 + $0x78] sm:$0xff] %vm1505, %v8128
      %8209 = vst.msk [vmem:[#allocation3 + $0x80] sm:$0xff] %vm1505, %v8130
      %8210 = vst.msk [vmem:[#allocation3 + $0x88] sm:$0xff] %vm1505, %v8132
      %8211 = vst.msk [vmem:[#allocation3 + $0x90] sm:$0xff] %vm1505, %v8134
      %8212 = vst.msk [vmem:[#allocation3 + $0x98] sm:$0xff] %vm1505, %v8136
      %8213 = vst.msk [vmem:[#allocation3 + $0xa0] sm:$0xff] %vm1505, %v8138
      %8214 = vst.msk [vmem:[#allocation3 + $0xa8] sm:$0xff] %vm1505, %v8140
      %8215 = vst.msk [vmem:[#allocation3 + $0xb0] sm:$0xff] %vm1505, %v8142
      %8216 = vst.msk [vmem:[#allocation3 + $0xb8] sm:$0xff] %vm1505, %v8144
      %8217 = vst.msk [vmem:[#allocation3 + $0xc0] sm:$0xff] %vm1505, %v8146
      %8218 = vst.msk [vmem:[#allocation3 + $0xc8] sm:$0xff] %vm1505, %v8148
      %8219 = vst.msk [vmem:[#allocation3 + $0xd0] sm:$0xff] %vm1505, %v8150
      %8220 = vst.msk [vmem:[#allocation3 + $0xd8] sm:$0xff] %vm1505, %v8152
      %8221 = vst.msk [vmem:[#allocation3 + $0xe0] sm:$0xff] %vm1505, %v8154
      %8222 = vst.msk [vmem:[#allocation3 + $0xe8] sm:$0xff] %vm1505, %v8156
      %8223 = vst.msk [vmem:[#allocation3 + $0xf0] sm:$0xff] %vm1505, %v8158
      %8224 = vst.msk [vmem:[#allocation3 + $0xf8] sm:$0xff] %vm1505, %v8160
      %v8225 = vld [vmem:[%s1344 + $0x1] sm:$0xff]
      %v8226 = vld [vmem:[%s1344 + $0x9] sm:$0xff]
      %v8227 = vld [vmem:[%s1344 + $0x19] sm:$0xff]
      %v8228 = vld [vmem:[%s1344 + $0x21] sm:$0xff]
      %v8229 = vld [vmem:[%s1344 + $0x31] sm:$0xff]
      %v8230 = vld [vmem:[%s1344 + $0x39] sm:$0xff]
      %v8231 = vld [vmem:[%s1344 + $0x49] sm:$0xff]
      %v8232 = vld [vmem:[%s1344 + $0x51] sm:$0xff]
      %v8233 = vld [vmem:[%s1344 + $0x61] sm:$0xff]
      %v8234 = vld [vmem:[%s1344 + $0x69] sm:$0xff]
      %v8235 = vld [vmem:[%s1344 + $0x79] sm:$0xff]
      %v8236 = vld [vmem:[%s1344 + $0x81] sm:$0xff]
      %v8237 = vld [vmem:[%s1344 + $0x91] sm:$0xff]
      %v8238 = vld [vmem:[%s1344 + $0x99] sm:$0xff]
      %v8239 = vld [vmem:[%s1344 + $0xa9] sm:$0xff]
      %v8240 = vld [vmem:[%s1344 + $0xb1] sm:$0xff]
      %v8241 = vld [vmem:[%s1344 + $0xc1] sm:$0xff]
      %v8242 = vld [vmem:[%s1344 + $0xc9] sm:$0xff]
      %v8243 = vld [vmem:[%s1344 + $0xd9] sm:$0xff]
      %v8244 = vld [vmem:[%s1344 + $0xe1] sm:$0xff]
      %v8245 = vld [vmem:[%s1344 + $0xf1] sm:$0xff]
      %v8246 = vld [vmem:[%s1344 + $0xf9] sm:$0xff]
      %v8247 = vld [vmem:[%s1344 + $0x109] sm:$0xff]
      %v8248 = vld [vmem:[%s1344 + $0x111] sm:$0xff]
      %v8249 = vld [vmem:[%s1344 + $0x121] sm:$0xff]
      %v8250 = vld [vmem:[%s1344 + $0x129] sm:$0xff]
      %v8251 = vld [vmem:[%s1344 + $0x139] sm:$0xff]
      %v8252 = vld [vmem:[%s1344 + $0x141] sm:$0xff]
      %v8253 = vld [vmem:[%s1344 + $0x151] sm:$0xff]
      %v8254 = vld [vmem:[%s1344 + $0x159] sm:$0xff]
      %v8255 = vld [vmem:[%s1344 + $0x169] sm:$0xff]
      %v8256 = vld [vmem:[%s1344 + $0x171] sm:$0xff]
      %8289 = vrot.lane.b32.xlu0 %v8225, 28
      %v8290 = vpop.permute.xlu0 %8289
      %8291 = vrot.lane.b32.xlu0 %v8226, 28
      %v8292 = vpop.permute.xlu0 %8291
      %8293 = vrot.lane.b32.xlu0 %v8227, 28
      %v8294 = vpop.permute.xlu0 %8293
      %8295 = vrot.lane.b32.xlu0 %v8228, 28
      %v8296 = vpop.permute.xlu0 %8295
      %8297 = vrot.lane.b32.xlu0 %v8229, 28
      %v8298 = vpop.permute.xlu0 %8297
      %8299 = vrot.lane.b32.xlu0 %v8230, 28
      %v8300 = vpop.permute.xlu0 %8299
      %8301 = vrot.lane.b32.xlu0 %v8231, 28
      %v8302 = vpop.permute.xlu0 %8301
      %8303 = vrot.lane.b32.xlu0 %v8232, 28
      %v8304 = vpop.permute.xlu0 %8303
      %8305 = vrot.lane.b32.xlu0 %v8233, 28
      %v8306 = vpop.permute.xlu0 %8305
      %8307 = vrot.lane.b32.xlu0 %v8234, 28
      %v8308 = vpop.permute.xlu0 %8307
      %8309 = vrot.lane.b32.xlu0 %v8235, 28
      %v8310 = vpop.permute.xlu0 %8309
      %8311 = vrot.lane.b32.xlu0 %v8236, 28
      %v8312 = vpop.permute.xlu0 %8311
      %8313 = vrot.lane.b32.xlu0 %v8237, 28
      %v8314 = vpop.permute.xlu0 %8313
      %8315 = vrot.lane.b32.xlu0 %v8238, 28
      %v8316 = vpop.permute.xlu0 %8315
      %8317 = vrot.lane.b32.xlu0 %v8239, 28
      %v8318 = vpop.permute.xlu0 %8317
      %8319 = vrot.lane.b32.xlu0 %v8240, 28
      %v8320 = vpop.permute.xlu0 %8319
      %8321 = vrot.lane.b32.xlu0 %v8241, 28
      %v8322 = vpop.permute.xlu0 %8321
      %8323 = vrot.lane.b32.xlu0 %v8242, 28
      %v8324 = vpop.permute.xlu0 %8323
      %8325 = vrot.lane.b32.xlu0 %v8243, 28
      %v8326 = vpop.permute.xlu0 %8325
      %8327 = vrot.lane.b32.xlu0 %v8244, 28
      %v8328 = vpop.permute.xlu0 %8327
      %8329 = vrot.lane.b32.xlu0 %v8245, 28
      %v8330 = vpop.permute.xlu0 %8329
      %8331 = vrot.lane.b32.xlu0 %v8246, 28
      %v8332 = vpop.permute.xlu0 %8331
      %8333 = vrot.lane.b32.xlu0 %v8247, 28
      %v8334 = vpop.permute.xlu0 %8333
      %8335 = vrot.lane.b32.xlu0 %v8248, 28
      %v8336 = vpop.permute.xlu0 %8335
      %8337 = vrot.lane.b32.xlu0 %v8249, 28
      %v8338 = vpop.permute.xlu0 %8337
      %8339 = vrot.lane.b32.xlu0 %v8250, 28
      %v8340 = vpop.permute.xlu0 %8339
      %8341 = vrot.lane.b32.xlu0 %v8251, 28
      %v8342 = vpop.permute.xlu0 %8341
      %8343 = vrot.lane.b32.xlu0 %v8252, 28
      %v8344 = vpop.permute.xlu0 %8343
      %8345 = vrot.lane.b32.xlu0 %v8253, 28
      %v8346 = vpop.permute.xlu0 %8345
      %8347 = vrot.lane.b32.xlu0 %v8254, 28
      %v8348 = vpop.permute.xlu0 %8347
      %8349 = vrot.lane.b32.xlu0 %v8255, 28
      %v8350 = vpop.permute.xlu0 %8349
      %8351 = vrot.lane.b32.xlu0 %v8256, 28
      %v8352 = vpop.permute.xlu0 %8351
      %8385 = vst.msk [vmem:[#allocation3] sm:$0xff] %vm1698, %v8290
      %8386 = vst.msk [vmem:[#allocation3 + $0x8] sm:$0xff] %vm1698, %v8292
      %8387 = vst.msk [vmem:[#allocation3 + $0x10] sm:$0xff] %vm1698, %v8294
      %8388 = vst.msk [vmem:[#allocation3 + $0x18] sm:$0xff] %vm1698, %v8296
      %8389 = vst.msk [vmem:[#allocation3 + $0x20] sm:$0xff] %vm1698, %v8298
      %8390 = vst.msk [vmem:[#allocation3 + $0x28] sm:$0xff] %vm1698, %v8300
      %8391 = vst.msk [vmem:[#allocation3 + $0x30] sm:$0xff] %vm1698, %v8302
      %8392 = vst.msk [vmem:[#allocation3 + $0x38] sm:$0xff] %vm1698, %v8304
      %8393 = vst.msk [vmem:[#allocation3 + $0x40] sm:$0xff] %vm1698, %v8306
      %8394 = vst.msk [vmem:[#allocation3 + $0x48] sm:$0xff] %vm1698, %v8308
      %8395 = vst.msk [vmem:[#allocation3 + $0x50] sm:$0xff] %vm1698, %v8310
      %8396 = vst.msk [vmem:[#allocation3 + $0x58] sm:$0xff] %vm1698, %v8312
      %8397 = vst.msk [vmem:[#allocation3 + $0x60] sm:$0xff] %vm1698, %v8314
      %8398 = vst.msk [vmem:[#allocation3 + $0x68] sm:$0xff] %vm1698, %v8316
      %8399 = vst.msk [vmem:[#allocation3 + $0x70] sm:$0xff] %vm1698, %v8318
      %8400 = vst.msk [vmem:[#allocation3 + $0x78] sm:$0xff] %vm1698, %v8320
      %8401 = vst.msk [vmem:[#allocation3 + $0x80] sm:$0xff] %vm1698, %v8322
      %8402 = vst.msk [vmem:[#allocation3 + $0x88] sm:$0xff] %vm1698, %v8324
      %8403 = vst.msk [vmem:[#allocation3 + $0x90] sm:$0xff] %vm1698, %v8326
      %8404 = vst.msk [vmem:[#allocation3 + $0x98] sm:$0xff] %vm1698, %v8328
      %8405 = vst.msk [vmem:[#allocation3 + $0xa0] sm:$0xff] %vm1698, %v8330
      %8406 = vst.msk [vmem:[#allocation3 + $0xa8] sm:$0xff] %vm1698, %v8332
      %8407 = vst.msk [vmem:[#allocation3 + $0xb0] sm:$0xff] %vm1698, %v8334
      %8408 = vst.msk [vmem:[#allocation3 + $0xb8] sm:$0xff] %vm1698, %v8336
      %8409 = vst.msk [vmem:[#allocation3 + $0xc0] sm:$0xff] %vm1698, %v8338
      %8410 = vst.msk [vmem:[#allocation3 + $0xc8] sm:$0xff] %vm1698, %v8340
      %8411 = vst.msk [vmem:[#allocation3 + $0xd0] sm:$0xff] %vm1698, %v8342
      %8412 = vst.msk [vmem:[#allocation3 + $0xd8] sm:$0xff] %vm1698, %v8344
      %8413 = vst.msk [vmem:[#allocation3 + $0xe0] sm:$0xff] %vm1698, %v8346
      %8414 = vst.msk [vmem:[#allocation3 + $0xe8] sm:$0xff] %vm1698, %v8348
      %8415 = vst.msk [vmem:[#allocation3 + $0xf0] sm:$0xff] %vm1698, %v8350
      %8416 = vst.msk [vmem:[#allocation3 + $0xf8] sm:$0xff] %vm1698, %v8352
      %v8417 = vld [vmem:[%s1344 + $0x2] sm:$0xff]
      %v8418 = vld [vmem:[%s1344 + $0xa] sm:$0xff]
      %v8419 = vld [vmem:[%s1344 + $0x1a] sm:$0xff]
      %v8420 = vld [vmem:[%s1344 + $0x22] sm:$0xff]
      %v8421 = vld [vmem:[%s1344 + $0x32] sm:$0xff]
      %v8422 = vld [vmem:[%s1344 + $0x3a] sm:$0xff]
      %v8423 = vld [vmem:[%s1344 + $0x4a] sm:$0xff]
      %v8424 = vld [vmem:[%s1344 + $0x52] sm:$0xff]
      %v8425 = vld [vmem:[%s1344 + $0x62] sm:$0xff]
      %v8426 = vld [vmem:[%s1344 + $0x6a] sm:$0xff]
      %v8427 = vld [vmem:[%s1344 + $0x7a] sm:$0xff]
      %v8428 = vld [vmem:[%s1344 + $0x82] sm:$0xff]
      %v8429 = vld [vmem:[%s1344 + $0x92] sm:$0xff]
      %v8430 = vld [vmem:[%s1344 + $0x9a] sm:$0xff]
      %v8431 = vld [vmem:[%s1344 + $0xaa] sm:$0xff]
      %v8432 = vld [vmem:[%s1344 + $0xb2] sm:$0xff]
      %v8433 = vld [vmem:[%s1344 + $0xc2] sm:$0xff]
      %v8434 = vld [vmem:[%s1344 + $0xca] sm:$0xff]
      %v8435 = vld [vmem:[%s1344 + $0xda] sm:$0xff]
      %v8436 = vld [vmem:[%s1344 + $0xe2] sm:$0xff]
      %v8437 = vld [vmem:[%s1344 + $0xf2] sm:$0xff]
      %v8438 = vld [vmem:[%s1344 + $0xfa] sm:$0xff]
      %v8439 = vld [vmem:[%s1344 + $0x10a] sm:$0xff]
      %v8440 = vld [vmem:[%s1344 + $0x112] sm:$0xff]
      %v8441 = vld [vmem:[%s1344 + $0x122] sm:$0xff]
      %v8442 = vld [vmem:[%s1344 + $0x12a] sm:$0xff]
      %v8443 = vld [vmem:[%s1344 + $0x13a] sm:$0xff]
      %v8444 = vld [vmem:[%s1344 + $0x142] sm:$0xff]
      %v8445 = vld [vmem:[%s1344 + $0x152] sm:$0xff]
      %v8446 = vld [vmem:[%s1344 + $0x15a] sm:$0xff]
      %v8447 = vld [vmem:[%s1344 + $0x16a] sm:$0xff]
      %v8448 = vld [vmem:[%s1344 + $0x172] sm:$0xff]
      %8481 = vrot.lane.b32.xlu0 %v8417, 32
      %v8482 = vpop.permute.xlu0 %8481
      %8483 = vrot.lane.b32.xlu0 %v8418, 32
      %v8484 = vpop.permute.xlu0 %8483
      %8485 = vrot.lane.b32.xlu0 %v8419, 32
      %v8486 = vpop.permute.xlu0 %8485
      %8487 = vrot.lane.b32.xlu0 %v8420, 32
      %v8488 = vpop.permute.xlu0 %8487
      %8489 = vrot.lane.b32.xlu0 %v8421, 32
      %v8490 = vpop.permute.xlu0 %8489
      %8491 = vrot.lane.b32.xlu0 %v8422, 32
      %v8492 = vpop.permute.xlu0 %8491
      %8493 = vrot.lane.b32.xlu0 %v8423, 32
      %v8494 = vpop.permute.xlu0 %8493
      %8495 = vrot.lane.b32.xlu0 %v8424, 32
      %v8496 = vpop.permute.xlu0 %8495
      %8497 = vrot.lane.b32.xlu0 %v8425, 32
      %v8498 = vpop.permute.xlu0 %8497
      %8499 = vrot.lane.b32.xlu0 %v8426, 32
      %v8500 = vpop.permute.xlu0 %8499
      %8501 = vrot.lane.b32.xlu0 %v8427, 32
      %v8502 = vpop.permute.xlu0 %8501
      %8503 = vrot.lane.b32.xlu0 %v8428, 32
      %v8504 = vpop.permute.xlu0 %8503
      %8505 = vrot.lane.b32.xlu0 %v8429, 32
      %v8506 = vpop.permute.xlu0 %8505
      %8507 = vrot.lane.b32.xlu0 %v8430, 32
      %v8508 = vpop.permute.xlu0 %8507
      %8509 = vrot.lane.b32.xlu0 %v8431, 32
      %v8510 = vpop.permute.xlu0 %8509
      %8511 = vrot.lane.b32.xlu0 %v8432, 32
      %v8512 = vpop.permute.xlu0 %8511
      %8513 = vrot.lane.b32.xlu0 %v8433, 32
      %v8514 = vpop.permute.xlu0 %8513
      %8515 = vrot.lane.b32.xlu0 %v8434, 32
      %v8516 = vpop.permute.xlu0 %8515
      %8517 = vrot.lane.b32.xlu0 %v8435, 32
      %v8518 = vpop.permute.xlu0 %8517
      %8519 = vrot.lane.b32.xlu0 %v8436, 32
      %v8520 = vpop.permute.xlu0 %8519
      %8521 = vrot.lane.b32.xlu0 %v8437, 32
      %v8522 = vpop.permute.xlu0 %8521
      %8523 = vrot.lane.b32.xlu0 %v8438, 32
      %v8524 = vpop.permute.xlu0 %8523
      %8525 = vrot.lane.b32.xlu0 %v8439, 32
      %v8526 = vpop.permute.xlu0 %8525
      %8527 = vrot.lane.b32.xlu0 %v8440, 32
      %v8528 = vpop.permute.xlu0 %8527
      %8529 = vrot.lane.b32.xlu0 %v8441, 32
      %v8530 = vpop.permute.xlu0 %8529
      %8531 = vrot.lane.b32.xlu0 %v8442, 32
      %v8532 = vpop.permute.xlu0 %8531
      %8533 = vrot.lane.b32.xlu0 %v8443, 32
      %v8534 = vpop.permute.xlu0 %8533
      %8535 = vrot.lane.b32.xlu0 %v8444, 32
      %v8536 = vpop.permute.xlu0 %8535
      %8537 = vrot.lane.b32.xlu0 %v8445, 32
      %v8538 = vpop.permute.xlu0 %8537
      %8539 = vrot.lane.b32.xlu0 %v8446, 32
      %v8540 = vpop.permute.xlu0 %8539
      %8541 = vrot.lane.b32.xlu0 %v8447, 32
      %v8542 = vpop.permute.xlu0 %8541
      %8543 = vrot.lane.b32.xlu0 %v8448, 32
      %v8544 = vpop.permute.xlu0 %8543
      %8577 = vst.msk [vmem:[#allocation3] sm:$0xff] %vm1891, %v8482
      %8578 = vst.msk [vmem:[#allocation3 + $0x8] sm:$0xff] %vm1891, %v8484
      %8579 = vst.msk [vmem:[#allocation3 + $0x10] sm:$0xff] %vm1891, %v8486
      %8580 = vst.msk [vmem:[#allocation3 + $0x18] sm:$0xff] %vm1891, %v8488
      %8581 = vst.msk [vmem:[#allocation3 + $0x20] sm:$0xff] %vm1891, %v8490
      %8582 = vst.msk [vmem:[#allocation3 + $0x28] sm:$0xff] %vm1891, %v8492
      %8583 = vst.msk [vmem:[#allocation3 + $0x30] sm:$0xff] %vm1891, %v8494
      %8584 = vst.msk [vmem:[#allocation3 + $0x38] sm:$0xff] %vm1891, %v8496
      %8585 = vst.msk [vmem:[#allocation3 + $0x40] sm:$0xff] %vm1891, %v8498
      %8586 = vst.msk [vmem:[#allocation3 + $0x48] sm:$0xff] %vm1891, %v8500
      %8587 = vst.msk [vmem:[#allocation3 + $0x50] sm:$0xff] %vm1891, %v8502
      %8588 = vst.msk [vmem:[#allocation3 + $0x58] sm:$0xff] %vm1891, %v8504
      %8589 = vst.msk [vmem:[#allocation3 + $0x60] sm:$0xff] %vm1891, %v8506
      %8590 = vst.msk [vmem:[#allocation3 + $0x68] sm:$0xff] %vm1891, %v8508
      %8591 = vst.msk [vmem:[#allocation3 + $0x70] sm:$0xff] %vm1891, %v8510
      %8592 = vst.msk [vmem:[#allocation3 + $0x78] sm:$0xff] %vm1891, %v8512
      %8593 = vst.msk [vmem:[#allocation3 + $0x80] sm:$0xff] %vm1891, %v8514
      %8594 = vst.msk [vmem:[#allocation3 + $0x88] sm:$0xff] %vm1891, %v8516
      %8595 = vst.msk [vmem:[#allocation3 + $0x90] sm:$0xff] %vm1891, %v8518
      %8596 = vst.msk [vmem:[#allocation3 + $0x98] sm:$0xff] %vm1891, %v8520
      %8597 = vst.msk [vmem:[#allocation3 + $0xa0] sm:$0xff] %vm1891, %v8522
      %8598 = vst.msk [vmem:[#allocation3 + $0xa8] sm:$0xff] %vm1891, %v8524
      %8599 = vst.msk [vmem:[#allocation3 + $0xb0] sm:$0xff] %vm1891, %v8526
      %8600 = vst.msk [vmem:[#allocation3 + $0xb8] sm:$0xff] %vm1891, %v8528
      %8601 = vst.msk [vmem:[#allocation3 + $0xc0] sm:$0xff] %vm1891, %v8530
      %8602 = vst.msk [vmem:[#allocation3 + $0xc8] sm:$0xff] %vm1891, %v8532
      %8603 = vst.msk [vmem:[#allocation3 + $0xd0] sm:$0xff] %vm1891, %v8534
      %8604 = vst.msk [vmem:[#allocation3 + $0xd8] sm:$0xff] %vm1891, %v8536
      %8605 = vst.msk [vmem:[#allocation3 + $0xe0] sm:$0xff] %vm1891, %v8538
      %8606 = vst.msk [vmem:[#allocation3 + $0xe8] sm:$0xff] %vm1891, %v8540
      %8607 = vst.msk [vmem:[#allocation3 + $0xf0] sm:$0xff] %vm1891, %v8542
      %8608 = vst.msk [vmem:[#allocation3 + $0xf8] sm:$0xff] %vm1891, %v8544
      %v8609 = vld [vmem:[#allocation3] sm:$0xff]
      %v8610 = vld [vmem:[#allocation3 + $0x8] sm:$0xff]
      %v8611 = vld [vmem:[#allocation3 + $0x10] sm:$0xff]
      %v8612 = vld [vmem:[#allocation3 + $0x18] sm:$0xff]
      %v8613 = vld [vmem:[#allocation3 + $0x20] sm:$0xff]
      %v8614 = vld [vmem:[#allocation3 + $0x28] sm:$0xff]
      %v8615 = vld [vmem:[#allocation3 + $0x30] sm:$0xff]
      %v8616 = vld [vmem:[#allocation3 + $0x38] sm:$0xff]
      %v8617 = vld [vmem:[#allocation3 + $0x40] sm:$0xff]
      %v8618 = vld [vmem:[#allocation3 + $0x48] sm:$0xff]
      %v8619 = vld [vmem:[#allocation3 + $0x50] sm:$0xff]
      %v8620 = vld [vmem:[#allocation3 + $0x58] sm:$0xff]
      %v8621 = vld [vmem:[#allocation3 + $0x60] sm:$0xff]
      %v8622 = vld [vmem:[#allocation3 + $0x68] sm:$0xff]
      %v8623 = vld [vmem:[#allocation3 + $0x70] sm:$0xff]
      %v8624 = vld [vmem:[#allocation3 + $0x78] sm:$0xff]
      %v8625 = vld [vmem:[#allocation3 + $0x80] sm:$0xff]
      %v8626 = vld [vmem:[#allocation3 + $0x88] sm:$0xff]
      %v8627 = vld [vmem:[#allocation3 + $0x90] sm:$0xff]
      %v8628 = vld [vmem:[#allocation3 + $0x98] sm:$0xff]
      %v8629 = vld [vmem:[#allocation3 + $0xa0] sm:$0xff]
      %v8630 = vld [vmem:[#allocation3 + $0xa8] sm:$0xff]
      %v8631 = vld [vmem:[#allocation3 + $0xb0] sm:$0xff]
      %v8632 = vld [vmem:[#allocation3 + $0xb8] sm:$0xff]
      %v8633 = vld [vmem:[#allocation3 + $0xc0] sm:$0xff]
      %v8634 = vld [vmem:[#allocation3 + $0xc8] sm:$0xff]
      %v8635 = vld [vmem:[#allocation3 + $0xd0] sm:$0xff]
      %v8636 = vld [vmem:[#allocation3 + $0xd8] sm:$0xff]
      %v8637 = vld [vmem:[#allocation3 + $0xe0] sm:$0xff]
      %v8638 = vld [vmem:[#allocation3 + $0xe8] sm:$0xff]
      %v8639 = vld [vmem:[#allocation3 + $0xf0] sm:$0xff]
      %v8640 = vld [vmem:[#allocation3 + $0xf8] sm:$0xff]
      %v8641 = vld [vmem:[%s2] sm:$0xff]
      %v8642 = vld [vmem:[%s2 + $0x8] sm:$0xff]
      %v8643 = vld [vmem:[%s2 + $0x10] sm:$0xff]
      %v8644 = vld [vmem:[%s2 + $0x18] sm:$0xff]
      %v8645 = vld [vmem:[%s2 + $0x20] sm:$0xf]
      %v8647 = vsel %vm1961, %v8609, 0
      %v8650 = vsel %vm1961, %v8610, 0
      %v8653 = vsel %vm1961, %v8611, 0
      %v8656 = vsel %vm1961, %v8612, 0
      %v8659 = vsel %vm1961, %v8613, 0
      %v8662 = vsel %vm1961, %v8614, 0
      %v8665 = vsel %vm1961, %v8615, 0
      %v8668 = vsel %vm1961, %v8616, 0
      %v8671 = vsel %vm1961, %v8617, 0
      %v8674 = vsel %vm1961, %v8618, 0
      %v8677 = vsel %vm1961, %v8619, 0
      %v8680 = vsel %vm1961, %v8620, 0
      %v8683 = vsel %vm1961, %v8621, 0
      %v8686 = vsel %vm1961, %v8622, 0
      %v8689 = vsel %vm1961, %v8623, 0
      %v8692 = vsel %vm1961, %v8624, 0
      %v8695 = vsel %vm1961, %v8625, 0
      %v8698 = vsel %vm1961, %v8626, 0
      %v8701 = vsel %vm1961, %v8627, 0
      %v8704 = vsel %vm1961, %v8628, 0
      %v8707 = vsel %vm1961, %v8629, 0
      %v8710 = vsel %vm1961, %v8630, 0
      %v8713 = vsel %vm1961, %v8631, 0
      %v8716 = vsel %vm1961, %v8632, 0
      %v8719 = vsel %vm1961, %v8633, 0
      %v8722 = vsel %vm1961, %v8634, 0
      %v8725 = vsel %vm1961, %v8635, 0
      %v8728 = vsel %vm1961, %v8636, 0
      %v8731 = vsel %vm1961, %v8637, 0
      %v8734 = vsel %vm1961, %v8638, 0
      %v8737 = vsel %vm1961, %v8639, 0
      %v8740 = vsel %vm1961, %v8640, 0
      %v8743 = vsel %vm2058, %v8645, 0
      %8745 = vmatpush.msra.mxu0 0.0
      %8746 = vmatpush.msra.mxu0 0.0
      %8747 = vmatpush.msra.mxu0 0.0
      %8748 = vmatpush.msra.mxu0 0.0
      %8749 = vmatpush.msra.mxu0 0.0
      %8750 = vmatpush.msra.mxu0 0.0
      %8751 = vmatpush.msra.mxu0 0.0
      %8752 = vmatpush.msra.mxu0 0.0
      %8753 = vmatpush.msra.mxu0 0.0
      %8754 = vmatpush.msra.mxu0 0.0
      %8755 = vmatpush.msra.mxu0 0.0
      %8756 = vmatpush.msra.mxu0 %v8743
      %8757 = vmatpush.msra.mxu0 %v8644
      %8758 = vmatpush.msra.mxu0 %v8643
      %8759 = vmatpush.msra.mxu0 %v8642
      %8760 = vmatpush.msra.mxu0 %v8641
      %8761 = vmatmul.f32.gmra.mxu0 %v8647
      %v8762 = vpop.f32.mrf.mxu0
      %v8763 = vadd.f32 0.0, %v8762
      %8764 = vmatmul.f32.gmra.mxu0 %v8650
      %v8765 = vpop.f32.mrf.mxu0
      %v8766 = vadd.f32 0.0, %v8765
      %8767 = vmatmul.f32.gmra.mxu0 %v8653
      %v8768 = vpop.f32.mrf.mxu0
      %v8769 = vadd.f32 0.0, %v8768
      %8770 = vmatmul.f32.gmra.mxu0 %v8656
      %v8771 = vpop.f32.mrf.mxu0
      %v8772 = vadd.f32 0.0, %v8771
      %8773 = vmatmul.f32.gmra.mxu0 %v8659
      %v8774 = vpop.f32.mrf.mxu0
      %v8775 = vadd.f32 0.0, %v8774
      %8776 = vmatmul.f32.gmra.mxu0 %v8662
      %v8777 = vpop.f32.mrf.mxu0
      %v8778 = vadd.f32 0.0, %v8777
      %8779 = vmatmul.f32.gmra.mxu0 %v8665
      %v8780 = vpop.f32.mrf.mxu0
      %v8781 = vadd.f32 0.0, %v8780
      %8782 = vmatmul.f32.gmra.mxu0 %v8668
      %v8783 = vpop.f32.mrf.mxu0
      %v8784 = vadd.f32 0.0, %v8783
      %8785 = vmatmul.f32.gmra.mxu0 %v8671
      %v8786 = vpop.f32.mrf.mxu0
      %v8787 = vadd.f32 0.0, %v8786
      %8788 = vmatmul.f32.gmra.mxu0 %v8674
      %v8789 = vpop.f32.mrf.mxu0
      %v8790 = vadd.f32 0.0, %v8789
      %8791 = vmatmul.f32.gmra.mxu0 %v8677
      %v8792 = vpop.f32.mrf.mxu0
      %v8793 = vadd.f32 0.0, %v8792
      %8794 = vmatmul.f32.gmra.mxu0 %v8680
      %v8795 = vpop.f32.mrf.mxu0
      %v8796 = vadd.f32 0.0, %v8795
      %8797 = vmatmul.f32.gmra.mxu0 %v8683
      %v8798 = vpop.f32.mrf.mxu0
      %v8799 = vadd.f32 0.0, %v8798
      %8800 = vmatmul.f32.gmra.mxu0 %v8686
      %v8801 = vpop.f32.mrf.mxu0
      %v8802 = vadd.f32 0.0, %v8801
      %8803 = vmatmul.f32.gmra.mxu0 %v8689
      %v8804 = vpop.f32.mrf.mxu0
      %v8805 = vadd.f32 0.0, %v8804
      %8806 = vmatmul.f32.gmra.mxu0 %v8692
      %v8807 = vpop.f32.mrf.mxu0
      %v8808 = vadd.f32 0.0, %v8807
      %8809 = vmatmul.f32.gmra.mxu0 %v8695
      %v8810 = vpop.f32.mrf.mxu0
      %v8811 = vadd.f32 0.0, %v8810
      %8812 = vmatmul.f32.gmra.mxu0 %v8698
      %v8813 = vpop.f32.mrf.mxu0
      %v8814 = vadd.f32 0.0, %v8813
      %8815 = vmatmul.f32.gmra.mxu0 %v8701
      %v8816 = vpop.f32.mrf.mxu0
      %v8817 = vadd.f32 0.0, %v8816
      %8818 = vmatmul.f32.gmra.mxu0 %v8704
      %v8819 = vpop.f32.mrf.mxu0
      %v8820 = vadd.f32 0.0, %v8819
      %8821 = vmatmul.f32.gmra.mxu0 %v8707
      %v8822 = vpop.f32.mrf.mxu0
      %v8823 = vadd.f32 0.0, %v8822
      %8824 = vmatmul.f32.gmra.mxu0 %v8710
      %v8825 = vpop.f32.mrf.mxu0
      %v8826 = vadd.f32 0.0, %v8825
      %8827 = vmatmul.f32.gmra.mxu0 %v8713
      %v8828 = vpop.f32.mrf.mxu0
      %v8829 = vadd.f32 0.0, %v8828
      %8830 = vmatmul.f32.gmra.mxu0 %v8716
      %v8831 = vpop.f32.mrf.mxu0
      %v8832 = vadd.f32 0.0, %v8831
      %8833 = vmatmul.f32.gmra.mxu0 %v8719
      %v8834 = vpop.f32.mrf.mxu0
      %v8835 = vadd.f32 0.0, %v8834
      %8836 = vmatmul.f32.gmra.mxu0 %v8722
      %v8837 = vpop.f32.mrf.mxu0
      %v8838 = vadd.f32 0.0, %v8837
      %8839 = vmatmul.f32.gmra.mxu0 %v8725
      %v8840 = vpop.f32.mrf.mxu0
      %v8841 = vadd.f32 0.0, %v8840
      %8842 = vmatmul.f32.gmra.mxu0 %v8728
      %v8843 = vpop.f32.mrf.mxu0
      %v8844 = vadd.f32 0.0, %v8843
      %8845 = vmatmul.f32.gmra.mxu0 %v8731
      %v8846 = vpop.f32.mrf.mxu0
      %v8847 = vadd.f32 0.0, %v8846
      %8848 = vmatmul.f32.gmra.mxu0 %v8734
      %v8849 = vpop.f32.mrf.mxu0
      %v8850 = vadd.f32 0.0, %v8849
      %8851 = vmatmul.f32.gmra.mxu0 %v8737
      %v8852 = vpop.f32.mrf.mxu0
      %v8853 = vadd.f32 0.0, %v8852
      %8854 = vmatmul.f32.gmra.mxu0 %v8740
      %v8855 = vpop.f32.mrf.mxu0
      %v8856 = vadd.f32 0.0, %v8855
      %8857 = vdwg.mxu0
      %v8858 = vsel %vm204, %v8763, 0.0
      %v8859 = vsel %vm204, %v8766, 0.0
      %v8860 = vadd.f32 %v8858, %v8859
      %v8861 = vsel %vm204, %v8769, 0.0
      %v8862 = vadd.f32 %v8860, %v8861
      %v8863 = vsel %vm204, %v8772, 0.0
      %v8864 = vadd.f32 %v8862, %v8863
      %v8865 = vsel %vm204, %v8775, 0.0
      %v8866 = vadd.f32 %v8864, %v8865
      %v8867 = vsel %vm204, %v8778, 0.0
      %v8868 = vadd.f32 %v8866, %v8867
      %v8869 = vsel %vm204, %v8781, 0.0
      %v8870 = vadd.f32 %v8868, %v8869
      %v8871 = vsel %vm204, %v8784, 0.0
      %v8872 = vadd.f32 %v8870, %v8871
      %v8873 = vsel %vm204, %v8787, 0.0
      %v8874 = vadd.f32 %v8872, %v8873
      %v8875 = vsel %vm204, %v8790, 0.0
      %v8876 = vadd.f32 %v8874, %v8875
      %v8877 = vsel %vm204, %v8793, 0.0
      %v8878 = vadd.f32 %v8876, %v8877
      %v8879 = vsel %vm204, %v8796, 0.0
      %v8880 = vadd.f32 %v8878, %v8879
      %v8881 = vsel %vm204, %v8799, 0.0
      %v8882 = vadd.f32 %v8880, %v8881
      %v8883 = vsel %vm204, %v8802, 0.0
      %v8884 = vadd.f32 %v8882, %v8883
      %v8885 = vsel %vm204, %v8805, 0.0
      %v8886 = vadd.f32 %v8884, %v8885
      %v8887 = vsel %vm204, %v8808, 0.0
      %v8888 = vadd.f32 %v8886, %v8887
      %v8889 = vsel %vm204, %v8811, 0.0
      %v8890 = vadd.f32 %v8888, %v8889
      %v8891 = vsel %vm204, %v8814, 0.0
      %v8892 = vadd.f32 %v8890, %v8891
      %v8893 = vsel %vm204, %v8817, 0.0
      %v8894 = vadd.f32 %v8892, %v8893
      %v8895 = vsel %vm204, %v8820, 0.0
      %v8896 = vadd.f32 %v8894, %v8895
      %v8897 = vsel %vm204, %v8823, 0.0
      %v8898 = vadd.f32 %v8896, %v8897
      %v8899 = vsel %vm204, %v8826, 0.0
      %v8900 = vadd.f32 %v8898, %v8899
      %v8901 = vsel %vm204, %v8829, 0.0
      %v8902 = vadd.f32 %v8900, %v8901
      %v8903 = vsel %vm204, %v8832, 0.0
      %v8904 = vadd.f32 %v8902, %v8903
      %v8905 = vsel %vm204, %v8835, 0.0
      %v8906 = vadd.f32 %v8904, %v8905
      %v8907 = vsel %vm204, %v8838, 0.0
      %v8908 = vadd.f32 %v8906, %v8907
      %v8909 = vsel %vm204, %v8841, 0.0
      %v8910 = vadd.f32 %v8908, %v8909
      %v8911 = vsel %vm204, %v8844, 0.0
      %v8912 = vadd.f32 %v8910, %v8911
      %v8913 = vsel %vm204, %v8847, 0.0
      %v8914 = vadd.f32 %v8912, %v8913
      %v8915 = vsel %vm204, %v8850, 0.0
      %v8916 = vadd.f32 %v8914, %v8915
      %v8917 = vsel %vm204, %v8853, 0.0
      %v8918 = vadd.f32 %v8916, %v8917
      %v8919 = vsel %vm204, %v8856, 0.0
      %v8920 = vadd.f32 %v8918, %v8919
      %v8921 = vrot.slane %v8920, 4
      %v8922 = vadd.f32 %v8920, %v8921
      %v8923 = vrot.slane %v8922, 2
      %v8924 = vadd.f32 %v8922, %v8923
      %v8925 = vrot.slane %v8924, 1
      %v8926 = vadd.f32 %v8924, %v8925
      %v8927 = vmul.f32 %v8926, %v2250
      %v8928 = vsub.f32 %v8763, %v8927
      %v8929 = vsub.f32 %v8766, %v8927
      %v8930 = vsub.f32 %v8769, %v8927
      %v8931 = vsub.f32 %v8772, %v8927
      %v8932 = vsub.f32 %v8775, %v8927
      %v8933 = vsub.f32 %v8778, %v8927
      %v8934 = vsub.f32 %v8781, %v8927
      %v8935 = vsub.f32 %v8784, %v8927
      %v8936 = vsub.f32 %v8787, %v8927
      %v8937 = vsub.f32 %v8790, %v8927
      %v8938 = vsub.f32 %v8793, %v8927
      %v8939 = vsub.f32 %v8796, %v8927
      %v8940 = vsub.f32 %v8799, %v8927
      %v8941 = vsub.f32 %v8802, %v8927
      %v8942 = vsub.f32 %v8805, %v8927
      %v8943 = vsub.f32 %v8808, %v8927
      %v8944 = vsub.f32 %v8811, %v8927
      %v8945 = vsub.f32 %v8814, %v8927
      %v8946 = vsub.f32 %v8817, %v8927
      %v8947 = vsub.f32 %v8820, %v8927
      %v8948 = vsub.f32 %v8823, %v8927
      %v8949 = vsub.f32 %v8826, %v8927
      %v8950 = vsub.f32 %v8829, %v8927
      %v8951 = vsub.f32 %v8832, %v8927
      %v8952 = vsub.f32 %v8835, %v8927
      %v8953 = vsub.f32 %v8838, %v8927
      %v8954 = vsub.f32 %v8841, %v8927
      %v8955 = vsub.f32 %v8844, %v8927
      %v8956 = vsub.f32 %v8847, %v8927
      %v8957 = vsub.f32 %v8850, %v8927
      %v8958 = vsub.f32 %v8853, %v8927
      %v8959 = vsub.f32 %v8856, %v8927
      %v8960 = vmul.f32 %v8928, %v8928
      %v8961 = vmul.f32 %v8929, %v8929
      %v8962 = vmul.f32 %v8930, %v8930
      %v8963 = vmul.f32 %v8931, %v8931
      %v8964 = vmul.f32 %v8932, %v8932
      %v8965 = vmul.f32 %v8933, %v8933
      %v8966 = vmul.f32 %v8934, %v8934
      %v8967 = vmul.f32 %v8935, %v8935
      %v8968 = vmul.f32 %v8936, %v8936
      %v8969 = vmul.f32 %v8937, %v8937
      %v8970 = vmul.f32 %v8938, %v8938
      %v8971 = vmul.f32 %v8939, %v8939
      %v8972 = vmul.f32 %v8940, %v8940
      %v8973 = vmul.f32 %v8941, %v8941
      %v8974 = vmul.f32 %v8942, %v8942
      %v8975 = vmul.f32 %v8943, %v8943
      %v8976 = vmul.f32 %v8944, %v8944
      %v8977 = vmul.f32 %v8945, %v8945
      %v8978 = vmul.f32 %v8946, %v8946
      %v8979 = vmul.f32 %v8947, %v8947
      %v8980 = vmul.f32 %v8948, %v8948
      %v8981 = vmul.f32 %v8949, %v8949
      %v8982 = vmul.f32 %v8950, %v8950
      %v8983 = vmul.f32 %v8951, %v8951
      %v8984 = vmul.f32 %v8952, %v8952
      %v8985 = vmul.f32 %v8953, %v8953
      %v8986 = vmul.f32 %v8954, %v8954
      %v8987 = vmul.f32 %v8955, %v8955
      %v8988 = vmul.f32 %v8956, %v8956
      %v8989 = vmul.f32 %v8957, %v8957
      %v8990 = vmul.f32 %v8958, %v8958
      %v8991 = vmul.f32 %v8959, %v8959
      %v8992 = vsel %vm204, %v8960, 0.0
      %v8993 = vsel %vm204, %v8961, 0.0
      %v8994 = vadd.f32 %v8992, %v8993
      %v8995 = vsel %vm204, %v8962, 0.0
      %v8996 = vadd.f32 %v8994, %v8995
      %v8997 = vsel %vm204, %v8963, 0.0
      %v8998 = vadd.f32 %v8996, %v8997
      %v8999 = vsel %vm204, %v8964, 0.0
      %v9000 = vadd.f32 %v8998, %v8999
      %v9001 = vsel %vm204, %v8965, 0.0
      %v9002 = vadd.f32 %v9000, %v9001
      %v9003 = vsel %vm204, %v8966, 0.0
      %v9004 = vadd.f32 %v9002, %v9003
      %v9005 = vsel %vm204, %v8967, 0.0
      %v9006 = vadd.f32 %v9004, %v9005
      %v9007 = vsel %vm204, %v8968, 0.0
      %v9008 = vadd.f32 %v9006, %v9007
      %v9009 = vsel %vm204, %v8969, 0.0
      %v9010 = vadd.f32 %v9008, %v9009
      %v9011 = vsel %vm204, %v8970, 0.0
      %v9012 = vadd.f32 %v9010, %v9011
      %v9013 = vsel %vm204, %v8971, 0.0
      %v9014 = vadd.f32 %v9012, %v9013
      %v9015 = vsel %vm204, %v8972, 0.0
      %v9016 = vadd.f32 %v9014, %v9015
      %v9017 = vsel %vm204, %v8973, 0.0
      %v9018 = vadd.f32 %v9016, %v9017
      %v9019 = vsel %vm204, %v8974, 0.0
      %v9020 = vadd.f32 %v9018, %v9019
      %v9021 = vsel %vm204, %v8975, 0.0
      %v9022 = vadd.f32 %v9020, %v9021
      %v9023 = vsel %vm204, %v8976, 0.0
      %v9024 = vadd.f32 %v9022, %v9023
      %v9025 = vsel %vm204, %v8977, 0.0
      %v9026 = vadd.f32 %v9024, %v9025
      %v9027 = vsel %vm204, %v8978, 0.0
      %v9028 = vadd.f32 %v9026, %v9027
      %v9029 = vsel %vm204, %v8979, 0.0
      %v9030 = vadd.f32 %v9028, %v9029
      %v9031 = vsel %vm204, %v8980, 0.0
      %v9032 = vadd.f32 %v9030, %v9031
      %v9033 = vsel %vm204, %v8981, 0.0
      %v9034 = vadd.f32 %v9032, %v9033
      %v9035 = vsel %vm204, %v8982, 0.0
      %v9036 = vadd.f32 %v9034, %v9035
      %v9037 = vsel %vm204, %v8983, 0.0
      %v9038 = vadd.f32 %v9036, %v9037
      %v9039 = vsel %vm204, %v8984, 0.0
      %v9040 = vadd.f32 %v9038, %v9039
      %v9041 = vsel %vm204, %v8985, 0.0
      %v9042 = vadd.f32 %v9040, %v9041
      %v9043 = vsel %vm204, %v8986, 0.0
      %v9044 = vadd.f32 %v9042, %v9043
      %v9045 = vsel %vm204, %v8987, 0.0
      %v9046 = vadd.f32 %v9044, %v9045
      %v9047 = vsel %vm204, %v8988, 0.0
      %v9048 = vadd.f32 %v9046, %v9047
      %v9049 = vsel %vm204, %v8989, 0.0
      %v9050 = vadd.f32 %v9048, %v9049
      %v9051 = vsel %vm204, %v8990, 0.0
      %v9052 = vadd.f32 %v9050, %v9051
      %v9053 = vsel %vm204, %v8991, 0.0
      %v9054 = vadd.f32 %v9052, %v9053
      %v9055 = vrot.slane %v9054, 4
      %v9056 = vadd.f32 %v9054, %v9055
      %v9057 = vrot.slane %v9056, 2
      %v9058 = vadd.f32 %v9056, %v9057
      %v9059 = vrot.slane %v9058, 1
      %v9060 = vadd.f32 %v9058, %v9059
      %v9061 = vmul.f32 %v9060, %v2250
      %v9062 = vadd.f32 %v9061, 1e-05
      %v9063 = vrsqrt.pop %v9062
      %v9064 = vmul.f32 %v9063, %v9062
      %v9065 = vmul.f32 %v9064, %v9063
      %v9066 = vmul.f32 0.5, %v9065
      %v9067 = vsub.f32 1.5, %v9066
      %v9068 = vmul.f32 %v9063, %v9067
      %vm9069 = vweird.f32 %v9062
      %vm9070 = vweird.f32 %v9063
      %vm9071 = vmor %vm9069, %vm9070
      %v9072 = vsel %vm9071, %v9063, %v9068
      %v9073 = vmul.f32 %v8928, %v9072
      %v9074 = vmul.f32 %v8929, %v9072
      %v9075 = vmul.f32 %v8930, %v9072
      %v9076 = vmul.f32 %v8931, %v9072
      %v9077 = vmul.f32 %v8932, %v9072
      %v9078 = vmul.f32 %v8933, %v9072
      %v9079 = vmul.f32 %v8934, %v9072
      %v9080 = vmul.f32 %v8935, %v9072
      %v9081 = vmul.f32 %v8936, %v9072
      %v9082 = vmul.f32 %v8937, %v9072
      %v9083 = vmul.f32 %v8938, %v9072
      %v9084 = vmul.f32 %v8939, %v9072
      %v9085 = vmul.f32 %v8940, %v9072
      %v9086 = vmul.f32 %v8941, %v9072
      %v9087 = vmul.f32 %v8942, %v9072
      %v9088 = vmul.f32 %v8943, %v9072
      %v9089 = vmul.f32 %v8944, %v9072
      %v9090 = vmul.f32 %v8945, %v9072
      %v9091 = vmul.f32 %v8946, %v9072
      %v9092 = vmul.f32 %v8947, %v9072
      %v9093 = vmul.f32 %v8948, %v9072
      %v9094 = vmul.f32 %v8949, %v9072
      %v9095 = vmul.f32 %v8950, %v9072
      %v9096 = vmul.f32 %v8951, %v9072
      %v9097 = vmul.f32 %v8952, %v9072
      %v9098 = vmul.f32 %v8953, %v9072
      %v9099 = vmul.f32 %v8954, %v9072
      %v9100 = vmul.f32 %v8955, %v9072
      %v9101 = vmul.f32 %v8956, %v9072
      %v9102 = vmul.f32 %v8957, %v9072
      %v9103 = vmul.f32 %v8958, %v9072
      %v9104 = vmul.f32 %v8959, %v9072
      %9105 = vst.msk [vmem:[%s170] sm:$0xff] %vm204, %v9073
      %9106 = vst.msk [vmem:[%s170 + $0x8] sm:$0xff] %vm204, %v9074
      %9107 = vst.msk [vmem:[%s170 + $0x10] sm:$0xff] %vm204, %v9075
      %9108 = vst.msk [vmem:[%s170 + $0x18] sm:$0xff] %vm204, %v9076
      %9109 = vst.msk [vmem:[%s170 + $0x20] sm:$0xff] %vm204, %v9077
      %9110 = vst.msk [vmem:[%s170 + $0x28] sm:$0xff] %vm204, %v9078
      %9111 = vst.msk [vmem:[%s170 + $0x30] sm:$0xff] %vm204, %v9079
      %9112 = vst.msk [vmem:[%s170 + $0x38] sm:$0xff] %vm204, %v9080
      %9113 = vst.msk [vmem:[%s170 + $0x40] sm:$0xff] %vm204, %v9081
      %9114 = vst.msk [vmem:[%s170 + $0x48] sm:$0xff] %vm204, %v9082
      %9115 = vst.msk [vmem:[%s170 + $0x50] sm:$0xff] %vm204, %v9083
      %9116 = vst.msk [vmem:[%s170 + $0x58] sm:$0xff] %vm204, %v9084
      %9117 = vst.msk [vmem:[%s170 + $0x60] sm:$0xff] %vm204, %v9085
      %9118 = vst.msk [vmem:[%s170 + $0x68] sm:$0xff] %vm204, %v9086
      %9119 = vst.msk [vmem:[%s170 + $0x70] sm:$0xff] %vm204, %v9087
      %9120 = vst.msk [vmem:[%s170 + $0x78] sm:$0xff] %vm204, %v9088
      %9121 = vst.msk [vmem:[%s170 + $0x80] sm:$0xff] %vm204, %v9089
      %9122 = vst.msk [vmem:[%s170 + $0x88] sm:$0xff] %vm204, %v9090
      %9123 = vst.msk [vmem:[%s170 + $0x90] sm:$0xff] %vm204, %v9091
      %9124 = vst.msk [vmem:[%s170 + $0x98] sm:$0xff] %vm204, %v9092
      %9125 = vst.msk [vmem:[%s170 + $0xa0] sm:$0xff] %vm204, %v9093
      %9126 = vst.msk [vmem:[%s170 + $0xa8] sm:$0xff] %vm204, %v9094
      %9127 = vst.msk [vmem:[%s170 + $0xb0] sm:$0xff] %vm204, %v9095
      %9128 = vst.msk [vmem:[%s170 + $0xb8] sm:$0xff] %vm204, %v9096
      %9129 = vst.msk [vmem:[%s170 + $0xc0] sm:$0xff] %vm204, %v9097
      %9130 = vst.msk [vmem:[%s170 + $0xc8] sm:$0xff] %vm204, %v9098
      %9131 = vst.msk [vmem:[%s170 + $0xd0] sm:$0xff] %vm204, %v9099
      %9132 = vst.msk [vmem:[%s170 + $0xd8] sm:$0xff] %vm204, %v9100
      %9133 = vst.msk [vmem:[%s170 + $0xe0] sm:$0xff] %vm204, %v9101
      %9134 = vst.msk [vmem:[%s170 + $0xe8] sm:$0xff] %vm204, %v9102
      %9135 = vst.msk [vmem:[%s170 + $0xf0] sm:$0xff] %vm204, %v9103
      %9136 = vst.msk [vmem:[%s170 + $0xf8] sm:$0xff] %vm204, %v9104
      %p9137 = scmp.lt.s32.totalorder %s14, 1
      %s9138 = scalar_select %p9137, %s14, 1
      %s9139 = smul.addr %s9138, 32
      %s9140 = smul.addr %s9139, 8
      %s9141 = scalar_lea.vmem %s3, %s9140
      // Predicated region
      $region33: #{resblock_forward.1} parent=31 // pred_check
        %p9142 = pneg %p100
      $region34: #{resblock_forward.1} parent=31 // pred_check_branch
        %9144 = sbr.rel (%p9142) target = $region36
      $region35: #{resblock_forward.1} parent=31 // pred_region
        _
      $region36: #{resblock_forward.1} parent=31 // pred_fallthru
        _
    $region32: #{resblock_forward.1} parent=5 // pred_fallthru
      _
    %p9145 = scmp.le.s32.totalorder 2, %s9
    // Predicated region
    $region37: #{resblock_forward.1} parent=5 // pred_check
      %p9146 = pneg %p9145
    $region38: #{resblock_forward.1} parent=5 // pred_check_branch
      %9148 = sbr.rel (%p9146) target = $region40
    $region39: #{resblock_forward.1} parent=5 // pred_region
      %s9149 = ssub.s32 %s9, 2
      // Predicated region
      $region41: #{resblock_forward.1} parent=39 // pred_check
        %p9150 = pneg %p106
      $region42: #{resblock_forward.1} parent=39 // pred_check_branch
        %9152 = sbr.rel (%p9150) target = $region44
      $region43: #{resblock_forward.1} parent=39 // pred_region
        %p9153 = scmp.lt.s32.totalorder %s15, 1
        %s9154 = scalar_select %p9153, %s15, 1
        %s9155 = smul.addr %s9154, 32
        %s9156 = smul.addr %s9155, 8
        %s9157 = scalar_lea.vmem %s3, %s9156
      $region44: #{resblock_forward.1} parent=39 // pred_fallthru
        _
    $region40: #{resblock_forward.1} parent=5 // pred_fallthru
      _
  $region6: #{resblock_forward.1} parent=0 // loop_footer
    %s13 = sadd.s32 1, %s9
  $region7: #{resblock_forward.1} parent=0 // loop_footer_branch
    %8 = sbr.rel target = $region3
  $region8: #{resblock_forward.1} parent=0 // loop_exit
    _

</llo_original>
